<compile_context>
chip_gen: v6e
topology: v6e:2x2x1
jax: 0.10.0
libtpu: 0.0.40
codegen_flags: <defaults>
</compile_context>

<pallas_src>
import functools

import jax
import jax.numpy as jnp
from jax.experimental import pallas as pl
from jax.experimental.pallas import tpu as pltpu


def _round_up(x, m):
    return ((x + m - 1) // m) * m


# --------------------- BasicModel(model_id=7) static schedule --------------------- #

INPUT_DIM = 98
OUT_DIM = 2
LANE = 128
BATCH_TILE = 128      # MXU row tile; also batch padding granularity


def basic_model7_layer_dims(input_dim=INPUT_DIM, out_dim=OUT_DIM):
    """[(in, out), ...] for every Linear in BasicModel(model_id=7), in order."""
    dims = [(input_dim, 1024)]                      # self.in_ = Dense(input_dim, 1024)
    size = 1024
    # layer1: n=3, d=2 ; layer2: n=10, d=1 ; layer3: n=3, d=1/2
    for n_layers, d_factor in [(3, 2.0), (10, 1.0), (3, 0.5)]:
        for i in range(n_layers):
            nin = int(size // d_factor ** i)
            nout = int(size // d_factor ** (i + 1))
            dims.append((nin, nout))
        size = int(size // d_factor ** n_layers)
    dims.append((size, out_dim))                    # self.out = nn.Linear(size, out_dim)
    return dims


_LAYER_DIMS = basic_model7_layer_dims()
_NUM_LAYERS = len(_LAYER_DIMS)                                    # 18
_PADDED_DIMS = [(_round_up(i, LANE), _round_up(o, LANE)) for i, o in _LAYER_DIMS]
IN_PAD = _PADDED_DIMS[0][0]                                       # 128
OUT_PAD = _PADDED_DIMS[-1][1]                                     # 128

# Weight groups: layers with identical padded shapes are stacked into one slab.
# Group 4 is the ten identical (128,128) middle layers -> one (10,128,128) slab.
_GROUPS = [[0], [1], [2], [3], list(range(4, 14)), [14], [15], [16], [17]]
_NUM_GROUPS = len(_GROUPS)


def _group_shape(g):
    layers = _GROUPS[g]
    shp = _PADDED_DIMS[layers[0]]
    for l in layers:
        assert _PADDED_DIMS[l] == shp
    return (len(layers),) + shp if len(layers) > 1 else shp


_GROUP_SHAPES = [_group_shape(g) for g in range(_NUM_GROUPS)]

# Bias layout: every layer's padded bias concatenated along the lane axis.
_BIAS_OFFSETS = []
_off = 0
for _, _o_p in _PADDED_DIMS:
    _BIAS_OFFSETS.append(_off)
    _off += _o_p
BIAS_TOTAL = _off                                                 # 5120

# Per-layer schedule: (group, sub-index-in-group-or-None, bias offset, width, relu)
_SCHEDULE = []
for _g, _layers in enumerate(_GROUPS):
    for _s, _l in enumerate(_layers):
        _sub = _s if len(_layers) > 1 else None
        _relu = _l < _NUM_LAYERS - 1               # final nn.Linear has no activation
        _SCHEDULE.append((_g, _sub, _BIAS_OFFSETS[_l], _PADDED_DIMS[_l][1], _relu))
_SCHEDULE = tuple(_SCHEDULE)


# ------------------------------ Fused Pallas kernel ------------------------------- #

def _fused_mlp_kernel(*refs):
    """refs = (model_idx, x, w_hbm[0..G), bias, out, w_buf[0..G), dma_sems).

    Whole 18-layer MLP in one kernel body.  Weight slabs are manually streamed
    HBM->VMEM (issue all up front, wait just-in-time) so the weight DMA overlaps
    the earlier layers' matmuls; slabs stay resident across batch-tile steps.
    """
    g_n = _NUM_GROUPS
    midx_ref = refs[0]
    x_ref = refs[1]
    w_hbm = refs[2:2 + g_n]
    b_ref = refs[2 + g_n]
    o_ref = refs[3 + g_n]
    w_buf = refs[4 + g_n:4 + 2 * g_n]
    sems = refs[4 + 2 * g_n]

    m = midx_ref[0]                                 # selected (e1, e2) model
    is_first = pl.program_id(0) == 0

    def dma(g):
        return pltpu.make_async_copy(w_hbm[g].at[m], w_buf[g], sems.at[g])

    # Issue every weight-slab DMA up front (first batch tile only; the slabs are
    # then resident in VMEM scratch for all later grid steps).
    @pl.when(is_first)
    def _start_all():
        for g in range(g_n):
            dma(g).start()

    y = x_ref[...].astype(jnp.float32)              # (BATCH_TILE, IN_PAD)
    waited = set()
    for (g, sub, b_off, n_out, relu) in _SCHEDULE:  # unrolled static layer chain
        if g not in waited:                         # wait just-in-time so later
            waited.add(g)                           # slabs stream under compute

            @pl.when(is_first)
            def _wait(g=g):
                dma(g).wait()

        w = w_buf[g][...] if sub is None else w_buf[g][sub]       # bf16 (K, N)
        y = jnp.dot(y.astype(jnp.bfloat16), w,
                    preferred_element_type=jnp.float32)
        y = y + b_ref[0, :, b_off:b_off + n_out]                  # f32 bias (1, N)
        if relu:
            y = jnp.maximum(y, 0.0)
    o_ref[...] = y.astype(o_ref.dtype)


def fused_mlp(model_idx, x_pad, weights, bias):
    """One pallas_call for the whole padded MLP, grid over batch tiles."""
    batch_pad = x_pad.shape[0]
    grid = (batch_pad // BATCH_TILE,)
    in_specs = (
        [pl.BlockSpec((BATCH_TILE, IN_PAD), lambda i, midx: (i, 0))]
        + [pl.BlockSpec(memory_space=pl.ANY)] * _NUM_GROUPS       # HBM weight slabs
        + [pl.BlockSpec((1, 1, BIAS_TOTAL), lambda i, midx: (midx[0], 0, 0))]
    )
    out_specs = pl.BlockSpec((BATCH_TILE, OUT_PAD), lambda i, midx: (i, 0))
    scratch_shapes = (
        [pltpu.VMEM(shape, jnp.bfloat16) for shape in _GROUP_SHAPES]
        + [pltpu.SemaphoreType.DMA((_NUM_GROUPS,))]
    )
    return pl.pallas_call(
        _fused_mlp_kernel,
        out_shape=jax.ShapeDtypeStruct((batch_pad, OUT_PAD), jnp.float32),
        grid_spec=pltpu.PrefetchScalarGridSpec(
            num_scalar_prefetch=1,
            grid=grid,
            in_specs=in_specs,
            out_specs=out_specs,
            scratch_shapes=scratch_shapes,
        ),
        # Batch axis must be sequential on one core: weight DMAs are issued only
        # at program_id(0) == 0 and the slabs are reused from scratch afterwards.
        compiler_params=pltpu.CompilerParams(
            dimension_semantics=("arbitrary",)),
    )(model_idx, x_pad, *weights, bias)


# ------------------------------ Parameter handling -------------------------------- #

def init_basic_model7(key, input_dim=INPUT_DIM, out_dim=OUT_DIM):
    """Deterministic PyTorch-style U(+-1/sqrt(fan_in)) init.

    Weights stored [in_features, out_features] (transposed from nn.Linear).
    """
    dims = basic_model7_layer_dims(input_dim, out_dim)
    keys = jax.random.split(key, 2 * len(dims))
    params = []
    for idx, (nin, nout) in enumerate(dims):
        bound = 1.0 / (nin ** 0.5)
        w = jax.random.uniform(keys[2 * idx], (nin, nout), jnp.float32, -bound, bound)
        b = jax.random.uniform(keys[2 * idx + 1], (nout,), jnp.float32, -bound, bound)
        params.append((w, b))
    return params


def _pad_weight(w, shape):
    nin, nout = w.shape
    return jnp.zeros(shape, jnp.float32).at[:nin, :nout].set(w)


def pack_model(params):
    """Pad one model's params to lane multiples and pack into the 9 bf16 weight
    slabs + one concatenated (1, BIAS_TOTAL) f32 bias row (zero padding -> exact)."""
    slabs = []
    for g, layers in enumerate(_GROUPS):
        shape = _GROUP_SHAPES[g]
        if len(layers) == 1:
            slab = _pad_weight(params[layers[0]][0], shape)
        else:
            slab = jnp.stack([_pad_weight(params[l][0], shape[1:]) for l in layers])
        slabs.append(slab.astype(jnp.bfloat16))
    bias = jnp.zeros((1, BIAS_TOTAL), jnp.float32)
    for l, (_, b) in enumerate(params):
        bias = bias.at[0, _BIAS_OFFSETS[l]:_BIAS_OFFSETS[l] + b.shape[0]].set(b)
    return slabs, bias


def stack_models(all_params):
    """Stack every (e1,e2) model along a leading model axis (HBM resident; the
    kernel only DMAs the model selected by the scalar-prefetch index)."""
    packed = [pack_model(p) for p in all_params]
    weights = tuple(jnp.stack([pk[0][g] for pk in packed])
                    for g in range(_NUM_GROUPS))
    bias = jnp.stack([pk[1] for pk in packed])            # (n_models, 1, BIAS_TOTAL)
    return weights, bias


# -------------------------------- jitted forward ---------------------------------- #

@functools.partial(jax.jit, static_argnums=(4,))
def _forward_jit(model_idx, x, weights, bias, out_dim):
    batch, in_dim = x.shape
    batch_pad = _round_up(max(batch, BATCH_TILE), BATCH_TILE)
    x_pad = jnp.zeros((batch_pad, IN_PAD), jnp.float32)
    x_pad = x_pad.at[:batch, :in_dim].set(x.astype(jnp.float32))
    y_pad = fused_mlp(model_idx, x_pad, weights, bias)
    return y_pad[:batch, :out_dim]


def reference_forward(params, x):
    """Pure-JAX reference using identical bf16-weight / f32-accumulate math."""
    y = x.astype(jnp.float32)
    num = len(params)
    for idx, (w, b) in enumerate(params):
        y = jnp.dot(y.astype(jnp.bfloat16), w.astype(jnp.bfloat16),
                    preferred_element_type=jnp.float32) + b
        if idx < num - 1:
            y = jnp.maximum(y, 0.0)
    return y


# ---------------------------------- E1E2Model ------------------------------------- #

class E1E2ModelPallas:
    """E1E2Model with model_id=1 (-> BasicModel model_id=7).

    bakeModel: one independent BasicModel per (e1_class, e2_class) pair.  All
    pairs' weights are stacked along a leading model axis; forward dispatches
    with a scalar model index so a single compiled executable serves every pair.
    """

    def __init__(self, e1_classes, e2_classes, model_id=1,
                 input_dim=INPUT_DIM, out_dim=OUT_DIM, seed=0):
        assert model_id == 1, "only model_id=1 (BasicModel id 7) implemented here"
        assert input_dim == INPUT_DIM and out_dim == OUT_DIM
        self.e1_classes = list(e1_classes)
        self.e2_classes = list(e2_classes)
        self.out_dim = out_dim
        self.model_index = {}      # (e1, e2) -> model slot
        self.params = {}           # f32 reference parameters per (e1, e2)
        all_params = []
        base_key = jax.random.PRNGKey(seed)
        idx = 0
        for e1 in self.e1_classes:
            self.params[e1] = {}
            for e2 in self.e2_classes:
                p = init_basic_model7(jax.random.fold_in(base_key, idx),
                                      input_dim, out_dim)
                self.params[e1][e2] = p
                all_params.append(p)
                self.model_index[(e1, e2)] = idx
                idx += 1
        self.weights, self.bias = stack_models(all_params)

    def forward(self, x, e1_mat, e2_mat):
        midx = jnp.array([self.model_index[(e1_mat, e2_mat)]], dtype=jnp.int32)
        return _forward_jit(midx, x, self.weights, self.bias, self.out_dim)


# ------------------------------------- main ---------------------------------------- #

if __name__ == "__main__":
    key = jax.random.PRNGKey(0)
    batch = 8

    model = E1E2ModelPallas(
        e1_classes=["e1_a", "e1_b"],
        e2_classes=["e2_x", "e2_y"],
        model_id=1,
        input_dim=INPUT_DIM,
        out_dim=OUT_DIM,
        seed=0,
    )

    x = jax.random.normal(key, (batch, INPUT_DIM), dtype=jnp.float32)

    y = jax.block_until_ready(model.forward(x, "e1_a", "e2_y"))
    assert y.shape == (batch, OUT_DIM), y.shape
    assert bool(jnp.all(jnp.isfinite(y)))

    # Correctness check vs. a pure-JAX reference using identical bf16/f32 math.
    y_ref = reference_forward(model.params["e1_a"]["e2_y"], x)
    assert jnp.allclose(y, y_ref, rtol=1e-2, atol=1e-2), (
        float(jnp.max(jnp.abs(y - y_ref))))

    # A second (e1, e2) pair reuses the SAME compiled executable; only the scalar
    # model index changes.
    y2 = jax.block_until_ready(model.forward(x, "e1_b", "e2_x"))
    y2_ref = reference_forward(model.params["e1_b"]["e2_x"], x)
    assert y2.shape == (batch, OUT_DIM)
    assert bool(jnp.all(jnp.isfinite(y2)))
    assert jnp.allclose(y2, y2_ref, rtol=1e-2, atol=1e-2), (
        float(jnp.max(jnp.abs(y2 - y2_ref))))

    print("KERNEL_OK")
</pallas_src>

<mosaic_0001>
module attributes {stable_mosaic.version = 11 : i64} {
  func.func @_fused_mlp_kernel(%arg0: i32, %arg1: memref<1xi32, #tpu.memory_space<smem>>, %arg2: memref<128x128xf32, #tpu.memory_space<vmem>>, %arg3: memref<4x128x1024xbf16, #tpu.memory_space<any>>, %arg4: memref<4x1024x512xbf16, #tpu.memory_space<any>>, %arg5: memref<4x512x256xbf16, #tpu.memory_space<any>>, %arg6: memref<4x256x128xbf16, #tpu.memory_space<any>>, %arg7: memref<4x10x128x128xbf16, #tpu.memory_space<any>>, %arg8: memref<4x128x256xbf16, #tpu.memory_space<any>>, %arg9: memref<4x256x512xbf16, #tpu.memory_space<any>>, %arg10: memref<4x512x1024xbf16, #tpu.memory_space<any>>, %arg11: memref<4x1024x128xbf16, #tpu.memory_space<any>>, %arg12: memref<1x1x5120xf32, #tpu.memory_space<vmem>>, %arg13: memref<128x128xf32, #tpu.memory_space<vmem>>, %arg14: memref<128x1024xbf16, #tpu.memory_space<vmem>>, %arg15: memref<1024x512xbf16, #tpu.memory_space<vmem>>, %arg16: memref<512x256xbf16, #tpu.memory_space<vmem>>, %arg17: memref<256x128xbf16, #tpu.memory_space<vmem>>, %arg18: memref<10x128x128xbf16, #tpu.memory_space<vmem>>, %arg19: memref<128x256xbf16, #tpu.memory_space<vmem>>, %arg20: memref<256x512xbf16, #tpu.memory_space<vmem>>, %arg21: memref<512x1024xbf16, #tpu.memory_space<vmem>>, %arg22: memref<1024x128xbf16, #tpu.memory_space<vmem>>, %arg23: memref<9x!tpu.dma_semaphore, #tpu.memory_space<semaphore_mem>>) attributes {dimension_semantics = [#tpu.dimension_semantics<arbitrary>], iteration_bounds = array<i64: 1>, scalar_prefetch = 1 : i64, scratch_operands = 10 : i64, tpu.core_type = #tpu.core_type<tc>, window_params = [{transform_indices = @transform_0, window_bounds = array<i64: 128, 128>}, {}, {}, {}, {}, {}, {}, {}, {}, {}, {transform_indices = @transform_10, window_bounds = array<i64: 1, 1, 5120>}, {transform_indices = @transform_11, window_bounds = array<i64: 128, 128>}]} {
    %c0 = arith.constant 0 : index
    %0 = memref.load %arg1[%c0] : memref<1xi32, #tpu.memory_space<smem>>
    %c0_i32 = arith.constant 0 : i32
    %1 = arith.cmpi eq, %arg0, %c0_i32 : i32
    %2 = arith.extui %1 : i1 to i32
    %c0_i32_0 = arith.constant 0 : i32
    %3 = arith.cmpi ne, %2, %c0_i32_0 : i32
    scf.if %3 {
      %c0_i32_122 = arith.constant 0 : i32
      %c0_i32_123 = arith.constant 0 : i32
      %c0_i32_124 = arith.constant 0 : i32
      %194 = tpu.memref_slice %arg3[%0, %c0_i32_123, %c0_i32_124] : memref<4x128x1024xbf16, #tpu.memory_space<any>> -> memref<1x128x1024xbf16, #tpu.memory_space<any>>
      %195 = tpu.memref_squeeze %194 : memref<1x128x1024xbf16, #tpu.memory_space<any>> -> memref<128x1024xbf16, #tpu.memory_space<any>>
      %196 = tpu.memref_slice %arg23[%c0_i32_122] : memref<9x!tpu.dma_semaphore, #tpu.memory_space<semaphore_mem>> -> memref<1x!tpu.dma_semaphore, #tpu.memory_space<semaphore_mem>>
      %197 = tpu.memref_squeeze %196 : memref<1x!tpu.dma_semaphore, #tpu.memory_space<semaphore_mem>> -> memref<!tpu.dma_semaphore, #tpu.memory_space<semaphore_mem>>
      tpu.enqueue_dma source(%195 : memref<128x1024xbf16, #tpu.memory_space<any>>) target(%arg14 : memref<128x1024xbf16, #tpu.memory_space<vmem>>) target_semaphore(%197 : memref<!tpu.dma_semaphore, #tpu.memory_space<semaphore_mem>>)
      %c1_i32 = arith.constant 1 : i32
      %c0_i32_125 = arith.constant 0 : i32
      %c0_i32_126 = arith.constant 0 : i32
      %198 = tpu.memref_slice %arg4[%0, %c0_i32_125, %c0_i32_126] : memref<4x1024x512xbf16, #tpu.memory_space<any>> -> memref<1x1024x512xbf16, #tpu.memory_space<any>>
      %199 = tpu.memref_squeeze %198 : memref<1x1024x512xbf16, #tpu.memory_space<any>> -> memref<1024x512xbf16, #tpu.memory_space<any>>
      %200 = tpu.memref_slice %arg23[%c1_i32] : memref<9x!tpu.dma_semaphore, #tpu.memory_space<semaphore_mem>> -> memref<1x!tpu.dma_semaphore, #tpu.memory_space<semaphore_mem>>
      %201 = tpu.memref_squeeze %200 : memref<1x!tpu.dma_semaphore, #tpu.memory_space<semaphore_mem>> -> memref<!tpu.dma_semaphore, #tpu.memory_space<semaphore_mem>>
      tpu.enqueue_dma source(%199 : memref<1024x512xbf16, #tpu.memory_space<any>>) target(%arg15 : memref<1024x512xbf16, #tpu.memory_space<vmem>>) target_semaphore(%201 : memref<!tpu.dma_semaphore, #tpu.memory_space<semaphore_mem>>)
      %c2_i32 = arith.constant 2 : i32
      %c0_i32_127 = arith.constant 0 : i32
      %c0_i32_128 = arith.constant 0 : i32
      %202 = tpu.memref_slice %arg5[%0, %c0_i32_127, %c0_i32_128] : memref<4x512x256xbf16, #tpu.memory_space<any>> -> memref<1x512x256xbf16, #tpu.memory_space<any>>
      %203 = tpu.memref_squeeze %202 : memref<1x512x256xbf16, #tpu.memory_space<any>> -> memref<512x256xbf16, #tpu.memory_space<any>>
      %204 = tpu.memref_slice %arg23[%c2_i32] : memref<9x!tpu.dma_semaphore, #tpu.memory_space<semaphore_mem>> -> memref<1x!tpu.dma_semaphore, #tpu.memory_space<semaphore_mem>>
      %205 = tpu.memref_squeeze %204 : memref<1x!tpu.dma_semaphore, #tpu.memory_space<semaphore_mem>> -> memref<!tpu.dma_semaphore, #tpu.memory_space<semaphore_mem>>
      tpu.enqueue_dma source(%203 : memref<512x256xbf16, #tpu.memory_space<any>>) target(%arg16 : memref<512x256xbf16, #tpu.memory_space<vmem>>) target_semaphore(%205 : memref<!tpu.dma_semaphore, #tpu.memory_space<semaphore_mem>>)
      %c3_i32 = arith.constant 3 : i32
      %c0_i32_129 = arith.constant 0 : i32
      %c0_i32_130 = arith.constant 0 : i32
      %206 = tpu.memref_slice %arg6[%0, %c0_i32_129, %c0_i32_130] : memref<4x256x128xbf16, #tpu.memory_space<any>> -> memref<1x256x128xbf16, #tpu.memory_space<any>>
      %207 = tpu.memref_squeeze %206 : memref<1x256x128xbf16, #tpu.memory_space<any>> -> memref<256x128xbf16, #tpu.memory_space<any>>
      %208 = tpu.memref_slice %arg23[%c3_i32] : memref<9x!tpu.dma_semaphore, #tpu.memory_space<semaphore_mem>> -> memref<1x!tpu.dma_semaphore, #tpu.memory_space<semaphore_mem>>
      %209 = tpu.memref_squeeze %208 : memref<1x!tpu.dma_semaphore, #tpu.memory_space<semaphore_mem>> -> memref<!tpu.dma_semaphore, #tpu.memory_space<semaphore_mem>>
      tpu.enqueue_dma source(%207 : memref<256x128xbf16, #tpu.memory_space<any>>) target(%arg17 : memref<256x128xbf16, #tpu.memory_space<vmem>>) target_semaphore(%209 : memref<!tpu.dma_semaphore, #tpu.memory_space<semaphore_mem>>)
      %c4_i32 = arith.constant 4 : i32
      %c0_i32_131 = arith.constant 0 : i32
      %c0_i32_132 = arith.constant 0 : i32
      %c0_i32_133 = arith.constant 0 : i32
      %210 = tpu.memref_slice %arg7[%0, %c0_i32_131, %c0_i32_132, %c0_i32_133] : memref<4x10x128x128xbf16, #tpu.memory_space<any>> -> memref<1x10x128x128xbf16, #tpu.memory_space<any>>
      %211 = tpu.memref_squeeze %210 : memref<1x10x128x128xbf16, #tpu.memory_space<any>> -> memref<10x128x128xbf16, #tpu.memory_space<any>>
      %212 = tpu.memref_slice %arg23[%c4_i32] : memref<9x!tpu.dma_semaphore, #tpu.memory_space<semaphore_mem>> -> memref<1x!tpu.dma_semaphore, #tpu.memory_space<semaphore_mem>>
      %213 = tpu.memref_squeeze %212 : memref<1x!tpu.dma_semaphore, #tpu.memory_space<semaphore_mem>> -> memref<!tpu.dma_semaphore, #tpu.memory_space<semaphore_mem>>
      tpu.enqueue_dma source(%211 : memref<10x128x128xbf16, #tpu.memory_space<any>>) target(%arg18 : memref<10x128x128xbf16, #tpu.memory_space<vmem>>) target_semaphore(%213 : memref<!tpu.dma_semaphore, #tpu.memory_space<semaphore_mem>>)
      %c5_i32 = arith.constant 5 : i32
      %c0_i32_134 = arith.constant 0 : i32
      %c0_i32_135 = arith.constant 0 : i32
      %214 = tpu.memref_slice %arg8[%0, %c0_i32_134, %c0_i32_135] : memref<4x128x256xbf16, #tpu.memory_space<any>> -> memref<1x128x256xbf16, #tpu.memory_space<any>>
      %215 = tpu.memref_squeeze %214 : memref<1x128x256xbf16, #tpu.memory_space<any>> -> memref<128x256xbf16, #tpu.memory_space<any>>
      %216 = tpu.memref_slice %arg23[%c5_i32] : memref<9x!tpu.dma_semaphore, #tpu.memory_space<semaphore_mem>> -> memref<1x!tpu.dma_semaphore, #tpu.memory_space<semaphore_mem>>
      %217 = tpu.memref_squeeze %216 : memref<1x!tpu.dma_semaphore, #tpu.memory_space<semaphore_mem>> -> memref<!tpu.dma_semaphore, #tpu.memory_space<semaphore_mem>>
      tpu.enqueue_dma source(%215 : memref<128x256xbf16, #tpu.memory_space<any>>) target(%arg19 : memref<128x256xbf16, #tpu.memory_space<vmem>>) target_semaphore(%217 : memref<!tpu.dma_semaphore, #tpu.memory_space<semaphore_mem>>)
      %c6_i32 = arith.constant 6 : i32
      %c0_i32_136 = arith.constant 0 : i32
      %c0_i32_137 = arith.constant 0 : i32
      %218 = tpu.memref_slice %arg9[%0, %c0_i32_136, %c0_i32_137] : memref<4x256x512xbf16, #tpu.memory_space<any>> -> memref<1x256x512xbf16, #tpu.memory_space<any>>
      %219 = tpu.memref_squeeze %218 : memref<1x256x512xbf16, #tpu.memory_space<any>> -> memref<256x512xbf16, #tpu.memory_space<any>>
      %220 = tpu.memref_slice %arg23[%c6_i32] : memref<9x!tpu.dma_semaphore, #tpu.memory_space<semaphore_mem>> -> memref<1x!tpu.dma_semaphore, #tpu.memory_space<semaphore_mem>>
      %221 = tpu.memref_squeeze %220 : memref<1x!tpu.dma_semaphore, #tpu.memory_space<semaphore_mem>> -> memref<!tpu.dma_semaphore, #tpu.memory_space<semaphore_mem>>
      tpu.enqueue_dma source(%219 : memref<256x512xbf16, #tpu.memory_space<any>>) target(%arg20 : memref<256x512xbf16, #tpu.memory_space<vmem>>) target_semaphore(%221 : memref<!tpu.dma_semaphore, #tpu.memory_space<semaphore_mem>>)
      %c7_i32 = arith.constant 7 : i32
      %c0_i32_138 = arith.constant 0 : i32
      %c0_i32_139 = arith.constant 0 : i32
      %222 = tpu.memref_slice %arg10[%0, %c0_i32_138, %c0_i32_139] : memref<4x512x1024xbf16, #tpu.memory_space<any>> -> memref<1x512x1024xbf16, #tpu.memory_space<any>>
      %223 = tpu.memref_squeeze %222 : memref<1x512x1024xbf16, #tpu.memory_space<any>> -> memref<512x1024xbf16, #tpu.memory_space<any>>
      %224 = tpu.memref_slice %arg23[%c7_i32] : memref<9x!tpu.dma_semaphore, #tpu.memory_space<semaphore_mem>> -> memref<1x!tpu.dma_semaphore, #tpu.memory_space<semaphore_mem>>
      %225 = tpu.memref_squeeze %224 : memref<1x!tpu.dma_semaphore, #tpu.memory_space<semaphore_mem>> -> memref<!tpu.dma_semaphore, #tpu.memory_space<semaphore_mem>>
      tpu.enqueue_dma source(%223 : memref<512x1024xbf16, #tpu.memory_space<any>>) target(%arg21 : memref<512x1024xbf16, #tpu.memory_space<vmem>>) target_semaphore(%225 : memref<!tpu.dma_semaphore, #tpu.memory_space<semaphore_mem>>)
      %c8_i32 = arith.constant 8 : i32
      %c0_i32_140 = arith.constant 0 : i32
      %c0_i32_141 = arith.constant 0 : i32
      %226 = tpu.memref_slice %arg11[%0, %c0_i32_140, %c0_i32_141] : memref<4x1024x128xbf16, #tpu.memory_space<any>> -> memref<1x1024x128xbf16, #tpu.memory_space<any>>
      %227 = tpu.memref_squeeze %226 : memref<1x1024x128xbf16, #tpu.memory_space<any>> -> memref<1024x128xbf16, #tpu.memory_space<any>>
      %228 = tpu.memref_slice %arg23[%c8_i32] : memref<9x!tpu.dma_semaphore, #tpu.memory_space<semaphore_mem>> -> memref<1x!tpu.dma_semaphore, #tpu.memory_space<semaphore_mem>>
      %229 = tpu.memref_squeeze %228 : memref<1x!tpu.dma_semaphore, #tpu.memory_space<semaphore_mem>> -> memref<!tpu.dma_semaphore, #tpu.memory_space<semaphore_mem>>
      tpu.enqueue_dma source(%227 : memref<1024x128xbf16, #tpu.memory_space<any>>) target(%arg22 : memref<1024x128xbf16, #tpu.memory_space<vmem>>) target_semaphore(%229 : memref<!tpu.dma_semaphore, #tpu.memory_space<semaphore_mem>>)
    } else {
    }
    %c0_1 = arith.constant 0 : index
    %c0_2 = arith.constant 0 : index
    %4 = vector.load %arg2[%c0_1, %c0_2] : memref<128x128xf32, #tpu.memory_space<vmem>>, vector<128x128xf32>
    %5 = arith.extui %1 : i1 to i32
    %c0_i32_3 = arith.constant 0 : i32
    %6 = arith.cmpi ne, %5, %c0_i32_3 : i32
    scf.if %6 {
      %c0_i32_122 = arith.constant 0 : i32
      %c0_i32_123 = arith.constant 0 : i32
      %c0_i32_124 = arith.constant 0 : i32
      %194 = tpu.memref_slice %arg3[%0, %c0_i32_123, %c0_i32_124] : memref<4x128x1024xbf16, #tpu.memory_space<any>> -> memref<1x128x1024xbf16, #tpu.memory_space<any>>
      %195 = tpu.memref_squeeze %194 : memref<1x128x1024xbf16, #tpu.memory_space<any>> -> memref<128x1024xbf16, #tpu.memory_space<any>>
      %196 = tpu.memref_slice %arg23[%c0_i32_122] : memref<9x!tpu.dma_semaphore, #tpu.memory_space<semaphore_mem>> -> memref<1x!tpu.dma_semaphore, #tpu.memory_space<semaphore_mem>>
      %197 = tpu.memref_squeeze %196 : memref<1x!tpu.dma_semaphore, #tpu.memory_space<semaphore_mem>> -> memref<!tpu.dma_semaphore, #tpu.memory_space<semaphore_mem>>
      tpu.wait_dma2 semaphore(%197 : memref<!tpu.dma_semaphore, #tpu.memory_space<semaphore_mem>>) src(%195 : memref<128x1024xbf16, #tpu.memory_space<any>>) dst(%arg14 : memref<128x1024xbf16, #tpu.memory_space<vmem>>)
    } else {
    }
    %c0_4 = arith.constant 0 : index
    %c0_5 = arith.constant 0 : index
    %7 = vector.load %arg14[%c0_4, %c0_5] : memref<128x1024xbf16, #tpu.memory_space<vmem>>, vector<128x1024xbf16>
    %8 = arith.truncf %4 : vector<128x128xf32> to vector<128x128xbf16>
    %cst = arith.constant dense<0.000000e+00> : vector<128x1024xf32>
    %9 = tpu.matmul %8, %7, %cst {dimension_numbers = #tpu.dot_dimension_numbers<[1], [0], [0], [1], [0, 0, 1, 1], [], []>} : vector<128x128xbf16>, vector<128x1024xbf16>, vector<128x1024xf32> -> vector<128x1024xf32>
    %c0_6 = arith.constant 0 : index
    %c0_7 = arith.constant 0 : index
    %c0_8 = arith.constant 0 : index
    %10 = vector.load %arg12[%c0_6, %c0_7, %c0_8] : memref<1x1x5120xf32, #tpu.memory_space<vmem>>, vector<1x1x1024xf32>
    %11 = vector.shape_cast %10 : vector<1x1x1024xf32> to vector<1x1024xf32>
    %12 = vector.broadcast %11 : vector<1x1024xf32> to vector<128x1024xf32>
    %13 = arith.addf %9, %12 : vector<128x1024xf32>
    %cst_9 = arith.constant 0.000000e+00 : f32
    %14 = vector.broadcast %cst_9 : f32 to vector<128x1024xf32>
    %15 = arith.maximumf %13, %14 : vector<128x1024xf32>
    %16 = arith.extui %1 : i1 to i32
    %c0_i32_10 = arith.constant 0 : i32
    %17 = arith.cmpi ne, %16, %c0_i32_10 : i32
    scf.if %17 {
      %c1_i32 = arith.constant 1 : i32
      %c0_i32_122 = arith.constant 0 : i32
      %c0_i32_123 = arith.constant 0 : i32
      %194 = tpu.memref_slice %arg4[%0, %c0_i32_122, %c0_i32_123] : memref<4x1024x512xbf16, #tpu.memory_space<any>> -> memref<1x1024x512xbf16, #tpu.memory_space<any>>
      %195 = tpu.memref_squeeze %194 : memref<1x1024x512xbf16, #tpu.memory_space<any>> -> memref<1024x512xbf16, #tpu.memory_space<any>>
      %196 = tpu.memref_slice %arg23[%c1_i32] : memref<9x!tpu.dma_semaphore, #tpu.memory_space<semaphore_mem>> -> memref<1x!tpu.dma_semaphore, #tpu.memory_space<semaphore_mem>>
      %197 = tpu.memref_squeeze %196 : memref<1x!tpu.dma_semaphore, #tpu.memory_space<semaphore_mem>> -> memref<!tpu.dma_semaphore, #tpu.memory_space<semaphore_mem>>
      tpu.wait_dma2 semaphore(%197 : memref<!tpu.dma_semaphore, #tpu.memory_space<semaphore_mem>>) src(%195 : memref<1024x512xbf16, #tpu.memory_space<any>>) dst(%arg15 : memref<1024x512xbf16, #tpu.memory_space<vmem>>)
    } else {
    }
    %c0_11 = arith.constant 0 : index
    %c0_12 = arith.constant 0 : index
    %18 = vector.load %arg15[%c0_11, %c0_12] : memref<1024x512xbf16, #tpu.memory_space<vmem>>, vector<1024x512xbf16>
    %19 = arith.truncf %15 : vector<128x1024xf32> to vector<128x1024xbf16>
    %cst_13 = arith.constant dense<0.000000e+00> : vector<128x512xf32>
    %20 = tpu.matmul %19, %18, %cst_13 {dimension_numbers = #tpu.dot_dimension_numbers<[1], [0], [0], [1], [0, 0, 1, 1], [], []>} : vector<128x1024xbf16>, vector<1024x512xbf16>, vector<128x512xf32> -> vector<128x512xf32>
    %c0_14 = arith.constant 0 : index
    %c0_15 = arith.constant 0 : index
    %c1024 = arith.constant 1024 : index
    %21 = vector.load %arg12[%c0_14, %c0_15, %c1024] : memref<1x1x5120xf32, #tpu.memory_space<vmem>>, vector<1x1x512xf32>
    %22 = vector.shape_cast %21 : vector<1x1x512xf32> to vector<1x512xf32>
    %23 = vector.broadcast %22 : vector<1x512xf32> to vector<128x512xf32>
    %24 = arith.addf %20, %23 : vector<128x512xf32>
    %cst_16 = arith.constant 0.000000e+00 : f32
    %25 = vector.broadcast %cst_16 : f32 to vector<128x512xf32>
    %26 = arith.maximumf %24, %25 : vector<128x512xf32>
    %27 = arith.extui %1 : i1 to i32
    %c0_i32_17 = arith.constant 0 : i32
    %28 = arith.cmpi ne, %27, %c0_i32_17 : i32
    scf.if %28 {
      %c2_i32 = arith.constant 2 : i32
      %c0_i32_122 = arith.constant 0 : i32
      %c0_i32_123 = arith.constant 0 : i32
      %194 = tpu.memref_slice %arg5[%0, %c0_i32_122, %c0_i32_123] : memref<4x512x256xbf16, #tpu.memory_space<any>> -> memref<1x512x256xbf16, #tpu.memory_space<any>>
      %195 = tpu.memref_squeeze %194 : memref<1x512x256xbf16, #tpu.memory_space<any>> -> memref<512x256xbf16, #tpu.memory_space<any>>
      %196 = tpu.memref_slice %arg23[%c2_i32] : memref<9x!tpu.dma_semaphore, #tpu.memory_space<semaphore_mem>> -> memref<1x!tpu.dma_semaphore, #tpu.memory_space<semaphore_mem>>
      %197 = tpu.memref_squeeze %196 : memref<1x!tpu.dma_semaphore, #tpu.memory_space<semaphore_mem>> -> memref<!tpu.dma_semaphore, #tpu.memory_space<semaphore_mem>>
      tpu.wait_dma2 semaphore(%197 : memref<!tpu.dma_semaphore, #tpu.memory_space<semaphore_mem>>) src(%195 : memref<512x256xbf16, #tpu.memory_space<any>>) dst(%arg16 : memref<512x256xbf16, #tpu.memory_space<vmem>>)
    } else {
    }
    %c0_18 = arith.constant 0 : index
    %c0_19 = arith.constant 0 : index
    %29 = vector.load %arg16[%c0_18, %c0_19] : memref<512x256xbf16, #tpu.memory_space<vmem>>, vector<512x256xbf16>
    %30 = arith.truncf %26 : vector<128x512xf32> to vector<128x512xbf16>
    %cst_20 = arith.constant dense<0.000000e+00> : vector<128x256xf32>
    %31 = tpu.matmul %30, %29, %cst_20 {dimension_numbers = #tpu.dot_dimension_numbers<[1], [0], [0], [1], [0, 0, 1, 1], [], []>} : vector<128x512xbf16>, vector<512x256xbf16>, vector<128x256xf32> -> vector<128x256xf32>
    %c0_21 = arith.constant 0 : index
    %c0_22 = arith.constant 0 : index
    %c1536 = arith.constant 1536 : index
    %32 = vector.load %arg12[%c0_21, %c0_22, %c1536] : memref<1x1x5120xf32, #tpu.memory_space<vmem>>, vector<1x1x256xf32>
    %33 = vector.shape_cast %32 : vector<1x1x256xf32> to vector<1x256xf32>
    %34 = vector.broadcast %33 : vector<1x256xf32> to vector<128x256xf32>
    %35 = arith.addf %31, %34 : vector<128x256xf32>
    %cst_23 = arith.constant 0.000000e+00 : f32
    %36 = vector.broadcast %cst_23 : f32 to vector<128x256xf32>
    %37 = arith.maximumf %35, %36 : vector<128x256xf32>
    %38 = arith.extui %1 : i1 to i32
    %c0_i32_24 = arith.constant 0 : i32
    %39 = arith.cmpi ne, %38, %c0_i32_24 : i32
    scf.if %39 {
      %c3_i32 = arith.constant 3 : i32
      %c0_i32_122 = arith.constant 0 : i32
      %c0_i32_123 = arith.constant 0 : i32
      %194 = tpu.memref_slice %arg6[%0, %c0_i32_122, %c0_i32_123] : memref<4x256x128xbf16, #tpu.memory_space<any>> -> memref<1x256x128xbf16, #tpu.memory_space<any>>
      %195 = tpu.memref_squeeze %194 : memref<1x256x128xbf16, #tpu.memory_space<any>> -> memref<256x128xbf16, #tpu.memory_space<any>>
      %196 = tpu.memref_slice %arg23[%c3_i32] : memref<9x!tpu.dma_semaphore, #tpu.memory_space<semaphore_mem>> -> memref<1x!tpu.dma_semaphore, #tpu.memory_space<semaphore_mem>>
      %197 = tpu.memref_squeeze %196 : memref<1x!tpu.dma_semaphore, #tpu.memory_space<semaphore_mem>> -> memref<!tpu.dma_semaphore, #tpu.memory_space<semaphore_mem>>
      tpu.wait_dma2 semaphore(%197 : memref<!tpu.dma_semaphore, #tpu.memory_space<semaphore_mem>>) src(%195 : memref<256x128xbf16, #tpu.memory_space<any>>) dst(%arg17 : memref<256x128xbf16, #tpu.memory_space<vmem>>)
    } else {
    }
    %c0_25 = arith.constant 0 : index
    %c0_26 = arith.constant 0 : index
    %40 = vector.load %arg17[%c0_25, %c0_26] : memref<256x128xbf16, #tpu.memory_space<vmem>>, vector<256x128xbf16>
    %41 = arith.truncf %37 : vector<128x256xf32> to vector<128x256xbf16>
    %cst_27 = arith.constant dense<0.000000e+00> : vector<128x128xf32>
    %42 = tpu.matmul %41, %40, %cst_27 {dimension_numbers = #tpu.dot_dimension_numbers<[1], [0], [0], [1], [0, 0, 1, 1], [], []>} : vector<128x256xbf16>, vector<256x128xbf16>, vector<128x128xf32> -> vector<128x128xf32>
    %c0_28 = arith.constant 0 : index
    %c0_29 = arith.constant 0 : index
    %c1792 = arith.constant 1792 : index
    %43 = vector.load %arg12[%c0_28, %c0_29, %c1792] : memref<1x1x5120xf32, #tpu.memory_space<vmem>>, vector<1x1x128xf32>
    %44 = vector.shape_cast %43 : vector<1x1x128xf32> to vector<1x128xf32>
    %45 = vector.broadcast %44 : vector<1x128xf32> to vector<128x128xf32>
    %46 = arith.addf %42, %45 : vector<128x128xf32>
    %cst_30 = arith.constant 0.000000e+00 : f32
    %47 = vector.broadcast %cst_30 : f32 to vector<128x128xf32>
    %48 = arith.maximumf %46, %47 : vector<128x128xf32>
    %49 = arith.extui %1 : i1 to i32
    %c0_i32_31 = arith.constant 0 : i32
    %50 = arith.cmpi ne, %49, %c0_i32_31 : i32
    scf.if %50 {
      %c4_i32 = arith.constant 4 : i32
      %c0_i32_122 = arith.constant 0 : i32
      %c0_i32_123 = arith.constant 0 : i32
      %c0_i32_124 = arith.constant 0 : i32
      %194 = tpu.memref_slice %arg7[%0, %c0_i32_122, %c0_i32_123, %c0_i32_124] : memref<4x10x128x128xbf16, #tpu.memory_space<any>> -> memref<1x10x128x128xbf16, #tpu.memory_space<any>>
      %195 = tpu.memref_squeeze %194 : memref<1x10x128x128xbf16, #tpu.memory_space<any>> -> memref<10x128x128xbf16, #tpu.memory_space<any>>
      %196 = tpu.memref_slice %arg23[%c4_i32] : memref<9x!tpu.dma_semaphore, #tpu.memory_space<semaphore_mem>> -> memref<1x!tpu.dma_semaphore, #tpu.memory_space<semaphore_mem>>
      %197 = tpu.memref_squeeze %196 : memref<1x!tpu.dma_semaphore, #tpu.memory_space<semaphore_mem>> -> memref<!tpu.dma_semaphore, #tpu.memory_space<semaphore_mem>>
      tpu.wait_dma2 semaphore(%197 : memref<!tpu.dma_semaphore, #tpu.memory_space<semaphore_mem>>) src(%195 : memref<10x128x128xbf16, #tpu.memory_space<any>>) dst(%arg18 : memref<10x128x128xbf16, #tpu.memory_space<vmem>>)
    } else {
    }
    %c0_32 = arith.constant 0 : index
    %c0_33 = arith.constant 0 : index
    %c0_34 = arith.constant 0 : index
    %51 = vector.load %arg18[%c0_32, %c0_33, %c0_34] : memref<10x128x128xbf16, #tpu.memory_space<vmem>>, vector<1x128x128xbf16>
    %52 = vector.shape_cast %51 : vector<1x128x128xbf16> to vector<128x128xbf16>
    %53 = arith.truncf %48 : vector<128x128xf32> to vector<128x128xbf16>
    %cst_35 = arith.constant dense<0.000000e+00> : vector<128x128xf32>
    %54 = tpu.matmul %53, %52, %cst_35 {dimension_numbers = #tpu.dot_dimension_numbers<[1], [0], [0], [1], [0, 0, 1, 1], [], []>} : vector<128x128xbf16>, vector<128x128xbf16>, vector<128x128xf32> -> vector<128x128xf32>
    %c0_36 = arith.constant 0 : index
    %c0_37 = arith.constant 0 : index
    %c1920 = arith.constant 1920 : index
    %55 = vector.load %arg12[%c0_36, %c0_37, %c1920] : memref<1x1x5120xf32, #tpu.memory_space<vmem>>, vector<1x1x128xf32>
    %56 = vector.shape_cast %55 : vector<1x1x128xf32> to vector<1x128xf32>
    %57 = vector.broadcast %56 : vector<1x128xf32> to vector<128x128xf32>
    %58 = arith.addf %54, %57 : vector<128x128xf32>
    %cst_38 = arith.constant 0.000000e+00 : f32
    %59 = vector.broadcast %cst_38 : f32 to vector<128x128xf32>
    %60 = arith.maximumf %58, %59 : vector<128x128xf32>
    %c1 = arith.constant 1 : index
    %c0_39 = arith.constant 0 : index
    %c0_40 = arith.constant 0 : index
    %61 = vector.load %arg18[%c1, %c0_39, %c0_40] : memref<10x128x128xbf16, #tpu.memory_space<vmem>>, vector<1x128x128xbf16>
    %62 = vector.shape_cast %61 : vector<1x128x128xbf16> to vector<128x128xbf16>
    %63 = arith.truncf %60 : vector<128x128xf32> to vector<128x128xbf16>
    %cst_41 = arith.constant dense<0.000000e+00> : vector<128x128xf32>
    %64 = tpu.matmul %63, %62, %cst_41 {dimension_numbers = #tpu.dot_dimension_numbers<[1], [0], [0], [1], [0, 0, 1, 1], [], []>} : vector<128x128xbf16>, vector<128x128xbf16>, vector<128x128xf32> -> vector<128x128xf32>
    %c0_42 = arith.constant 0 : index
    %c0_43 = arith.constant 0 : index
    %c2048 = arith.constant 2048 : index
    %65 = vector.load %arg12[%c0_42, %c0_43, %c2048] : memref<1x1x5120xf32, #tpu.memory_space<vmem>>, vector<1x1x128xf32>
    %66 = vector.shape_cast %65 : vector<1x1x128xf32> to vector<1x128xf32>
    %67 = vector.broadcast %66 : vector<1x128xf32> to vector<128x128xf32>
    %68 = arith.addf %64, %67 : vector<128x128xf32>
    %cst_44 = arith.constant 0.000000e+00 : f32
    %69 = vector.broadcast %cst_44 : f32 to vector<128x128xf32>
    %70 = arith.maximumf %68, %69 : vector<128x128xf32>
    %c2 = arith.constant 2 : index
    %c0_45 = arith.constant 0 : index
    %c0_46 = arith.constant 0 : index
    %71 = vector.load %arg18[%c2, %c0_45, %c0_46] : memref<10x128x128xbf16, #tpu.memory_space<vmem>>, vector<1x128x128xbf16>
    %72 = vector.shape_cast %71 : vector<1x128x128xbf16> to vector<128x128xbf16>
    %73 = arith.truncf %70 : vector<128x128xf32> to vector<128x128xbf16>
    %cst_47 = arith.constant dense<0.000000e+00> : vector<128x128xf32>
    %74 = tpu.matmul %73, %72, %cst_47 {dimension_numbers = #tpu.dot_dimension_numbers<[1], [0], [0], [1], [0, 0, 1, 1], [], []>} : vector<128x128xbf16>, vector<128x128xbf16>, vector<128x128xf32> -> vector<128x128xf32>
    %c0_48 = arith.constant 0 : index
    %c0_49 = arith.constant 0 : index
    %c2176 = arith.constant 2176 : index
    %75 = vector.load %arg12[%c0_48, %c0_49, %c2176] : memref<1x1x5120xf32, #tpu.memory_space<vmem>>, vector<1x1x128xf32>
    %76 = vector.shape_cast %75 : vector<1x1x128xf32> to vector<1x128xf32>
    %77 = vector.broadcast %76 : vector<1x128xf32> to vector<128x128xf32>
    %78 = arith.addf %74, %77 : vector<128x128xf32>
    %cst_50 = arith.constant 0.000000e+00 : f32
    %79 = vector.broadcast %cst_50 : f32 to vector<128x128xf32>
    %80 = arith.maximumf %78, %79 : vector<128x128xf32>
    %c3 = arith.constant 3 : index
    %c0_51 = arith.constant 0 : index
    %c0_52 = arith.constant 0 : index
    %81 = vector.load %arg18[%c3, %c0_51, %c0_52] : memref<10x128x128xbf16, #tpu.memory_space<vmem>>, vector<1x128x128xbf16>
    %82 = vector.shape_cast %81 : vector<1x128x128xbf16> to vector<128x128xbf16>
    %83 = arith.truncf %80 : vector<128x128xf32> to vector<128x128xbf16>
    %cst_53 = arith.constant dense<0.000000e+00> : vector<128x128xf32>
    %84 = tpu.matmul %83, %82, %cst_53 {dimension_numbers = #tpu.dot_dimension_numbers<[1], [0], [0], [1], [0, 0, 1, 1], [], []>} : vector<128x128xbf16>, vector<128x128xbf16>, vector<128x128xf32> -> vector<128x128xf32>
    %c0_54 = arith.constant 0 : index
    %c0_55 = arith.constant 0 : index
    %c2304 = arith.constant 2304 : index
    %85 = vector.load %arg12[%c0_54, %c0_55, %c2304] : memref<1x1x5120xf32, #tpu.memory_space<vmem>>, vector<1x1x128xf32>
    %86 = vector.shape_cast %85 : vector<1x1x128xf32> to vector<1x128xf32>
    %87 = vector.broadcast %86 : vector<1x128xf32> to vector<128x128xf32>
    %88 = arith.addf %84, %87 : vector<128x128xf32>
    %cst_56 = arith.constant 0.000000e+00 : f32
    %89 = vector.broadcast %cst_56 : f32 to vector<128x128xf32>
    %90 = arith.maximumf %88, %89 : vector<128x128xf32>
    %c4 = arith.constant 4 : index
    %c0_57 = arith.constant 0 : index
    %c0_58 = arith.constant 0 : index
    %91 = vector.load %arg18[%c4, %c0_57, %c0_58] : memref<10x128x128xbf16, #tpu.memory_space<vmem>>, vector<1x128x128xbf16>
    %92 = vector.shape_cast %91 : vector<1x128x128xbf16> to vector<128x128xbf16>
    %93 = arith.truncf %90 : vector<128x128xf32> to vector<128x128xbf16>
    %cst_59 = arith.constant dense<0.000000e+00> : vector<128x128xf32>
    %94 = tpu.matmul %93, %92, %cst_59 {dimension_numbers = #tpu.dot_dimension_numbers<[1], [0], [0], [1], [0, 0, 1, 1], [], []>} : vector<128x128xbf16>, vector<128x128xbf16>, vector<128x128xf32> -> vector<128x128xf32>
    %c0_60 = arith.constant 0 : index
    %c0_61 = arith.constant 0 : index
    %c2432 = arith.constant 2432 : index
    %95 = vector.load %arg12[%c0_60, %c0_61, %c2432] : memref<1x1x5120xf32, #tpu.memory_space<vmem>>, vector<1x1x128xf32>
    %96 = vector.shape_cast %95 : vector<1x1x128xf32> to vector<1x128xf32>
    %97 = vector.broadcast %96 : vector<1x128xf32> to vector<128x128xf32>
    %98 = arith.addf %94, %97 : vector<128x128xf32>
    %cst_62 = arith.constant 0.000000e+00 : f32
    %99 = vector.broadcast %cst_62 : f32 to vector<128x128xf32>
    %100 = arith.maximumf %98, %99 : vector<128x128xf32>
    %c5 = arith.constant 5 : index
    %c0_63 = arith.constant 0 : index
    %c0_64 = arith.constant 0 : index
    %101 = vector.load %arg18[%c5, %c0_63, %c0_64] : memref<10x128x128xbf16, #tpu.memory_space<vmem>>, vector<1x128x128xbf16>
    %102 = vector.shape_cast %101 : vector<1x128x128xbf16> to vector<128x128xbf16>
    %103 = arith.truncf %100 : vector<128x128xf32> to vector<128x128xbf16>
    %cst_65 = arith.constant dense<0.000000e+00> : vector<128x128xf32>
    %104 = tpu.matmul %103, %102, %cst_65 {dimension_numbers = #tpu.dot_dimension_numbers<[1], [0], [0], [1], [0, 0, 1, 1], [], []>} : vector<128x128xbf16>, vector<128x128xbf16>, vector<128x128xf32> -> vector<128x128xf32>
    %c0_66 = arith.constant 0 : index
    %c0_67 = arith.constant 0 : index
    %c2560 = arith.constant 2560 : index
    %105 = vector.load %arg12[%c0_66, %c0_67, %c2560] : memref<1x1x5120xf32, #tpu.memory_space<vmem>>, vector<1x1x128xf32>
    %106 = vector.shape_cast %105 : vector<1x1x128xf32> to vector<1x128xf32>
    %107 = vector.broadcast %106 : vector<1x128xf32> to vector<128x128xf32>
    %108 = arith.addf %104, %107 : vector<128x128xf32>
    %cst_68 = arith.constant 0.000000e+00 : f32
    %109 = vector.broadcast %cst_68 : f32 to vector<128x128xf32>
    %110 = arith.maximumf %108, %109 : vector<128x128xf32>
    %c6 = arith.constant 6 : index
    %c0_69 = arith.constant 0 : index
    %c0_70 = arith.constant 0 : index
    %111 = vector.load %arg18[%c6, %c0_69, %c0_70] : memref<10x128x128xbf16, #tpu.memory_space<vmem>>, vector<1x128x128xbf16>
    %112 = vector.shape_cast %111 : vector<1x128x128xbf16> to vector<128x128xbf16>
    %113 = arith.truncf %110 : vector<128x128xf32> to vector<128x128xbf16>
    %cst_71 = arith.constant dense<0.000000e+00> : vector<128x128xf32>
    %114 = tpu.matmul %113, %112, %cst_71 {dimension_numbers = #tpu.dot_dimension_numbers<[1], [0], [0], [1], [0, 0, 1, 1], [], []>} : vector<128x128xbf16>, vector<128x128xbf16>, vector<128x128xf32> -> vector<128x128xf32>
    %c0_72 = arith.constant 0 : index
    %c0_73 = arith.constant 0 : index
    %c2688 = arith.constant 2688 : index
    %115 = vector.load %arg12[%c0_72, %c0_73, %c2688] : memref<1x1x5120xf32, #tpu.memory_space<vmem>>, vector<1x1x128xf32>
    %116 = vector.shape_cast %115 : vector<1x1x128xf32> to vector<1x128xf32>
    %117 = vector.broadcast %116 : vector<1x128xf32> to vector<128x128xf32>
    %118 = arith.addf %114, %117 : vector<128x128xf32>
    %cst_74 = arith.constant 0.000000e+00 : f32
    %119 = vector.broadcast %cst_74 : f32 to vector<128x128xf32>
    %120 = arith.maximumf %118, %119 : vector<128x128xf32>
    %c7 = arith.constant 7 : index
    %c0_75 = arith.constant 0 : index
    %c0_76 = arith.constant 0 : index
    %121 = vector.load %arg18[%c7, %c0_75, %c0_76] : memref<10x128x128xbf16, #tpu.memory_space<vmem>>, vector<1x128x128xbf16>
    %122 = vector.shape_cast %121 : vector<1x128x128xbf16> to vector<128x128xbf16>
    %123 = arith.truncf %120 : vector<128x128xf32> to vector<128x128xbf16>
    %cst_77 = arith.constant dense<0.000000e+00> : vector<128x128xf32>
    %124 = tpu.matmul %123, %122, %cst_77 {dimension_numbers = #tpu.dot_dimension_numbers<[1], [0], [0], [1], [0, 0, 1, 1], [], []>} : vector<128x128xbf16>, vector<128x128xbf16>, vector<128x128xf32> -> vector<128x128xf32>
    %c0_78 = arith.constant 0 : index
    %c0_79 = arith.constant 0 : index
    %c2816 = arith.constant 2816 : index
    %125 = vector.load %arg12[%c0_78, %c0_79, %c2816] : memref<1x1x5120xf32, #tpu.memory_space<vmem>>, vector<1x1x128xf32>
    %126 = vector.shape_cast %125 : vector<1x1x128xf32> to vector<1x128xf32>
    %127 = vector.broadcast %126 : vector<1x128xf32> to vector<128x128xf32>
    %128 = arith.addf %124, %127 : vector<128x128xf32>
    %cst_80 = arith.constant 0.000000e+00 : f32
    %129 = vector.broadcast %cst_80 : f32 to vector<128x128xf32>
    %130 = arith.maximumf %128, %129 : vector<128x128xf32>
    %c8 = arith.constant 8 : index
    %c0_81 = arith.constant 0 : index
    %c0_82 = arith.constant 0 : index
    %131 = vector.load %arg18[%c8, %c0_81, %c0_82] : memref<10x128x128xbf16, #tpu.memory_space<vmem>>, vector<1x128x128xbf16>
    %132 = vector.shape_cast %131 : vector<1x128x128xbf16> to vector<128x128xbf16>
    %133 = arith.truncf %130 : vector<128x128xf32> to vector<128x128xbf16>
    %cst_83 = arith.constant dense<0.000000e+00> : vector<128x128xf32>
    %134 = tpu.matmul %133, %132, %cst_83 {dimension_numbers = #tpu.dot_dimension_numbers<[1], [0], [0], [1], [0, 0, 1, 1], [], []>} : vector<128x128xbf16>, vector<128x128xbf16>, vector<128x128xf32> -> vector<128x128xf32>
    %c0_84 = arith.constant 0 : index
    %c0_85 = arith.constant 0 : index
    %c2944 = arith.constant 2944 : index
    %135 = vector.load %arg12[%c0_84, %c0_85, %c2944] : memref<1x1x5120xf32, #tpu.memory_space<vmem>>, vector<1x1x128xf32>
    %136 = vector.shape_cast %135 : vector<1x1x128xf32> to vector<1x128xf32>
    %137 = vector.broadcast %136 : vector<1x128xf32> to vector<128x128xf32>
    %138 = arith.addf %134, %137 : vector<128x128xf32>
    %cst_86 = arith.constant 0.000000e+00 : f32
    %139 = vector.broadcast %cst_86 : f32 to vector<128x128xf32>
    %140 = arith.maximumf %138, %139 : vector<128x128xf32>
    %c9 = arith.constant 9 : index
    %c0_87 = arith.constant 0 : index
    %c0_88 = arith.constant 0 : index
    %141 = vector.load %arg18[%c9, %c0_87, %c0_88] : memref<10x128x128xbf16, #tpu.memory_space<vmem>>, vector<1x128x128xbf16>
    %142 = vector.shape_cast %141 : vector<1x128x128xbf16> to vector<128x128xbf16>
    %143 = arith.truncf %140 : vector<128x128xf32> to vector<128x128xbf16>
    %cst_89 = arith.constant dense<0.000000e+00> : vector<128x128xf32>
    %144 = tpu.matmul %143, %142, %cst_89 {dimension_numbers = #tpu.dot_dimension_numbers<[1], [0], [0], [1], [0, 0, 1, 1], [], []>} : vector<128x128xbf16>, vector<128x128xbf16>, vector<128x128xf32> -> vector<128x128xf32>
    %c0_90 = arith.constant 0 : index
    %c0_91 = arith.constant 0 : index
    %c3072 = arith.constant 3072 : index
    %145 = vector.load %arg12[%c0_90, %c0_91, %c3072] : memref<1x1x5120xf32, #tpu.memory_space<vmem>>, vector<1x1x128xf32>
    %146 = vector.shape_cast %145 : vector<1x1x128xf32> to vector<1x128xf32>
    %147 = vector.broadcast %146 : vector<1x128xf32> to vector<128x128xf32>
    %148 = arith.addf %144, %147 : vector<128x128xf32>
    %cst_92 = arith.constant 0.000000e+00 : f32
    %149 = vector.broadcast %cst_92 : f32 to vector<128x128xf32>
    %150 = arith.maximumf %148, %149 : vector<128x128xf32>
    %151 = arith.extui %1 : i1 to i32
    %c0_i32_93 = arith.constant 0 : i32
    %152 = arith.cmpi ne, %151, %c0_i32_93 : i32
    scf.if %152 {
      %c5_i32 = arith.constant 5 : i32
      %c0_i32_122 = arith.constant 0 : i32
      %c0_i32_123 = arith.constant 0 : i32
      %194 = tpu.memref_slice %arg8[%0, %c0_i32_122, %c0_i32_123] : memref<4x128x256xbf16, #tpu.memory_space<any>> -> memref<1x128x256xbf16, #tpu.memory_space<any>>
      %195 = tpu.memref_squeeze %194 : memref<1x128x256xbf16, #tpu.memory_space<any>> -> memref<128x256xbf16, #tpu.memory_space<any>>
      %196 = tpu.memref_slice %arg23[%c5_i32] : memref<9x!tpu.dma_semaphore, #tpu.memory_space<semaphore_mem>> -> memref<1x!tpu.dma_semaphore, #tpu.memory_space<semaphore_mem>>
      %197 = tpu.memref_squeeze %196 : memref<1x!tpu.dma_semaphore, #tpu.memory_space<semaphore_mem>> -> memref<!tpu.dma_semaphore, #tpu.memory_space<semaphore_mem>>
      tpu.wait_dma2 semaphore(%197 : memref<!tpu.dma_semaphore, #tpu.memory_space<semaphore_mem>>) src(%195 : memref<128x256xbf16, #tpu.memory_space<any>>) dst(%arg19 : memref<128x256xbf16, #tpu.memory_space<vmem>>)
    } else {
    }
    %c0_94 = arith.constant 0 : index
    %c0_95 = arith.constant 0 : index
    %153 = vector.load %arg19[%c0_94, %c0_95] : memref<128x256xbf16, #tpu.memory_space<vmem>>, vector<128x256xbf16>
    %154 = arith.truncf %150 : vector<128x128xf32> to vector<128x128xbf16>
    %cst_96 = arith.constant dense<0.000000e+00> : vector<128x256xf32>
    %155 = tpu.matmul %154, %153, %cst_96 {dimension_numbers = #tpu.dot_dimension_numbers<[1], [0], [0], [1], [0, 0, 1, 1], [], []>} : vector<128x128xbf16>, vector<128x256xbf16>, vector<128x256xf32> -> vector<128x256xf32>
    %c0_97 = arith.constant 0 : index
    %c0_98 = arith.constant 0 : index
    %c3200 = arith.constant 3200 : index
    %156 = vector.load %arg12[%c0_97, %c0_98, %c3200] : memref<1x1x5120xf32, #tpu.memory_space<vmem>>, vector<1x1x256xf32>
    %157 = vector.shape_cast %156 : vector<1x1x256xf32> to vector<1x256xf32>
    %158 = vector.broadcast %157 : vector<1x256xf32> to vector<128x256xf32>
    %159 = arith.addf %155, %158 : vector<128x256xf32>
    %cst_99 = arith.constant 0.000000e+00 : f32
    %160 = vector.broadcast %cst_99 : f32 to vector<128x256xf32>
    %161 = arith.maximumf %159, %160 : vector<128x256xf32>
    %162 = arith.extui %1 : i1 to i32
    %c0_i32_100 = arith.constant 0 : i32
    %163 = arith.cmpi ne, %162, %c0_i32_100 : i32
    scf.if %163 {
      %c6_i32 = arith.constant 6 : i32
      %c0_i32_122 = arith.constant 0 : i32
      %c0_i32_123 = arith.constant 0 : i32
      %194 = tpu.memref_slice %arg9[%0, %c0_i32_122, %c0_i32_123] : memref<4x256x512xbf16, #tpu.memory_space<any>> -> memref<1x256x512xbf16, #tpu.memory_space<any>>
      %195 = tpu.memref_squeeze %194 : memref<1x256x512xbf16, #tpu.memory_space<any>> -> memref<256x512xbf16, #tpu.memory_space<any>>
      %196 = tpu.memref_slice %arg23[%c6_i32] : memref<9x!tpu.dma_semaphore, #tpu.memory_space<semaphore_mem>> -> memref<1x!tpu.dma_semaphore, #tpu.memory_space<semaphore_mem>>
      %197 = tpu.memref_squeeze %196 : memref<1x!tpu.dma_semaphore, #tpu.memory_space<semaphore_mem>> -> memref<!tpu.dma_semaphore, #tpu.memory_space<semaphore_mem>>
      tpu.wait_dma2 semaphore(%197 : memref<!tpu.dma_semaphore, #tpu.memory_space<semaphore_mem>>) src(%195 : memref<256x512xbf16, #tpu.memory_space<any>>) dst(%arg20 : memref<256x512xbf16, #tpu.memory_space<vmem>>)
    } else {
    }
    %c0_101 = arith.constant 0 : index
    %c0_102 = arith.constant 0 : index
    %164 = vector.load %arg20[%c0_101, %c0_102] : memref<256x512xbf16, #tpu.memory_space<vmem>>, vector<256x512xbf16>
    %165 = arith.truncf %161 : vector<128x256xf32> to vector<128x256xbf16>
    %cst_103 = arith.constant dense<0.000000e+00> : vector<128x512xf32>
    %166 = tpu.matmul %165, %164, %cst_103 {dimension_numbers = #tpu.dot_dimension_numbers<[1], [0], [0], [1], [0, 0, 1, 1], [], []>} : vector<128x256xbf16>, vector<256x512xbf16>, vector<128x512xf32> -> vector<128x512xf32>
    %c0_104 = arith.constant 0 : index
    %c0_105 = arith.constant 0 : index
    %c3456 = arith.constant 3456 : index
    %167 = vector.load %arg12[%c0_104, %c0_105, %c3456] : memref<1x1x5120xf32, #tpu.memory_space<vmem>>, vector<1x1x512xf32>
    %168 = vector.shape_cast %167 : vector<1x1x512xf32> to vector<1x512xf32>
    %169 = vector.broadcast %168 : vector<1x512xf32> to vector<128x512xf32>
    %170 = arith.addf %166, %169 : vector<128x512xf32>
    %cst_106 = arith.constant 0.000000e+00 : f32
    %171 = vector.broadcast %cst_106 : f32 to vector<128x512xf32>
    %172 = arith.maximumf %170, %171 : vector<128x512xf32>
    %173 = arith.extui %1 : i1 to i32
    %c0_i32_107 = arith.constant 0 : i32
    %174 = arith.cmpi ne, %173, %c0_i32_107 : i32
    scf.if %174 {
      %c7_i32 = arith.constant 7 : i32
      %c0_i32_122 = arith.constant 0 : i32
      %c0_i32_123 = arith.constant 0 : i32
      %194 = tpu.memref_slice %arg10[%0, %c0_i32_122, %c0_i32_123] : memref<4x512x1024xbf16, #tpu.memory_space<any>> -> memref<1x512x1024xbf16, #tpu.memory_space<any>>
      %195 = tpu.memref_squeeze %194 : memref<1x512x1024xbf16, #tpu.memory_space<any>> -> memref<512x1024xbf16, #tpu.memory_space<any>>
      %196 = tpu.memref_slice %arg23[%c7_i32] : memref<9x!tpu.dma_semaphore, #tpu.memory_space<semaphore_mem>> -> memref<1x!tpu.dma_semaphore, #tpu.memory_space<semaphore_mem>>
      %197 = tpu.memref_squeeze %196 : memref<1x!tpu.dma_semaphore, #tpu.memory_space<semaphore_mem>> -> memref<!tpu.dma_semaphore, #tpu.memory_space<semaphore_mem>>
      tpu.wait_dma2 semaphore(%197 : memref<!tpu.dma_semaphore, #tpu.memory_space<semaphore_mem>>) src(%195 : memref<512x1024xbf16, #tpu.memory_space<any>>) dst(%arg21 : memref<512x1024xbf16, #tpu.memory_space<vmem>>)
    } else {
    }
    %c0_108 = arith.constant 0 : index
    %c0_109 = arith.constant 0 : index
    %175 = vector.load %arg21[%c0_108, %c0_109] : memref<512x1024xbf16, #tpu.memory_space<vmem>>, vector<512x1024xbf16>
    %176 = arith.truncf %172 : vector<128x512xf32> to vector<128x512xbf16>
    %cst_110 = arith.constant dense<0.000000e+00> : vector<128x1024xf32>
    %177 = tpu.matmul %176, %175, %cst_110 {dimension_numbers = #tpu.dot_dimension_numbers<[1], [0], [0], [1], [0, 0, 1, 1], [], []>} : vector<128x512xbf16>, vector<512x1024xbf16>, vector<128x1024xf32> -> vector<128x1024xf32>
    %c0_111 = arith.constant 0 : index
    %c0_112 = arith.constant 0 : index
    %c3968 = arith.constant 3968 : index
    %178 = vector.load %arg12[%c0_111, %c0_112, %c3968] : memref<1x1x5120xf32, #tpu.memory_space<vmem>>, vector<1x1x1024xf32>
    %179 = vector.shape_cast %178 : vector<1x1x1024xf32> to vector<1x1024xf32>
    %180 = vector.broadcast %179 : vector<1x1024xf32> to vector<128x1024xf32>
    %181 = arith.addf %177, %180 : vector<128x1024xf32>
    %cst_113 = arith.constant 0.000000e+00 : f32
    %182 = vector.broadcast %cst_113 : f32 to vector<128x1024xf32>
    %183 = arith.maximumf %181, %182 : vector<128x1024xf32>
    %184 = arith.extui %1 : i1 to i32
    %c0_i32_114 = arith.constant 0 : i32
    %185 = arith.cmpi ne, %184, %c0_i32_114 : i32
    scf.if %185 {
      %c8_i32 = arith.constant 8 : i32
      %c0_i32_122 = arith.constant 0 : i32
      %c0_i32_123 = arith.constant 0 : i32
      %194 = tpu.memref_slice %arg11[%0, %c0_i32_122, %c0_i32_123] : memref<4x1024x128xbf16, #tpu.memory_space<any>> -> memref<1x1024x128xbf16, #tpu.memory_space<any>>
      %195 = tpu.memref_squeeze %194 : memref<1x1024x128xbf16, #tpu.memory_space<any>> -> memref<1024x128xbf16, #tpu.memory_space<any>>
      %196 = tpu.memref_slice %arg23[%c8_i32] : memref<9x!tpu.dma_semaphore, #tpu.memory_space<semaphore_mem>> -> memref<1x!tpu.dma_semaphore, #tpu.memory_space<semaphore_mem>>
      %197 = tpu.memref_squeeze %196 : memref<1x!tpu.dma_semaphore, #tpu.memory_space<semaphore_mem>> -> memref<!tpu.dma_semaphore, #tpu.memory_space<semaphore_mem>>
      tpu.wait_dma2 semaphore(%197 : memref<!tpu.dma_semaphore, #tpu.memory_space<semaphore_mem>>) src(%195 : memref<1024x128xbf16, #tpu.memory_space<any>>) dst(%arg22 : memref<1024x128xbf16, #tpu.memory_space<vmem>>)
    } else {
    }
    %c0_115 = arith.constant 0 : index
    %c0_116 = arith.constant 0 : index
    %186 = vector.load %arg22[%c0_115, %c0_116] : memref<1024x128xbf16, #tpu.memory_space<vmem>>, vector<1024x128xbf16>
    %187 = arith.truncf %183 : vector<128x1024xf32> to vector<128x1024xbf16>
    %cst_117 = arith.constant dense<0.000000e+00> : vector<128x128xf32>
    %188 = tpu.matmul %187, %186, %cst_117 {dimension_numbers = #tpu.dot_dimension_numbers<[1], [0], [0], [1], [0, 0, 1, 1], [], []>} : vector<128x1024xbf16>, vector<1024x128xbf16>, vector<128x128xf32> -> vector<128x128xf32>
    %c0_118 = arith.constant 0 : index
    %c0_119 = arith.constant 0 : index
    %c4992 = arith.constant 4992 : index
    %189 = vector.load %arg12[%c0_118, %c0_119, %c4992] : memref<1x1x5120xf32, #tpu.memory_space<vmem>>, vector<1x1x128xf32>
    %190 = vector.shape_cast %189 : vector<1x1x128xf32> to vector<1x128xf32>
    %191 = vector.broadcast %190 : vector<1x128xf32> to vector<128x128xf32>
    %192 = arith.addf %188, %191 : vector<128x128xf32>
    %c0_120 = arith.constant 0 : index
    %c0_121 = arith.constant 0 : index
    %193 = vector.load %arg13[%c0_120, %c0_121] : memref<128x128xf32, #tpu.memory_space<vmem>>, vector<128x128xf32>
    tpu.vector_store %arg13[%c0_120, %c0_121], %192 {strides = array<i32>} : memref<128x128xf32, #tpu.memory_space<vmem>>, vector<128x128xf32>,
    return
  }
  func.func @transform_0(%arg0: i32, %arg1: memref<1xi32, #tpu.memory_space<smem>>) -> (i32, i32) {
    %c0_i32 = arith.constant 0 : i32
    %c0_i32_0 = arith.constant 0 : i32
    return %arg0, %c0_i32 : i32, i32
  }
  func.func @transform_10(%arg0: i32, %arg1: memref<1xi32, #tpu.memory_space<smem>>) -> (i32, i32, i32) {
    %c0 = arith.constant 0 : index
    %0 = memref.load %arg1[%c0] : memref<1xi32, #tpu.memory_space<smem>>
    %c0_i32 = arith.constant 0 : i32
    %c0_i32_0 = arith.constant 0 : i32
    %c0_i32_1 = arith.constant 0 : i32
    return %0, %c0_i32, %c0_i32_0 : i32, i32, i32
  }
  func.func @transform_11(%arg0: i32, %arg1: memref<1xi32, #tpu.memory_space<smem>>) -> (i32, i32) {
    %c0_i32 = arith.constant 0 : i32
    %c0_i32_0 = arith.constant 0 : i32
    return %arg0, %c0_i32 : i32, i32
  }
}

</mosaic_0001>

<llo_original>
// kernel: _forward_jit.1
$region0: #{_forward_jit.1}
  #allocation0 [shape = 'u32[]', space=smem, size = 0x4, offset = 0x4, fixed_abs, tag = 'smem constant byte address 0x4 - core index']
  #allocation1 [shape = 'u32[144,128]{1,0:T(1,128)}', space=vmem, size = 0x12000, scoped, tag = 'internal scratch']
  #allocation2 [shape = 'bf16[128,1024]{1,0:T(8,128)(2,1)}', space=vmem, size = 0x40000, scoped, tag = 'scratch operand']
  #allocation3 [shape = 'bf16[1024,512]{1,0:T(8,128)(2,1)}', space=vmem, size = 0x100000, scoped, tag = 'scratch operand']
  #allocation4 [shape = 'bf16[512,256]{1,0:T(8,128)(2,1)}', space=vmem, size = 0x40000, scoped, tag = 'scratch operand']
  #allocation5 [shape = 'bf16[256,128]{1,0:T(8,128)(2,1)}', space=vmem, size = 0x10000, scoped, tag = 'scratch operand']
  #allocation6 [shape = 'bf16[10,128,128]{2,1,0:T(8,128)(2,1)}', space=vmem, size = 0x50000, scoped, tag = 'scratch operand']
  #allocation7 [shape = 'bf16[128,256]{1,0:T(8,128)(2,1)}', space=vmem, size = 0x10000, scoped, tag = 'scratch operand']
  #allocation8 [shape = 'bf16[256,512]{1,0:T(8,128)(2,1)}', space=vmem, size = 0x40000, scoped, tag = 'scratch operand']
  #allocation9 [shape = 'bf16[512,1024]{1,0:T(8,128)(2,1)}', space=vmem, size = 0x100000, scoped, tag = 'scratch operand']
  #allocation10 [shape = 'bf16[1024,128]{1,0:T(8,128)(2,1)}', space=vmem, size = 0x40000, scoped, tag = 'scratch operand']
  #allocation11 [shape = 's32[9]{0}', space=sflag, size = 0x24, scoped, tag = 'scratch operand']
  #allocation12 [shape = 's32[1]{0}', space=sflag, size = 0x4, scoped, tag = 'scoped memory for _forward_jit.1']
  #allocation13 [shape = 's32[1]{0:T(128)S(6)}', space=smem, size = 0x200, scoped, tag = 'prefetched SMEM operand 0']
  #allocation16 [shape = 's32[]', space=sflag, size = 0x4, offset = 0, fixed_abs, tag = 'sflag constant byte address 0x0 - dummy sync flag']
  #allocation17 [shape = 's32[]', space=sflag, size = 0x4, offset = 0, fixed_abs, tag = 'sflag constant byte address 0x0 - dummy sync flag']
  #allocation18 [shape = 'u32[]', space=smem, size = 0x4, offset = 0x44, fixed_abs, tag = 'smem constant byte address 0x44 - assertion arg 0']
  #allocation19 [shape = 'u32[]', space=smem, size = 0x4, offset = 0x48, fixed_abs, tag = 'smem constant byte address 0x48 - assertion arg 1']
  #allocation20 [shape = 's32[]', space=sflag, size = 0x4, offset = 0, fixed_abs, tag = 'sflag constant byte address 0x0 - dummy sync flag']
  #allocation21 [shape = 's32[]', space=sflag, size = 0x4, offset = 0, fixed_abs, tag = 'sflag constant byte address 0x0 - dummy sync flag']
  #allocation22 [shape = 's32[]', space=sflag, size = 0x4, offset = 0, fixed_abs, tag = 'sflag constant byte address 0x0 - dummy sync flag']
  #allocation23 [shape = 's32[]', space=sflag, size = 0x4, offset = 0, fixed_abs, tag = 'sflag constant byte address 0x0 - dummy sync flag']
  #allocation24 [shape = 's32[]', space=sflag, size = 0x4, offset = 0, fixed_abs, tag = 'sflag constant byte address 0x0 - dummy sync flag']
  #allocation25 [shape = 's32[]', space=sflag, size = 0x4, offset = 0, fixed_abs, tag = 'sflag constant byte address 0x0 - dummy sync flag']
  #allocation26 [shape = 's32[]', space=sflag, size = 0x4, offset = 0, fixed_abs, tag = 'sflag constant byte address 0x0 - dummy sync flag']
  #allocation27 [shape = 's32[]', space=sflag, size = 0x4, offset = 0, fixed_abs, tag = 'sflag constant byte address 0x0 - dummy sync flag']
  #allocation28 [shape = 's32[]', space=sflag, size = 0x4, offset = 0, fixed_abs, tag = 'sflag constant byte address 0x0 - dummy sync flag']
  #allocation29 [shape = 's32[]', space=sflag, size = 0x4, offset = 0, fixed_abs, tag = 'sflag constant byte address 0x0 - dummy sync flag']
  #allocation30 [shape = 's32[]', space=sflag, size = 0x4, offset = 0, fixed_abs, tag = 'sflag constant byte address 0x0 - dummy sync flag']
  #allocation31 [shape = 's32[]', space=sflag, size = 0x4, offset = 0, fixed_abs, tag = 'sflag constant byte address 0x0 - dummy sync flag']
  #allocation32 [shape = 's32[]', space=sflag, size = 0x4, offset = 0, fixed_abs, tag = 'sflag constant byte address 0x0 - dummy sync flag']
  #allocation33 [shape = 's32[]', space=sflag, size = 0x4, offset = 0, fixed_abs, tag = 'sflag constant byte address 0x0 - dummy sync flag']
  #allocation34 [shape = 's32[]', space=sflag, size = 0x4, offset = 0, fixed_abs, tag = 'sflag constant byte address 0x0 - dummy sync flag']
  #allocation35 [shape = 's32[]', space=sflag, size = 0x4, offset = 0, fixed_abs, tag = 'sflag constant byte address 0x0 - dummy sync flag']
  %s0 = inlined_call_operand.<no memory space> [shape: s32[1], index: 0, kind: input, shape index: {}]
  %s1 = inlined_call_operand.vmem [shape: f32[128,128], index: 1, kind: input, shape index: {}]
  %s2 = inlined_call_operand.hbm [shape: bf16[4,128,1024], index: 2, kind: input, shape index: {}]
  %s3 = inlined_call_operand.hbm [shape: bf16[4,1024,512], index: 3, kind: input, shape index: {}]
  %s4 = inlined_call_operand.hbm [shape: bf16[4,512,256], index: 4, kind: input, shape index: {}]
  %s5 = inlined_call_operand.hbm [shape: bf16[4,256,128], index: 5, kind: input, shape index: {}]
  %s6 = inlined_call_operand.hbm [shape: bf16[4,10,128,128], index: 6, kind: input, shape index: {}]
  %s7 = inlined_call_operand.hbm [shape: bf16[4,128,256], index: 7, kind: input, shape index: {}]
  %s8 = inlined_call_operand.hbm [shape: bf16[4,256,512], index: 8, kind: input, shape index: {}]
  %s9 = inlined_call_operand.hbm [shape: bf16[4,512,1024], index: 9, kind: input, shape index: {}]
  %s10 = inlined_call_operand.hbm [shape: bf16[4,1024,128], index: 10, kind: input, shape index: {}]
  %s11 = inlined_call_operand.hbm [shape: f32[4,1,5120], index: 11, kind: input, shape index: {}]
  %s12 = inlined_call_operand.vmem [shape: f32[128,128], index: 12, kind: output, shape index: {}]
  %s13 = sld [smem:[#allocation0]]
  $region98: #{_forward_jit.1} parent=0
    _
  %s15 = ssub.s32 1, %s13
  %s16 = scalar_select 0, %s15, %s13
  %17 = sst [smem:[#allocation13]] %s0
  $region1: #{_forward_jit.1} parent=0
    #allocation14 [shape = 'u8[20480]{0}', space=vmem, size = 0x5000, scoped, tag = 'input window, operand 11, single buffered']
    #allocation15 [shape = 's32[1]{0}', space=sflag, size = 0x4, scoped, tag = 'scoped memory for _forward_jit.1']
    %18 = vsyncpa [#allocation15], 0
    // Predicated region
    $region2: #{_forward_jit.1} parent=1 // pred_check
      _
    $region3: #{_forward_jit.1} parent=1 // pred_check_branch
      %20 = sbr.rel (0) target = $region5
    $region4: #{_forward_jit.1} parent=1 // pred_region
      _
    $region5: #{_forward_jit.1} parent=1 // pred_fallthru
      _
    // Predicated region
    $region6: #{_forward_jit.1} parent=1 // pred_check
      _
    $region7: #{_forward_jit.1} parent=1 // pred_check_branch
      %22 = sbr.rel (0) target = $region9
    $region8: #{_forward_jit.1} parent=1 // pred_region
      %s23 = sld [smem:[#allocation13]]
      %s25 = ssub.s32 640, 640
      %26 = vsyncadd [#allocation15], %s25
      %s27 = smul.addr %s23, 40
      %s28 = smul.addr %s27, 16
      %s29 = scalar_lea.hbm %s11, %s28
      %s31 = sshll.u32 [#allocation14], 4
      %s32 = int_to_ptr.vmem [resolvable:$true] %s31
      %34 = dma.hbm_to_vmem [thread:$0]  %s29, 640, %s32, [#allocation15]
    $region9: #{_forward_jit.1} parent=1 // pred_fallthru
      _
    // Predicated region
    $region10: #{_forward_jit.1} parent=1 // pred_check
      _
    $region11: #{_forward_jit.1} parent=1 // pred_check_branch
      %36 = sbr.rel (0) target = $region13
    $region12: #{_forward_jit.1} parent=1 // pred_region
      %37 = dma.done [#allocation15], 640
    $region13: #{_forward_jit.1} parent=1 // pred_fallthru
      _
    %s38 = sld [smem:[#allocation13]]
    %s40 = sld [smem:[#allocation13]]
    %p41 = scmp.eq.s32.totalorder 0, 0
    // Predicated region
    $region14: #{_forward_jit.1} parent=1 // pred_check
      %p42 = pneg %p41
    $region15: #{_forward_jit.1} parent=1 // pred_check_branch
      %44 = sbr.rel (%p42) target = $region17
    $region16: #{_forward_jit.1} parent=1 // pred_region
      %s45 = smul.u32 %s40, 128
      %s46 = smul.addr %s45, 64
      %s47 = scalar_lea.hbm %s2, %s46
      // Predicated region
      $region18: #{_forward_jit.1} parent=16 // pred_check
        _
      $region19: #{_forward_jit.1} parent=16 // pred_check_branch
        %49 = sbr.rel target = $region21
      $region20: #{_forward_jit.1} parent=16 // pred_region
        %50 = sst [smem:[#allocation18]] [#allocation17]
        %51 = sst [smem:[#allocation19]] [#allocation16]
      $region21: #{_forward_jit.1} parent=16 // pred_fallthru
        _
      %53 = shalt.err (0)
      %s55 = sshll.u32 [#allocation2], 4
      %s56 = int_to_ptr.vmem [resolvable:$true] %s55
      %58 = dma.hbm_to_vmem [thread:$0]  %s47, 8192, %s56, [#allocation11]
      %s59 = smul.u32 %s40, 512
      %s60 = smul.addr %s59, 64
      %s61 = scalar_lea.hbm %s3, %s60
      %s62 = scalar_lea.sflag [#allocation11], 1
      // Predicated region
      $region22: #{_forward_jit.1} parent=16 // pred_check
        _
      $region23: #{_forward_jit.1} parent=16 // pred_check_branch
        %64 = sbr.rel target = $region25
      $region24: #{_forward_jit.1} parent=16 // pred_region
        %65 = sst [smem:[#allocation18]] [#allocation21]
        %66 = sst [smem:[#allocation19]] [#allocation20]
      $region25: #{_forward_jit.1} parent=16 // pred_fallthru
        _
      %68 = shalt.err (0)
      %s70 = sshll.u32 [#allocation3], 4
      %s71 = int_to_ptr.vmem [resolvable:$true] %s70
      %73 = dma.hbm_to_vmem [thread:$0]  %s61, 32768, %s71, %s62
      %s74 = smul.addr %s45, 64
      %s75 = scalar_lea.hbm %s4, %s74
      %s76 = scalar_lea.sflag [#allocation11], 2
      // Predicated region
      $region26: #{_forward_jit.1} parent=16 // pred_check
        _
      $region27: #{_forward_jit.1} parent=16 // pred_check_branch
        %78 = sbr.rel target = $region29
      $region28: #{_forward_jit.1} parent=16 // pred_region
        %79 = sst [smem:[#allocation18]] [#allocation23]
        %80 = sst [smem:[#allocation19]] [#allocation22]
      $region29: #{_forward_jit.1} parent=16 // pred_fallthru
        _
      %82 = shalt.err (0)
      %s84 = sshll.u32 [#allocation4], 4
      %s85 = int_to_ptr.vmem [resolvable:$true] %s84
      %87 = dma.hbm_to_vmem [thread:$0]  %s75, 8192, %s85, %s76
      %s88 = smul.u32 %s40, 32
      %s89 = smul.addr %s88, 64
      %s90 = scalar_lea.hbm %s5, %s89
      %s91 = scalar_lea.sflag [#allocation11], 3
      // Predicated region
      $region30: #{_forward_jit.1} parent=16 // pred_check
        _
      $region31: #{_forward_jit.1} parent=16 // pred_check_branch
        %93 = sbr.rel target = $region33
      $region32: #{_forward_jit.1} parent=16 // pred_region
        %94 = sst [smem:[#allocation18]] [#allocation25]
        %95 = sst [smem:[#allocation19]] [#allocation24]
      $region33: #{_forward_jit.1} parent=16 // pred_fallthru
        _
      %97 = shalt.err (0)
      %s99 = sshll.u32 [#allocation5], 4
      %s100 = int_to_ptr.vmem [resolvable:$true] %s99
      %102 = dma.hbm_to_vmem [thread:$0]  %s90, 2048, %s100, %s91
      %s103 = smul.u32 %s40, 160
      %s104 = smul.addr %s103, 64
      %s105 = scalar_lea.hbm %s6, %s104
      %s106 = scalar_lea.sflag [#allocation11], 4
      // Predicated region
      $region34: #{_forward_jit.1} parent=16 // pred_check
        _
      $region35: #{_forward_jit.1} parent=16 // pred_check_branch
        %108 = sbr.rel target = $region37
      $region36: #{_forward_jit.1} parent=16 // pred_region
        %109 = sst [smem:[#allocation18]] [#allocation27]
        %110 = sst [smem:[#allocation19]] [#allocation26]
      $region37: #{_forward_jit.1} parent=16 // pred_fallthru
        _
      %112 = shalt.err (0)
      %s114 = sshll.u32 [#allocation6], 4
      %s115 = int_to_ptr.vmem [resolvable:$true] %s114
      %117 = dma.hbm_to_vmem [thread:$0]  %s105, 10240, %s115, %s106
      %s118 = smul.addr %s88, 64
      %s119 = scalar_lea.hbm %s7, %s118
      %s120 = scalar_lea.sflag [#allocation11], 5
      // Predicated region
      $region38: #{_forward_jit.1} parent=16 // pred_check
        _
      $region39: #{_forward_jit.1} parent=16 // pred_check_branch
        %122 = sbr.rel target = $region41
      $region40: #{_forward_jit.1} parent=16 // pred_region
        %123 = sst [smem:[#allocation18]] [#allocation29]
        %124 = sst [smem:[#allocation19]] [#allocation28]
      $region41: #{_forward_jit.1} parent=16 // pred_fallthru
        _
      %126 = shalt.err (0)
      %s128 = sshll.u32 [#allocation7], 4
      %s129 = int_to_ptr.vmem [resolvable:$true] %s128
      %131 = dma.hbm_to_vmem [thread:$0]  %s119, 2048, %s129, %s120
      %s132 = smul.addr %s45, 64
      %s133 = scalar_lea.hbm %s8, %s132
      %s134 = scalar_lea.sflag [#allocation11], 6
      // Predicated region
      $region42: #{_forward_jit.1} parent=16 // pred_check
        _
      $region43: #{_forward_jit.1} parent=16 // pred_check_branch
        %136 = sbr.rel target = $region45
      $region44: #{_forward_jit.1} parent=16 // pred_region
        %137 = sst [smem:[#allocation18]] [#allocation31]
        %138 = sst [smem:[#allocation19]] [#allocation30]
      $region45: #{_forward_jit.1} parent=16 // pred_fallthru
        _
      %140 = shalt.err (0)
      %s142 = sshll.u32 [#allocation8], 4
      %s143 = int_to_ptr.vmem [resolvable:$true] %s142
      %145 = dma.hbm_to_vmem [thread:$0]  %s133, 8192, %s143, %s134
      %s146 = smul.addr %s59, 64
      %s147 = scalar_lea.hbm %s9, %s146
      %s148 = scalar_lea.sflag [#allocation11], 7
      // Predicated region
      $region46: #{_forward_jit.1} parent=16 // pred_check
        _
      $region47: #{_forward_jit.1} parent=16 // pred_check_branch
        %150 = sbr.rel target = $region49
      $region48: #{_forward_jit.1} parent=16 // pred_region
        %151 = sst [smem:[#allocation18]] [#allocation33]
        %152 = sst [smem:[#allocation19]] [#allocation32]
      $region49: #{_forward_jit.1} parent=16 // pred_fallthru
        _
      %154 = shalt.err (0)
      %s156 = sshll.u32 [#allocation9], 4
      %s157 = int_to_ptr.vmem [resolvable:$true] %s156
      %159 = dma.hbm_to_vmem [thread:$0]  %s147, 32768, %s157, %s148
      %s160 = smul.addr %s45, 64
      %s161 = scalar_lea.hbm %s10, %s160
      %s162 = scalar_lea.sflag [#allocation11], 8
      // Predicated region
      $region50: #{_forward_jit.1} parent=16 // pred_check
        _
      $region51: #{_forward_jit.1} parent=16 // pred_check_branch
        %164 = sbr.rel target = $region53
      $region52: #{_forward_jit.1} parent=16 // pred_region
        %165 = sst [smem:[#allocation18]] [#allocation35]
        %166 = sst [smem:[#allocation19]] [#allocation34]
      $region53: #{_forward_jit.1} parent=16 // pred_fallthru
        _
      %168 = shalt.err (0)
      %s170 = sshll.u32 [#allocation10], 4
      %s171 = int_to_ptr.vmem [resolvable:$true] %s170
      %173 = dma.hbm_to_vmem [thread:$0]  %s161, 8192, %s171, %s162
    $region17: #{_forward_jit.1} parent=1 // pred_fallthru
      _
    %v174 = vld [vmem:[%s1] sm:$0xff]
    %v175 = vld [vmem:[%s1 + $0x8] sm:$0xff]
    %v176 = vld [vmem:[%s1 + $0x10] sm:$0xff]
    %v177 = vld [vmem:[%s1 + $0x18] sm:$0xff]
    %v178 = vld [vmem:[%s1 + $0x20] sm:$0xff]
    %v179 = vld [vmem:[%s1 + $0x28] sm:$0xff]
    %v180 = vld [vmem:[%s1 + $0x30] sm:$0xff]
    %v181 = vld [vmem:[%s1 + $0x38] sm:$0xff]
    %v182 = vld [vmem:[%s1 + $0x40] sm:$0xff]
    %v183 = vld [vmem:[%s1 + $0x48] sm:$0xff]
    %v184 = vld [vmem:[%s1 + $0x50] sm:$0xff]
    %v185 = vld [vmem:[%s1 + $0x58] sm:$0xff]
    %v186 = vld [vmem:[%s1 + $0x60] sm:$0xff]
    %v187 = vld [vmem:[%s1 + $0x68] sm:$0xff]
    %v188 = vld [vmem:[%s1 + $0x70] sm:$0xff]
    %v189 = vld [vmem:[%s1 + $0x78] sm:$0xff]
    // Predicated region
    $region54: #{_forward_jit.1} parent=1 // pred_check
      %p190 = pneg %p41
    $region55: #{_forward_jit.1} parent=1 // pred_check_branch
      %192 = sbr.rel (%p190) target = $region57
    $region56: #{_forward_jit.1} parent=1 // pred_region
      %s193 = smul.u32 4, 16
      %s194 = smul.u32 %s193, 8
      %s195 = sshll.u32 %s194, 4
      %196 = dma.done [#allocation11], %s195
    $region57: #{_forward_jit.1} parent=1 // pred_fallthru
      _
    %v197 = vld [vmem:[#allocation2] sm:$0xff]
    %v198 = vld [vmem:[#allocation2 + $0x8] sm:$0xff]
    %v199 = vld [vmem:[#allocation2 + $0x10] sm:$0xff]
    %v200 = vld [vmem:[#allocation2 + $0x18] sm:$0xff]
    %v201 = vld [vmem:[#allocation2 + $0x20] sm:$0xff]
    %v202 = vld [vmem:[#allocation2 + $0x28] sm:$0xff]
    %v203 = vld [vmem:[#allocation2 + $0x30] sm:$0xff]
    %v204 = vld [vmem:[#allocation2 + $0x38] sm:$0xff]
    %v205 = vld [vmem:[#allocation2 + $0x40] sm:$0xff]
    %v206 = vld [vmem:[#allocation2 + $0x48] sm:$0xff]
    %v207 = vld [vmem:[#allocation2 + $0x50] sm:$0xff]
    %v208 = vld [vmem:[#allocation2 + $0x58] sm:$0xff]
    %v209 = vld [vmem:[#allocation2 + $0x60] sm:$0xff]
    %v210 = vld [vmem:[#allocation2 + $0x68] sm:$0xff]
    %v211 = vld [vmem:[#allocation2 + $0x70] sm:$0xff]
    %v212 = vld [vmem:[#allocation2 + $0x78] sm:$0xff]
    %v213 = vld [vmem:[#allocation2 + $0x80] sm:$0xff]
    %v214 = vld [vmem:[#allocation2 + $0x88] sm:$0xff]
    %v215 = vld [vmem:[#allocation2 + $0x90] sm:$0xff]
    %v216 = vld [vmem:[#allocation2 + $0x98] sm:$0xff]
    %v217 = vld [vmem:[#allocation2 + $0xa0] sm:$0xff]
    %v218 = vld [vmem:[#allocation2 + $0xa8] sm:$0xff]
    %v219 = vld [vmem:[#allocation2 + $0xb0] sm:$0xff]
    %v220 = vld [vmem:[#allocation2 + $0xb8] sm:$0xff]
    %v221 = vld [vmem:[#allocation2 + $0xc0] sm:$0xff]
    %v222 = vld [vmem:[#allocation2 + $0xc8] sm:$0xff]
    %v223 = vld [vmem:[#allocation2 + $0xd0] sm:$0xff]
    %v224 = vld [vmem:[#allocation2 + $0xd8] sm:$0xff]
    %v225 = vld [vmem:[#allocation2 + $0xe0] sm:$0xff]
    %v226 = vld [vmem:[#allocation2 + $0xe8] sm:$0xff]
    %v227 = vld [vmem:[#allocation2 + $0xf0] sm:$0xff]
    %v228 = vld [vmem:[#allocation2 + $0xf8] sm:$0xff]
    %v229 = vld [vmem:[#allocation2 + $0x100] sm:$0xff]
    %v230 = vld [vmem:[#allocation2 + $0x108] sm:$0xff]
    %v231 = vld [vmem:[#allocation2 + $0x110] sm:$0xff]
    %v232 = vld [vmem:[#allocation2 + $0x118] sm:$0xff]
    %v233 = vld [vmem:[#allocation2 + $0x120] sm:$0xff]
    %v234 = vld [vmem:[#allocation2 + $0x128] sm:$0xff]
    %v235 = vld [vmem:[#allocation2 + $0x130] sm:$0xff]
    %v236 = vld [vmem:[#allocation2 + $0x138] sm:$0xff]
    %v237 = vld [vmem:[#allocation2 + $0x140] sm:$0xff]
    %v238 = vld [vmem:[#allocation2 + $0x148] sm:$0xff]
    %v239 = vld [vmem:[#allocation2 + $0x150] sm:$0xff]
    %v240 = vld [vmem:[#allocation2 + $0x158] sm:$0xff]
    %v241 = vld [vmem:[#allocation2 + $0x160] sm:$0xff]
    %v242 = vld [vmem:[#allocation2 + $0x168] sm:$0xff]
    %v243 = vld [vmem:[#allocation2 + $0x170] sm:$0xff]
    %v244 = vld [vmem:[#allocation2 + $0x178] sm:$0xff]
    %v245 = vld [vmem:[#allocation2 + $0x180] sm:$0xff]
    %v246 = vld [vmem:[#allocation2 + $0x188] sm:$0xff]
    %v247 = vld [vmem:[#allocation2 + $0x190] sm:$0xff]
    %v248 = vld [vmem:[#allocation2 + $0x198] sm:$0xff]
    %v249 = vld [vmem:[#allocation2 + $0x1a0] sm:$0xff]
    %v250 = vld [vmem:[#allocation2 + $0x1a8] sm:$0xff]
    %v251 = vld [vmem:[#allocation2 + $0x1b0] sm:$0xff]
    %v252 = vld [vmem:[#allocation2 + $0x1b8] sm:$0xff]
    %v253 = vld [vmem:[#allocation2 + $0x1c0] sm:$0xff]
    %v254 = vld [vmem:[#allocation2 + $0x1c8] sm:$0xff]
    %v255 = vld [vmem:[#allocation2 + $0x1d0] sm:$0xff]
    %v256 = vld [vmem:[#allocation2 + $0x1d8] sm:$0xff]
    %v257 = vld [vmem:[#allocation2 + $0x1e0] sm:$0xff]
    %v258 = vld [vmem:[#allocation2 + $0x1e8] sm:$0xff]
    %v259 = vld [vmem:[#allocation2 + $0x1f0] sm:$0xff]
    %v260 = vld [vmem:[#allocation2 + $0x1f8] sm:$0xff]
    %v261 = vpack.c.bf16 %v175, %v174
    %v262 = vpack.c.bf16 %v177, %v176
    %v263 = vpack.c.bf16 %v179, %v178
    %v264 = vpack.c.bf16 %v181, %v180
    %v265 = vpack.c.bf16 %v183, %v182
    %v266 = vpack.c.bf16 %v185, %v184
    %v267 = vpack.c.bf16 %v187, %v186
    %v268 = vpack.c.bf16 %v189, %v188
    %v269 = vld [vmem:[#allocation14] sm:$0xff]
    %v271 = vlaneseq
    %v272 = vshrl.u32 %v271, 7
    %v273 = vsub.s32 0, %v272
    %v274 = vrot.slane %v269, %v273
    %v275 = vlaneseq
    %v276 = vshrl.u32 %v275, 7
    %v277 = vsub.s32 1, %v276
    %v278 = vrot.slane %v269, %v277
    %v279 = vlaneseq
    %v280 = vshrl.u32 %v279, 7
    %v281 = vsub.s32 2, %v280
    %v282 = vrot.slane %v269, %v281
    %v283 = vlaneseq
    %v284 = vshrl.u32 %v283, 7
    %v285 = vsub.s32 3, %v284
    %v286 = vrot.slane %v269, %v285
    %v287 = vlaneseq
    %v288 = vshrl.u32 %v287, 7
    %v289 = vsub.s32 4, %v288
    %v290 = vrot.slane %v269, %v289
    %v291 = vlaneseq
    %v292 = vshrl.u32 %v291, 7
    %v293 = vsub.s32 5, %v292
    %v294 = vrot.slane %v269, %v293
    %v295 = vlaneseq
    %v296 = vshrl.u32 %v295, 7
    %v297 = vsub.s32 6, %v296
    %v298 = vrot.slane %v269, %v297
    %v299 = vlaneseq
    %v300 = vshrl.u32 %v299, 7
    %v301 = vsub.s32 7, %v300
    %v302 = vrot.slane %v269, %v301
    %v375 = vunpack.c.l.b16 %v197
    %v376 = vunpack.c.h.b16 %v197
    %v377 = vunpack.c.l.b16 %v198
    %v378 = vunpack.c.h.b16 %v198
    %v379 = vunpack.c.l.b16 %v199
    %v380 = vunpack.c.h.b16 %v199
    %v381 = vunpack.c.l.b16 %v200
    %v382 = vunpack.c.h.b16 %v200
    %v383 = vunpack.c.l.b16 %v201
    %v384 = vunpack.c.h.b16 %v201
    %v385 = vunpack.c.l.b16 %v202
    %v386 = vunpack.c.h.b16 %v202
    %v387 = vunpack.c.l.b16 %v203
    %v388 = vunpack.c.h.b16 %v203
    %v389 = vunpack.c.l.b16 %v204
    %v390 = vunpack.c.h.b16 %v204
    %v391 = vunpack.c.l.b16 %v205
    %v392 = vunpack.c.h.b16 %v205
    %v393 = vunpack.c.l.b16 %v206
    %v394 = vunpack.c.h.b16 %v206
    %v395 = vunpack.c.l.b16 %v207
    %v396 = vunpack.c.h.b16 %v207
    %v397 = vunpack.c.l.b16 %v208
    %v398 = vunpack.c.h.b16 %v208
    %v399 = vunpack.c.l.b16 %v209
    %v400 = vunpack.c.h.b16 %v209
    %v401 = vunpack.c.l.b16 %v210
    %v402 = vunpack.c.h.b16 %v210
    %v403 = vunpack.c.l.b16 %v211
    %v404 = vunpack.c.h.b16 %v211
    %v405 = vunpack.c.l.b16 %v212
    %v406 = vunpack.c.h.b16 %v212
    %v407 = vunpack.c.l.b16 %v213
    %v408 = vunpack.c.h.b16 %v213
    %v409 = vunpack.c.l.b16 %v214
    %v410 = vunpack.c.h.b16 %v214
    %v411 = vunpack.c.l.b16 %v215
    %v412 = vunpack.c.h.b16 %v215
    %v413 = vunpack.c.l.b16 %v216
    %v414 = vunpack.c.h.b16 %v216
    %v415 = vunpack.c.l.b16 %v217
    %v416 = vunpack.c.h.b16 %v217
    %v417 = vunpack.c.l.b16 %v218
    %v418 = vunpack.c.h.b16 %v218
    %v419 = vunpack.c.l.b16 %v219
    %v420 = vunpack.c.h.b16 %v219
    %v421 = vunpack.c.l.b16 %v220
    %v422 = vunpack.c.h.b16 %v220
    %v423 = vunpack.c.l.b16 %v221
    %v424 = vunpack.c.h.b16 %v221
    %v425 = vunpack.c.l.b16 %v222
    %v426 = vunpack.c.h.b16 %v222
    %v427 = vunpack.c.l.b16 %v223
    %v428 = vunpack.c.h.b16 %v223
    %v429 = vunpack.c.l.b16 %v224
    %v430 = vunpack.c.h.b16 %v224
    %v431 = vunpack.c.l.b16 %v225
    %v432 = vunpack.c.h.b16 %v225
    %v433 = vunpack.c.l.b16 %v226
    %v434 = vunpack.c.h.b16 %v226
    %v435 = vunpack.c.l.b16 %v227
    %v436 = vunpack.c.h.b16 %v227
    %v437 = vunpack.c.l.b16 %v228
    %v438 = vunpack.c.h.b16 %v228
    %v439 = vunpack.c.l.b16 %v229
    %v440 = vunpack.c.h.b16 %v229
    %v441 = vunpack.c.l.b16 %v230
    %v442 = vunpack.c.h.b16 %v230
    %v443 = vunpack.c.l.b16 %v231
    %v444 = vunpack.c.h.b16 %v231
    %v445 = vunpack.c.l.b16 %v232
    %v446 = vunpack.c.h.b16 %v232
    %v447 = vunpack.c.l.b16 %v233
    %v448 = vunpack.c.h.b16 %v233
    %v449 = vunpack.c.l.b16 %v234
    %v450 = vunpack.c.h.b16 %v234
    %v451 = vunpack.c.l.b16 %v235
    %v452 = vunpack.c.h.b16 %v235
    %v453 = vunpack.c.l.b16 %v236
    %v454 = vunpack.c.h.b16 %v236
    %v455 = vunpack.c.l.b16 %v237
    %v456 = vunpack.c.h.b16 %v237
    %v457 = vunpack.c.l.b16 %v238
    %v458 = vunpack.c.h.b16 %v238
    %v459 = vunpack.c.l.b16 %v239
    %v460 = vunpack.c.h.b16 %v239
    %v461 = vunpack.c.l.b16 %v240
    %v462 = vunpack.c.h.b16 %v240
    %v463 = vunpack.c.l.b16 %v241
    %v464 = vunpack.c.h.b16 %v241
    %v465 = vunpack.c.l.b16 %v242
    %v466 = vunpack.c.h.b16 %v242
    %v467 = vunpack.c.l.b16 %v243
    %v468 = vunpack.c.h.b16 %v243
    %v469 = vunpack.c.l.b16 %v244
    %v470 = vunpack.c.h.b16 %v244
    %v471 = vunpack.c.l.b16 %v245
    %v472 = vunpack.c.h.b16 %v245
    %v473 = vunpack.c.l.b16 %v246
    %v474 = vunpack.c.h.b16 %v246
    %v475 = vunpack.c.l.b16 %v247
    %v476 = vunpack.c.h.b16 %v247
    %v477 = vunpack.c.l.b16 %v248
    %v478 = vunpack.c.h.b16 %v248
    %v479 = vunpack.c.l.b16 %v249
    %v480 = vunpack.c.h.b16 %v249
    %v481 = vunpack.c.l.b16 %v250
    %v482 = vunpack.c.h.b16 %v250
    %v483 = vunpack.c.l.b16 %v251
    %v484 = vunpack.c.h.b16 %v251
    %v485 = vunpack.c.l.b16 %v252
    %v486 = vunpack.c.h.b16 %v252
    %v487 = vunpack.c.l.b16 %v253
    %v488 = vunpack.c.h.b16 %v253
    %v489 = vunpack.c.l.b16 %v254
    %v490 = vunpack.c.h.b16 %v254
    %v491 = vunpack.c.l.b16 %v255
    %v492 = vunpack.c.h.b16 %v255
    %v493 = vunpack.c.l.b16 %v256
    %v494 = vunpack.c.h.b16 %v256
    %v495 = vunpack.c.l.b16 %v257
    %v496 = vunpack.c.h.b16 %v257
    %v497 = vunpack.c.l.b16 %v258
    %v498 = vunpack.c.h.b16 %v258
    %v499 = vunpack.c.l.b16 %v259
    %v500 = vunpack.c.h.b16 %v259
    %v501 = vunpack.c.l.b16 %v260
    %v502 = vunpack.c.h.b16 %v260
    %v503 = vpack.c.b16 %v383, %v375
    %v504 = vpack.c.b16 %v384, %v376
    %v505 = vpack.c.b16 %v385, %v377
    %v506 = vpack.c.b16 %v386, %v378
    %v507 = vpack.c.b16 %v387, %v379
    %v508 = vpack.c.b16 %v388, %v380
    %v509 = vpack.c.b16 %v389, %v381
    %v510 = vpack.c.b16 %v390, %v382
    %v511 = vpack.c.b16 %v399, %v391
    %v512 = vpack.c.b16 %v400, %v392
    %v513 = vpack.c.b16 %v401, %v393
    %v514 = vpack.c.b16 %v402, %v394
    %v515 = vpack.c.b16 %v403, %v395
    %v516 = vpack.c.b16 %v404, %v396
    %v517 = vpack.c.b16 %v405, %v397
    %v518 = vpack.c.b16 %v406, %v398
    %v519 = vpack.c.b16 %v415, %v407
    %v520 = vpack.c.b16 %v416, %v408
    %v521 = vpack.c.b16 %v417, %v409
    %v522 = vpack.c.b16 %v418, %v410
    %v523 = vpack.c.b16 %v419, %v411
    %v524 = vpack.c.b16 %v420, %v412
    %v525 = vpack.c.b16 %v421, %v413
    %v526 = vpack.c.b16 %v422, %v414
    %v527 = vpack.c.b16 %v431, %v423
    %v528 = vpack.c.b16 %v432, %v424
    %v529 = vpack.c.b16 %v433, %v425
    %v530 = vpack.c.b16 %v434, %v426
    %v531 = vpack.c.b16 %v435, %v427
    %v532 = vpack.c.b16 %v436, %v428
    %v533 = vpack.c.b16 %v437, %v429
    %v534 = vpack.c.b16 %v438, %v430
    %v535 = vpack.c.b16 %v447, %v439
    %v536 = vpack.c.b16 %v448, %v440
    %v537 = vpack.c.b16 %v449, %v441
    %v538 = vpack.c.b16 %v450, %v442
    %v539 = vpack.c.b16 %v451, %v443
    %v540 = vpack.c.b16 %v452, %v444
    %v541 = vpack.c.b16 %v453, %v445
    %v542 = vpack.c.b16 %v454, %v446
    %v543 = vpack.c.b16 %v463, %v455
    %v544 = vpack.c.b16 %v464, %v456
    %v545 = vpack.c.b16 %v465, %v457
    %v546 = vpack.c.b16 %v466, %v458
    %v547 = vpack.c.b16 %v467, %v459
    %v548 = vpack.c.b16 %v468, %v460
    %v549 = vpack.c.b16 %v469, %v461
    %v550 = vpack.c.b16 %v470, %v462
    %v551 = vpack.c.b16 %v479, %v471
    %v552 = vpack.c.b16 %v480, %v472
    %v553 = vpack.c.b16 %v481, %v473
    %v554 = vpack.c.b16 %v482, %v474
    %v555 = vpack.c.b16 %v483, %v475
    %v556 = vpack.c.b16 %v484, %v476
    %v557 = vpack.c.b16 %v485, %v477
    %v558 = vpack.c.b16 %v486, %v478
    %v559 = vpack.c.b16 %v495, %v487
    %v560 = vpack.c.b16 %v496, %v488
    %v561 = vpack.c.b16 %v497, %v489
    %v562 = vpack.c.b16 %v498, %v490
    %v563 = vpack.c.b16 %v499, %v491
    %v564 = vpack.c.b16 %v500, %v492
    %v565 = vpack.c.b16 %v501, %v493
    %v566 = vpack.c.b16 %v502, %v494
    %631 = vmatprep.subr.bf16.mxu0 %v560
    %632 = vmatpush1.bf16.msra.mxu0 %v559
    %633 = vmatprep.subr.bf16.mxu0 %v552
    %634 = vmatpush1.bf16.msra.mxu0 %v551
    %635 = vmatprep.subr.bf16.mxu0 %v544
    %636 = vmatpush1.bf16.msra.mxu0 %v543
    %637 = vmatprep.subr.bf16.mxu0 %v536
    %638 = vmatpush1.bf16.msra.mxu0 %v535
    %639 = vmatprep.subr.bf16.mxu0 %v528
    %640 = vmatpush1.bf16.msra.mxu0 %v527
    %641 = vmatprep.subr.bf16.mxu0 %v520
    %642 = vmatpush1.bf16.msra.mxu0 %v519
    %643 = vmatprep.subr.bf16.mxu0 %v512
    %644 = vmatpush1.bf16.msra.mxu0 %v511
    %645 = vmatprep.subr.bf16.mxu0 %v504
    %646 = vmatpush1.bf16.msra.mxu0 %v503
    %647 = vmatprep.subr.bf16.mxu0 0
    %648 = vmatpush2.bf16.msra.mxu0 0
    %649 = vmatprep.subr.bf16.mxu0 0
    %650 = vmatpush2.bf16.msra.mxu0 0
    %651 = vmatprep.subr.bf16.mxu0 0
    %652 = vmatpush2.bf16.msra.mxu0 0
    %653 = vmatprep.subr.bf16.mxu0 0
    %654 = vmatpush2.bf16.msra.mxu0 0
    %655 = vmatprep.subr.bf16.mxu0 0
    %656 = vmatpush2.bf16.msra.mxu0 0
    %657 = vmatprep.subr.bf16.mxu0 0
    %658 = vmatpush2.bf16.msra.mxu0 0
    %659 = vmatprep.subr.bf16.mxu0 0
    %660 = vmatpush2.bf16.msra.mxu0 0
    %661 = vmatprep.subr.bf16.mxu0 0
    %662 = vmatpush2.bf16.msra.mxu0 0
    %663 = vmatprep.mubr.bf16.mxu0 0
    %664 = vmatmul.mubr.bf16.gmra.mxu0 %v261
    %v665 = vpop.f32.mrf.mxu0
    %v666 = vadd.f32 %v274, %v665
    %v667 = vpop.f32.mrf.mxu0
    %v668 = vadd.f32 %v278, %v667
    %v669 = vpop.f32.mrf.mxu0
    %v670 = vadd.f32 %v274, %v669
    %v671 = vpop.f32.mrf.mxu0
    %v672 = vadd.f32 %v278, %v671
    %673 = vmatprep.mubr.bf16.mxu0 0
    %674 = vmatmul.mubr.bf16.gmra.mxu0 %v262
    %v675 = vpop.f32.mrf.mxu0
    %v676 = vadd.f32 %v274, %v675
    %v677 = vpop.f32.mrf.mxu0
    %v678 = vadd.f32 %v278, %v677
    %v679 = vpop.f32.mrf.mxu0
    %v680 = vadd.f32 %v274, %v679
    %v681 = vpop.f32.mrf.mxu0
    %v682 = vadd.f32 %v278, %v681
    %683 = vmatprep.mubr.bf16.mxu0 0
    %684 = vmatmul.mubr.bf16.gmra.mxu0 %v263
    %v685 = vpop.f32.mrf.mxu0
    %v686 = vadd.f32 %v274, %v685
    %v687 = vpop.f32.mrf.mxu0
    %v688 = vadd.f32 %v278, %v687
    %v689 = vpop.f32.mrf.mxu0
    %v690 = vadd.f32 %v274, %v689
    %v691 = vpop.f32.mrf.mxu0
    %v692 = vadd.f32 %v278, %v691
    %693 = vmatprep.mubr.bf16.mxu0 0
    %694 = vmatmul.mubr.bf16.gmra.mxu0 %v264
    %v695 = vpop.f32.mrf.mxu0
    %v696 = vadd.f32 %v274, %v695
    %v697 = vpop.f32.mrf.mxu0
    %v698 = vadd.f32 %v278, %v697
    %v699 = vpop.f32.mrf.mxu0
    %v700 = vadd.f32 %v274, %v699
    %v701 = vpop.f32.mrf.mxu0
    %v702 = vadd.f32 %v278, %v701
    %703 = vmatprep.mubr.bf16.mxu0 0
    %704 = vmatmul.mubr.bf16.gmra.mxu0 %v265
    %v705 = vpop.f32.mrf.mxu0
    %v706 = vadd.f32 %v274, %v705
    %v707 = vpop.f32.mrf.mxu0
    %v708 = vadd.f32 %v278, %v707
    %v709 = vpop.f32.mrf.mxu0
    %v710 = vadd.f32 %v274, %v709
    %v711 = vpop.f32.mrf.mxu0
    %v712 = vadd.f32 %v278, %v711
    %713 = vmatprep.mubr.bf16.mxu0 0
    %714 = vmatmul.mubr.bf16.gmra.mxu0 %v266
    %v715 = vpop.f32.mrf.mxu0
    %v716 = vadd.f32 %v274, %v715
    %v717 = vpop.f32.mrf.mxu0
    %v718 = vadd.f32 %v278, %v717
    %v719 = vpop.f32.mrf.mxu0
    %v720 = vadd.f32 %v274, %v719
    %v721 = vpop.f32.mrf.mxu0
    %v722 = vadd.f32 %v278, %v721
    %723 = vmatprep.mubr.bf16.mxu0 0
    %724 = vmatmul.mubr.bf16.gmra.mxu0 %v267
    %v725 = vpop.f32.mrf.mxu0
    %v726 = vadd.f32 %v274, %v725
    %v727 = vpop.f32.mrf.mxu0
    %v728 = vadd.f32 %v278, %v727
    %v729 = vpop.f32.mrf.mxu0
    %v730 = vadd.f32 %v274, %v729
    %v731 = vpop.f32.mrf.mxu0
    %v732 = vadd.f32 %v278, %v731
    %733 = vmatprep.mubr.bf16.mxu0 0
    %734 = vmatmul.mubr.bf16.gmra.mxu0 %v268
    %v735 = vpop.f32.mrf.mxu0
    %v736 = vadd.f32 %v274, %v735
    %v737 = vpop.f32.mrf.mxu0
    %v738 = vadd.f32 %v278, %v737
    %v739 = vpop.f32.mrf.mxu0
    %v740 = vadd.f32 %v274, %v739
    %v741 = vpop.f32.mrf.mxu0
    %v742 = vadd.f32 %v278, %v741
    %743 = vdwg.mxu0
    %744 = vmatprep.subr.bf16.mxu0 %v562
    %745 = vmatpush1.bf16.msra.mxu0 %v561
    %746 = vmatprep.subr.bf16.mxu0 %v554
    %747 = vmatpush1.bf16.msra.mxu0 %v553
    %748 = vmatprep.subr.bf16.mxu0 %v546
    %749 = vmatpush1.bf16.msra.mxu0 %v545
    %750 = vmatprep.subr.bf16.mxu0 %v538
    %751 = vmatpush1.bf16.msra.mxu0 %v537
    %752 = vmatprep.subr.bf16.mxu0 %v530
    %753 = vmatpush1.bf16.msra.mxu0 %v529
    %754 = vmatprep.subr.bf16.mxu0 %v522
    %755 = vmatpush1.bf16.msra.mxu0 %v521
    %756 = vmatprep.subr.bf16.mxu0 %v514
    %757 = vmatpush1.bf16.msra.mxu0 %v513
    %758 = vmatprep.subr.bf16.mxu0 %v506
    %759 = vmatpush1.bf16.msra.mxu0 %v505
    %760 = vmatprep.subr.bf16.mxu0 0
    %761 = vmatpush2.bf16.msra.mxu0 0
    %762 = vmatprep.subr.bf16.mxu0 0
    %763 = vmatpush2.bf16.msra.mxu0 0
    %764 = vmatprep.subr.bf16.mxu0 0
    %765 = vmatpush2.bf16.msra.mxu0 0
    %766 = vmatprep.subr.bf16.mxu0 0
    %767 = vmatpush2.bf16.msra.mxu0 0
    %768 = vmatprep.subr.bf16.mxu0 0
    %769 = vmatpush2.bf16.msra.mxu0 0
    %770 = vmatprep.subr.bf16.mxu0 0
    %771 = vmatpush2.bf16.msra.mxu0 0
    %772 = vmatprep.subr.bf16.mxu0 0
    %773 = vmatpush2.bf16.msra.mxu0 0
    %774 = vmatprep.subr.bf16.mxu0 0
    %775 = vmatpush2.bf16.msra.mxu0 0
    %776 = vmatprep.mubr.bf16.mxu0 0
    %777 = vmatmul.mubr.bf16.gmra.mxu0 %v261
    %v778 = vpop.f32.mrf.mxu0
    %v779 = vadd.f32 %v282, %v778
    %v780 = vpop.f32.mrf.mxu0
    %v781 = vadd.f32 %v286, %v780
    %v782 = vpop.f32.mrf.mxu0
    %v783 = vadd.f32 %v282, %v782
    %v784 = vpop.f32.mrf.mxu0
    %v785 = vadd.f32 %v286, %v784
    %786 = vmatprep.mubr.bf16.mxu0 0
    %787 = vmatmul.mubr.bf16.gmra.mxu0 %v262
    %v788 = vpop.f32.mrf.mxu0
    %v789 = vadd.f32 %v282, %v788
    %v790 = vpop.f32.mrf.mxu0
    %v791 = vadd.f32 %v286, %v790
    %v792 = vpop.f32.mrf.mxu0
    %v793 = vadd.f32 %v282, %v792
    %v794 = vpop.f32.mrf.mxu0
    %v795 = vadd.f32 %v286, %v794
    %796 = vmatprep.mubr.bf16.mxu0 0
    %797 = vmatmul.mubr.bf16.gmra.mxu0 %v263
    %v798 = vpop.f32.mrf.mxu0
    %v799 = vadd.f32 %v282, %v798
    %v800 = vpop.f32.mrf.mxu0
    %v801 = vadd.f32 %v286, %v800
    %v802 = vpop.f32.mrf.mxu0
    %v803 = vadd.f32 %v282, %v802
    %v804 = vpop.f32.mrf.mxu0
    %v805 = vadd.f32 %v286, %v804
    %806 = vmatprep.mubr.bf16.mxu0 0
    %807 = vmatmul.mubr.bf16.gmra.mxu0 %v264
    %v808 = vpop.f32.mrf.mxu0
    %v809 = vadd.f32 %v282, %v808
    %v810 = vpop.f32.mrf.mxu0
    %v811 = vadd.f32 %v286, %v810
    %v812 = vpop.f32.mrf.mxu0
    %v813 = vadd.f32 %v282, %v812
    %v814 = vpop.f32.mrf.mxu0
    %v815 = vadd.f32 %v286, %v814
    %816 = vmatprep.mubr.bf16.mxu0 0
    %817 = vmatmul.mubr.bf16.gmra.mxu0 %v265
    %v818 = vpop.f32.mrf.mxu0
    %v819 = vadd.f32 %v282, %v818
    %v820 = vpop.f32.mrf.mxu0
    %v821 = vadd.f32 %v286, %v820
    %v822 = vpop.f32.mrf.mxu0
    %v823 = vadd.f32 %v282, %v822
    %v824 = vpop.f32.mrf.mxu0
    %v825 = vadd.f32 %v286, %v824
    %826 = vmatprep.mubr.bf16.mxu0 0
    %827 = vmatmul.mubr.bf16.gmra.mxu0 %v266
    %v828 = vpop.f32.mrf.mxu0
    %v829 = vadd.f32 %v282, %v828
    %v830 = vpop.f32.mrf.mxu0
    %v831 = vadd.f32 %v286, %v830
    %v832 = vpop.f32.mrf.mxu0
    %v833 = vadd.f32 %v282, %v832
    %v834 = vpop.f32.mrf.mxu0
    %v835 = vadd.f32 %v286, %v834
    %836 = vmatprep.mubr.bf16.mxu0 0
    %837 = vmatmul.mubr.bf16.gmra.mxu0 %v267
    %v838 = vpop.f32.mrf.mxu0
    %v839 = vadd.f32 %v282, %v838
    %v840 = vpop.f32.mrf.mxu0
    %v841 = vadd.f32 %v286, %v840
    %v842 = vpop.f32.mrf.mxu0
    %v843 = vadd.f32 %v282, %v842
    %v844 = vpop.f32.mrf.mxu0
    %v845 = vadd.f32 %v286, %v844
    %846 = vmatprep.mubr.bf16.mxu0 0
    %847 = vmatmul.mubr.bf16.gmra.mxu0 %v268
    %v848 = vpop.f32.mrf.mxu0
    %v849 = vadd.f32 %v282, %v848
    %v850 = vpop.f32.mrf.mxu0
    %v851 = vadd.f32 %v286, %v850
    %v852 = vpop.f32.mrf.mxu0
    %v853 = vadd.f32 %v282, %v852
    %v854 = vpop.f32.mrf.mxu0
    %v855 = vadd.f32 %v286, %v854
    %856 = vdwg.mxu0
    %857 = vmatprep.subr.bf16.mxu0 %v564
    %858 = vmatpush1.bf16.msra.mxu0 %v563
    %859 = vmatprep.subr.bf16.mxu0 %v556
    %860 = vmatpush1.bf16.msra.mxu0 %v555
    %861 = vmatprep.subr.bf16.mxu0 %v548
    %862 = vmatpush1.bf16.msra.mxu0 %v547
    %863 = vmatprep.subr.bf16.mxu0 %v540
    %864 = vmatpush1.bf16.msra.mxu0 %v539
    %865 = vmatprep.subr.bf16.mxu0 %v532
    %866 = vmatpush1.bf16.msra.mxu0 %v531
    %867 = vmatprep.subr.bf16.mxu0 %v524
    %868 = vmatpush1.bf16.msra.mxu0 %v523
    %869 = vmatprep.subr.bf16.mxu0 %v516
    %870 = vmatpush1.bf16.msra.mxu0 %v515
    %871 = vmatprep.subr.bf16.mxu0 %v508
    %872 = vmatpush1.bf16.msra.mxu0 %v507
    %873 = vmatprep.subr.bf16.mxu0 0
    %874 = vmatpush2.bf16.msra.mxu0 0
    %875 = vmatprep.subr.bf16.mxu0 0
    %876 = vmatpush2.bf16.msra.mxu0 0
    %877 = vmatprep.subr.bf16.mxu0 0
    %878 = vmatpush2.bf16.msra.mxu0 0
    %879 = vmatprep.subr.bf16.mxu0 0
    %880 = vmatpush2.bf16.msra.mxu0 0
    %881 = vmatprep.subr.bf16.mxu0 0
    %882 = vmatpush2.bf16.msra.mxu0 0
    %883 = vmatprep.subr.bf16.mxu0 0
    %884 = vmatpush2.bf16.msra.mxu0 0
    %885 = vmatprep.subr.bf16.mxu0 0
    %886 = vmatpush2.bf16.msra.mxu0 0
    %887 = vmatprep.subr.bf16.mxu0 0
    %888 = vmatpush2.bf16.msra.mxu0 0
    %889 = vmatprep.mubr.bf16.mxu0 0
    %890 = vmatmul.mubr.bf16.gmra.mxu0 %v261
    %v891 = vpop.f32.mrf.mxu0
    %v892 = vadd.f32 %v290, %v891
    %v893 = vpop.f32.mrf.mxu0
    %v894 = vadd.f32 %v294, %v893
    %v895 = vpop.f32.mrf.mxu0
    %v896 = vadd.f32 %v290, %v895
    %v897 = vpop.f32.mrf.mxu0
    %v898 = vadd.f32 %v294, %v897
    %899 = vmatprep.mubr.bf16.mxu0 0
    %900 = vmatmul.mubr.bf16.gmra.mxu0 %v262
    %v901 = vpop.f32.mrf.mxu0
    %v902 = vadd.f32 %v290, %v901
    %v903 = vpop.f32.mrf.mxu0
    %v904 = vadd.f32 %v294, %v903
    %v905 = vpop.f32.mrf.mxu0
    %v906 = vadd.f32 %v290, %v905
    %v907 = vpop.f32.mrf.mxu0
    %v908 = vadd.f32 %v294, %v907
    %909 = vmatprep.mubr.bf16.mxu0 0
    %910 = vmatmul.mubr.bf16.gmra.mxu0 %v263
    %v911 = vpop.f32.mrf.mxu0
    %v912 = vadd.f32 %v290, %v911
    %v913 = vpop.f32.mrf.mxu0
    %v914 = vadd.f32 %v294, %v913
    %v915 = vpop.f32.mrf.mxu0
    %v916 = vadd.f32 %v290, %v915
    %v917 = vpop.f32.mrf.mxu0
    %v918 = vadd.f32 %v294, %v917
    %919 = vmatprep.mubr.bf16.mxu0 0
    %920 = vmatmul.mubr.bf16.gmra.mxu0 %v264
    %v921 = vpop.f32.mrf.mxu0
    %v922 = vadd.f32 %v290, %v921
    %v923 = vpop.f32.mrf.mxu0
    %v924 = vadd.f32 %v294, %v923
    %v925 = vpop.f32.mrf.mxu0
    %v926 = vadd.f32 %v290, %v925
    %v927 = vpop.f32.mrf.mxu0
    %v928 = vadd.f32 %v294, %v927
    %929 = vmatprep.mubr.bf16.mxu0 0
    %930 = vmatmul.mubr.bf16.gmra.mxu0 %v265
    %v931 = vpop.f32.mrf.mxu0
    %v932 = vadd.f32 %v290, %v931
    %v933 = vpop.f32.mrf.mxu0
    %v934 = vadd.f32 %v294, %v933
    %v935 = vpop.f32.mrf.mxu0
    %v936 = vadd.f32 %v290, %v935
    %v937 = vpop.f32.mrf.mxu0
    %v938 = vadd.f32 %v294, %v937
    %939 = vmatprep.mubr.bf16.mxu0 0
    %940 = vmatmul.mubr.bf16.gmra.mxu0 %v266
    %v941 = vpop.f32.mrf.mxu0
    %v942 = vadd.f32 %v290, %v941
    %v943 = vpop.f32.mrf.mxu0
    %v944 = vadd.f32 %v294, %v943
    %v945 = vpop.f32.mrf.mxu0
    %v946 = vadd.f32 %v290, %v945
    %v947 = vpop.f32.mrf.mxu0
    %v948 = vadd.f32 %v294, %v947
    %949 = vmatprep.mubr.bf16.mxu0 0
    %950 = vmatmul.mubr.bf16.gmra.mxu0 %v267
    %v951 = vpop.f32.mrf.mxu0
    %v952 = vadd.f32 %v290, %v951
    %v953 = vpop.f32.mrf.mxu0
    %v954 = vadd.f32 %v294, %v953
    %v955 = vpop.f32.mrf.mxu0
    %v956 = vadd.f32 %v290, %v955
    %v957 = vpop.f32.mrf.mxu0
    %v958 = vadd.f32 %v294, %v957
    %959 = vmatprep.mubr.bf16.mxu0 0
    %960 = vmatmul.mubr.bf16.gmra.mxu0 %v268
    %v961 = vpop.f32.mrf.mxu0
    %v962 = vadd.f32 %v290, %v961
    %v963 = vpop.f32.mrf.mxu0
    %v964 = vadd.f32 %v294, %v963
    %v965 = vpop.f32.mrf.mxu0
    %v966 = vadd.f32 %v290, %v965
    %v967 = vpop.f32.mrf.mxu0
    %v968 = vadd.f32 %v294, %v967
    %969 = vdwg.mxu0
    %970 = vmatprep.subr.bf16.mxu0 %v566
    %971 = vmatpush1.bf16.msra.mxu0 %v565
    %972 = vmatprep.subr.bf16.mxu0 %v558
    %973 = vmatpush1.bf16.msra.mxu0 %v557
    %974 = vmatprep.subr.bf16.mxu0 %v550
    %975 = vmatpush1.bf16.msra.mxu0 %v549
    %976 = vmatprep.subr.bf16.mxu0 %v542
    %977 = vmatpush1.bf16.msra.mxu0 %v541
    %978 = vmatprep.subr.bf16.mxu0 %v534
    %979 = vmatpush1.bf16.msra.mxu0 %v533
    %980 = vmatprep.subr.bf16.mxu0 %v526
    %981 = vmatpush1.bf16.msra.mxu0 %v525
    %982 = vmatprep.subr.bf16.mxu0 %v518
    %983 = vmatpush1.bf16.msra.mxu0 %v517
    %984 = vmatprep.subr.bf16.mxu0 %v510
    %985 = vmatpush1.bf16.msra.mxu0 %v509
    %986 = vmatprep.subr.bf16.mxu0 0
    %987 = vmatpush2.bf16.msra.mxu0 0
    %988 = vmatprep.subr.bf16.mxu0 0
    %989 = vmatpush2.bf16.msra.mxu0 0
    %990 = vmatprep.subr.bf16.mxu0 0
    %991 = vmatpush2.bf16.msra.mxu0 0
    %992 = vmatprep.subr.bf16.mxu0 0
    %993 = vmatpush2.bf16.msra.mxu0 0
    %994 = vmatprep.subr.bf16.mxu0 0
    %995 = vmatpush2.bf16.msra.mxu0 0
    %996 = vmatprep.subr.bf16.mxu0 0
    %997 = vmatpush2.bf16.msra.mxu0 0
    %998 = vmatprep.subr.bf16.mxu0 0
    %999 = vmatpush2.bf16.msra.mxu0 0
    %1000 = vmatprep.subr.bf16.mxu0 0
    %1001 = vmatpush2.bf16.msra.mxu0 0
    %1002 = vmatprep.mubr.bf16.mxu0 0
    %1003 = vmatmul.mubr.bf16.gmra.mxu0 %v261
    %v1004 = vpop.f32.mrf.mxu0
    %v1005 = vadd.f32 %v298, %v1004
    %v1006 = vpop.f32.mrf.mxu0
    %v1007 = vadd.f32 %v302, %v1006
    %v1008 = vpop.f32.mrf.mxu0
    %v1009 = vadd.f32 %v298, %v1008
    %v1010 = vpop.f32.mrf.mxu0
    %v1011 = vadd.f32 %v302, %v1010
    %1012 = vmatprep.mubr.bf16.mxu0 0
    %1013 = vmatmul.mubr.bf16.gmra.mxu0 %v262
    %v1014 = vpop.f32.mrf.mxu0
    %v1015 = vadd.f32 %v298, %v1014
    %v1016 = vpop.f32.mrf.mxu0
    %v1017 = vadd.f32 %v302, %v1016
    %v1018 = vpop.f32.mrf.mxu0
    %v1019 = vadd.f32 %v298, %v1018
    %v1020 = vpop.f32.mrf.mxu0
    %v1021 = vadd.f32 %v302, %v1020
    %1022 = vmatprep.mubr.bf16.mxu0 0
    %1023 = vmatmul.mubr.bf16.gmra.mxu0 %v263
    %v1024 = vpop.f32.mrf.mxu0
    %v1025 = vadd.f32 %v298, %v1024
    %v1026 = vpop.f32.mrf.mxu0
    %v1027 = vadd.f32 %v302, %v1026
    %v1028 = vpop.f32.mrf.mxu0
    %v1029 = vadd.f32 %v298, %v1028
    %v1030 = vpop.f32.mrf.mxu0
    %v1031 = vadd.f32 %v302, %v1030
    %1032 = vmatprep.mubr.bf16.mxu0 0
    %1033 = vmatmul.mubr.bf16.gmra.mxu0 %v264
    %v1034 = vpop.f32.mrf.mxu0
    %v1035 = vadd.f32 %v298, %v1034
    %v1036 = vpop.f32.mrf.mxu0
    %v1037 = vadd.f32 %v302, %v1036
    %v1038 = vpop.f32.mrf.mxu0
    %v1039 = vadd.f32 %v298, %v1038
    %v1040 = vpop.f32.mrf.mxu0
    %v1041 = vadd.f32 %v302, %v1040
    %1042 = vmatprep.mubr.bf16.mxu0 0
    %1043 = vmatmul.mubr.bf16.gmra.mxu0 %v265
    %v1044 = vpop.f32.mrf.mxu0
    %v1045 = vadd.f32 %v298, %v1044
    %v1046 = vpop.f32.mrf.mxu0
    %v1047 = vadd.f32 %v302, %v1046
    %v1048 = vpop.f32.mrf.mxu0
    %v1049 = vadd.f32 %v298, %v1048
    %v1050 = vpop.f32.mrf.mxu0
    %v1051 = vadd.f32 %v302, %v1050
    %1052 = vmatprep.mubr.bf16.mxu0 0
    %1053 = vmatmul.mubr.bf16.gmra.mxu0 %v266
    %v1054 = vpop.f32.mrf.mxu0
    %v1055 = vadd.f32 %v298, %v1054
    %v1056 = vpop.f32.mrf.mxu0
    %v1057 = vadd.f32 %v302, %v1056
    %v1058 = vpop.f32.mrf.mxu0
    %v1059 = vadd.f32 %v298, %v1058
    %v1060 = vpop.f32.mrf.mxu0
    %v1061 = vadd.f32 %v302, %v1060
    %1062 = vmatprep.mubr.bf16.mxu0 0
    %1063 = vmatmul.mubr.bf16.gmra.mxu0 %v267
    %v1064 = vpop.f32.mrf.mxu0
    %v1065 = vadd.f32 %v298, %v1064
    %v1066 = vpop.f32.mrf.mxu0
    %v1067 = vadd.f32 %v302, %v1066
    %v1068 = vpop.f32.mrf.mxu0
    %v1069 = vadd.f32 %v298, %v1068
    %v1070 = vpop.f32.mrf.mxu0
    %v1071 = vadd.f32 %v302, %v1070
    %1072 = vmatprep.mubr.bf16.mxu0 0
    %1073 = vmatmul.mubr.bf16.gmra.mxu0 %v268
    %v1074 = vpop.f32.mrf.mxu0
    %v1075 = vadd.f32 %v298, %v1074
    %v1076 = vpop.f32.mrf.mxu0
    %v1077 = vadd.f32 %v302, %v1076
    %v1078 = vpop.f32.mrf.mxu0
    %v1079 = vadd.f32 %v298, %v1078
    %v1080 = vpop.f32.mrf.mxu0
    %v1081 = vadd.f32 %v302, %v1080
    %1082 = vdwg.mxu0
    %v1083 = vmax.f32 %v666, 0.0
    %v1084 = vmax.f32 %v668, 0.0
    %v1085 = vmax.f32 %v779, 0.0
    %v1086 = vmax.f32 %v781, 0.0
    %v1087 = vmax.f32 %v892, 0.0
    %v1088 = vmax.f32 %v894, 0.0
    %v1089 = vmax.f32 %v1005, 0.0
    %v1090 = vmax.f32 %v1007, 0.0
    %v1091 = vmax.f32 %v670, 0.0
    %v1092 = vmax.f32 %v672, 0.0
    %v1093 = vmax.f32 %v783, 0.0
    %v1094 = vmax.f32 %v785, 0.0
    %v1095 = vmax.f32 %v896, 0.0
    %v1096 = vmax.f32 %v898, 0.0
    %v1097 = vmax.f32 %v1009, 0.0
    %v1098 = vmax.f32 %v1011, 0.0
    %v1099 = vmax.f32 %v676, 0.0
    %v1100 = vmax.f32 %v678, 0.0
    %v1101 = vmax.f32 %v789, 0.0
    %v1102 = vmax.f32 %v791, 0.0
    %v1103 = vmax.f32 %v902, 0.0
    %v1104 = vmax.f32 %v904, 0.0
    %v1105 = vmax.f32 %v1015, 0.0
    %v1106 = vmax.f32 %v1017, 0.0
    %v1107 = vmax.f32 %v680, 0.0
    %v1108 = vmax.f32 %v682, 0.0
    %v1109 = vmax.f32 %v793, 0.0
    %v1110 = vmax.f32 %v795, 0.0
    %v1111 = vmax.f32 %v906, 0.0
    %v1112 = vmax.f32 %v908, 0.0
    %v1113 = vmax.f32 %v1019, 0.0
    %v1114 = vmax.f32 %v1021, 0.0
    %v1115 = vmax.f32 %v686, 0.0
    %v1116 = vmax.f32 %v688, 0.0
    %v1117 = vmax.f32 %v799, 0.0
    %v1118 = vmax.f32 %v801, 0.0
    %v1119 = vmax.f32 %v912, 0.0
    %v1120 = vmax.f32 %v914, 0.0
    %v1121 = vmax.f32 %v1025, 0.0
    %v1122 = vmax.f32 %v1027, 0.0
    %v1123 = vmax.f32 %v690, 0.0
    %v1124 = vmax.f32 %v692, 0.0
    %v1125 = vmax.f32 %v803, 0.0
    %v1126 = vmax.f32 %v805, 0.0
    %v1127 = vmax.f32 %v916, 0.0
    %v1128 = vmax.f32 %v918, 0.0
    %v1129 = vmax.f32 %v1029, 0.0
    %v1130 = vmax.f32 %v1031, 0.0
    %v1131 = vmax.f32 %v696, 0.0
    %v1132 = vmax.f32 %v698, 0.0
    %v1133 = vmax.f32 %v809, 0.0
    %v1134 = vmax.f32 %v811, 0.0
    %v1135 = vmax.f32 %v922, 0.0
    %v1136 = vmax.f32 %v924, 0.0
    %v1137 = vmax.f32 %v1035, 0.0
    %v1138 = vmax.f32 %v1037, 0.0
    %v1139 = vmax.f32 %v700, 0.0
    %v1140 = vmax.f32 %v702, 0.0
    %v1141 = vmax.f32 %v813, 0.0
    %v1142 = vmax.f32 %v815, 0.0
    %v1143 = vmax.f32 %v926, 0.0
    %v1144 = vmax.f32 %v928, 0.0
    %v1145 = vmax.f32 %v1039, 0.0
    %v1146 = vmax.f32 %v1041, 0.0
    %v1147 = vmax.f32 %v706, 0.0
    %v1148 = vmax.f32 %v708, 0.0
    %v1149 = vmax.f32 %v819, 0.0
    %v1150 = vmax.f32 %v821, 0.0
    %v1151 = vmax.f32 %v932, 0.0
    %v1152 = vmax.f32 %v934, 0.0
    %v1153 = vmax.f32 %v1045, 0.0
    %v1154 = vmax.f32 %v1047, 0.0
    %v1155 = vmax.f32 %v710, 0.0
    %v1156 = vmax.f32 %v712, 0.0
    %v1157 = vmax.f32 %v823, 0.0
    %v1158 = vmax.f32 %v825, 0.0
    %v1159 = vmax.f32 %v936, 0.0
    %v1160 = vmax.f32 %v938, 0.0
    %v1161 = vmax.f32 %v1049, 0.0
    %v1162 = vmax.f32 %v1051, 0.0
    %v1163 = vmax.f32 %v716, 0.0
    %v1164 = vmax.f32 %v718, 0.0
    %v1165 = vmax.f32 %v829, 0.0
    %v1166 = vmax.f32 %v831, 0.0
    %v1167 = vmax.f32 %v942, 0.0
    %v1168 = vmax.f32 %v944, 0.0
    %v1169 = vmax.f32 %v1055, 0.0
    %v1170 = vmax.f32 %v1057, 0.0
    %v1171 = vmax.f32 %v720, 0.0
    %v1172 = vmax.f32 %v722, 0.0
    %v1173 = vmax.f32 %v833, 0.0
    %v1174 = vmax.f32 %v835, 0.0
    %v1175 = vmax.f32 %v946, 0.0
    %v1176 = vmax.f32 %v948, 0.0
    %v1177 = vmax.f32 %v1059, 0.0
    %v1178 = vmax.f32 %v1061, 0.0
    %v1179 = vmax.f32 %v726, 0.0
    %v1180 = vmax.f32 %v728, 0.0
    %v1181 = vmax.f32 %v839, 0.0
    %v1182 = vmax.f32 %v841, 0.0
    %v1183 = vmax.f32 %v952, 0.0
    %v1184 = vmax.f32 %v954, 0.0
    %v1185 = vmax.f32 %v1065, 0.0
    %v1186 = vmax.f32 %v1067, 0.0
    %v1187 = vmax.f32 %v730, 0.0
    %v1188 = vmax.f32 %v732, 0.0
    %v1189 = vmax.f32 %v843, 0.0
    %v1190 = vmax.f32 %v845, 0.0
    %v1191 = vmax.f32 %v956, 0.0
    %v1192 = vmax.f32 %v958, 0.0
    %v1193 = vmax.f32 %v1069, 0.0
    %v1194 = vmax.f32 %v1071, 0.0
    %v1195 = vmax.f32 %v736, 0.0
    %v1196 = vmax.f32 %v738, 0.0
    %v1197 = vmax.f32 %v849, 0.0
    %v1198 = vmax.f32 %v851, 0.0
    %v1199 = vmax.f32 %v962, 0.0
    %v1200 = vmax.f32 %v964, 0.0
    %v1201 = vmax.f32 %v1075, 0.0
    %v1202 = vmax.f32 %v1077, 0.0
    %v1203 = vmax.f32 %v740, 0.0
    %v1204 = vmax.f32 %v742, 0.0
    %v1205 = vmax.f32 %v853, 0.0
    %v1206 = vmax.f32 %v855, 0.0
    %v1207 = vmax.f32 %v966, 0.0
    %v1208 = vmax.f32 %v968, 0.0
    %v1209 = vmax.f32 %v1079, 0.0
    %v1210 = vmax.f32 %v1081, 0.0
    // Predicated region
    $region58: #{_forward_jit.1} parent=1 // pred_check
      %p1211 = pneg %p41
    $region59: #{_forward_jit.1} parent=1 // pred_check_branch
      %1213 = sbr.rel (%p1211) target = $region61
    $region60: #{_forward_jit.1} parent=1 // pred_region
      %s1214 = scalar_lea.sflag [#allocation11], 1
      %s1215 = smul.u32 4, 128
      %s1216 = smul.u32 %s1215, 4
      %s1217 = sshll.u32 %s1216, 4
      %1218 = dma.done %s1214, %s1217
    $region61: #{_forward_jit.1} parent=1 // pred_fallthru
      _
    %v1219 = vld [vmem:[#allocation3] sm:$0xff]
    %v1220 = vld [vmem:[#allocation3 + $0x8] sm:$0xff]
    %v1221 = vld [vmem:[#allocation3 + $0x10] sm:$0xff]
    %v1222 = vld [vmem:[#allocation3 + $0x18] sm:$0xff]
    %v1223 = vld [vmem:[#allocation3 + $0x20] sm:$0xff]
    %v1224 = vld [vmem:[#allocation3 + $0x28] sm:$0xff]
    %v1225 = vld [vmem:[#allocation3 + $0x30] sm:$0xff]
    %v1226 = vld [vmem:[#allocation3 + $0x38] sm:$0xff]
    %v1227 = vld [vmem:[#allocation3 + $0x40] sm:$0xff]
    %v1228 = vld [vmem:[#allocation3 + $0x48] sm:$0xff]
    %v1229 = vld [vmem:[#allocation3 + $0x50] sm:$0xff]
    %v1230 = vld [vmem:[#allocation3 + $0x58] sm:$0xff]
    %v1231 = vld [vmem:[#allocation3 + $0x60] sm:$0xff]
    %v1232 = vld [vmem:[#allocation3 + $0x68] sm:$0xff]
    %v1233 = vld [vmem:[#allocation3 + $0x70] sm:$0xff]
    %v1234 = vld [vmem:[#allocation3 + $0x78] sm:$0xff]
    %v1235 = vld [vmem:[#allocation3 + $0x80] sm:$0xff]
    %v1236 = vld [vmem:[#allocation3 + $0x88] sm:$0xff]
    %v1237 = vld [vmem:[#allocation3 + $0x90] sm:$0xff]
    %v1238 = vld [vmem:[#allocation3 + $0x98] sm:$0xff]
    %v1239 = vld [vmem:[#allocation3 + $0xa0] sm:$0xff]
    %v1240 = vld [vmem:[#allocation3 + $0xa8] sm:$0xff]
    %v1241 = vld [vmem:[#allocation3 + $0xb0] sm:$0xff]
    %v1242 = vld [vmem:[#allocation3 + $0xb8] sm:$0xff]
    %v1243 = vld [vmem:[#allocation3 + $0xc0] sm:$0xff]
    %v1244 = vld [vmem:[#allocation3 + $0xc8] sm:$0xff]
    %v1245 = vld [vmem:[#allocation3 + $0xd0] sm:$0xff]
    %v1246 = vld [vmem:[#allocation3 + $0xd8] sm:$0xff]
    %v1247 = vld [vmem:[#allocation3 + $0xe0] sm:$0xff]
    %v1248 = vld [vmem:[#allocation3 + $0xe8] sm:$0xff]
    %v1249 = vld [vmem:[#allocation3 + $0xf0] sm:$0xff]
    %v1250 = vld [vmem:[#allocation3 + $0xf8] sm:$0xff]
    %v1251 = vld [vmem:[#allocation3 + $0x100] sm:$0xff]
    %v1252 = vld [vmem:[#allocation3 + $0x108] sm:$0xff]
    %v1253 = vld [vmem:[#allocation3 + $0x110] sm:$0xff]
    %v1254 = vld [vmem:[#allocation3 + $0x118] sm:$0xff]
    %v1255 = vld [vmem:[#allocation3 + $0x120] sm:$0xff]
    %v1256 = vld [vmem:[#allocation3 + $0x128] sm:$0xff]
    %v1257 = vld [vmem:[#allocation3 + $0x130] sm:$0xff]
    %v1258 = vld [vmem:[#allocation3 + $0x138] sm:$0xff]
    %v1259 = vld [vmem:[#allocation3 + $0x140] sm:$0xff]
    %v1260 = vld [vmem:[#allocation3 + $0x148] sm:$0xff]
    %v1261 = vld [vmem:[#allocation3 + $0x150] sm:$0xff]
    %v1262 = vld [vmem:[#allocation3 + $0x158] sm:$0xff]
    %v1263 = vld [vmem:[#allocation3 + $0x160] sm:$0xff]
    %v1264 = vld [vmem:[#allocation3 + $0x168] sm:$0xff]
    %v1265 = vld [vmem:[#allocation3 + $0x170] sm:$0xff]
    %v1266 = vld [vmem:[#allocation3 + $0x178] sm:$0xff]
    %v1267 = vld [vmem:[#allocation3 + $0x180] sm:$0xff]
    %v1268 = vld [vmem:[#allocation3 + $0x188] sm:$0xff]
    %v1269 = vld [vmem:[#allocation3 + $0x190] sm:$0xff]
    %v1270 = vld [vmem:[#allocation3 + $0x198] sm:$0xff]
    %v1271 = vld [vmem:[#allocation3 + $0x1a0] sm:$0xff]
    %v1272 = vld [vmem:[#allocation3 + $0x1a8] sm:$0xff]
    %v1273 = vld [vmem:[#allocation3 + $0x1b0] sm:$0xff]
    %v1274 = vld [vmem:[#allocation3 + $0x1b8] sm:$0xff]
    %v1275 = vld [vmem:[#allocation3 + $0x1c0] sm:$0xff]
    %v1276 = vld [vmem:[#allocation3 + $0x1c8] sm:$0xff]
    %v1277 = vld [vmem:[#allocation3 + $0x1d0] sm:$0xff]
    %v1278 = vld [vmem:[#allocation3 + $0x1d8] sm:$0xff]
    %v1279 = vld [vmem:[#allocation3 + $0x1e0] sm:$0xff]
    %v1280 = vld [vmem:[#allocation3 + $0x1e8] sm:$0xff]
    %v1281 = vld [vmem:[#allocation3 + $0x1f0] sm:$0xff]
    %v1282 = vld [vmem:[#allocation3 + $0x1f8] sm:$0xff]
    %v1283 = vld [vmem:[#allocation3 + $0x200] sm:$0xff]
    %v1284 = vld [vmem:[#allocation3 + $0x208] sm:$0xff]
    %v1285 = vld [vmem:[#allocation3 + $0x210] sm:$0xff]
    %v1286 = vld [vmem:[#allocation3 + $0x218] sm:$0xff]
    %v1287 = vld [vmem:[#allocation3 + $0x220] sm:$0xff]
    %v1288 = vld [vmem:[#allocation3 + $0x228] sm:$0xff]
    %v1289 = vld [vmem:[#allocation3 + $0x230] sm:$0xff]
    %v1290 = vld [vmem:[#allocation3 + $0x238] sm:$0xff]
    %v1291 = vld [vmem:[#allocation3 + $0x240] sm:$0xff]
    %v1292 = vld [vmem:[#allocation3 + $0x248] sm:$0xff]
    %v1293 = vld [vmem:[#allocation3 + $0x250] sm:$0xff]
    %v1294 = vld [vmem:[#allocation3 + $0x258] sm:$0xff]
    %v1295 = vld [vmem:[#allocation3 + $0x260] sm:$0xff]
    %v1296 = vld [vmem:[#allocation3 + $0x268] sm:$0xff]
    %v1297 = vld [vmem:[#allocation3 + $0x270] sm:$0xff]
    %v1298 = vld [vmem:[#allocation3 + $0x278] sm:$0xff]
    %v1299 = vld [vmem:[#allocation3 + $0x280] sm:$0xff]
    %v1300 = vld [vmem:[#allocation3 + $0x288] sm:$0xff]
    %v1301 = vld [vmem:[#allocation3 + $0x290] sm:$0xff]
    %v1302 = vld [vmem:[#allocation3 + $0x298] sm:$0xff]
    %v1303 = vld [vmem:[#allocation3 + $0x2a0] sm:$0xff]
    %v1304 = vld [vmem:[#allocation3 + $0x2a8] sm:$0xff]
    %v1305 = vld [vmem:[#allocation3 + $0x2b0] sm:$0xff]
    %v1306 = vld [vmem:[#allocation3 + $0x2b8] sm:$0xff]
    %v1307 = vld [vmem:[#allocation3 + $0x2c0] sm:$0xff]
    %v1308 = vld [vmem:[#allocation3 + $0x2c8] sm:$0xff]
    %v1309 = vld [vmem:[#allocation3 + $0x2d0] sm:$0xff]
    %v1310 = vld [vmem:[#allocation3 + $0x2d8] sm:$0xff]
    %v1311 = vld [vmem:[#allocation3 + $0x2e0] sm:$0xff]
    %v1312 = vld [vmem:[#allocation3 + $0x2e8] sm:$0xff]
    %v1313 = vld [vmem:[#allocation3 + $0x2f0] sm:$0xff]
    %v1314 = vld [vmem:[#allocation3 + $0x2f8] sm:$0xff]
    %v1315 = vld [vmem:[#allocation3 + $0x300] sm:$0xff]
    %v1316 = vld [vmem:[#allocation3 + $0x308] sm:$0xff]
    %v1317 = vld [vmem:[#allocation3 + $0x310] sm:$0xff]
    %v1318 = vld [vmem:[#allocation3 + $0x318] sm:$0xff]
    %v1319 = vld [vmem:[#allocation3 + $0x320] sm:$0xff]
    %v1320 = vld [vmem:[#allocation3 + $0x328] sm:$0xff]
    %v1321 = vld [vmem:[#allocation3 + $0x330] sm:$0xff]
    %v1322 = vld [vmem:[#allocation3 + $0x338] sm:$0xff]
    %v1323 = vld [vmem:[#allocation3 + $0x340] sm:$0xff]
    %v1324 = vld [vmem:[#allocation3 + $0x348] sm:$0xff]
    %v1325 = vld [vmem:[#allocation3 + $0x350] sm:$0xff]
    %v1326 = vld [vmem:[#allocation3 + $0x358] sm:$0xff]
    %v1327 = vld [vmem:[#allocation3 + $0x360] sm:$0xff]
    %v1328 = vld [vmem:[#allocation3 + $0x368] sm:$0xff]
    %v1329 = vld [vmem:[#allocation3 + $0x370] sm:$0xff]
    %v1330 = vld [vmem:[#allocation3 + $0x378] sm:$0xff]
    %v1331 = vld [vmem:[#allocation3 + $0x380] sm:$0xff]
    %v1332 = vld [vmem:[#allocation3 + $0x388] sm:$0xff]
    %v1333 = vld [vmem:[#allocation3 + $0x390] sm:$0xff]
    %v1334 = vld [vmem:[#allocation3 + $0x398] sm:$0xff]
    %v1335 = vld [vmem:[#allocation3 + $0x3a0] sm:$0xff]
    %v1336 = vld [vmem:[#allocation3 + $0x3a8] sm:$0xff]
    %v1337 = vld [vmem:[#allocation3 + $0x3b0] sm:$0xff]
    %v1338 = vld [vmem:[#allocation3 + $0x3b8] sm:$0xff]
    %v1339 = vld [vmem:[#allocation3 + $0x3c0] sm:$0xff]
    %v1340 = vld [vmem:[#allocation3 + $0x3c8] sm:$0xff]
    %v1341 = vld [vmem:[#allocation3 + $0x3d0] sm:$0xff]
    %v1342 = vld [vmem:[#allocation3 + $0x3d8] sm:$0xff]
    %v1343 = vld [vmem:[#allocation3 + $0x3e0] sm:$0xff]
    %v1344 = vld [vmem:[#allocation3 + $0x3e8] sm:$0xff]
    %v1345 = vld [vmem:[#allocation3 + $0x3f0] sm:$0xff]
    %v1346 = vld [vmem:[#allocation3 + $0x3f8] sm:$0xff]
    %v1347 = vld [vmem:[#allocation3 + $0x400] sm:$0xff]
    %v1348 = vld [vmem:[#allocation3 + $0x408] sm:$0xff]
    %v1349 = vld [vmem:[#allocation3 + $0x410] sm:$0xff]
    %v1350 = vld [vmem:[#allocation3 + $0x418] sm:$0xff]
    %v1351 = vld [vmem:[#allocation3 + $0x420] sm:$0xff]
    %v1352 = vld [vmem:[#allocation3 + $0x428] sm:$0xff]
    %v1353 = vld [vmem:[#allocation3 + $0x430] sm:$0xff]
    %v1354 = vld [vmem:[#allocation3 + $0x438] sm:$0xff]
    %v1355 = vld [vmem:[#allocation3 + $0x440] sm:$0xff]
    %v1356 = vld [vmem:[#allocation3 + $0x448] sm:$0xff]
    %v1357 = vld [vmem:[#allocation3 + $0x450] sm:$0xff]
    %v1358 = vld [vmem:[#allocation3 + $0x458] sm:$0xff]
    %v1359 = vld [vmem:[#allocation3 + $0x460] sm:$0xff]
    %v1360 = vld [vmem:[#allocation3 + $0x468] sm:$0xff]
    %v1361 = vld [vmem:[#allocation3 + $0x470] sm:$0xff]
    %v1362 = vld [vmem:[#allocation3 + $0x478] sm:$0xff]
    %v1363 = vld [vmem:[#allocation3 + $0x480] sm:$0xff]
    %v1364 = vld [vmem:[#allocation3 + $0x488] sm:$0xff]
    %v1365 = vld [vmem:[#allocation3 + $0x490] sm:$0xff]
    %v1366 = vld [vmem:[#allocation3 + $0x498] sm:$0xff]
    %v1367 = vld [vmem:[#allocation3 + $0x4a0] sm:$0xff]
    %v1368 = vld [vmem:[#allocation3 + $0x4a8] sm:$0xff]
    %v1369 = vld [vmem:[#allocation3 + $0x4b0] sm:$0xff]
    %v1370 = vld [vmem:[#allocation3 + $0x4b8] sm:$0xff]
    %v1371 = vld [vmem:[#allocation3 + $0x4c0] sm:$0xff]
    %v1372 = vld [vmem:[#allocation3 + $0x4c8] sm:$0xff]
    %v1373 = vld [vmem:[#allocation3 + $0x4d0] sm:$0xff]
    %v1374 = vld [vmem:[#allocation3 + $0x4d8] sm:$0xff]
    %v1375 = vld [vmem:[#allocation3 + $0x4e0] sm:$0xff]
    %v1376 = vld [vmem:[#allocation3 + $0x4e8] sm:$0xff]
    %v1377 = vld [vmem:[#allocation3 + $0x4f0] sm:$0xff]
    %v1378 = vld [vmem:[#allocation3 + $0x4f8] sm:$0xff]
    %v1379 = vld [vmem:[#allocation3 + $0x500] sm:$0xff]
    %v1380 = vld [vmem:[#allocation3 + $0x508] sm:$0xff]
    %v1381 = vld [vmem:[#allocation3 + $0x510] sm:$0xff]
    %v1382 = vld [vmem:[#allocation3 + $0x518] sm:$0xff]
    %v1383 = vld [vmem:[#allocation3 + $0x520] sm:$0xff]
    %v1384 = vld [vmem:[#allocation3 + $0x528] sm:$0xff]
    %v1385 = vld [vmem:[#allocation3 + $0x530] sm:$0xff]
    %v1386 = vld [vmem:[#allocation3 + $0x538] sm:$0xff]
    %v1387 = vld [vmem:[#allocation3 + $0x540] sm:$0xff]
    %v1388 = vld [vmem:[#allocation3 + $0x548] sm:$0xff]
    %v1389 = vld [vmem:[#allocation3 + $0x550] sm:$0xff]
    %v1390 = vld [vmem:[#allocation3 + $0x558] sm:$0xff]
    %v1391 = vld [vmem:[#allocation3 + $0x560] sm:$0xff]
    %v1392 = vld [vmem:[#allocation3 + $0x568] sm:$0xff]
    %v1393 = vld [vmem:[#allocation3 + $0x570] sm:$0xff]
    %v1394 = vld [vmem:[#allocation3 + $0x578] sm:$0xff]
    %v1395 = vld [vmem:[#allocation3 + $0x580] sm:$0xff]
    %v1396 = vld [vmem:[#allocation3 + $0x588] sm:$0xff]
    %v1397 = vld [vmem:[#allocation3 + $0x590] sm:$0xff]
    %v1398 = vld [vmem:[#allocation3 + $0x598] sm:$0xff]
    %v1399 = vld [vmem:[#allocation3 + $0x5a0] sm:$0xff]
    %v1400 = vld [vmem:[#allocation3 + $0x5a8] sm:$0xff]
    %v1401 = vld [vmem:[#allocation3 + $0x5b0] sm:$0xff]
    %v1402 = vld [vmem:[#allocation3 + $0x5b8] sm:$0xff]
    %v1403 = vld [vmem:[#allocation3 + $0x5c0] sm:$0xff]
    %v1404 = vld [vmem:[#allocation3 + $0x5c8] sm:$0xff]
    %v1405 = vld [vmem:[#allocation3 + $0x5d0] sm:$0xff]
    %v1406 = vld [vmem:[#allocation3 + $0x5d8] sm:$0xff]
    %v1407 = vld [vmem:[#allocation3 + $0x5e0] sm:$0xff]
    %v1408 = vld [vmem:[#allocation3 + $0x5e8] sm:$0xff]
    %v1409 = vld [vmem:[#allocation3 + $0x5f0] sm:$0xff]
    %v1410 = vld [vmem:[#allocation3 + $0x5f8] sm:$0xff]
    %v1411 = vld [vmem:[#allocation3 + $0x600] sm:$0xff]
    %v1412 = vld [vmem:[#allocation3 + $0x608] sm:$0xff]
    %v1413 = vld [vmem:[#allocation3 + $0x610] sm:$0xff]
    %v1414 = vld [vmem:[#allocation3 + $0x618] sm:$0xff]
    %v1415 = vld [vmem:[#allocation3 + $0x620] sm:$0xff]
    %v1416 = vld [vmem:[#allocation3 + $0x628] sm:$0xff]
    %v1417 = vld [vmem:[#allocation3 + $0x630] sm:$0xff]
    %v1418 = vld [vmem:[#allocation3 + $0x638] sm:$0xff]
    %v1419 = vld [vmem:[#allocation3 + $0x640] sm:$0xff]
    %v1420 = vld [vmem:[#allocation3 + $0x648] sm:$0xff]
    %v1421 = vld [vmem:[#allocation3 + $0x650] sm:$0xff]
    %v1422 = vld [vmem:[#allocation3 + $0x658] sm:$0xff]
    %v1423 = vld [vmem:[#allocation3 + $0x660] sm:$0xff]
    %v1424 = vld [vmem:[#allocation3 + $0x668] sm:$0xff]
    %v1425 = vld [vmem:[#allocation3 + $0x670] sm:$0xff]
    %v1426 = vld [vmem:[#allocation3 + $0x678] sm:$0xff]
    %v1427 = vld [vmem:[#allocation3 + $0x680] sm:$0xff]
    %v1428 = vld [vmem:[#allocation3 + $0x688] sm:$0xff]
    %v1429 = vld [vmem:[#allocation3 + $0x690] sm:$0xff]
    %v1430 = vld [vmem:[#allocation3 + $0x698] sm:$0xff]
    %v1431 = vld [vmem:[#allocation3 + $0x6a0] sm:$0xff]
    %v1432 = vld [vmem:[#allocation3 + $0x6a8] sm:$0xff]
    %v1433 = vld [vmem:[#allocation3 + $0x6b0] sm:$0xff]
    %v1434 = vld [vmem:[#allocation3 + $0x6b8] sm:$0xff]
    %v1435 = vld [vmem:[#allocation3 + $0x6c0] sm:$0xff]
    %v1436 = vld [vmem:[#allocation3 + $0x6c8] sm:$0xff]
    %v1437 = vld [vmem:[#allocation3 + $0x6d0] sm:$0xff]
    %v1438 = vld [vmem:[#allocation3 + $0x6d8] sm:$0xff]
    %v1439 = vld [vmem:[#allocation3 + $0x6e0] sm:$0xff]
    %v1440 = vld [vmem:[#allocation3 + $0x6e8] sm:$0xff]
    %v1441 = vld [vmem:[#allocation3 + $0x6f0] sm:$0xff]
    %v1442 = vld [vmem:[#allocation3 + $0x6f8] sm:$0xff]
    %v1443 = vld [vmem:[#allocation3 + $0x700] sm:$0xff]
    %v1444 = vld [vmem:[#allocation3 + $0x708] sm:$0xff]
    %v1445 = vld [vmem:[#allocation3 + $0x710] sm:$0xff]
    %v1446 = vld [vmem:[#allocation3 + $0x718] sm:$0xff]
    %v1447 = vld [vmem:[#allocation3 + $0x720] sm:$0xff]
    %v1448 = vld [vmem:[#allocation3 + $0x728] sm:$0xff]
    %v1449 = vld [vmem:[#allocation3 + $0x730] sm:$0xff]
    %v1450 = vld [vmem:[#allocation3 + $0x738] sm:$0xff]
    %v1451 = vld [vmem:[#allocation3 + $0x740] sm:$0xff]
    %v1452 = vld [vmem:[#allocation3 + $0x748] sm:$0xff]
    %v1453 = vld [vmem:[#allocation3 + $0x750] sm:$0xff]
    %v1454 = vld [vmem:[#allocation3 + $0x758] sm:$0xff]
    %v1455 = vld [vmem:[#allocation3 + $0x760] sm:$0xff]
    %v1456 = vld [vmem:[#allocation3 + $0x768] sm:$0xff]
    %v1457 = vld [vmem:[#allocation3 + $0x770] sm:$0xff]
    %v1458 = vld [vmem:[#allocation3 + $0x778] sm:$0xff]
    %v1459 = vld [vmem:[#allocation3 + $0x780] sm:$0xff]
    %v1460 = vld [vmem:[#allocation3 + $0x788] sm:$0xff]
    %v1461 = vld [vmem:[#allocation3 + $0x790] sm:$0xff]
    %v1462 = vld [vmem:[#allocation3 + $0x798] sm:$0xff]
    %v1463 = vld [vmem:[#allocation3 + $0x7a0] sm:$0xff]
    %v1464 = vld [vmem:[#allocation3 + $0x7a8] sm:$0xff]
    %v1465 = vld [vmem:[#allocation3 + $0x7b0] sm:$0xff]
    %v1466 = vld [vmem:[#allocation3 + $0x7b8] sm:$0xff]
    %v1467 = vld [vmem:[#allocation3 + $0x7c0] sm:$0xff]
    %v1468 = vld [vmem:[#allocation3 + $0x7c8] sm:$0xff]
    %v1469 = vld [vmem:[#allocation3 + $0x7d0] sm:$0xff]
    %v1470 = vld [vmem:[#allocation3 + $0x7d8] sm:$0xff]
    %v1471 = vld [vmem:[#allocation3 + $0x7e0] sm:$0xff]
    %v1472 = vld [vmem:[#allocation3 + $0x7e8] sm:$0xff]
    %v1473 = vld [vmem:[#allocation3 + $0x7f0] sm:$0xff]
    %v1474 = vld [vmem:[#allocation3 + $0x7f8] sm:$0xff]
    %v1475 = vpack.c.bf16 %v1091, %v1083
    %v1476 = vpack.c.bf16 %v1092, %v1084
    %v1477 = vpack.c.bf16 %v1093, %v1085
    %v1478 = vpack.c.bf16 %v1094, %v1086
    %v1479 = vpack.c.bf16 %v1095, %v1087
    %v1480 = vpack.c.bf16 %v1096, %v1088
    %v1481 = vpack.c.bf16 %v1097, %v1089
    %v1482 = vpack.c.bf16 %v1098, %v1090
    %v1483 = vpack.c.bf16 %v1107, %v1099
    %v1484 = vpack.c.bf16 %v1108, %v1100
    %v1485 = vpack.c.bf16 %v1109, %v1101
    %v1486 = vpack.c.bf16 %v1110, %v1102
    %v1487 = vpack.c.bf16 %v1111, %v1103
    %v1488 = vpack.c.bf16 %v1112, %v1104
    %v1489 = vpack.c.bf16 %v1113, %v1105
    %v1490 = vpack.c.bf16 %v1114, %v1106
    %v1491 = vpack.c.bf16 %v1123, %v1115
    %v1492 = vpack.c.bf16 %v1124, %v1116
    %v1493 = vpack.c.bf16 %v1125, %v1117
    %v1494 = vpack.c.bf16 %v1126, %v1118
    %v1495 = vpack.c.bf16 %v1127, %v1119
    %v1496 = vpack.c.bf16 %v1128, %v1120
    %v1497 = vpack.c.bf16 %v1129, %v1121
    %v1498 = vpack.c.bf16 %v1130, %v1122
    %v1499 = vpack.c.bf16 %v1139, %v1131
    %v1500 = vpack.c.bf16 %v1140, %v1132
    %v1501 = vpack.c.bf16 %v1141, %v1133
    %v1502 = vpack.c.bf16 %v1142, %v1134
    %v1503 = vpack.c.bf16 %v1143, %v1135
    %v1504 = vpack.c.bf16 %v1144, %v1136
    %v1505 = vpack.c.bf16 %v1145, %v1137
    %v1506 = vpack.c.bf16 %v1146, %v1138
    %v1507 = vpack.c.bf16 %v1155, %v1147
    %v1508 = vpack.c.bf16 %v1156, %v1148
    %v1509 = vpack.c.bf16 %v1157, %v1149
    %v1510 = vpack.c.bf16 %v1158, %v1150
    %v1511 = vpack.c.bf16 %v1159, %v1151
    %v1512 = vpack.c.bf16 %v1160, %v1152
    %v1513 = vpack.c.bf16 %v1161, %v1153
    %v1514 = vpack.c.bf16 %v1162, %v1154
    %v1515 = vpack.c.bf16 %v1171, %v1163
    %v1516 = vpack.c.bf16 %v1172, %v1164
    %v1517 = vpack.c.bf16 %v1173, %v1165
    %v1518 = vpack.c.bf16 %v1174, %v1166
    %v1519 = vpack.c.bf16 %v1175, %v1167
    %v1520 = vpack.c.bf16 %v1176, %v1168
    %v1521 = vpack.c.bf16 %v1177, %v1169
    %v1522 = vpack.c.bf16 %v1178, %v1170
    %v1523 = vpack.c.bf16 %v1187, %v1179
    %v1524 = vpack.c.bf16 %v1188, %v1180
    %v1525 = vpack.c.bf16 %v1189, %v1181
    %v1526 = vpack.c.bf16 %v1190, %v1182
    %v1527 = vpack.c.bf16 %v1191, %v1183
    %v1528 = vpack.c.bf16 %v1192, %v1184
    %v1529 = vpack.c.bf16 %v1193, %v1185
    %v1530 = vpack.c.bf16 %v1194, %v1186
    %v1531 = vpack.c.bf16 %v1203, %v1195
    %v1532 = vpack.c.bf16 %v1204, %v1196
    %v1533 = vpack.c.bf16 %v1205, %v1197
    %v1534 = vpack.c.bf16 %v1206, %v1198
    %v1535 = vpack.c.bf16 %v1207, %v1199
    %v1536 = vpack.c.bf16 %v1208, %v1200
    %v1537 = vpack.c.bf16 %v1209, %v1201
    %v1538 = vpack.c.bf16 %v1210, %v1202
    %v1539 = vld [vmem:[#allocation14 + $0x8] sm:$0xf]
    %v1541 = vlaneseq
    %v1542 = vshrl.u32 %v1541, 7
    %v1543 = vsub.s32 0, %v1542
    %v1544 = vrot.slane %v1539, %v1543
    %v1545 = vlaneseq
    %v1546 = vshrl.u32 %v1545, 7
    %v1547 = vsub.s32 1, %v1546
    %v1548 = vrot.slane %v1539, %v1547
    %v1549 = vlaneseq
    %v1550 = vshrl.u32 %v1549, 7
    %v1551 = vsub.s32 2, %v1550
    %v1552 = vrot.slane %v1539, %v1551
    %v1553 = vlaneseq
    %v1554 = vshrl.u32 %v1553, 7
    %v1555 = vsub.s32 3, %v1554
    %v1556 = vrot.slane %v1539, %v1555
    %v1817 = vunpack.c.l.b16 %v1219
    %v1818 = vunpack.c.h.b16 %v1219
    %v1819 = vunpack.c.l.b16 %v1220
    %v1820 = vunpack.c.h.b16 %v1220
    %v1821 = vunpack.c.l.b16 %v1221
    %v1822 = vunpack.c.h.b16 %v1221
    %v1823 = vunpack.c.l.b16 %v1222
    %v1824 = vunpack.c.h.b16 %v1222
    %v1825 = vunpack.c.l.b16 %v1223
    %v1826 = vunpack.c.h.b16 %v1223
    %v1827 = vunpack.c.l.b16 %v1224
    %v1828 = vunpack.c.h.b16 %v1224
    %v1829 = vunpack.c.l.b16 %v1225
    %v1830 = vunpack.c.h.b16 %v1225
    %v1831 = vunpack.c.l.b16 %v1226
    %v1832 = vunpack.c.h.b16 %v1226
    %v1833 = vunpack.c.l.b16 %v1227
    %v1834 = vunpack.c.h.b16 %v1227
    %v1835 = vunpack.c.l.b16 %v1228
    %v1836 = vunpack.c.h.b16 %v1228
    %v1837 = vunpack.c.l.b16 %v1229
    %v1838 = vunpack.c.h.b16 %v1229
    %v1839 = vunpack.c.l.b16 %v1230
    %v1840 = vunpack.c.h.b16 %v1230
    %v1841 = vunpack.c.l.b16 %v1231
    %v1842 = vunpack.c.h.b16 %v1231
    %v1843 = vunpack.c.l.b16 %v1232
    %v1844 = vunpack.c.h.b16 %v1232
    %v1845 = vunpack.c.l.b16 %v1233
    %v1846 = vunpack.c.h.b16 %v1233
    %v1847 = vunpack.c.l.b16 %v1234
    %v1848 = vunpack.c.h.b16 %v1234
    %v1849 = vunpack.c.l.b16 %v1235
    %v1850 = vunpack.c.h.b16 %v1235
    %v1851 = vunpack.c.l.b16 %v1236
    %v1852 = vunpack.c.h.b16 %v1236
    %v1853 = vunpack.c.l.b16 %v1237
    %v1854 = vunpack.c.h.b16 %v1237
    %v1855 = vunpack.c.l.b16 %v1238
    %v1856 = vunpack.c.h.b16 %v1238
    %v1857 = vunpack.c.l.b16 %v1239
    %v1858 = vunpack.c.h.b16 %v1239
    %v1859 = vunpack.c.l.b16 %v1240
    %v1860 = vunpack.c.h.b16 %v1240
    %v1861 = vunpack.c.l.b16 %v1241
    %v1862 = vunpack.c.h.b16 %v1241
    %v1863 = vunpack.c.l.b16 %v1242
    %v1864 = vunpack.c.h.b16 %v1242
    %v1865 = vunpack.c.l.b16 %v1243
    %v1866 = vunpack.c.h.b16 %v1243
    %v1867 = vunpack.c.l.b16 %v1244
    %v1868 = vunpack.c.h.b16 %v1244
    %v1869 = vunpack.c.l.b16 %v1245
    %v1870 = vunpack.c.h.b16 %v1245
    %v1871 = vunpack.c.l.b16 %v1246
    %v1872 = vunpack.c.h.b16 %v1246
    %v1873 = vunpack.c.l.b16 %v1247
    %v1874 = vunpack.c.h.b16 %v1247
    %v1875 = vunpack.c.l.b16 %v1248
    %v1876 = vunpack.c.h.b16 %v1248
    %v1877 = vunpack.c.l.b16 %v1249
    %v1878 = vunpack.c.h.b16 %v1249
    %v1879 = vunpack.c.l.b16 %v1250
    %v1880 = vunpack.c.h.b16 %v1250
    %v1881 = vunpack.c.l.b16 %v1251
    %v1882 = vunpack.c.h.b16 %v1251
    %v1883 = vunpack.c.l.b16 %v1252
    %v1884 = vunpack.c.h.b16 %v1252
    %v1885 = vunpack.c.l.b16 %v1253
    %v1886 = vunpack.c.h.b16 %v1253
    %v1887 = vunpack.c.l.b16 %v1254
    %v1888 = vunpack.c.h.b16 %v1254
    %v1889 = vunpack.c.l.b16 %v1255
    %v1890 = vunpack.c.h.b16 %v1255
    %v1891 = vunpack.c.l.b16 %v1256
    %v1892 = vunpack.c.h.b16 %v1256
    %v1893 = vunpack.c.l.b16 %v1257
    %v1894 = vunpack.c.h.b16 %v1257
    %v1895 = vunpack.c.l.b16 %v1258
    %v1896 = vunpack.c.h.b16 %v1258
    %v1897 = vunpack.c.l.b16 %v1259
    %v1898 = vunpack.c.h.b16 %v1259
    %v1899 = vunpack.c.l.b16 %v1260
    %v1900 = vunpack.c.h.b16 %v1260
    %v1901 = vunpack.c.l.b16 %v1261
    %v1902 = vunpack.c.h.b16 %v1261
    %v1903 = vunpack.c.l.b16 %v1262
    %v1904 = vunpack.c.h.b16 %v1262
    %v1905 = vunpack.c.l.b16 %v1263
    %v1906 = vunpack.c.h.b16 %v1263
    %v1907 = vunpack.c.l.b16 %v1264
    %v1908 = vunpack.c.h.b16 %v1264
    %v1909 = vunpack.c.l.b16 %v1265
    %v1910 = vunpack.c.h.b16 %v1265
    %v1911 = vunpack.c.l.b16 %v1266
    %v1912 = vunpack.c.h.b16 %v1266
    %v1913 = vunpack.c.l.b16 %v1267
    %v1914 = vunpack.c.h.b16 %v1267
    %v1915 = vunpack.c.l.b16 %v1268
    %v1916 = vunpack.c.h.b16 %v1268
    %v1917 = vunpack.c.l.b16 %v1269
    %v1918 = vunpack.c.h.b16 %v1269
    %v1919 = vunpack.c.l.b16 %v1270
    %v1920 = vunpack.c.h.b16 %v1270
    %v1921 = vunpack.c.l.b16 %v1271
    %v1922 = vunpack.c.h.b16 %v1271
    %v1923 = vunpack.c.l.b16 %v1272
    %v1924 = vunpack.c.h.b16 %v1272
    %v1925 = vunpack.c.l.b16 %v1273
    %v1926 = vunpack.c.h.b16 %v1273
    %v1927 = vunpack.c.l.b16 %v1274
    %v1928 = vunpack.c.h.b16 %v1274
    %v1929 = vunpack.c.l.b16 %v1275
    %v1930 = vunpack.c.h.b16 %v1275
    %v1931 = vunpack.c.l.b16 %v1276
    %v1932 = vunpack.c.h.b16 %v1276
    %v1933 = vunpack.c.l.b16 %v1277
    %v1934 = vunpack.c.h.b16 %v1277
    %v1935 = vunpack.c.l.b16 %v1278
    %v1936 = vunpack.c.h.b16 %v1278
    %v1937 = vunpack.c.l.b16 %v1279
    %v1938 = vunpack.c.h.b16 %v1279
    %v1939 = vunpack.c.l.b16 %v1280
    %v1940 = vunpack.c.h.b16 %v1280
    %v1941 = vunpack.c.l.b16 %v1281
    %v1942 = vunpack.c.h.b16 %v1281
    %v1943 = vunpack.c.l.b16 %v1282
    %v1944 = vunpack.c.h.b16 %v1282
    %v1945 = vunpack.c.l.b16 %v1283
    %v1946 = vunpack.c.h.b16 %v1283
    %v1947 = vunpack.c.l.b16 %v1284
    %v1948 = vunpack.c.h.b16 %v1284
    %v1949 = vunpack.c.l.b16 %v1285
    %v1950 = vunpack.c.h.b16 %v1285
    %v1951 = vunpack.c.l.b16 %v1286
    %v1952 = vunpack.c.h.b16 %v1286
    %v1953 = vunpack.c.l.b16 %v1287
    %v1954 = vunpack.c.h.b16 %v1287
    %v1955 = vunpack.c.l.b16 %v1288
    %v1956 = vunpack.c.h.b16 %v1288
    %v1957 = vunpack.c.l.b16 %v1289
    %v1958 = vunpack.c.h.b16 %v1289
    %v1959 = vunpack.c.l.b16 %v1290
    %v1960 = vunpack.c.h.b16 %v1290
    %v1961 = vunpack.c.l.b16 %v1291
    %v1962 = vunpack.c.h.b16 %v1291
    %v1963 = vunpack.c.l.b16 %v1292
    %v1964 = vunpack.c.h.b16 %v1292
    %v1965 = vunpack.c.l.b16 %v1293
    %v1966 = vunpack.c.h.b16 %v1293
    %v1967 = vunpack.c.l.b16 %v1294
    %v1968 = vunpack.c.h.b16 %v1294
    %v1969 = vunpack.c.l.b16 %v1295
    %v1970 = vunpack.c.h.b16 %v1295
    %v1971 = vunpack.c.l.b16 %v1296
    %v1972 = vunpack.c.h.b16 %v1296
    %v1973 = vunpack.c.l.b16 %v1297
    %v1974 = vunpack.c.h.b16 %v1297
    %v1975 = vunpack.c.l.b16 %v1298
    %v1976 = vunpack.c.h.b16 %v1298
    %v1977 = vunpack.c.l.b16 %v1299
    %v1978 = vunpack.c.h.b16 %v1299
    %v1979 = vunpack.c.l.b16 %v1300
    %v1980 = vunpack.c.h.b16 %v1300
    %v1981 = vunpack.c.l.b16 %v1301
    %v1982 = vunpack.c.h.b16 %v1301
    %v1983 = vunpack.c.l.b16 %v1302
    %v1984 = vunpack.c.h.b16 %v1302
    %v1985 = vunpack.c.l.b16 %v1303
    %v1986 = vunpack.c.h.b16 %v1303
    %v1987 = vunpack.c.l.b16 %v1304
    %v1988 = vunpack.c.h.b16 %v1304
    %v1989 = vunpack.c.l.b16 %v1305
    %v1990 = vunpack.c.h.b16 %v1305
    %v1991 = vunpack.c.l.b16 %v1306
    %v1992 = vunpack.c.h.b16 %v1306
    %v1993 = vunpack.c.l.b16 %v1307
    %v1994 = vunpack.c.h.b16 %v1307
    %v1995 = vunpack.c.l.b16 %v1308
    %v1996 = vunpack.c.h.b16 %v1308
    %v1997 = vunpack.c.l.b16 %v1309
    %v1998 = vunpack.c.h.b16 %v1309
    %v1999 = vunpack.c.l.b16 %v1310
    %v2000 = vunpack.c.h.b16 %v1310
    %v2001 = vunpack.c.l.b16 %v1311
    %v2002 = vunpack.c.h.b16 %v1311
    %v2003 = vunpack.c.l.b16 %v1312
    %v2004 = vunpack.c.h.b16 %v1312
    %v2005 = vunpack.c.l.b16 %v1313
    %v2006 = vunpack.c.h.b16 %v1313
    %v2007 = vunpack.c.l.b16 %v1314
    %v2008 = vunpack.c.h.b16 %v1314
    %v2009 = vunpack.c.l.b16 %v1315
    %v2010 = vunpack.c.h.b16 %v1315
    %v2011 = vunpack.c.l.b16 %v1316
    %v2012 = vunpack.c.h.b16 %v1316
    %v2013 = vunpack.c.l.b16 %v1317
    %v2014 = vunpack.c.h.b16 %v1317
    %v2015 = vunpack.c.l.b16 %v1318
    %v2016 = vunpack.c.h.b16 %v1318
    %v2017 = vunpack.c.l.b16 %v1319
    %v2018 = vunpack.c.h.b16 %v1319
    %v2019 = vunpack.c.l.b16 %v1320
    %v2020 = vunpack.c.h.b16 %v1320
    %v2021 = vunpack.c.l.b16 %v1321
    %v2022 = vunpack.c.h.b16 %v1321
    %v2023 = vunpack.c.l.b16 %v1322
    %v2024 = vunpack.c.h.b16 %v1322
    %v2025 = vunpack.c.l.b16 %v1323
    %v2026 = vunpack.c.h.b16 %v1323
    %v2027 = vunpack.c.l.b16 %v1324
    %v2028 = vunpack.c.h.b16 %v1324
    %v2029 = vunpack.c.l.b16 %v1325
    %v2030 = vunpack.c.h.b16 %v1325
    %v2031 = vunpack.c.l.b16 %v1326
    %v2032 = vunpack.c.h.b16 %v1326
    %v2033 = vunpack.c.l.b16 %v1327
    %v2034 = vunpack.c.h.b16 %v1327
    %v2035 = vunpack.c.l.b16 %v1328
    %v2036 = vunpack.c.h.b16 %v1328
    %v2037 = vunpack.c.l.b16 %v1329
    %v2038 = vunpack.c.h.b16 %v1329
    %v2039 = vunpack.c.l.b16 %v1330
    %v2040 = vunpack.c.h.b16 %v1330
    %v2041 = vunpack.c.l.b16 %v1331
    %v2042 = vunpack.c.h.b16 %v1331
    %v2043 = vunpack.c.l.b16 %v1332
    %v2044 = vunpack.c.h.b16 %v1332
    %v2045 = vunpack.c.l.b16 %v1333
    %v2046 = vunpack.c.h.b16 %v1333
    %v2047 = vunpack.c.l.b16 %v1334
    %v2048 = vunpack.c.h.b16 %v1334
    %v2049 = vunpack.c.l.b16 %v1335
    %v2050 = vunpack.c.h.b16 %v1335
    %v2051 = vunpack.c.l.b16 %v1336
    %v2052 = vunpack.c.h.b16 %v1336
    %v2053 = vunpack.c.l.b16 %v1337
    %v2054 = vunpack.c.h.b16 %v1337
    %v2055 = vunpack.c.l.b16 %v1338
    %v2056 = vunpack.c.h.b16 %v1338
    %v2057 = vunpack.c.l.b16 %v1339
    %v2058 = vunpack.c.h.b16 %v1339
    %v2059 = vunpack.c.l.b16 %v1340
    %v2060 = vunpack.c.h.b16 %v1340
    %v2061 = vunpack.c.l.b16 %v1341
    %v2062 = vunpack.c.h.b16 %v1341
    %v2063 = vunpack.c.l.b16 %v1342
    %v2064 = vunpack.c.h.b16 %v1342
    %v2065 = vunpack.c.l.b16 %v1343
    %v2066 = vunpack.c.h.b16 %v1343
    %v2067 = vunpack.c.l.b16 %v1344
    %v2068 = vunpack.c.h.b16 %v1344
    %v2069 = vunpack.c.l.b16 %v1345
    %v2070 = vunpack.c.h.b16 %v1345
    %v2071 = vunpack.c.l.b16 %v1346
    %v2072 = vunpack.c.h.b16 %v1346
    %v2073 = vunpack.c.l.b16 %v1347
    %v2074 = vunpack.c.h.b16 %v1347
    %v2075 = vunpack.c.l.b16 %v1348
    %v2076 = vunpack.c.h.b16 %v1348
    %v2077 = vunpack.c.l.b16 %v1349
    %v2078 = vunpack.c.h.b16 %v1349
    %v2079 = vunpack.c.l.b16 %v1350
    %v2080 = vunpack.c.h.b16 %v1350
    %v2081 = vunpack.c.l.b16 %v1351
    %v2082 = vunpack.c.h.b16 %v1351
    %v2083 = vunpack.c.l.b16 %v1352
    %v2084 = vunpack.c.h.b16 %v1352
    %v2085 = vunpack.c.l.b16 %v1353
    %v2086 = vunpack.c.h.b16 %v1353
    %v2087 = vunpack.c.l.b16 %v1354
    %v2088 = vunpack.c.h.b16 %v1354
    %v2089 = vunpack.c.l.b16 %v1355
    %v2090 = vunpack.c.h.b16 %v1355
    %v2091 = vunpack.c.l.b16 %v1356
    %v2092 = vunpack.c.h.b16 %v1356
    %v2093 = vunpack.c.l.b16 %v1357
    %v2094 = vunpack.c.h.b16 %v1357
    %v2095 = vunpack.c.l.b16 %v1358
    %v2096 = vunpack.c.h.b16 %v1358
    %v2097 = vunpack.c.l.b16 %v1359
    %v2098 = vunpack.c.h.b16 %v1359
    %v2099 = vunpack.c.l.b16 %v1360
    %v2100 = vunpack.c.h.b16 %v1360
    %v2101 = vunpack.c.l.b16 %v1361
    %v2102 = vunpack.c.h.b16 %v1361
    %v2103 = vunpack.c.l.b16 %v1362
    %v2104 = vunpack.c.h.b16 %v1362
    %v2105 = vunpack.c.l.b16 %v1363
    %v2106 = vunpack.c.h.b16 %v1363
    %v2107 = vunpack.c.l.b16 %v1364
    %v2108 = vunpack.c.h.b16 %v1364
    %v2109 = vunpack.c.l.b16 %v1365
    %v2110 = vunpack.c.h.b16 %v1365
    %v2111 = vunpack.c.l.b16 %v1366
    %v2112 = vunpack.c.h.b16 %v1366
    %v2113 = vunpack.c.l.b16 %v1367
    %v2114 = vunpack.c.h.b16 %v1367
    %v2115 = vunpack.c.l.b16 %v1368
    %v2116 = vunpack.c.h.b16 %v1368
    %v2117 = vunpack.c.l.b16 %v1369
    %v2118 = vunpack.c.h.b16 %v1369
    %v2119 = vunpack.c.l.b16 %v1370
    %v2120 = vunpack.c.h.b16 %v1370
    %v2121 = vunpack.c.l.b16 %v1371
    %v2122 = vunpack.c.h.b16 %v1371
    %v2123 = vunpack.c.l.b16 %v1372
    %v2124 = vunpack.c.h.b16 %v1372
    %v2125 = vunpack.c.l.b16 %v1373
    %v2126 = vunpack.c.h.b16 %v1373
    %v2127 = vunpack.c.l.b16 %v1374
    %v2128 = vunpack.c.h.b16 %v1374
    %v2129 = vunpack.c.l.b16 %v1375
    %v2130 = vunpack.c.h.b16 %v1375
    %v2131 = vunpack.c.l.b16 %v1376
    %v2132 = vunpack.c.h.b16 %v1376
    %v2133 = vunpack.c.l.b16 %v1377
    %v2134 = vunpack.c.h.b16 %v1377
    %v2135 = vunpack.c.l.b16 %v1378
    %v2136 = vunpack.c.h.b16 %v1378
    %v2137 = vunpack.c.l.b16 %v1379
    %v2138 = vunpack.c.h.b16 %v1379
    %v2139 = vunpack.c.l.b16 %v1380
    %v2140 = vunpack.c.h.b16 %v1380
    %v2141 = vunpack.c.l.b16 %v1381
    %v2142 = vunpack.c.h.b16 %v1381
    %v2143 = vunpack.c.l.b16 %v1382
    %v2144 = vunpack.c.h.b16 %v1382
    %v2145 = vunpack.c.l.b16 %v1383
    %v2146 = vunpack.c.h.b16 %v1383
    %v2147 = vunpack.c.l.b16 %v1384
    %v2148 = vunpack.c.h.b16 %v1384
    %v2149 = vunpack.c.l.b16 %v1385
    %v2150 = vunpack.c.h.b16 %v1385
    %v2151 = vunpack.c.l.b16 %v1386
    %v2152 = vunpack.c.h.b16 %v1386
    %v2153 = vunpack.c.l.b16 %v1387
    %v2154 = vunpack.c.h.b16 %v1387
    %v2155 = vunpack.c.l.b16 %v1388
    %v2156 = vunpack.c.h.b16 %v1388
    %v2157 = vunpack.c.l.b16 %v1389
    %v2158 = vunpack.c.h.b16 %v1389
    %v2159 = vunpack.c.l.b16 %v1390
    %v2160 = vunpack.c.h.b16 %v1390
    %v2161 = vunpack.c.l.b16 %v1391
    %v2162 = vunpack.c.h.b16 %v1391
    %v2163 = vunpack.c.l.b16 %v1392
    %v2164 = vunpack.c.h.b16 %v1392
    %v2165 = vunpack.c.l.b16 %v1393
    %v2166 = vunpack.c.h.b16 %v1393
    %v2167 = vunpack.c.l.b16 %v1394
    %v2168 = vunpack.c.h.b16 %v1394
    %v2169 = vunpack.c.l.b16 %v1395
    %v2170 = vunpack.c.h.b16 %v1395
    %v2171 = vunpack.c.l.b16 %v1396
    %v2172 = vunpack.c.h.b16 %v1396
    %v2173 = vunpack.c.l.b16 %v1397
    %v2174 = vunpack.c.h.b16 %v1397
    %v2175 = vunpack.c.l.b16 %v1398
    %v2176 = vunpack.c.h.b16 %v1398
    %v2177 = vunpack.c.l.b16 %v1399
    %v2178 = vunpack.c.h.b16 %v1399
    %v2179 = vunpack.c.l.b16 %v1400
    %v2180 = vunpack.c.h.b16 %v1400
    %v2181 = vunpack.c.l.b16 %v1401
    %v2182 = vunpack.c.h.b16 %v1401
    %v2183 = vunpack.c.l.b16 %v1402
    %v2184 = vunpack.c.h.b16 %v1402
    %v2185 = vunpack.c.l.b16 %v1403
    %v2186 = vunpack.c.h.b16 %v1403
    %v2187 = vunpack.c.l.b16 %v1404
    %v2188 = vunpack.c.h.b16 %v1404
    %v2189 = vunpack.c.l.b16 %v1405
    %v2190 = vunpack.c.h.b16 %v1405
    %v2191 = vunpack.c.l.b16 %v1406
    %v2192 = vunpack.c.h.b16 %v1406
    %v2193 = vunpack.c.l.b16 %v1407
    %v2194 = vunpack.c.h.b16 %v1407
    %v2195 = vunpack.c.l.b16 %v1408
    %v2196 = vunpack.c.h.b16 %v1408
    %v2197 = vunpack.c.l.b16 %v1409
    %v2198 = vunpack.c.h.b16 %v1409
    %v2199 = vunpack.c.l.b16 %v1410
    %v2200 = vunpack.c.h.b16 %v1410
    %v2201 = vunpack.c.l.b16 %v1411
    %v2202 = vunpack.c.h.b16 %v1411
    %v2203 = vunpack.c.l.b16 %v1412
    %v2204 = vunpack.c.h.b16 %v1412
    %v2205 = vunpack.c.l.b16 %v1413
    %v2206 = vunpack.c.h.b16 %v1413
    %v2207 = vunpack.c.l.b16 %v1414
    %v2208 = vunpack.c.h.b16 %v1414
    %v2209 = vunpack.c.l.b16 %v1415
    %v2210 = vunpack.c.h.b16 %v1415
    %v2211 = vunpack.c.l.b16 %v1416
    %v2212 = vunpack.c.h.b16 %v1416
    %v2213 = vunpack.c.l.b16 %v1417
    %v2214 = vunpack.c.h.b16 %v1417
    %v2215 = vunpack.c.l.b16 %v1418
    %v2216 = vunpack.c.h.b16 %v1418
    %v2217 = vunpack.c.l.b16 %v1419
    %v2218 = vunpack.c.h.b16 %v1419
    %v2219 = vunpack.c.l.b16 %v1420
    %v2220 = vunpack.c.h.b16 %v1420
    %v2221 = vunpack.c.l.b16 %v1421
    %v2222 = vunpack.c.h.b16 %v1421
    %v2223 = vunpack.c.l.b16 %v1422
    %v2224 = vunpack.c.h.b16 %v1422
    %v2225 = vunpack.c.l.b16 %v1423
    %v2226 = vunpack.c.h.b16 %v1423
    %v2227 = vunpack.c.l.b16 %v1424
    %v2228 = vunpack.c.h.b16 %v1424
    %v2229 = vunpack.c.l.b16 %v1425
    %v2230 = vunpack.c.h.b16 %v1425
    %v2231 = vunpack.c.l.b16 %v1426
    %v2232 = vunpack.c.h.b16 %v1426
    %v2233 = vunpack.c.l.b16 %v1427
    %v2234 = vunpack.c.h.b16 %v1427
    %v2235 = vunpack.c.l.b16 %v1428
    %v2236 = vunpack.c.h.b16 %v1428
    %v2237 = vunpack.c.l.b16 %v1429
    %v2238 = vunpack.c.h.b16 %v1429
    %v2239 = vunpack.c.l.b16 %v1430
    %v2240 = vunpack.c.h.b16 %v1430
    %v2241 = vunpack.c.l.b16 %v1431
    %v2242 = vunpack.c.h.b16 %v1431
    %v2243 = vunpack.c.l.b16 %v1432
    %v2244 = vunpack.c.h.b16 %v1432
    %v2245 = vunpack.c.l.b16 %v1433
    %v2246 = vunpack.c.h.b16 %v1433
    %v2247 = vunpack.c.l.b16 %v1434
    %v2248 = vunpack.c.h.b16 %v1434
    %v2249 = vunpack.c.l.b16 %v1435
    %v2250 = vunpack.c.h.b16 %v1435
    %v2251 = vunpack.c.l.b16 %v1436
    %v2252 = vunpack.c.h.b16 %v1436
    %v2253 = vunpack.c.l.b16 %v1437
    %v2254 = vunpack.c.h.b16 %v1437
    %v2255 = vunpack.c.l.b16 %v1438
    %v2256 = vunpack.c.h.b16 %v1438
    %v2257 = vunpack.c.l.b16 %v1439
    %v2258 = vunpack.c.h.b16 %v1439
    %v2259 = vunpack.c.l.b16 %v1440
    %v2260 = vunpack.c.h.b16 %v1440
    %v2261 = vunpack.c.l.b16 %v1441
    %v2262 = vunpack.c.h.b16 %v1441
    %v2263 = vunpack.c.l.b16 %v1442
    %v2264 = vunpack.c.h.b16 %v1442
    %v2265 = vunpack.c.l.b16 %v1443
    %v2266 = vunpack.c.h.b16 %v1443
    %v2267 = vunpack.c.l.b16 %v1444
    %v2268 = vunpack.c.h.b16 %v1444
    %v2269 = vunpack.c.l.b16 %v1445
    %v2270 = vunpack.c.h.b16 %v1445
    %v2271 = vunpack.c.l.b16 %v1446
    %v2272 = vunpack.c.h.b16 %v1446
    %v2273 = vunpack.c.l.b16 %v1447
    %v2274 = vunpack.c.h.b16 %v1447
    %v2275 = vunpack.c.l.b16 %v1448
    %v2276 = vunpack.c.h.b16 %v1448
    %v2277 = vunpack.c.l.b16 %v1449
    %v2278 = vunpack.c.h.b16 %v1449
    %v2279 = vunpack.c.l.b16 %v1450
    %v2280 = vunpack.c.h.b16 %v1450
    %v2281 = vunpack.c.l.b16 %v1451
    %v2282 = vunpack.c.h.b16 %v1451
    %v2283 = vunpack.c.l.b16 %v1452
    %v2284 = vunpack.c.h.b16 %v1452
    %v2285 = vunpack.c.l.b16 %v1453
    %v2286 = vunpack.c.h.b16 %v1453
    %v2287 = vunpack.c.l.b16 %v1454
    %v2288 = vunpack.c.h.b16 %v1454
    %v2289 = vunpack.c.l.b16 %v1455
    %v2290 = vunpack.c.h.b16 %v1455
    %v2291 = vunpack.c.l.b16 %v1456
    %v2292 = vunpack.c.h.b16 %v1456
    %v2293 = vunpack.c.l.b16 %v1457
    %v2294 = vunpack.c.h.b16 %v1457
    %v2295 = vunpack.c.l.b16 %v1458
    %v2296 = vunpack.c.h.b16 %v1458
    %v2297 = vunpack.c.l.b16 %v1459
    %v2298 = vunpack.c.h.b16 %v1459
    %v2299 = vunpack.c.l.b16 %v1460
    %v2300 = vunpack.c.h.b16 %v1460
    %v2301 = vunpack.c.l.b16 %v1461
    %v2302 = vunpack.c.h.b16 %v1461
    %v2303 = vunpack.c.l.b16 %v1462
    %v2304 = vunpack.c.h.b16 %v1462
    %v2305 = vunpack.c.l.b16 %v1463
    %v2306 = vunpack.c.h.b16 %v1463
    %v2307 = vunpack.c.l.b16 %v1464
    %v2308 = vunpack.c.h.b16 %v1464
    %v2309 = vunpack.c.l.b16 %v1465
    %v2310 = vunpack.c.h.b16 %v1465
    %v2311 = vunpack.c.l.b16 %v1466
    %v2312 = vunpack.c.h.b16 %v1466
    %v2313 = vunpack.c.l.b16 %v1467
    %v2314 = vunpack.c.h.b16 %v1467
    %v2315 = vunpack.c.l.b16 %v1468
    %v2316 = vunpack.c.h.b16 %v1468
    %v2317 = vunpack.c.l.b16 %v1469
    %v2318 = vunpack.c.h.b16 %v1469
    %v2319 = vunpack.c.l.b16 %v1470
    %v2320 = vunpack.c.h.b16 %v1470
    %v2321 = vunpack.c.l.b16 %v1471
    %v2322 = vunpack.c.h.b16 %v1471
    %v2323 = vunpack.c.l.b16 %v1472
    %v2324 = vunpack.c.h.b16 %v1472
    %v2325 = vunpack.c.l.b16 %v1473
    %v2326 = vunpack.c.h.b16 %v1473
    %v2327 = vunpack.c.l.b16 %v1474
    %v2328 = vunpack.c.h.b16 %v1474
    %v2329 = vpack.c.b16 %v1821, %v1817
    %v2330 = vpack.c.b16 %v1822, %v1818
    %v2331 = vpack.c.b16 %v1823, %v1819
    %v2332 = vpack.c.b16 %v1824, %v1820
    %v2333 = vpack.c.b16 %v1829, %v1825
    %v2334 = vpack.c.b16 %v1830, %v1826
    %v2335 = vpack.c.b16 %v1831, %v1827
    %v2336 = vpack.c.b16 %v1832, %v1828
    %v2337 = vpack.c.b16 %v1837, %v1833
    %v2338 = vpack.c.b16 %v1838, %v1834
    %v2339 = vpack.c.b16 %v1839, %v1835
    %v2340 = vpack.c.b16 %v1840, %v1836
    %v2341 = vpack.c.b16 %v1845, %v1841
    %v2342 = vpack.c.b16 %v1846, %v1842
    %v2343 = vpack.c.b16 %v1847, %v1843
    %v2344 = vpack.c.b16 %v1848, %v1844
    %v2345 = vpack.c.b16 %v1853, %v1849
    %v2346 = vpack.c.b16 %v1854, %v1850
    %v2347 = vpack.c.b16 %v1855, %v1851
    %v2348 = vpack.c.b16 %v1856, %v1852
    %v2349 = vpack.c.b16 %v1861, %v1857
    %v2350 = vpack.c.b16 %v1862, %v1858
    %v2351 = vpack.c.b16 %v1863, %v1859
    %v2352 = vpack.c.b16 %v1864, %v1860
    %v2353 = vpack.c.b16 %v1869, %v1865
    %v2354 = vpack.c.b16 %v1870, %v1866
    %v2355 = vpack.c.b16 %v1871, %v1867
    %v2356 = vpack.c.b16 %v1872, %v1868
    %v2357 = vpack.c.b16 %v1877, %v1873
    %v2358 = vpack.c.b16 %v1878, %v1874
    %v2359 = vpack.c.b16 %v1879, %v1875
    %v2360 = vpack.c.b16 %v1880, %v1876
    %v2361 = vpack.c.b16 %v1885, %v1881
    %v2362 = vpack.c.b16 %v1886, %v1882
    %v2363 = vpack.c.b16 %v1887, %v1883
    %v2364 = vpack.c.b16 %v1888, %v1884
    %v2365 = vpack.c.b16 %v1893, %v1889
    %v2366 = vpack.c.b16 %v1894, %v1890
    %v2367 = vpack.c.b16 %v1895, %v1891
    %v2368 = vpack.c.b16 %v1896, %v1892
    %v2369 = vpack.c.b16 %v1901, %v1897
    %v2370 = vpack.c.b16 %v1902, %v1898
    %v2371 = vpack.c.b16 %v1903, %v1899
    %v2372 = vpack.c.b16 %v1904, %v1900
    %v2373 = vpack.c.b16 %v1909, %v1905
    %v2374 = vpack.c.b16 %v1910, %v1906
    %v2375 = vpack.c.b16 %v1911, %v1907
    %v2376 = vpack.c.b16 %v1912, %v1908
    %v2377 = vpack.c.b16 %v1917, %v1913
    %v2378 = vpack.c.b16 %v1918, %v1914
    %v2379 = vpack.c.b16 %v1919, %v1915
    %v2380 = vpack.c.b16 %v1920, %v1916
    %v2381 = vpack.c.b16 %v1925, %v1921
    %v2382 = vpack.c.b16 %v1926, %v1922
    %v2383 = vpack.c.b16 %v1927, %v1923
    %v2384 = vpack.c.b16 %v1928, %v1924
    %v2385 = vpack.c.b16 %v1933, %v1929
    %v2386 = vpack.c.b16 %v1934, %v1930
    %v2387 = vpack.c.b16 %v1935, %v1931
    %v2388 = vpack.c.b16 %v1936, %v1932
    %v2389 = vpack.c.b16 %v1941, %v1937
    %v2390 = vpack.c.b16 %v1942, %v1938
    %v2391 = vpack.c.b16 %v1943, %v1939
    %v2392 = vpack.c.b16 %v1944, %v1940
    %v2393 = vpack.c.b16 %v1949, %v1945
    %v2394 = vpack.c.b16 %v1950, %v1946
    %v2395 = vpack.c.b16 %v1951, %v1947
    %v2396 = vpack.c.b16 %v1952, %v1948
    %v2397 = vpack.c.b16 %v1957, %v1953
    %v2398 = vpack.c.b16 %v1958, %v1954
    %v2399 = vpack.c.b16 %v1959, %v1955
    %v2400 = vpack.c.b16 %v1960, %v1956
    %v2401 = vpack.c.b16 %v1965, %v1961
    %v2402 = vpack.c.b16 %v1966, %v1962
    %v2403 = vpack.c.b16 %v1967, %v1963
    %v2404 = vpack.c.b16 %v1968, %v1964
    %v2405 = vpack.c.b16 %v1973, %v1969
    %v2406 = vpack.c.b16 %v1974, %v1970
    %v2407 = vpack.c.b16 %v1975, %v1971
    %v2408 = vpack.c.b16 %v1976, %v1972
    %v2409 = vpack.c.b16 %v1981, %v1977
    %v2410 = vpack.c.b16 %v1982, %v1978
    %v2411 = vpack.c.b16 %v1983, %v1979
    %v2412 = vpack.c.b16 %v1984, %v1980
    %v2413 = vpack.c.b16 %v1989, %v1985
    %v2414 = vpack.c.b16 %v1990, %v1986
    %v2415 = vpack.c.b16 %v1991, %v1987
    %v2416 = vpack.c.b16 %v1992, %v1988
    %v2417 = vpack.c.b16 %v1997, %v1993
    %v2418 = vpack.c.b16 %v1998, %v1994
    %v2419 = vpack.c.b16 %v1999, %v1995
    %v2420 = vpack.c.b16 %v2000, %v1996
    %v2421 = vpack.c.b16 %v2005, %v2001
    %v2422 = vpack.c.b16 %v2006, %v2002
    %v2423 = vpack.c.b16 %v2007, %v2003
    %v2424 = vpack.c.b16 %v2008, %v2004
    %v2425 = vpack.c.b16 %v2013, %v2009
    %v2426 = vpack.c.b16 %v2014, %v2010
    %v2427 = vpack.c.b16 %v2015, %v2011
    %v2428 = vpack.c.b16 %v2016, %v2012
    %v2429 = vpack.c.b16 %v2021, %v2017
    %v2430 = vpack.c.b16 %v2022, %v2018
    %v2431 = vpack.c.b16 %v2023, %v2019
    %v2432 = vpack.c.b16 %v2024, %v2020
    %v2433 = vpack.c.b16 %v2029, %v2025
    %v2434 = vpack.c.b16 %v2030, %v2026
    %v2435 = vpack.c.b16 %v2031, %v2027
    %v2436 = vpack.c.b16 %v2032, %v2028
    %v2437 = vpack.c.b16 %v2037, %v2033
    %v2438 = vpack.c.b16 %v2038, %v2034
    %v2439 = vpack.c.b16 %v2039, %v2035
    %v2440 = vpack.c.b16 %v2040, %v2036
    %v2441 = vpack.c.b16 %v2045, %v2041
    %v2442 = vpack.c.b16 %v2046, %v2042
    %v2443 = vpack.c.b16 %v2047, %v2043
    %v2444 = vpack.c.b16 %v2048, %v2044
    %v2445 = vpack.c.b16 %v2053, %v2049
    %v2446 = vpack.c.b16 %v2054, %v2050
    %v2447 = vpack.c.b16 %v2055, %v2051
    %v2448 = vpack.c.b16 %v2056, %v2052
    %v2449 = vpack.c.b16 %v2061, %v2057
    %v2450 = vpack.c.b16 %v2062, %v2058
    %v2451 = vpack.c.b16 %v2063, %v2059
    %v2452 = vpack.c.b16 %v2064, %v2060
    %v2453 = vpack.c.b16 %v2069, %v2065
    %v2454 = vpack.c.b16 %v2070, %v2066
    %v2455 = vpack.c.b16 %v2071, %v2067
    %v2456 = vpack.c.b16 %v2072, %v2068
    %v2457 = vpack.c.b16 %v2077, %v2073
    %v2458 = vpack.c.b16 %v2078, %v2074
    %v2459 = vpack.c.b16 %v2079, %v2075
    %v2460 = vpack.c.b16 %v2080, %v2076
    %v2461 = vpack.c.b16 %v2085, %v2081
    %v2462 = vpack.c.b16 %v2086, %v2082
    %v2463 = vpack.c.b16 %v2087, %v2083
    %v2464 = vpack.c.b16 %v2088, %v2084
    %v2465 = vpack.c.b16 %v2093, %v2089
    %v2466 = vpack.c.b16 %v2094, %v2090
    %v2467 = vpack.c.b16 %v2095, %v2091
    %v2468 = vpack.c.b16 %v2096, %v2092
    %v2469 = vpack.c.b16 %v2101, %v2097
    %v2470 = vpack.c.b16 %v2102, %v2098
    %v2471 = vpack.c.b16 %v2103, %v2099
    %v2472 = vpack.c.b16 %v2104, %v2100
    %v2473 = vpack.c.b16 %v2109, %v2105
    %v2474 = vpack.c.b16 %v2110, %v2106
    %v2475 = vpack.c.b16 %v2111, %v2107
    %v2476 = vpack.c.b16 %v2112, %v2108
    %v2477 = vpack.c.b16 %v2117, %v2113
    %v2478 = vpack.c.b16 %v2118, %v2114
    %v2479 = vpack.c.b16 %v2119, %v2115
    %v2480 = vpack.c.b16 %v2120, %v2116
    %v2481 = vpack.c.b16 %v2125, %v2121
    %v2482 = vpack.c.b16 %v2126, %v2122
    %v2483 = vpack.c.b16 %v2127, %v2123
    %v2484 = vpack.c.b16 %v2128, %v2124
    %v2485 = vpack.c.b16 %v2133, %v2129
    %v2486 = vpack.c.b16 %v2134, %v2130
    %v2487 = vpack.c.b16 %v2135, %v2131
    %v2488 = vpack.c.b16 %v2136, %v2132
    %v2489 = vpack.c.b16 %v2141, %v2137
    %v2490 = vpack.c.b16 %v2142, %v2138
    %v2491 = vpack.c.b16 %v2143, %v2139
    %v2492 = vpack.c.b16 %v2144, %v2140
    %v2493 = vpack.c.b16 %v2149, %v2145
    %v2494 = vpack.c.b16 %v2150, %v2146
    %v2495 = vpack.c.b16 %v2151, %v2147
    %v2496 = vpack.c.b16 %v2152, %v2148
    %v2497 = vpack.c.b16 %v2157, %v2153
    %v2498 = vpack.c.b16 %v2158, %v2154
    %v2499 = vpack.c.b16 %v2159, %v2155
    %v2500 = vpack.c.b16 %v2160, %v2156
    %v2501 = vpack.c.b16 %v2165, %v2161
    %v2502 = vpack.c.b16 %v2166, %v2162
    %v2503 = vpack.c.b16 %v2167, %v2163
    %v2504 = vpack.c.b16 %v2168, %v2164
    %v2505 = vpack.c.b16 %v2173, %v2169
    %v2506 = vpack.c.b16 %v2174, %v2170
    %v2507 = vpack.c.b16 %v2175, %v2171
    %v2508 = vpack.c.b16 %v2176, %v2172
    %v2509 = vpack.c.b16 %v2181, %v2177
    %v2510 = vpack.c.b16 %v2182, %v2178
    %v2511 = vpack.c.b16 %v2183, %v2179
    %v2512 = vpack.c.b16 %v2184, %v2180
    %v2513 = vpack.c.b16 %v2189, %v2185
    %v2514 = vpack.c.b16 %v2190, %v2186
    %v2515 = vpack.c.b16 %v2191, %v2187
    %v2516 = vpack.c.b16 %v2192, %v2188
    %v2517 = vpack.c.b16 %v2197, %v2193
    %v2518 = vpack.c.b16 %v2198, %v2194
    %v2519 = vpack.c.b16 %v2199, %v2195
    %v2520 = vpack.c.b16 %v2200, %v2196
    %v2521 = vpack.c.b16 %v2205, %v2201
    %v2522 = vpack.c.b16 %v2206, %v2202
    %v2523 = vpack.c.b16 %v2207, %v2203
    %v2524 = vpack.c.b16 %v2208, %v2204
    %v2525 = vpack.c.b16 %v2213, %v2209
    %v2526 = vpack.c.b16 %v2214, %v2210
    %v2527 = vpack.c.b16 %v2215, %v2211
    %v2528 = vpack.c.b16 %v2216, %v2212
    %v2529 = vpack.c.b16 %v2221, %v2217
    %v2530 = vpack.c.b16 %v2222, %v2218
    %v2531 = vpack.c.b16 %v2223, %v2219
    %v2532 = vpack.c.b16 %v2224, %v2220
    %v2533 = vpack.c.b16 %v2229, %v2225
    %v2534 = vpack.c.b16 %v2230, %v2226
    %v2535 = vpack.c.b16 %v2231, %v2227
    %v2536 = vpack.c.b16 %v2232, %v2228
    %v2537 = vpack.c.b16 %v2237, %v2233
    %v2538 = vpack.c.b16 %v2238, %v2234
    %v2539 = vpack.c.b16 %v2239, %v2235
    %v2540 = vpack.c.b16 %v2240, %v2236
    %v2541 = vpack.c.b16 %v2245, %v2241
    %v2542 = vpack.c.b16 %v2246, %v2242
    %v2543 = vpack.c.b16 %v2247, %v2243
    %v2544 = vpack.c.b16 %v2248, %v2244
    %v2545 = vpack.c.b16 %v2253, %v2249
    %v2546 = vpack.c.b16 %v2254, %v2250
    %v2547 = vpack.c.b16 %v2255, %v2251
    %v2548 = vpack.c.b16 %v2256, %v2252
    %v2549 = vpack.c.b16 %v2261, %v2257
    %v2550 = vpack.c.b16 %v2262, %v2258
    %v2551 = vpack.c.b16 %v2263, %v2259
    %v2552 = vpack.c.b16 %v2264, %v2260
    %v2553 = vpack.c.b16 %v2269, %v2265
    %v2554 = vpack.c.b16 %v2270, %v2266
    %v2555 = vpack.c.b16 %v2271, %v2267
    %v2556 = vpack.c.b16 %v2272, %v2268
    %v2557 = vpack.c.b16 %v2277, %v2273
    %v2558 = vpack.c.b16 %v2278, %v2274
    %v2559 = vpack.c.b16 %v2279, %v2275
    %v2560 = vpack.c.b16 %v2280, %v2276
    %v2561 = vpack.c.b16 %v2285, %v2281
    %v2562 = vpack.c.b16 %v2286, %v2282
    %v2563 = vpack.c.b16 %v2287, %v2283
    %v2564 = vpack.c.b16 %v2288, %v2284
    %v2565 = vpack.c.b16 %v2293, %v2289
    %v2566 = vpack.c.b16 %v2294, %v2290
    %v2567 = vpack.c.b16 %v2295, %v2291
    %v2568 = vpack.c.b16 %v2296, %v2292
    %v2569 = vpack.c.b16 %v2301, %v2297
    %v2570 = vpack.c.b16 %v2302, %v2298
    %v2571 = vpack.c.b16 %v2303, %v2299
    %v2572 = vpack.c.b16 %v2304, %v2300
    %v2573 = vpack.c.b16 %v2309, %v2305
    %v2574 = vpack.c.b16 %v2310, %v2306
    %v2575 = vpack.c.b16 %v2311, %v2307
    %v2576 = vpack.c.b16 %v2312, %v2308
    %v2577 = vpack.c.b16 %v2317, %v2313
    %v2578 = vpack.c.b16 %v2318, %v2314
    %v2579 = vpack.c.b16 %v2319, %v2315
    %v2580 = vpack.c.b16 %v2320, %v2316
    %v2581 = vpack.c.b16 %v2325, %v2321
    %v2582 = vpack.c.b16 %v2326, %v2322
    %v2583 = vpack.c.b16 %v2327, %v2323
    %v2584 = vpack.c.b16 %v2328, %v2324
    %2841 = vmatprep.subr.bf16.mxu0 %v2358
    %2842 = vmatpush1.bf16.msra.mxu0 %v2357
    %2843 = vmatprep.subr.bf16.mxu0 %v2354
    %2844 = vmatpush1.bf16.msra.mxu0 %v2353
    %2845 = vmatprep.subr.bf16.mxu0 %v2350
    %2846 = vmatpush1.bf16.msra.mxu0 %v2349
    %2847 = vmatprep.subr.bf16.mxu0 %v2346
    %2848 = vmatpush1.bf16.msra.mxu0 %v2345
    %2849 = vmatprep.subr.bf16.mxu0 %v2342
    %2850 = vmatpush1.bf16.msra.mxu0 %v2341
    %2851 = vmatprep.subr.bf16.mxu0 %v2338
    %2852 = vmatpush1.bf16.msra.mxu0 %v2337
    %2853 = vmatprep.subr.bf16.mxu0 %v2334
    %2854 = vmatpush1.bf16.msra.mxu0 %v2333
    %2855 = vmatprep.subr.bf16.mxu0 %v2330
    %2856 = vmatpush1.bf16.msra.mxu0 %v2329
    %2857 = vmatprep.subr.bf16.mxu0 %v2390
    %2858 = vmatpush2.bf16.msra.mxu0 %v2389
    %2859 = vmatprep.subr.bf16.mxu0 %v2386
    %2860 = vmatpush2.bf16.msra.mxu0 %v2385
    %2861 = vmatprep.subr.bf16.mxu0 %v2382
    %2862 = vmatpush2.bf16.msra.mxu0 %v2381
    %2863 = vmatprep.subr.bf16.mxu0 %v2378
    %2864 = vmatpush2.bf16.msra.mxu0 %v2377
    %2865 = vmatprep.subr.bf16.mxu0 %v2374
    %2866 = vmatpush2.bf16.msra.mxu0 %v2373
    %2867 = vmatprep.subr.bf16.mxu0 %v2370
    %2868 = vmatpush2.bf16.msra.mxu0 %v2369
    %2869 = vmatprep.subr.bf16.mxu0 %v2366
    %2870 = vmatpush2.bf16.msra.mxu0 %v2365
    %2871 = vmatprep.subr.bf16.mxu0 %v2362
    %2872 = vmatpush2.bf16.msra.mxu0 %v2361
    %2873 = vmatprep.mubr.bf16.mxu0 %v1476
    %2874 = vmatmul.mubr.bf16.gmra.mxu0 %v1475
    %v2875 = vpop.f32.mrf.mxu0
    %v2876 = vadd.f32 %v1544, %v2875
    %v2877 = vpop.f32.mrf.mxu0
    %v2878 = vadd.f32 %v1548, %v2877
    %v2879 = vpop.f32.mrf.mxu0
    %v2880 = vadd.f32 %v1544, %v2879
    %v2881 = vpop.f32.mrf.mxu0
    %v2882 = vadd.f32 %v1548, %v2881
    %2883 = vmatprep.mubr.bf16.mxu0 %v1484
    %2884 = vmatmul.mubr.bf16.gmra.mxu0 %v1483
    %v2885 = vpop.f32.mrf.mxu0
    %v2886 = vadd.f32 %v1544, %v2885
    %v2887 = vpop.f32.mrf.mxu0
    %v2888 = vadd.f32 %v1548, %v2887
    %v2889 = vpop.f32.mrf.mxu0
    %v2890 = vadd.f32 %v1544, %v2889
    %v2891 = vpop.f32.mrf.mxu0
    %v2892 = vadd.f32 %v1548, %v2891
    %2893 = vmatprep.mubr.bf16.mxu0 %v1492
    %2894 = vmatmul.mubr.bf16.gmra.mxu0 %v1491
    %v2895 = vpop.f32.mrf.mxu0
    %v2896 = vadd.f32 %v1544, %v2895
    %v2897 = vpop.f32.mrf.mxu0
    %v2898 = vadd.f32 %v1548, %v2897
    %v2899 = vpop.f32.mrf.mxu0
    %v2900 = vadd.f32 %v1544, %v2899
    %v2901 = vpop.f32.mrf.mxu0
    %v2902 = vadd.f32 %v1548, %v2901
    %2903 = vmatprep.mubr.bf16.mxu0 %v1500
    %2904 = vmatmul.mubr.bf16.gmra.mxu0 %v1499
    %v2905 = vpop.f32.mrf.mxu0
    %v2906 = vadd.f32 %v1544, %v2905
    %v2907 = vpop.f32.mrf.mxu0
    %v2908 = vadd.f32 %v1548, %v2907
    %v2909 = vpop.f32.mrf.mxu0
    %v2910 = vadd.f32 %v1544, %v2909
    %v2911 = vpop.f32.mrf.mxu0
    %v2912 = vadd.f32 %v1548, %v2911
    %2913 = vmatprep.mubr.bf16.mxu0 %v1508
    %2914 = vmatmul.mubr.bf16.gmra.mxu0 %v1507
    %v2915 = vpop.f32.mrf.mxu0
    %v2916 = vadd.f32 %v1544, %v2915
    %v2917 = vpop.f32.mrf.mxu0
    %v2918 = vadd.f32 %v1548, %v2917
    %v2919 = vpop.f32.mrf.mxu0
    %v2920 = vadd.f32 %v1544, %v2919
    %v2921 = vpop.f32.mrf.mxu0
    %v2922 = vadd.f32 %v1548, %v2921
    %2923 = vmatprep.mubr.bf16.mxu0 %v1516
    %2924 = vmatmul.mubr.bf16.gmra.mxu0 %v1515
    %v2925 = vpop.f32.mrf.mxu0
    %v2926 = vadd.f32 %v1544, %v2925
    %v2927 = vpop.f32.mrf.mxu0
    %v2928 = vadd.f32 %v1548, %v2927
    %v2929 = vpop.f32.mrf.mxu0
    %v2930 = vadd.f32 %v1544, %v2929
    %v2931 = vpop.f32.mrf.mxu0
    %v2932 = vadd.f32 %v1548, %v2931
    %2933 = vmatprep.mubr.bf16.mxu0 %v1524
    %2934 = vmatmul.mubr.bf16.gmra.mxu0 %v1523
    %v2935 = vpop.f32.mrf.mxu0
    %v2936 = vadd.f32 %v1544, %v2935
    %v2937 = vpop.f32.mrf.mxu0
    %v2938 = vadd.f32 %v1548, %v2937
    %v2939 = vpop.f32.mrf.mxu0
    %v2940 = vadd.f32 %v1544, %v2939
    %v2941 = vpop.f32.mrf.mxu0
    %v2942 = vadd.f32 %v1548, %v2941
    %2943 = vmatprep.mubr.bf16.mxu0 %v1532
    %2944 = vmatmul.mubr.bf16.gmra.mxu0 %v1531
    %v2945 = vpop.f32.mrf.mxu0
    %v2946 = vadd.f32 %v1544, %v2945
    %v2947 = vpop.f32.mrf.mxu0
    %v2948 = vadd.f32 %v1548, %v2947
    %v2949 = vpop.f32.mrf.mxu0
    %v2950 = vadd.f32 %v1544, %v2949
    %v2951 = vpop.f32.mrf.mxu0
    %v2952 = vadd.f32 %v1548, %v2951
    %2953 = vdwg.mxu0
    %2954 = vmatprep.subr.bf16.mxu0 %v2422
    %2955 = vmatpush1.bf16.msra.mxu0 %v2421
    %2956 = vmatprep.subr.bf16.mxu0 %v2418
    %2957 = vmatpush1.bf16.msra.mxu0 %v2417
    %2958 = vmatprep.subr.bf16.mxu0 %v2414
    %2959 = vmatpush1.bf16.msra.mxu0 %v2413
    %2960 = vmatprep.subr.bf16.mxu0 %v2410
    %2961 = vmatpush1.bf16.msra.mxu0 %v2409
    %2962 = vmatprep.subr.bf16.mxu0 %v2406
    %2963 = vmatpush1.bf16.msra.mxu0 %v2405
    %2964 = vmatprep.subr.bf16.mxu0 %v2402
    %2965 = vmatpush1.bf16.msra.mxu0 %v2401
    %2966 = vmatprep.subr.bf16.mxu0 %v2398
    %2967 = vmatpush1.bf16.msra.mxu0 %v2397
    %2968 = vmatprep.subr.bf16.mxu0 %v2394
    %2969 = vmatpush1.bf16.msra.mxu0 %v2393
    %2970 = vmatprep.subr.bf16.mxu0 %v2454
    %2971 = vmatpush2.bf16.msra.mxu0 %v2453
    %2972 = vmatprep.subr.bf16.mxu0 %v2450
    %2973 = vmatpush2.bf16.msra.mxu0 %v2449
    %2974 = vmatprep.subr.bf16.mxu0 %v2446
    %2975 = vmatpush2.bf16.msra.mxu0 %v2445
    %2976 = vmatprep.subr.bf16.mxu0 %v2442
    %2977 = vmatpush2.bf16.msra.mxu0 %v2441
    %2978 = vmatprep.subr.bf16.mxu0 %v2438
    %2979 = vmatpush2.bf16.msra.mxu0 %v2437
    %2980 = vmatprep.subr.bf16.mxu0 %v2434
    %2981 = vmatpush2.bf16.msra.mxu0 %v2433
    %2982 = vmatprep.subr.bf16.mxu0 %v2430
    %2983 = vmatpush2.bf16.msra.mxu0 %v2429
    %2984 = vmatprep.subr.bf16.mxu0 %v2426
    %2985 = vmatpush2.bf16.msra.mxu0 %v2425
    %2986 = vmatprep.mubr.bf16.mxu0 %v1478
    %2987 = vmatmul.mubr.bf16.gmra.mxu0 %v1477
    %v2988 = vpop.f32.mrf.mxu0
    %v2989 = vadd.f32 %v2876, %v2988
    %v2990 = vpop.f32.mrf.mxu0
    %v2991 = vadd.f32 %v2878, %v2990
    %v2992 = vpop.f32.mrf.mxu0
    %v2993 = vadd.f32 %v2880, %v2992
    %v2994 = vpop.f32.mrf.mxu0
    %v2995 = vadd.f32 %v2882, %v2994
    %2996 = vmatprep.mubr.bf16.mxu0 %v1486
    %2997 = vmatmul.mubr.bf16.gmra.mxu0 %v1485
    %v2998 = vpop.f32.mrf.mxu0
    %v2999 = vadd.f32 %v2886, %v2998
    %v3000 = vpop.f32.mrf.mxu0
    %v3001 = vadd.f32 %v2888, %v3000
    %v3002 = vpop.f32.mrf.mxu0
    %v3003 = vadd.f32 %v2890, %v3002
    %v3004 = vpop.f32.mrf.mxu0
    %v3005 = vadd.f32 %v2892, %v3004
    %3006 = vmatprep.mubr.bf16.mxu0 %v1494
    %3007 = vmatmul.mubr.bf16.gmra.mxu0 %v1493
    %v3008 = vpop.f32.mrf.mxu0
    %v3009 = vadd.f32 %v2896, %v3008
    %v3010 = vpop.f32.mrf.mxu0
    %v3011 = vadd.f32 %v2898, %v3010
    %v3012 = vpop.f32.mrf.mxu0
    %v3013 = vadd.f32 %v2900, %v3012
    %v3014 = vpop.f32.mrf.mxu0
    %v3015 = vadd.f32 %v2902, %v3014
    %3016 = vmatprep.mubr.bf16.mxu0 %v1502
    %3017 = vmatmul.mubr.bf16.gmra.mxu0 %v1501
    %v3018 = vpop.f32.mrf.mxu0
    %v3019 = vadd.f32 %v2906, %v3018
    %v3020 = vpop.f32.mrf.mxu0
    %v3021 = vadd.f32 %v2908, %v3020
    %v3022 = vpop.f32.mrf.mxu0
    %v3023 = vadd.f32 %v2910, %v3022
    %v3024 = vpop.f32.mrf.mxu0
    %v3025 = vadd.f32 %v2912, %v3024
    %3026 = vmatprep.mubr.bf16.mxu0 %v1510
    %3027 = vmatmul.mubr.bf16.gmra.mxu0 %v1509
    %v3028 = vpop.f32.mrf.mxu0
    %v3029 = vadd.f32 %v2916, %v3028
    %v3030 = vpop.f32.mrf.mxu0
    %v3031 = vadd.f32 %v2918, %v3030
    %v3032 = vpop.f32.mrf.mxu0
    %v3033 = vadd.f32 %v2920, %v3032
    %v3034 = vpop.f32.mrf.mxu0
    %v3035 = vadd.f32 %v2922, %v3034
    %3036 = vmatprep.mubr.bf16.mxu0 %v1518
    %3037 = vmatmul.mubr.bf16.gmra.mxu0 %v1517
    %v3038 = vpop.f32.mrf.mxu0
    %v3039 = vadd.f32 %v2926, %v3038
    %v3040 = vpop.f32.mrf.mxu0
    %v3041 = vadd.f32 %v2928, %v3040
    %v3042 = vpop.f32.mrf.mxu0
    %v3043 = vadd.f32 %v2930, %v3042
    %v3044 = vpop.f32.mrf.mxu0
    %v3045 = vadd.f32 %v2932, %v3044
    %3046 = vmatprep.mubr.bf16.mxu0 %v1526
    %3047 = vmatmul.mubr.bf16.gmra.mxu0 %v1525
    %v3048 = vpop.f32.mrf.mxu0
    %v3049 = vadd.f32 %v2936, %v3048
    %v3050 = vpop.f32.mrf.mxu0
    %v3051 = vadd.f32 %v2938, %v3050
    %v3052 = vpop.f32.mrf.mxu0
    %v3053 = vadd.f32 %v2940, %v3052
    %v3054 = vpop.f32.mrf.mxu0
    %v3055 = vadd.f32 %v2942, %v3054
    %3056 = vmatprep.mubr.bf16.mxu0 %v1534
    %3057 = vmatmul.mubr.bf16.gmra.mxu0 %v1533
    %v3058 = vpop.f32.mrf.mxu0
    %v3059 = vadd.f32 %v2946, %v3058
    %v3060 = vpop.f32.mrf.mxu0
    %v3061 = vadd.f32 %v2948, %v3060
    %v3062 = vpop.f32.mrf.mxu0
    %v3063 = vadd.f32 %v2950, %v3062
    %v3064 = vpop.f32.mrf.mxu0
    %v3065 = vadd.f32 %v2952, %v3064
    %3066 = vdwg.mxu0
    %3067 = vmatprep.subr.bf16.mxu0 %v2486
    %3068 = vmatpush1.bf16.msra.mxu0 %v2485
    %3069 = vmatprep.subr.bf16.mxu0 %v2482
    %3070 = vmatpush1.bf16.msra.mxu0 %v2481
    %3071 = vmatprep.subr.bf16.mxu0 %v2478
    %3072 = vmatpush1.bf16.msra.mxu0 %v2477
    %3073 = vmatprep.subr.bf16.mxu0 %v2474
    %3074 = vmatpush1.bf16.msra.mxu0 %v2473
    %3075 = vmatprep.subr.bf16.mxu0 %v2470
    %3076 = vmatpush1.bf16.msra.mxu0 %v2469
    %3077 = vmatprep.subr.bf16.mxu0 %v2466
    %3078 = vmatpush1.bf16.msra.mxu0 %v2465
    %3079 = vmatprep.subr.bf16.mxu0 %v2462
    %3080 = vmatpush1.bf16.msra.mxu0 %v2461
    %3081 = vmatprep.subr.bf16.mxu0 %v2458
    %3082 = vmatpush1.bf16.msra.mxu0 %v2457
    %3083 = vmatprep.subr.bf16.mxu0 %v2518
    %3084 = vmatpush2.bf16.msra.mxu0 %v2517
    %3085 = vmatprep.subr.bf16.mxu0 %v2514
    %3086 = vmatpush2.bf16.msra.mxu0 %v2513
    %3087 = vmatprep.subr.bf16.mxu0 %v2510
    %3088 = vmatpush2.bf16.msra.mxu0 %v2509
    %3089 = vmatprep.subr.bf16.mxu0 %v2506
    %3090 = vmatpush2.bf16.msra.mxu0 %v2505
    %3091 = vmatprep.subr.bf16.mxu0 %v2502
    %3092 = vmatpush2.bf16.msra.mxu0 %v2501
    %3093 = vmatprep.subr.bf16.mxu0 %v2498
    %3094 = vmatpush2.bf16.msra.mxu0 %v2497
    %3095 = vmatprep.subr.bf16.mxu0 %v2494
    %3096 = vmatpush2.bf16.msra.mxu0 %v2493
    %3097 = vmatprep.subr.bf16.mxu0 %v2490
    %3098 = vmatpush2.bf16.msra.mxu0 %v2489
    %3099 = vmatprep.mubr.bf16.mxu0 %v1480
    %3100 = vmatmul.mubr.bf16.gmra.mxu0 %v1479
    %v3101 = vpop.f32.mrf.mxu0
    %v3102 = vadd.f32 %v2989, %v3101
    %v3103 = vpop.f32.mrf.mxu0
    %v3104 = vadd.f32 %v2991, %v3103
    %v3105 = vpop.f32.mrf.mxu0
    %v3106 = vadd.f32 %v2993, %v3105
    %v3107 = vpop.f32.mrf.mxu0
    %v3108 = vadd.f32 %v2995, %v3107
    %3109 = vmatprep.mubr.bf16.mxu0 %v1488
    %3110 = vmatmul.mubr.bf16.gmra.mxu0 %v1487
    %v3111 = vpop.f32.mrf.mxu0
    %v3112 = vadd.f32 %v2999, %v3111
    %v3113 = vpop.f32.mrf.mxu0
    %v3114 = vadd.f32 %v3001, %v3113
    %v3115 = vpop.f32.mrf.mxu0
    %v3116 = vadd.f32 %v3003, %v3115
    %v3117 = vpop.f32.mrf.mxu0
    %v3118 = vadd.f32 %v3005, %v3117
    %3119 = vmatprep.mubr.bf16.mxu0 %v1496
    %3120 = vmatmul.mubr.bf16.gmra.mxu0 %v1495
    %v3121 = vpop.f32.mrf.mxu0
    %v3122 = vadd.f32 %v3009, %v3121
    %v3123 = vpop.f32.mrf.mxu0
    %v3124 = vadd.f32 %v3011, %v3123
    %v3125 = vpop.f32.mrf.mxu0
    %v3126 = vadd.f32 %v3013, %v3125
    %v3127 = vpop.f32.mrf.mxu0
    %v3128 = vadd.f32 %v3015, %v3127
    %3129 = vmatprep.mubr.bf16.mxu0 %v1504
    %3130 = vmatmul.mubr.bf16.gmra.mxu0 %v1503
    %v3131 = vpop.f32.mrf.mxu0
    %v3132 = vadd.f32 %v3019, %v3131
    %v3133 = vpop.f32.mrf.mxu0
    %v3134 = vadd.f32 %v3021, %v3133
    %v3135 = vpop.f32.mrf.mxu0
    %v3136 = vadd.f32 %v3023, %v3135
    %v3137 = vpop.f32.mrf.mxu0
    %v3138 = vadd.f32 %v3025, %v3137
    %3139 = vmatprep.mubr.bf16.mxu0 %v1512
    %3140 = vmatmul.mubr.bf16.gmra.mxu0 %v1511
    %v3141 = vpop.f32.mrf.mxu0
    %v3142 = vadd.f32 %v3029, %v3141
    %v3143 = vpop.f32.mrf.mxu0
    %v3144 = vadd.f32 %v3031, %v3143
    %v3145 = vpop.f32.mrf.mxu0
    %v3146 = vadd.f32 %v3033, %v3145
    %v3147 = vpop.f32.mrf.mxu0
    %v3148 = vadd.f32 %v3035, %v3147
    %3149 = vmatprep.mubr.bf16.mxu0 %v1520
    %3150 = vmatmul.mubr.bf16.gmra.mxu0 %v1519
    %v3151 = vpop.f32.mrf.mxu0
    %v3152 = vadd.f32 %v3039, %v3151
    %v3153 = vpop.f32.mrf.mxu0
    %v3154 = vadd.f32 %v3041, %v3153
    %v3155 = vpop.f32.mrf.mxu0
    %v3156 = vadd.f32 %v3043, %v3155
    %v3157 = vpop.f32.mrf.mxu0
    %v3158 = vadd.f32 %v3045, %v3157
    %3159 = vmatprep.mubr.bf16.mxu0 %v1528
    %3160 = vmatmul.mubr.bf16.gmra.mxu0 %v1527
    %v3161 = vpop.f32.mrf.mxu0
    %v3162 = vadd.f32 %v3049, %v3161
    %v3163 = vpop.f32.mrf.mxu0
    %v3164 = vadd.f32 %v3051, %v3163
    %v3165 = vpop.f32.mrf.mxu0
    %v3166 = vadd.f32 %v3053, %v3165
    %v3167 = vpop.f32.mrf.mxu0
    %v3168 = vadd.f32 %v3055, %v3167
    %3169 = vmatprep.mubr.bf16.mxu0 %v1536
    %3170 = vmatmul.mubr.bf16.gmra.mxu0 %v1535
    %v3171 = vpop.f32.mrf.mxu0
    %v3172 = vadd.f32 %v3059, %v3171
    %v3173 = vpop.f32.mrf.mxu0
    %v3174 = vadd.f32 %v3061, %v3173
    %v3175 = vpop.f32.mrf.mxu0
    %v3176 = vadd.f32 %v3063, %v3175
    %v3177 = vpop.f32.mrf.mxu0
    %v3178 = vadd.f32 %v3065, %v3177
    %3179 = vdwg.mxu0
    %3180 = vmatprep.subr.bf16.mxu0 %v2550
    %3181 = vmatpush1.bf16.msra.mxu0 %v2549
    %3182 = vmatprep.subr.bf16.mxu0 %v2546
    %3183 = vmatpush1.bf16.msra.mxu0 %v2545
    %3184 = vmatprep.subr.bf16.mxu0 %v2542
    %3185 = vmatpush1.bf16.msra.mxu0 %v2541
    %3186 = vmatprep.subr.bf16.mxu0 %v2538
    %3187 = vmatpush1.bf16.msra.mxu0 %v2537
    %3188 = vmatprep.subr.bf16.mxu0 %v2534
    %3189 = vmatpush1.bf16.msra.mxu0 %v2533
    %3190 = vmatprep.subr.bf16.mxu0 %v2530
    %3191 = vmatpush1.bf16.msra.mxu0 %v2529
    %3192 = vmatprep.subr.bf16.mxu0 %v2526
    %3193 = vmatpush1.bf16.msra.mxu0 %v2525
    %3194 = vmatprep.subr.bf16.mxu0 %v2522
    %3195 = vmatpush1.bf16.msra.mxu0 %v2521
    %3196 = vmatprep.subr.bf16.mxu0 %v2582
    %3197 = vmatpush2.bf16.msra.mxu0 %v2581
    %3198 = vmatprep.subr.bf16.mxu0 %v2578
    %3199 = vmatpush2.bf16.msra.mxu0 %v2577
    %3200 = vmatprep.subr.bf16.mxu0 %v2574
    %3201 = vmatpush2.bf16.msra.mxu0 %v2573
    %3202 = vmatprep.subr.bf16.mxu0 %v2570
    %3203 = vmatpush2.bf16.msra.mxu0 %v2569
    %3204 = vmatprep.subr.bf16.mxu0 %v2566
    %3205 = vmatpush2.bf16.msra.mxu0 %v2565
    %3206 = vmatprep.subr.bf16.mxu0 %v2562
    %3207 = vmatpush2.bf16.msra.mxu0 %v2561
    %3208 = vmatprep.subr.bf16.mxu0 %v2558
    %3209 = vmatpush2.bf16.msra.mxu0 %v2557
    %3210 = vmatprep.subr.bf16.mxu0 %v2554
    %3211 = vmatpush2.bf16.msra.mxu0 %v2553
    %3212 = vmatprep.mubr.bf16.mxu0 %v1482
    %3213 = vmatmul.mubr.bf16.gmra.mxu0 %v1481
    %v3214 = vpop.f32.mrf.mxu0
    %v3215 = vadd.f32 %v3102, %v3214
    %v3216 = vpop.f32.mrf.mxu0
    %v3217 = vadd.f32 %v3104, %v3216
    %v3218 = vpop.f32.mrf.mxu0
    %v3219 = vadd.f32 %v3106, %v3218
    %v3220 = vpop.f32.mrf.mxu0
    %v3221 = vadd.f32 %v3108, %v3220
    %3222 = vmatprep.mubr.bf16.mxu0 %v1490
    %3223 = vmatmul.mubr.bf16.gmra.mxu0 %v1489
    %v3224 = vpop.f32.mrf.mxu0
    %v3225 = vadd.f32 %v3112, %v3224
    %v3226 = vpop.f32.mrf.mxu0
    %v3227 = vadd.f32 %v3114, %v3226
    %v3228 = vpop.f32.mrf.mxu0
    %v3229 = vadd.f32 %v3116, %v3228
    %v3230 = vpop.f32.mrf.mxu0
    %v3231 = vadd.f32 %v3118, %v3230
    %3232 = vmatprep.mubr.bf16.mxu0 %v1498
    %3233 = vmatmul.mubr.bf16.gmra.mxu0 %v1497
    %v3234 = vpop.f32.mrf.mxu0
    %v3235 = vadd.f32 %v3122, %v3234
    %v3236 = vpop.f32.mrf.mxu0
    %v3237 = vadd.f32 %v3124, %v3236
    %v3238 = vpop.f32.mrf.mxu0
    %v3239 = vadd.f32 %v3126, %v3238
    %v3240 = vpop.f32.mrf.mxu0
    %v3241 = vadd.f32 %v3128, %v3240
    %3242 = vmatprep.mubr.bf16.mxu0 %v1506
    %3243 = vmatmul.mubr.bf16.gmra.mxu0 %v1505
    %v3244 = vpop.f32.mrf.mxu0
    %v3245 = vadd.f32 %v3132, %v3244
    %v3246 = vpop.f32.mrf.mxu0
    %v3247 = vadd.f32 %v3134, %v3246
    %v3248 = vpop.f32.mrf.mxu0
    %v3249 = vadd.f32 %v3136, %v3248
    %v3250 = vpop.f32.mrf.mxu0
    %v3251 = vadd.f32 %v3138, %v3250
    %3252 = vmatprep.mubr.bf16.mxu0 %v1514
    %3253 = vmatmul.mubr.bf16.gmra.mxu0 %v1513
    %v3254 = vpop.f32.mrf.mxu0
    %v3255 = vadd.f32 %v3142, %v3254
    %v3256 = vpop.f32.mrf.mxu0
    %v3257 = vadd.f32 %v3144, %v3256
    %v3258 = vpop.f32.mrf.mxu0
    %v3259 = vadd.f32 %v3146, %v3258
    %v3260 = vpop.f32.mrf.mxu0
    %v3261 = vadd.f32 %v3148, %v3260
    %3262 = vmatprep.mubr.bf16.mxu0 %v1522
    %3263 = vmatmul.mubr.bf16.gmra.mxu0 %v1521
    %v3264 = vpop.f32.mrf.mxu0
    %v3265 = vadd.f32 %v3152, %v3264
    %v3266 = vpop.f32.mrf.mxu0
    %v3267 = vadd.f32 %v3154, %v3266
    %v3268 = vpop.f32.mrf.mxu0
    %v3269 = vadd.f32 %v3156, %v3268
    %v3270 = vpop.f32.mrf.mxu0
    %v3271 = vadd.f32 %v3158, %v3270
    %3272 = vmatprep.mubr.bf16.mxu0 %v1530
    %3273 = vmatmul.mubr.bf16.gmra.mxu0 %v1529
    %v3274 = vpop.f32.mrf.mxu0
    %v3275 = vadd.f32 %v3162, %v3274
    %v3276 = vpop.f32.mrf.mxu0
    %v3277 = vadd.f32 %v3164, %v3276
    %v3278 = vpop.f32.mrf.mxu0
    %v3279 = vadd.f32 %v3166, %v3278
    %v3280 = vpop.f32.mrf.mxu0
    %v3281 = vadd.f32 %v3168, %v3280
    %3282 = vmatprep.mubr.bf16.mxu0 %v1538
    %3283 = vmatmul.mubr.bf16.gmra.mxu0 %v1537
    %v3284 = vpop.f32.mrf.mxu0
    %v3285 = vadd.f32 %v3172, %v3284
    %v3286 = vpop.f32.mrf.mxu0
    %v3287 = vadd.f32 %v3174, %v3286
    %v3288 = vpop.f32.mrf.mxu0
    %v3289 = vadd.f32 %v3176, %v3288
    %v3290 = vpop.f32.mrf.mxu0
    %v3291 = vadd.f32 %v3178, %v3290
    %3292 = vdwg.mxu0
    %3293 = vmatprep.subr.bf16.mxu0 %v2360
    %3294 = vmatpush1.bf16.msra.mxu0 %v2359
    %3295 = vmatprep.subr.bf16.mxu0 %v2356
    %3296 = vmatpush1.bf16.msra.mxu0 %v2355
    %3297 = vmatprep.subr.bf16.mxu0 %v2352
    %3298 = vmatpush1.bf16.msra.mxu0 %v2351
    %3299 = vmatprep.subr.bf16.mxu0 %v2348
    %3300 = vmatpush1.bf16.msra.mxu0 %v2347
    %3301 = vmatprep.subr.bf16.mxu0 %v2344
    %3302 = vmatpush1.bf16.msra.mxu0 %v2343
    %3303 = vmatprep.subr.bf16.mxu0 %v2340
    %3304 = vmatpush1.bf16.msra.mxu0 %v2339
    %3305 = vmatprep.subr.bf16.mxu0 %v2336
    %3306 = vmatpush1.bf16.msra.mxu0 %v2335
    %3307 = vmatprep.subr.bf16.mxu0 %v2332
    %3308 = vmatpush1.bf16.msra.mxu0 %v2331
    %3309 = vmatprep.subr.bf16.mxu0 %v2392
    %3310 = vmatpush2.bf16.msra.mxu0 %v2391
    %3311 = vmatprep.subr.bf16.mxu0 %v2388
    %3312 = vmatpush2.bf16.msra.mxu0 %v2387
    %3313 = vmatprep.subr.bf16.mxu0 %v2384
    %3314 = vmatpush2.bf16.msra.mxu0 %v2383
    %3315 = vmatprep.subr.bf16.mxu0 %v2380
    %3316 = vmatpush2.bf16.msra.mxu0 %v2379
    %3317 = vmatprep.subr.bf16.mxu0 %v2376
    %3318 = vmatpush2.bf16.msra.mxu0 %v2375
    %3319 = vmatprep.subr.bf16.mxu0 %v2372
    %3320 = vmatpush2.bf16.msra.mxu0 %v2371
    %3321 = vmatprep.subr.bf16.mxu0 %v2368
    %3322 = vmatpush2.bf16.msra.mxu0 %v2367
    %3323 = vmatprep.subr.bf16.mxu0 %v2364
    %3324 = vmatpush2.bf16.msra.mxu0 %v2363
    %3325 = vmatprep.mubr.bf16.mxu0 %v1476
    %3326 = vmatmul.mubr.bf16.gmra.mxu0 %v1475
    %v3327 = vpop.f32.mrf.mxu0
    %v3328 = vadd.f32 %v1552, %v3327
    %v3329 = vpop.f32.mrf.mxu0
    %v3330 = vadd.f32 %v1556, %v3329
    %v3331 = vpop.f32.mrf.mxu0
    %v3332 = vadd.f32 %v1552, %v3331
    %v3333 = vpop.f32.mrf.mxu0
    %v3334 = vadd.f32 %v1556, %v3333
    %3335 = vmatprep.mubr.bf16.mxu0 %v1484
    %3336 = vmatmul.mubr.bf16.gmra.mxu0 %v1483
    %v3337 = vpop.f32.mrf.mxu0
    %v3338 = vadd.f32 %v1552, %v3337
    %v3339 = vpop.f32.mrf.mxu0
    %v3340 = vadd.f32 %v1556, %v3339
    %v3341 = vpop.f32.mrf.mxu0
    %v3342 = vadd.f32 %v1552, %v3341
    %v3343 = vpop.f32.mrf.mxu0
    %v3344 = vadd.f32 %v1556, %v3343
    %3345 = vmatprep.mubr.bf16.mxu0 %v1492
    %3346 = vmatmul.mubr.bf16.gmra.mxu0 %v1491
    %v3347 = vpop.f32.mrf.mxu0
    %v3348 = vadd.f32 %v1552, %v3347
    %v3349 = vpop.f32.mrf.mxu0
    %v3350 = vadd.f32 %v1556, %v3349
    %v3351 = vpop.f32.mrf.mxu0
    %v3352 = vadd.f32 %v1552, %v3351
    %v3353 = vpop.f32.mrf.mxu0
    %v3354 = vadd.f32 %v1556, %v3353
    %3355 = vmatprep.mubr.bf16.mxu0 %v1500
    %3356 = vmatmul.mubr.bf16.gmra.mxu0 %v1499
    %v3357 = vpop.f32.mrf.mxu0
    %v3358 = vadd.f32 %v1552, %v3357
    %v3359 = vpop.f32.mrf.mxu0
    %v3360 = vadd.f32 %v1556, %v3359
    %v3361 = vpop.f32.mrf.mxu0
    %v3362 = vadd.f32 %v1552, %v3361
    %v3363 = vpop.f32.mrf.mxu0
    %v3364 = vadd.f32 %v1556, %v3363
    %3365 = vmatprep.mubr.bf16.mxu0 %v1508
    %3366 = vmatmul.mubr.bf16.gmra.mxu0 %v1507
    %v3367 = vpop.f32.mrf.mxu0
    %v3368 = vadd.f32 %v1552, %v3367
    %v3369 = vpop.f32.mrf.mxu0
    %v3370 = vadd.f32 %v1556, %v3369
    %v3371 = vpop.f32.mrf.mxu0
    %v3372 = vadd.f32 %v1552, %v3371
    %v3373 = vpop.f32.mrf.mxu0
    %v3374 = vadd.f32 %v1556, %v3373
    %3375 = vmatprep.mubr.bf16.mxu0 %v1516
    %3376 = vmatmul.mubr.bf16.gmra.mxu0 %v1515
    %v3377 = vpop.f32.mrf.mxu0
    %v3378 = vadd.f32 %v1552, %v3377
    %v3379 = vpop.f32.mrf.mxu0
    %v3380 = vadd.f32 %v1556, %v3379
    %v3381 = vpop.f32.mrf.mxu0
    %v3382 = vadd.f32 %v1552, %v3381
    %v3383 = vpop.f32.mrf.mxu0
    %v3384 = vadd.f32 %v1556, %v3383
    %3385 = vmatprep.mubr.bf16.mxu0 %v1524
    %3386 = vmatmul.mubr.bf16.gmra.mxu0 %v1523
    %v3387 = vpop.f32.mrf.mxu0
    %v3388 = vadd.f32 %v1552, %v3387
    %v3389 = vpop.f32.mrf.mxu0
    %v3390 = vadd.f32 %v1556, %v3389
    %v3391 = vpop.f32.mrf.mxu0
    %v3392 = vadd.f32 %v1552, %v3391
    %v3393 = vpop.f32.mrf.mxu0
    %v3394 = vadd.f32 %v1556, %v3393
    %3395 = vmatprep.mubr.bf16.mxu0 %v1532
    %3396 = vmatmul.mubr.bf16.gmra.mxu0 %v1531
    %v3397 = vpop.f32.mrf.mxu0
    %v3398 = vadd.f32 %v1552, %v3397
    %v3399 = vpop.f32.mrf.mxu0
    %v3400 = vadd.f32 %v1556, %v3399
    %v3401 = vpop.f32.mrf.mxu0
    %v3402 = vadd.f32 %v1552, %v3401
    %v3403 = vpop.f32.mrf.mxu0
    %v3404 = vadd.f32 %v1556, %v3403
    %3405 = vdwg.mxu0
    %3406 = vmatprep.subr.bf16.mxu0 %v2424
    %3407 = vmatpush1.bf16.msra.mxu0 %v2423
    %3408 = vmatprep.subr.bf16.mxu0 %v2420
    %3409 = vmatpush1.bf16.msra.mxu0 %v2419
    %3410 = vmatprep.subr.bf16.mxu0 %v2416
    %3411 = vmatpush1.bf16.msra.mxu0 %v2415
    %3412 = vmatprep.subr.bf16.mxu0 %v2412
    %3413 = vmatpush1.bf16.msra.mxu0 %v2411
    %3414 = vmatprep.subr.bf16.mxu0 %v2408
    %3415 = vmatpush1.bf16.msra.mxu0 %v2407
    %3416 = vmatprep.subr.bf16.mxu0 %v2404
    %3417 = vmatpush1.bf16.msra.mxu0 %v2403
    %3418 = vmatprep.subr.bf16.mxu0 %v2400
    %3419 = vmatpush1.bf16.msra.mxu0 %v2399
    %3420 = vmatprep.subr.bf16.mxu0 %v2396
    %3421 = vmatpush1.bf16.msra.mxu0 %v2395
    %3422 = vmatprep.subr.bf16.mxu0 %v2456
    %3423 = vmatpush2.bf16.msra.mxu0 %v2455
    %3424 = vmatprep.subr.bf16.mxu0 %v2452
    %3425 = vmatpush2.bf16.msra.mxu0 %v2451
    %3426 = vmatprep.subr.bf16.mxu0 %v2448
    %3427 = vmatpush2.bf16.msra.mxu0 %v2447
    %3428 = vmatprep.subr.bf16.mxu0 %v2444
    %3429 = vmatpush2.bf16.msra.mxu0 %v2443
    %3430 = vmatprep.subr.bf16.mxu0 %v2440
    %3431 = vmatpush2.bf16.msra.mxu0 %v2439
    %3432 = vmatprep.subr.bf16.mxu0 %v2436
    %3433 = vmatpush2.bf16.msra.mxu0 %v2435
    %3434 = vmatprep.subr.bf16.mxu0 %v2432
    %3435 = vmatpush2.bf16.msra.mxu0 %v2431
    %3436 = vmatprep.subr.bf16.mxu0 %v2428
    %3437 = vmatpush2.bf16.msra.mxu0 %v2427
    %3438 = vmatprep.mubr.bf16.mxu0 %v1478
    %3439 = vmatmul.mubr.bf16.gmra.mxu0 %v1477
    %v3440 = vpop.f32.mrf.mxu0
    %v3441 = vadd.f32 %v3328, %v3440
    %v3442 = vpop.f32.mrf.mxu0
    %v3443 = vadd.f32 %v3330, %v3442
    %v3444 = vpop.f32.mrf.mxu0
    %v3445 = vadd.f32 %v3332, %v3444
    %v3446 = vpop.f32.mrf.mxu0
    %v3447 = vadd.f32 %v3334, %v3446
    %3448 = vmatprep.mubr.bf16.mxu0 %v1486
    %3449 = vmatmul.mubr.bf16.gmra.mxu0 %v1485
    %v3450 = vpop.f32.mrf.mxu0
    %v3451 = vadd.f32 %v3338, %v3450
    %v3452 = vpop.f32.mrf.mxu0
    %v3453 = vadd.f32 %v3340, %v3452
    %v3454 = vpop.f32.mrf.mxu0
    %v3455 = vadd.f32 %v3342, %v3454
    %v3456 = vpop.f32.mrf.mxu0
    %v3457 = vadd.f32 %v3344, %v3456
    %3458 = vmatprep.mubr.bf16.mxu0 %v1494
    %3459 = vmatmul.mubr.bf16.gmra.mxu0 %v1493
    %v3460 = vpop.f32.mrf.mxu0
    %v3461 = vadd.f32 %v3348, %v3460
    %v3462 = vpop.f32.mrf.mxu0
    %v3463 = vadd.f32 %v3350, %v3462
    %v3464 = vpop.f32.mrf.mxu0
    %v3465 = vadd.f32 %v3352, %v3464
    %v3466 = vpop.f32.mrf.mxu0
    %v3467 = vadd.f32 %v3354, %v3466
    %3468 = vmatprep.mubr.bf16.mxu0 %v1502
    %3469 = vmatmul.mubr.bf16.gmra.mxu0 %v1501
    %v3470 = vpop.f32.mrf.mxu0
    %v3471 = vadd.f32 %v3358, %v3470
    %v3472 = vpop.f32.mrf.mxu0
    %v3473 = vadd.f32 %v3360, %v3472
    %v3474 = vpop.f32.mrf.mxu0
    %v3475 = vadd.f32 %v3362, %v3474
    %v3476 = vpop.f32.mrf.mxu0
    %v3477 = vadd.f32 %v3364, %v3476
    %3478 = vmatprep.mubr.bf16.mxu0 %v1510
    %3479 = vmatmul.mubr.bf16.gmra.mxu0 %v1509
    %v3480 = vpop.f32.mrf.mxu0
    %v3481 = vadd.f32 %v3368, %v3480
    %v3482 = vpop.f32.mrf.mxu0
    %v3483 = vadd.f32 %v3370, %v3482
    %v3484 = vpop.f32.mrf.mxu0
    %v3485 = vadd.f32 %v3372, %v3484
    %v3486 = vpop.f32.mrf.mxu0
    %v3487 = vadd.f32 %v3374, %v3486
    %3488 = vmatprep.mubr.bf16.mxu0 %v1518
    %3489 = vmatmul.mubr.bf16.gmra.mxu0 %v1517
    %v3490 = vpop.f32.mrf.mxu0
    %v3491 = vadd.f32 %v3378, %v3490
    %v3492 = vpop.f32.mrf.mxu0
    %v3493 = vadd.f32 %v3380, %v3492
    %v3494 = vpop.f32.mrf.mxu0
    %v3495 = vadd.f32 %v3382, %v3494
    %v3496 = vpop.f32.mrf.mxu0
    %v3497 = vadd.f32 %v3384, %v3496
    %3498 = vmatprep.mubr.bf16.mxu0 %v1526
    %3499 = vmatmul.mubr.bf16.gmra.mxu0 %v1525
    %v3500 = vpop.f32.mrf.mxu0
    %v3501 = vadd.f32 %v3388, %v3500
    %v3502 = vpop.f32.mrf.mxu0
    %v3503 = vadd.f32 %v3390, %v3502
    %v3504 = vpop.f32.mrf.mxu0
    %v3505 = vadd.f32 %v3392, %v3504
    %v3506 = vpop.f32.mrf.mxu0
    %v3507 = vadd.f32 %v3394, %v3506
    %3508 = vmatprep.mubr.bf16.mxu0 %v1534
    %3509 = vmatmul.mubr.bf16.gmra.mxu0 %v1533
    %v3510 = vpop.f32.mrf.mxu0
    %v3511 = vadd.f32 %v3398, %v3510
    %v3512 = vpop.f32.mrf.mxu0
    %v3513 = vadd.f32 %v3400, %v3512
    %v3514 = vpop.f32.mrf.mxu0
    %v3515 = vadd.f32 %v3402, %v3514
    %v3516 = vpop.f32.mrf.mxu0
    %v3517 = vadd.f32 %v3404, %v3516
    %3518 = vdwg.mxu0
    %3519 = vmatprep.subr.bf16.mxu0 %v2488
    %3520 = vmatpush1.bf16.msra.mxu0 %v2487
    %3521 = vmatprep.subr.bf16.mxu0 %v2484
    %3522 = vmatpush1.bf16.msra.mxu0 %v2483
    %3523 = vmatprep.subr.bf16.mxu0 %v2480
    %3524 = vmatpush1.bf16.msra.mxu0 %v2479
    %3525 = vmatprep.subr.bf16.mxu0 %v2476
    %3526 = vmatpush1.bf16.msra.mxu0 %v2475
    %3527 = vmatprep.subr.bf16.mxu0 %v2472
    %3528 = vmatpush1.bf16.msra.mxu0 %v2471
    %3529 = vmatprep.subr.bf16.mxu0 %v2468
    %3530 = vmatpush1.bf16.msra.mxu0 %v2467
    %3531 = vmatprep.subr.bf16.mxu0 %v2464
    %3532 = vmatpush1.bf16.msra.mxu0 %v2463
    %3533 = vmatprep.subr.bf16.mxu0 %v2460
    %3534 = vmatpush1.bf16.msra.mxu0 %v2459
    %3535 = vmatprep.subr.bf16.mxu0 %v2520
    %3536 = vmatpush2.bf16.msra.mxu0 %v2519
    %3537 = vmatprep.subr.bf16.mxu0 %v2516
    %3538 = vmatpush2.bf16.msra.mxu0 %v2515
    %3539 = vmatprep.subr.bf16.mxu0 %v2512
    %3540 = vmatpush2.bf16.msra.mxu0 %v2511
    %3541 = vmatprep.subr.bf16.mxu0 %v2508
    %3542 = vmatpush2.bf16.msra.mxu0 %v2507
    %3543 = vmatprep.subr.bf16.mxu0 %v2504
    %3544 = vmatpush2.bf16.msra.mxu0 %v2503
    %3545 = vmatprep.subr.bf16.mxu0 %v2500
    %3546 = vmatpush2.bf16.msra.mxu0 %v2499
    %3547 = vmatprep.subr.bf16.mxu0 %v2496
    %3548 = vmatpush2.bf16.msra.mxu0 %v2495
    %3549 = vmatprep.subr.bf16.mxu0 %v2492
    %3550 = vmatpush2.bf16.msra.mxu0 %v2491
    %3551 = vmatprep.mubr.bf16.mxu0 %v1480
    %3552 = vmatmul.mubr.bf16.gmra.mxu0 %v1479
    %v3553 = vpop.f32.mrf.mxu0
    %v3554 = vadd.f32 %v3441, %v3553
    %v3555 = vpop.f32.mrf.mxu0
    %v3556 = vadd.f32 %v3443, %v3555
    %v3557 = vpop.f32.mrf.mxu0
    %v3558 = vadd.f32 %v3445, %v3557
    %v3559 = vpop.f32.mrf.mxu0
    %v3560 = vadd.f32 %v3447, %v3559
    %3561 = vmatprep.mubr.bf16.mxu0 %v1488
    %3562 = vmatmul.mubr.bf16.gmra.mxu0 %v1487
    %v3563 = vpop.f32.mrf.mxu0
    %v3564 = vadd.f32 %v3451, %v3563
    %v3565 = vpop.f32.mrf.mxu0
    %v3566 = vadd.f32 %v3453, %v3565
    %v3567 = vpop.f32.mrf.mxu0
    %v3568 = vadd.f32 %v3455, %v3567
    %v3569 = vpop.f32.mrf.mxu0
    %v3570 = vadd.f32 %v3457, %v3569
    %3571 = vmatprep.mubr.bf16.mxu0 %v1496
    %3572 = vmatmul.mubr.bf16.gmra.mxu0 %v1495
    %v3573 = vpop.f32.mrf.mxu0
    %v3574 = vadd.f32 %v3461, %v3573
    %v3575 = vpop.f32.mrf.mxu0
    %v3576 = vadd.f32 %v3463, %v3575
    %v3577 = vpop.f32.mrf.mxu0
    %v3578 = vadd.f32 %v3465, %v3577
    %v3579 = vpop.f32.mrf.mxu0
    %v3580 = vadd.f32 %v3467, %v3579
    %3581 = vmatprep.mubr.bf16.mxu0 %v1504
    %3582 = vmatmul.mubr.bf16.gmra.mxu0 %v1503
    %v3583 = vpop.f32.mrf.mxu0
    %v3584 = vadd.f32 %v3471, %v3583
    %v3585 = vpop.f32.mrf.mxu0
    %v3586 = vadd.f32 %v3473, %v3585
    %v3587 = vpop.f32.mrf.mxu0
    %v3588 = vadd.f32 %v3475, %v3587
    %v3589 = vpop.f32.mrf.mxu0
    %v3590 = vadd.f32 %v3477, %v3589
    %3591 = vmatprep.mubr.bf16.mxu0 %v1512
    %3592 = vmatmul.mubr.bf16.gmra.mxu0 %v1511
    %v3593 = vpop.f32.mrf.mxu0
    %v3594 = vadd.f32 %v3481, %v3593
    %v3595 = vpop.f32.mrf.mxu0
    %v3596 = vadd.f32 %v3483, %v3595
    %v3597 = vpop.f32.mrf.mxu0
    %v3598 = vadd.f32 %v3485, %v3597
    %v3599 = vpop.f32.mrf.mxu0
    %v3600 = vadd.f32 %v3487, %v3599
    %3601 = vmatprep.mubr.bf16.mxu0 %v1520
    %3602 = vmatmul.mubr.bf16.gmra.mxu0 %v1519
    %v3603 = vpop.f32.mrf.mxu0
    %v3604 = vadd.f32 %v3491, %v3603
    %v3605 = vpop.f32.mrf.mxu0
    %v3606 = vadd.f32 %v3493, %v3605
    %v3607 = vpop.f32.mrf.mxu0
    %v3608 = vadd.f32 %v3495, %v3607
    %v3609 = vpop.f32.mrf.mxu0
    %v3610 = vadd.f32 %v3497, %v3609
    %3611 = vmatprep.mubr.bf16.mxu0 %v1528
    %3612 = vmatmul.mubr.bf16.gmra.mxu0 %v1527
    %v3613 = vpop.f32.mrf.mxu0
    %v3614 = vadd.f32 %v3501, %v3613
    %v3615 = vpop.f32.mrf.mxu0
    %v3616 = vadd.f32 %v3503, %v3615
    %v3617 = vpop.f32.mrf.mxu0
    %v3618 = vadd.f32 %v3505, %v3617
    %v3619 = vpop.f32.mrf.mxu0
    %v3620 = vadd.f32 %v3507, %v3619
    %3621 = vmatprep.mubr.bf16.mxu0 %v1536
    %3622 = vmatmul.mubr.bf16.gmra.mxu0 %v1535
    %v3623 = vpop.f32.mrf.mxu0
    %v3624 = vadd.f32 %v3511, %v3623
    %v3625 = vpop.f32.mrf.mxu0
    %v3626 = vadd.f32 %v3513, %v3625
    %v3627 = vpop.f32.mrf.mxu0
    %v3628 = vadd.f32 %v3515, %v3627
    %v3629 = vpop.f32.mrf.mxu0
    %v3630 = vadd.f32 %v3517, %v3629
    %3631 = vdwg.mxu0
    %3632 = vmatprep.subr.bf16.mxu0 %v2552
    %3633 = vmatpush1.bf16.msra.mxu0 %v2551
    %3634 = vmatprep.subr.bf16.mxu0 %v2548
    %3635 = vmatpush1.bf16.msra.mxu0 %v2547
    %3636 = vmatprep.subr.bf16.mxu0 %v2544
    %3637 = vmatpush1.bf16.msra.mxu0 %v2543
    %3638 = vmatprep.subr.bf16.mxu0 %v2540
    %3639 = vmatpush1.bf16.msra.mxu0 %v2539
    %3640 = vmatprep.subr.bf16.mxu0 %v2536
    %3641 = vmatpush1.bf16.msra.mxu0 %v2535
    %3642 = vmatprep.subr.bf16.mxu0 %v2532
    %3643 = vmatpush1.bf16.msra.mxu0 %v2531
    %3644 = vmatprep.subr.bf16.mxu0 %v2528
    %3645 = vmatpush1.bf16.msra.mxu0 %v2527
    %3646 = vmatprep.subr.bf16.mxu0 %v2524
    %3647 = vmatpush1.bf16.msra.mxu0 %v2523
    %3648 = vmatprep.subr.bf16.mxu0 %v2584
    %3649 = vmatpush2.bf16.msra.mxu0 %v2583
    %3650 = vmatprep.subr.bf16.mxu0 %v2580
    %3651 = vmatpush2.bf16.msra.mxu0 %v2579
    %3652 = vmatprep.subr.bf16.mxu0 %v2576
    %3653 = vmatpush2.bf16.msra.mxu0 %v2575
    %3654 = vmatprep.subr.bf16.mxu0 %v2572
    %3655 = vmatpush2.bf16.msra.mxu0 %v2571
    %3656 = vmatprep.subr.bf16.mxu0 %v2568
    %3657 = vmatpush2.bf16.msra.mxu0 %v2567
    %3658 = vmatprep.subr.bf16.mxu0 %v2564
    %3659 = vmatpush2.bf16.msra.mxu0 %v2563
    %3660 = vmatprep.subr.bf16.mxu0 %v2560
    %3661 = vmatpush2.bf16.msra.mxu0 %v2559
    %3662 = vmatprep.subr.bf16.mxu0 %v2556
    %3663 = vmatpush2.bf16.msra.mxu0 %v2555
    %3664 = vmatprep.mubr.bf16.mxu0 %v1482
    %3665 = vmatmul.mubr.bf16.gmra.mxu0 %v1481
    %v3666 = vpop.f32.mrf.mxu0
    %v3667 = vadd.f32 %v3554, %v3666
    %v3668 = vpop.f32.mrf.mxu0
    %v3669 = vadd.f32 %v3556, %v3668
    %v3670 = vpop.f32.mrf.mxu0
    %v3671 = vadd.f32 %v3558, %v3670
    %v3672 = vpop.f32.mrf.mxu0
    %v3673 = vadd.f32 %v3560, %v3672
    %3674 = vmatprep.mubr.bf16.mxu0 %v1490
    %3675 = vmatmul.mubr.bf16.gmra.mxu0 %v1489
    %v3676 = vpop.f32.mrf.mxu0
    %v3677 = vadd.f32 %v3564, %v3676
    %v3678 = vpop.f32.mrf.mxu0
    %v3679 = vadd.f32 %v3566, %v3678
    %v3680 = vpop.f32.mrf.mxu0
    %v3681 = vadd.f32 %v3568, %v3680
    %v3682 = vpop.f32.mrf.mxu0
    %v3683 = vadd.f32 %v3570, %v3682
    %3684 = vmatprep.mubr.bf16.mxu0 %v1498
    %3685 = vmatmul.mubr.bf16.gmra.mxu0 %v1497
    %v3686 = vpop.f32.mrf.mxu0
    %v3687 = vadd.f32 %v3574, %v3686
    %v3688 = vpop.f32.mrf.mxu0
    %v3689 = vadd.f32 %v3576, %v3688
    %v3690 = vpop.f32.mrf.mxu0
    %v3691 = vadd.f32 %v3578, %v3690
    %v3692 = vpop.f32.mrf.mxu0
    %v3693 = vadd.f32 %v3580, %v3692
    %3694 = vmatprep.mubr.bf16.mxu0 %v1506
    %3695 = vmatmul.mubr.bf16.gmra.mxu0 %v1505
    %v3696 = vpop.f32.mrf.mxu0
    %v3697 = vadd.f32 %v3584, %v3696
    %v3698 = vpop.f32.mrf.mxu0
    %v3699 = vadd.f32 %v3586, %v3698
    %v3700 = vpop.f32.mrf.mxu0
    %v3701 = vadd.f32 %v3588, %v3700
    %v3702 = vpop.f32.mrf.mxu0
    %v3703 = vadd.f32 %v3590, %v3702
    %3704 = vmatprep.mubr.bf16.mxu0 %v1514
    %3705 = vmatmul.mubr.bf16.gmra.mxu0 %v1513
    %v3706 = vpop.f32.mrf.mxu0
    %v3707 = vadd.f32 %v3594, %v3706
    %v3708 = vpop.f32.mrf.mxu0
    %v3709 = vadd.f32 %v3596, %v3708
    %v3710 = vpop.f32.mrf.mxu0
    %v3711 = vadd.f32 %v3598, %v3710
    %v3712 = vpop.f32.mrf.mxu0
    %v3713 = vadd.f32 %v3600, %v3712
    %3714 = vmatprep.mubr.bf16.mxu0 %v1522
    %3715 = vmatmul.mubr.bf16.gmra.mxu0 %v1521
    %v3716 = vpop.f32.mrf.mxu0
    %v3717 = vadd.f32 %v3604, %v3716
    %v3718 = vpop.f32.mrf.mxu0
    %v3719 = vadd.f32 %v3606, %v3718
    %v3720 = vpop.f32.mrf.mxu0
    %v3721 = vadd.f32 %v3608, %v3720
    %v3722 = vpop.f32.mrf.mxu0
    %v3723 = vadd.f32 %v3610, %v3722
    %3724 = vmatprep.mubr.bf16.mxu0 %v1530
    %3725 = vmatmul.mubr.bf16.gmra.mxu0 %v1529
    %v3726 = vpop.f32.mrf.mxu0
    %v3727 = vadd.f32 %v3614, %v3726
    %v3728 = vpop.f32.mrf.mxu0
    %v3729 = vadd.f32 %v3616, %v3728
    %v3730 = vpop.f32.mrf.mxu0
    %v3731 = vadd.f32 %v3618, %v3730
    %v3732 = vpop.f32.mrf.mxu0
    %v3733 = vadd.f32 %v3620, %v3732
    %3734 = vmatprep.mubr.bf16.mxu0 %v1538
    %3735 = vmatmul.mubr.bf16.gmra.mxu0 %v1537
    %v3736 = vpop.f32.mrf.mxu0
    %v3737 = vadd.f32 %v3624, %v3736
    %v3738 = vpop.f32.mrf.mxu0
    %v3739 = vadd.f32 %v3626, %v3738
    %v3740 = vpop.f32.mrf.mxu0
    %v3741 = vadd.f32 %v3628, %v3740
    %v3742 = vpop.f32.mrf.mxu0
    %v3743 = vadd.f32 %v3630, %v3742
    %3744 = vdwg.mxu0
    %v3745 = vmax.f32 %v3215, 0.0
    %v3746 = vmax.f32 %v3217, 0.0
    %v3747 = vmax.f32 %v3667, 0.0
    %v3748 = vmax.f32 %v3669, 0.0
    %v3749 = vmax.f32 %v3219, 0.0
    %v3750 = vmax.f32 %v3221, 0.0
    %v3751 = vmax.f32 %v3671, 0.0
    %v3752 = vmax.f32 %v3673, 0.0
    %v3753 = vmax.f32 %v3225, 0.0
    %v3754 = vmax.f32 %v3227, 0.0
    %v3755 = vmax.f32 %v3677, 0.0
    %v3756 = vmax.f32 %v3679, 0.0
    %v3757 = vmax.f32 %v3229, 0.0
    %v3758 = vmax.f32 %v3231, 0.0
    %v3759 = vmax.f32 %v3681, 0.0
    %v3760 = vmax.f32 %v3683, 0.0
    %v3761 = vmax.f32 %v3235, 0.0
    %v3762 = vmax.f32 %v3237, 0.0
    %v3763 = vmax.f32 %v3687, 0.0
    %v3764 = vmax.f32 %v3689, 0.0
    %v3765 = vmax.f32 %v3239, 0.0
    %v3766 = vmax.f32 %v3241, 0.0
    %v3767 = vmax.f32 %v3691, 0.0
    %v3768 = vmax.f32 %v3693, 0.0
    %v3769 = vmax.f32 %v3245, 0.0
    %v3770 = vmax.f32 %v3247, 0.0
    %v3771 = vmax.f32 %v3697, 0.0
    %v3772 = vmax.f32 %v3699, 0.0
    %v3773 = vmax.f32 %v3249, 0.0
    %v3774 = vmax.f32 %v3251, 0.0
    %v3775 = vmax.f32 %v3701, 0.0
    %v3776 = vmax.f32 %v3703, 0.0
    %v3777 = vmax.f32 %v3255, 0.0
    %v3778 = vmax.f32 %v3257, 0.0
    %v3779 = vmax.f32 %v3707, 0.0
    %v3780 = vmax.f32 %v3709, 0.0
    %v3781 = vmax.f32 %v3259, 0.0
    %v3782 = vmax.f32 %v3261, 0.0
    %v3783 = vmax.f32 %v3711, 0.0
    %v3784 = vmax.f32 %v3713, 0.0
    %v3785 = vmax.f32 %v3265, 0.0
    %v3786 = vmax.f32 %v3267, 0.0
    %v3787 = vmax.f32 %v3717, 0.0
    %v3788 = vmax.f32 %v3719, 0.0
    %v3789 = vmax.f32 %v3269, 0.0
    %v3790 = vmax.f32 %v3271, 0.0
    %v3791 = vmax.f32 %v3721, 0.0
    %v3792 = vmax.f32 %v3723, 0.0
    %v3793 = vmax.f32 %v3275, 0.0
    %v3794 = vmax.f32 %v3277, 0.0
    %v3795 = vmax.f32 %v3727, 0.0
    %v3796 = vmax.f32 %v3729, 0.0
    %v3797 = vmax.f32 %v3279, 0.0
    %v3798 = vmax.f32 %v3281, 0.0
    %v3799 = vmax.f32 %v3731, 0.0
    %v3800 = vmax.f32 %v3733, 0.0
    %v3801 = vmax.f32 %v3285, 0.0
    %v3802 = vmax.f32 %v3287, 0.0
    %v3803 = vmax.f32 %v3737, 0.0
    %v3804 = vmax.f32 %v3739, 0.0
    %v3805 = vmax.f32 %v3289, 0.0
    %v3806 = vmax.f32 %v3291, 0.0
    %v3807 = vmax.f32 %v3741, 0.0
    %v3808 = vmax.f32 %v3743, 0.0
    // Predicated region
    $region62: #{_forward_jit.1} parent=1 // pred_check
      %p3809 = pneg %p41
    $region63: #{_forward_jit.1} parent=1 // pred_check_branch
      %3811 = sbr.rel (%p3809) target = $region65
    $region64: #{_forward_jit.1} parent=1 // pred_region
      %s3812 = scalar_lea.sflag [#allocation11], 2
      %s3813 = smul.u32 4, 64
      %s3814 = smul.u32 %s3813, 2
      %s3815 = sshll.u32 %s3814, 4
      %3816 = dma.done %s3812, %s3815
    $region65: #{_forward_jit.1} parent=1 // pred_fallthru
      _
    %v3817 = vld [vmem:[#allocation4] sm:$0xff]
    %v3818 = vld [vmem:[#allocation4 + $0x8] sm:$0xff]
    %v3819 = vld [vmem:[#allocation4 + $0x10] sm:$0xff]
    %v3820 = vld [vmem:[#allocation4 + $0x18] sm:$0xff]
    %v3821 = vld [vmem:[#allocation4 + $0x20] sm:$0xff]
    %v3822 = vld [vmem:[#allocation4 + $0x28] sm:$0xff]
    %v3823 = vld [vmem:[#allocation4 + $0x30] sm:$0xff]
    %v3824 = vld [vmem:[#allocation4 + $0x38] sm:$0xff]
    %v3825 = vld [vmem:[#allocation4 + $0x40] sm:$0xff]
    %v3826 = vld [vmem:[#allocation4 + $0x48] sm:$0xff]
    %v3827 = vld [vmem:[#allocation4 + $0x50] sm:$0xff]
    %v3828 = vld [vmem:[#allocation4 + $0x58] sm:$0xff]
    %v3829 = vld [vmem:[#allocation4 + $0x60] sm:$0xff]
    %v3830 = vld [vmem:[#allocation4 + $0x68] sm:$0xff]
    %v3831 = vld [vmem:[#allocation4 + $0x70] sm:$0xff]
    %v3832 = vld [vmem:[#allocation4 + $0x78] sm:$0xff]
    %v3833 = vld [vmem:[#allocation4 + $0x80] sm:$0xff]
    %v3834 = vld [vmem:[#allocation4 + $0x88] sm:$0xff]
    %v3835 = vld [vmem:[#allocation4 + $0x90] sm:$0xff]
    %v3836 = vld [vmem:[#allocation4 + $0x98] sm:$0xff]
    %v3837 = vld [vmem:[#allocation4 + $0xa0] sm:$0xff]
    %v3838 = vld [vmem:[#allocation4 + $0xa8] sm:$0xff]
    %v3839 = vld [vmem:[#allocation4 + $0xb0] sm:$0xff]
    %v3840 = vld [vmem:[#allocation4 + $0xb8] sm:$0xff]
    %v3841 = vld [vmem:[#allocation4 + $0xc0] sm:$0xff]
    %v3842 = vld [vmem:[#allocation4 + $0xc8] sm:$0xff]
    %v3843 = vld [vmem:[#allocation4 + $0xd0] sm:$0xff]
    %v3844 = vld [vmem:[#allocation4 + $0xd8] sm:$0xff]
    %v3845 = vld [vmem:[#allocation4 + $0xe0] sm:$0xff]
    %v3846 = vld [vmem:[#allocation4 + $0xe8] sm:$0xff]
    %v3847 = vld [vmem:[#allocation4 + $0xf0] sm:$0xff]
    %v3848 = vld [vmem:[#allocation4 + $0xf8] sm:$0xff]
    %v3849 = vld [vmem:[#allocation4 + $0x100] sm:$0xff]
    %v3850 = vld [vmem:[#allocation4 + $0x108] sm:$0xff]
    %v3851 = vld [vmem:[#allocation4 + $0x110] sm:$0xff]
    %v3852 = vld [vmem:[#allocation4 + $0x118] sm:$0xff]
    %v3853 = vld [vmem:[#allocation4 + $0x120] sm:$0xff]
    %v3854 = vld [vmem:[#allocation4 + $0x128] sm:$0xff]
    %v3855 = vld [vmem:[#allocation4 + $0x130] sm:$0xff]
    %v3856 = vld [vmem:[#allocation4 + $0x138] sm:$0xff]
    %v3857 = vld [vmem:[#allocation4 + $0x140] sm:$0xff]
    %v3858 = vld [vmem:[#allocation4 + $0x148] sm:$0xff]
    %v3859 = vld [vmem:[#allocation4 + $0x150] sm:$0xff]
    %v3860 = vld [vmem:[#allocation4 + $0x158] sm:$0xff]
    %v3861 = vld [vmem:[#allocation4 + $0x160] sm:$0xff]
    %v3862 = vld [vmem:[#allocation4 + $0x168] sm:$0xff]
    %v3863 = vld [vmem:[#allocation4 + $0x170] sm:$0xff]
    %v3864 = vld [vmem:[#allocation4 + $0x178] sm:$0xff]
    %v3865 = vld [vmem:[#allocation4 + $0x180] sm:$0xff]
    %v3866 = vld [vmem:[#allocation4 + $0x188] sm:$0xff]
    %v3867 = vld [vmem:[#allocation4 + $0x190] sm:$0xff]
    %v3868 = vld [vmem:[#allocation4 + $0x198] sm:$0xff]
    %v3869 = vld [vmem:[#allocation4 + $0x1a0] sm:$0xff]
    %v3870 = vld [vmem:[#allocation4 + $0x1a8] sm:$0xff]
    %v3871 = vld [vmem:[#allocation4 + $0x1b0] sm:$0xff]
    %v3872 = vld [vmem:[#allocation4 + $0x1b8] sm:$0xff]
    %v3873 = vld [vmem:[#allocation4 + $0x1c0] sm:$0xff]
    %v3874 = vld [vmem:[#allocation4 + $0x1c8] sm:$0xff]
    %v3875 = vld [vmem:[#allocation4 + $0x1d0] sm:$0xff]
    %v3876 = vld [vmem:[#allocation4 + $0x1d8] sm:$0xff]
    %v3877 = vld [vmem:[#allocation4 + $0x1e0] sm:$0xff]
    %v3878 = vld [vmem:[#allocation4 + $0x1e8] sm:$0xff]
    %v3879 = vld [vmem:[#allocation4 + $0x1f0] sm:$0xff]
    %v3880 = vld [vmem:[#allocation4 + $0x1f8] sm:$0xff]
    %v3881 = vpack.c.bf16 %v3749, %v3745
    %v3882 = vpack.c.bf16 %v3750, %v3746
    %v3883 = vpack.c.bf16 %v3751, %v3747
    %v3884 = vpack.c.bf16 %v3752, %v3748
    %v3885 = vpack.c.bf16 %v3757, %v3753
    %v3886 = vpack.c.bf16 %v3758, %v3754
    %v3887 = vpack.c.bf16 %v3759, %v3755
    %v3888 = vpack.c.bf16 %v3760, %v3756
    %v3889 = vpack.c.bf16 %v3765, %v3761
    %v3890 = vpack.c.bf16 %v3766, %v3762
    %v3891 = vpack.c.bf16 %v3767, %v3763
    %v3892 = vpack.c.bf16 %v3768, %v3764
    %v3893 = vpack.c.bf16 %v3773, %v3769
    %v3894 = vpack.c.bf16 %v3774, %v3770
    %v3895 = vpack.c.bf16 %v3775, %v3771
    %v3896 = vpack.c.bf16 %v3776, %v3772
    %v3897 = vpack.c.bf16 %v3781, %v3777
    %v3898 = vpack.c.bf16 %v3782, %v3778
    %v3899 = vpack.c.bf16 %v3783, %v3779
    %v3900 = vpack.c.bf16 %v3784, %v3780
    %v3901 = vpack.c.bf16 %v3789, %v3785
    %v3902 = vpack.c.bf16 %v3790, %v3786
    %v3903 = vpack.c.bf16 %v3791, %v3787
    %v3904 = vpack.c.bf16 %v3792, %v3788
    %v3905 = vpack.c.bf16 %v3797, %v3793
    %v3906 = vpack.c.bf16 %v3798, %v3794
    %v3907 = vpack.c.bf16 %v3799, %v3795
    %v3908 = vpack.c.bf16 %v3800, %v3796
    %v3909 = vpack.c.bf16 %v3805, %v3801
    %v3910 = vpack.c.bf16 %v3806, %v3802
    %v3911 = vpack.c.bf16 %v3807, %v3803
    %v3912 = vpack.c.bf16 %v3808, %v3804
    %v3913 = vld [vmem:[#allocation14 + $0xc] sm:$0x3]
    %v3915 = vlaneseq
    %v3916 = vshrl.u32 %v3915, 7
    %v3917 = vsub.s32 0, %v3916
    %v3918 = vrot.slane %v3913, %v3917
    %v3919 = vlaneseq
    %v3920 = vshrl.u32 %v3919, 7
    %v3921 = vsub.s32 1, %v3920
    %v3922 = vrot.slane %v3913, %v3921
    %v3989 = vunpack.c.l.b16 %v3817
    %v3990 = vunpack.c.h.b16 %v3817
    %v3991 = vunpack.c.l.b16 %v3818
    %v3992 = vunpack.c.h.b16 %v3818
    %v3993 = vunpack.c.l.b16 %v3819
    %v3994 = vunpack.c.h.b16 %v3819
    %v3995 = vunpack.c.l.b16 %v3820
    %v3996 = vunpack.c.h.b16 %v3820
    %v3997 = vunpack.c.l.b16 %v3821
    %v3998 = vunpack.c.h.b16 %v3821
    %v3999 = vunpack.c.l.b16 %v3822
    %v4000 = vunpack.c.h.b16 %v3822
    %v4001 = vunpack.c.l.b16 %v3823
    %v4002 = vunpack.c.h.b16 %v3823
    %v4003 = vunpack.c.l.b16 %v3824
    %v4004 = vunpack.c.h.b16 %v3824
    %v4005 = vunpack.c.l.b16 %v3825
    %v4006 = vunpack.c.h.b16 %v3825
    %v4007 = vunpack.c.l.b16 %v3826
    %v4008 = vunpack.c.h.b16 %v3826
    %v4009 = vunpack.c.l.b16 %v3827
    %v4010 = vunpack.c.h.b16 %v3827
    %v4011 = vunpack.c.l.b16 %v3828
    %v4012 = vunpack.c.h.b16 %v3828
    %v4013 = vunpack.c.l.b16 %v3829
    %v4014 = vunpack.c.h.b16 %v3829
    %v4015 = vunpack.c.l.b16 %v3830
    %v4016 = vunpack.c.h.b16 %v3830
    %v4017 = vunpack.c.l.b16 %v3831
    %v4018 = vunpack.c.h.b16 %v3831
    %v4019 = vunpack.c.l.b16 %v3832
    %v4020 = vunpack.c.h.b16 %v3832
    %v4021 = vunpack.c.l.b16 %v3833
    %v4022 = vunpack.c.h.b16 %v3833
    %v4023 = vunpack.c.l.b16 %v3834
    %v4024 = vunpack.c.h.b16 %v3834
    %v4025 = vunpack.c.l.b16 %v3835
    %v4026 = vunpack.c.h.b16 %v3835
    %v4027 = vunpack.c.l.b16 %v3836
    %v4028 = vunpack.c.h.b16 %v3836
    %v4029 = vunpack.c.l.b16 %v3837
    %v4030 = vunpack.c.h.b16 %v3837
    %v4031 = vunpack.c.l.b16 %v3838
    %v4032 = vunpack.c.h.b16 %v3838
    %v4033 = vunpack.c.l.b16 %v3839
    %v4034 = vunpack.c.h.b16 %v3839
    %v4035 = vunpack.c.l.b16 %v3840
    %v4036 = vunpack.c.h.b16 %v3840
    %v4037 = vunpack.c.l.b16 %v3841
    %v4038 = vunpack.c.h.b16 %v3841
    %v4039 = vunpack.c.l.b16 %v3842
    %v4040 = vunpack.c.h.b16 %v3842
    %v4041 = vunpack.c.l.b16 %v3843
    %v4042 = vunpack.c.h.b16 %v3843
    %v4043 = vunpack.c.l.b16 %v3844
    %v4044 = vunpack.c.h.b16 %v3844
    %v4045 = vunpack.c.l.b16 %v3845
    %v4046 = vunpack.c.h.b16 %v3845
    %v4047 = vunpack.c.l.b16 %v3846
    %v4048 = vunpack.c.h.b16 %v3846
    %v4049 = vunpack.c.l.b16 %v3847
    %v4050 = vunpack.c.h.b16 %v3847
    %v4051 = vunpack.c.l.b16 %v3848
    %v4052 = vunpack.c.h.b16 %v3848
    %v4053 = vunpack.c.l.b16 %v3849
    %v4054 = vunpack.c.h.b16 %v3849
    %v4055 = vunpack.c.l.b16 %v3850
    %v4056 = vunpack.c.h.b16 %v3850
    %v4057 = vunpack.c.l.b16 %v3851
    %v4058 = vunpack.c.h.b16 %v3851
    %v4059 = vunpack.c.l.b16 %v3852
    %v4060 = vunpack.c.h.b16 %v3852
    %v4061 = vunpack.c.l.b16 %v3853
    %v4062 = vunpack.c.h.b16 %v3853
    %v4063 = vunpack.c.l.b16 %v3854
    %v4064 = vunpack.c.h.b16 %v3854
    %v4065 = vunpack.c.l.b16 %v3855
    %v4066 = vunpack.c.h.b16 %v3855
    %v4067 = vunpack.c.l.b16 %v3856
    %v4068 = vunpack.c.h.b16 %v3856
    %v4069 = vunpack.c.l.b16 %v3857
    %v4070 = vunpack.c.h.b16 %v3857
    %v4071 = vunpack.c.l.b16 %v3858
    %v4072 = vunpack.c.h.b16 %v3858
    %v4073 = vunpack.c.l.b16 %v3859
    %v4074 = vunpack.c.h.b16 %v3859
    %v4075 = vunpack.c.l.b16 %v3860
    %v4076 = vunpack.c.h.b16 %v3860
    %v4077 = vunpack.c.l.b16 %v3861
    %v4078 = vunpack.c.h.b16 %v3861
    %v4079 = vunpack.c.l.b16 %v3862
    %v4080 = vunpack.c.h.b16 %v3862
    %v4081 = vunpack.c.l.b16 %v3863
    %v4082 = vunpack.c.h.b16 %v3863
    %v4083 = vunpack.c.l.b16 %v3864
    %v4084 = vunpack.c.h.b16 %v3864
    %v4085 = vunpack.c.l.b16 %v3865
    %v4086 = vunpack.c.h.b16 %v3865
    %v4087 = vunpack.c.l.b16 %v3866
    %v4088 = vunpack.c.h.b16 %v3866
    %v4089 = vunpack.c.l.b16 %v3867
    %v4090 = vunpack.c.h.b16 %v3867
    %v4091 = vunpack.c.l.b16 %v3868
    %v4092 = vunpack.c.h.b16 %v3868
    %v4093 = vunpack.c.l.b16 %v3869
    %v4094 = vunpack.c.h.b16 %v3869
    %v4095 = vunpack.c.l.b16 %v3870
    %v4096 = vunpack.c.h.b16 %v3870
    %v4097 = vunpack.c.l.b16 %v3871
    %v4098 = vunpack.c.h.b16 %v3871
    %v4099 = vunpack.c.l.b16 %v3872
    %v4100 = vunpack.c.h.b16 %v3872
    %v4101 = vunpack.c.l.b16 %v3873
    %v4102 = vunpack.c.h.b16 %v3873
    %v4103 = vunpack.c.l.b16 %v3874
    %v4104 = vunpack.c.h.b16 %v3874
    %v4105 = vunpack.c.l.b16 %v3875
    %v4106 = vunpack.c.h.b16 %v3875
    %v4107 = vunpack.c.l.b16 %v3876
    %v4108 = vunpack.c.h.b16 %v3876
    %v4109 = vunpack.c.l.b16 %v3877
    %v4110 = vunpack.c.h.b16 %v3877
    %v4111 = vunpack.c.l.b16 %v3878
    %v4112 = vunpack.c.h.b16 %v3878
    %v4113 = vunpack.c.l.b16 %v3879
    %v4114 = vunpack.c.h.b16 %v3879
    %v4115 = vunpack.c.l.b16 %v3880
    %v4116 = vunpack.c.h.b16 %v3880
    %v4117 = vpack.c.b16 %v3991, %v3989
    %v4118 = vpack.c.b16 %v3992, %v3990
    %v4119 = vpack.c.b16 %v3995, %v3993
    %v4120 = vpack.c.b16 %v3996, %v3994
    %v4121 = vpack.c.b16 %v3999, %v3997
    %v4122 = vpack.c.b16 %v4000, %v3998
    %v4123 = vpack.c.b16 %v4003, %v4001
    %v4124 = vpack.c.b16 %v4004, %v4002
    %v4125 = vpack.c.b16 %v4007, %v4005
    %v4126 = vpack.c.b16 %v4008, %v4006
    %v4127 = vpack.c.b16 %v4011, %v4009
    %v4128 = vpack.c.b16 %v4012, %v4010
    %v4129 = vpack.c.b16 %v4015, %v4013
    %v4130 = vpack.c.b16 %v4016, %v4014
    %v4131 = vpack.c.b16 %v4019, %v4017
    %v4132 = vpack.c.b16 %v4020, %v4018
    %v4133 = vpack.c.b16 %v4023, %v4021
    %v4134 = vpack.c.b16 %v4024, %v4022
    %v4135 = vpack.c.b16 %v4027, %v4025
    %v4136 = vpack.c.b16 %v4028, %v4026
    %v4137 = vpack.c.b16 %v4031, %v4029
    %v4138 = vpack.c.b16 %v4032, %v4030
    %v4139 = vpack.c.b16 %v4035, %v4033
    %v4140 = vpack.c.b16 %v4036, %v4034
    %v4141 = vpack.c.b16 %v4039, %v4037
    %v4142 = vpack.c.b16 %v4040, %v4038
    %v4143 = vpack.c.b16 %v4043, %v4041
    %v4144 = vpack.c.b16 %v4044, %v4042
    %v4145 = vpack.c.b16 %v4047, %v4045
    %v4146 = vpack.c.b16 %v4048, %v4046
    %v4147 = vpack.c.b16 %v4051, %v4049
    %v4148 = vpack.c.b16 %v4052, %v4050
    %v4149 = vpack.c.b16 %v4055, %v4053
    %v4150 = vpack.c.b16 %v4056, %v4054
    %v4151 = vpack.c.b16 %v4059, %v4057
    %v4152 = vpack.c.b16 %v4060, %v4058
    %v4153 = vpack.c.b16 %v4063, %v4061
    %v4154 = vpack.c.b16 %v4064, %v4062
    %v4155 = vpack.c.b16 %v4067, %v4065
    %v4156 = vpack.c.b16 %v4068, %v4066
    %v4157 = vpack.c.b16 %v4071, %v4069
    %v4158 = vpack.c.b16 %v4072, %v4070
    %v4159 = vpack.c.b16 %v4075, %v4073
    %v4160 = vpack.c.b16 %v4076, %v4074
    %v4161 = vpack.c.b16 %v4079, %v4077
    %v4162 = vpack.c.b16 %v4080, %v4078
    %v4163 = vpack.c.b16 %v4083, %v4081
    %v4164 = vpack.c.b16 %v4084, %v4082
    %v4165 = vpack.c.b16 %v4087, %v4085
    %v4166 = vpack.c.b16 %v4088, %v4086
    %v4167 = vpack.c.b16 %v4091, %v4089
    %v4168 = vpack.c.b16 %v4092, %v4090
    %v4169 = vpack.c.b16 %v4095, %v4093
    %v4170 = vpack.c.b16 %v4096, %v4094
    %v4171 = vpack.c.b16 %v4099, %v4097
    %v4172 = vpack.c.b16 %v4100, %v4098
    %v4173 = vpack.c.b16 %v4103, %v4101
    %v4174 = vpack.c.b16 %v4104, %v4102
    %v4175 = vpack.c.b16 %v4107, %v4105
    %v4176 = vpack.c.b16 %v4108, %v4106
    %v4177 = vpack.c.b16 %v4111, %v4109
    %v4178 = vpack.c.b16 %v4112, %v4110
    %v4179 = vpack.c.b16 %v4115, %v4113
    %v4180 = vpack.c.b16 %v4116, %v4114
    %4245 = vmatprep.subr.bf16.mxu0 %v4132
    %4246 = vmatpush1.bf16.msra.mxu0 %v4131
    %4247 = vmatprep.subr.bf16.mxu0 %v4130
    %4248 = vmatpush1.bf16.msra.mxu0 %v4129
    %4249 = vmatprep.subr.bf16.mxu0 %v4128
    %4250 = vmatpush1.bf16.msra.mxu0 %v4127
    %4251 = vmatprep.subr.bf16.mxu0 %v4126
    %4252 = vmatpush1.bf16.msra.mxu0 %v4125
    %4253 = vmatprep.subr.bf16.mxu0 %v4124
    %4254 = vmatpush1.bf16.msra.mxu0 %v4123
    %4255 = vmatprep.subr.bf16.mxu0 %v4122
    %4256 = vmatpush1.bf16.msra.mxu0 %v4121
    %4257 = vmatprep.subr.bf16.mxu0 %v4120
    %4258 = vmatpush1.bf16.msra.mxu0 %v4119
    %4259 = vmatprep.subr.bf16.mxu0 %v4118
    %4260 = vmatpush1.bf16.msra.mxu0 %v4117
    %4261 = vmatprep.subr.bf16.mxu0 %v4148
    %4262 = vmatpush2.bf16.msra.mxu0 %v4147
    %4263 = vmatprep.subr.bf16.mxu0 %v4146
    %4264 = vmatpush2.bf16.msra.mxu0 %v4145
    %4265 = vmatprep.subr.bf16.mxu0 %v4144
    %4266 = vmatpush2.bf16.msra.mxu0 %v4143
    %4267 = vmatprep.subr.bf16.mxu0 %v4142
    %4268 = vmatpush2.bf16.msra.mxu0 %v4141
    %4269 = vmatprep.subr.bf16.mxu0 %v4140
    %4270 = vmatpush2.bf16.msra.mxu0 %v4139
    %4271 = vmatprep.subr.bf16.mxu0 %v4138
    %4272 = vmatpush2.bf16.msra.mxu0 %v4137
    %4273 = vmatprep.subr.bf16.mxu0 %v4136
    %4274 = vmatpush2.bf16.msra.mxu0 %v4135
    %4275 = vmatprep.subr.bf16.mxu0 %v4134
    %4276 = vmatpush2.bf16.msra.mxu0 %v4133
    %4277 = vmatprep.mubr.bf16.mxu0 %v3882
    %4278 = vmatmul.mubr.bf16.gmra.mxu0 %v3881
    %v4279 = vpop.f32.mrf.mxu0
    %v4280 = vadd.f32 %v3918, %v4279
    %v4281 = vpop.f32.mrf.mxu0
    %v4282 = vadd.f32 %v3922, %v4281
    %v4283 = vpop.f32.mrf.mxu0
    %v4284 = vadd.f32 %v3918, %v4283
    %v4285 = vpop.f32.mrf.mxu0
    %v4286 = vadd.f32 %v3922, %v4285
    %4287 = vmatprep.mubr.bf16.mxu0 %v3886
    %4288 = vmatmul.mubr.bf16.gmra.mxu0 %v3885
    %v4289 = vpop.f32.mrf.mxu0
    %v4290 = vadd.f32 %v3918, %v4289
    %v4291 = vpop.f32.mrf.mxu0
    %v4292 = vadd.f32 %v3922, %v4291
    %v4293 = vpop.f32.mrf.mxu0
    %v4294 = vadd.f32 %v3918, %v4293
    %v4295 = vpop.f32.mrf.mxu0
    %v4296 = vadd.f32 %v3922, %v4295
    %4297 = vmatprep.mubr.bf16.mxu0 %v3890
    %4298 = vmatmul.mubr.bf16.gmra.mxu0 %v3889
    %v4299 = vpop.f32.mrf.mxu0
    %v4300 = vadd.f32 %v3918, %v4299
    %v4301 = vpop.f32.mrf.mxu0
    %v4302 = vadd.f32 %v3922, %v4301
    %v4303 = vpop.f32.mrf.mxu0
    %v4304 = vadd.f32 %v3918, %v4303
    %v4305 = vpop.f32.mrf.mxu0
    %v4306 = vadd.f32 %v3922, %v4305
    %4307 = vmatprep.mubr.bf16.mxu0 %v3894
    %4308 = vmatmul.mubr.bf16.gmra.mxu0 %v3893
    %v4309 = vpop.f32.mrf.mxu0
    %v4310 = vadd.f32 %v3918, %v4309
    %v4311 = vpop.f32.mrf.mxu0
    %v4312 = vadd.f32 %v3922, %v4311
    %v4313 = vpop.f32.mrf.mxu0
    %v4314 = vadd.f32 %v3918, %v4313
    %v4315 = vpop.f32.mrf.mxu0
    %v4316 = vadd.f32 %v3922, %v4315
    %4317 = vmatprep.mubr.bf16.mxu0 %v3898
    %4318 = vmatmul.mubr.bf16.gmra.mxu0 %v3897
    %v4319 = vpop.f32.mrf.mxu0
    %v4320 = vadd.f32 %v3918, %v4319
    %v4321 = vpop.f32.mrf.mxu0
    %v4322 = vadd.f32 %v3922, %v4321
    %v4323 = vpop.f32.mrf.mxu0
    %v4324 = vadd.f32 %v3918, %v4323
    %v4325 = vpop.f32.mrf.mxu0
    %v4326 = vadd.f32 %v3922, %v4325
    %4327 = vmatprep.mubr.bf16.mxu0 %v3902
    %4328 = vmatmul.mubr.bf16.gmra.mxu0 %v3901
    %v4329 = vpop.f32.mrf.mxu0
    %v4330 = vadd.f32 %v3918, %v4329
    %v4331 = vpop.f32.mrf.mxu0
    %v4332 = vadd.f32 %v3922, %v4331
    %v4333 = vpop.f32.mrf.mxu0
    %v4334 = vadd.f32 %v3918, %v4333
    %v4335 = vpop.f32.mrf.mxu0
    %v4336 = vadd.f32 %v3922, %v4335
    %4337 = vmatprep.mubr.bf16.mxu0 %v3906
    %4338 = vmatmul.mubr.bf16.gmra.mxu0 %v3905
    %v4339 = vpop.f32.mrf.mxu0
    %v4340 = vadd.f32 %v3918, %v4339
    %v4341 = vpop.f32.mrf.mxu0
    %v4342 = vadd.f32 %v3922, %v4341
    %v4343 = vpop.f32.mrf.mxu0
    %v4344 = vadd.f32 %v3918, %v4343
    %v4345 = vpop.f32.mrf.mxu0
    %v4346 = vadd.f32 %v3922, %v4345
    %4347 = vmatprep.mubr.bf16.mxu0 %v3910
    %4348 = vmatmul.mubr.bf16.gmra.mxu0 %v3909
    %v4349 = vpop.f32.mrf.mxu0
    %v4350 = vadd.f32 %v3918, %v4349
    %v4351 = vpop.f32.mrf.mxu0
    %v4352 = vadd.f32 %v3922, %v4351
    %v4353 = vpop.f32.mrf.mxu0
    %v4354 = vadd.f32 %v3918, %v4353
    %v4355 = vpop.f32.mrf.mxu0
    %v4356 = vadd.f32 %v3922, %v4355
    %4357 = vdwg.mxu0
    %4358 = vmatprep.subr.bf16.mxu0 %v4164
    %4359 = vmatpush1.bf16.msra.mxu0 %v4163
    %4360 = vmatprep.subr.bf16.mxu0 %v4162
    %4361 = vmatpush1.bf16.msra.mxu0 %v4161
    %4362 = vmatprep.subr.bf16.mxu0 %v4160
    %4363 = vmatpush1.bf16.msra.mxu0 %v4159
    %4364 = vmatprep.subr.bf16.mxu0 %v4158
    %4365 = vmatpush1.bf16.msra.mxu0 %v4157
    %4366 = vmatprep.subr.bf16.mxu0 %v4156
    %4367 = vmatpush1.bf16.msra.mxu0 %v4155
    %4368 = vmatprep.subr.bf16.mxu0 %v4154
    %4369 = vmatpush1.bf16.msra.mxu0 %v4153
    %4370 = vmatprep.subr.bf16.mxu0 %v4152
    %4371 = vmatpush1.bf16.msra.mxu0 %v4151
    %4372 = vmatprep.subr.bf16.mxu0 %v4150
    %4373 = vmatpush1.bf16.msra.mxu0 %v4149
    %4374 = vmatprep.subr.bf16.mxu0 %v4180
    %4375 = vmatpush2.bf16.msra.mxu0 %v4179
    %4376 = vmatprep.subr.bf16.mxu0 %v4178
    %4377 = vmatpush2.bf16.msra.mxu0 %v4177
    %4378 = vmatprep.subr.bf16.mxu0 %v4176
    %4379 = vmatpush2.bf16.msra.mxu0 %v4175
    %4380 = vmatprep.subr.bf16.mxu0 %v4174
    %4381 = vmatpush2.bf16.msra.mxu0 %v4173
    %4382 = vmatprep.subr.bf16.mxu0 %v4172
    %4383 = vmatpush2.bf16.msra.mxu0 %v4171
    %4384 = vmatprep.subr.bf16.mxu0 %v4170
    %4385 = vmatpush2.bf16.msra.mxu0 %v4169
    %4386 = vmatprep.subr.bf16.mxu0 %v4168
    %4387 = vmatpush2.bf16.msra.mxu0 %v4167
    %4388 = vmatprep.subr.bf16.mxu0 %v4166
    %4389 = vmatpush2.bf16.msra.mxu0 %v4165
    %4390 = vmatprep.mubr.bf16.mxu0 %v3884
    %4391 = vmatmul.mubr.bf16.gmra.mxu0 %v3883
    %v4392 = vpop.f32.mrf.mxu0
    %v4393 = vadd.f32 %v4280, %v4392
    %v4394 = vpop.f32.mrf.mxu0
    %v4395 = vadd.f32 %v4282, %v4394
    %v4396 = vpop.f32.mrf.mxu0
    %v4397 = vadd.f32 %v4284, %v4396
    %v4398 = vpop.f32.mrf.mxu0
    %v4399 = vadd.f32 %v4286, %v4398
    %4400 = vmatprep.mubr.bf16.mxu0 %v3888
    %4401 = vmatmul.mubr.bf16.gmra.mxu0 %v3887
    %v4402 = vpop.f32.mrf.mxu0
    %v4403 = vadd.f32 %v4290, %v4402
    %v4404 = vpop.f32.mrf.mxu0
    %v4405 = vadd.f32 %v4292, %v4404
    %v4406 = vpop.f32.mrf.mxu0
    %v4407 = vadd.f32 %v4294, %v4406
    %v4408 = vpop.f32.mrf.mxu0
    %v4409 = vadd.f32 %v4296, %v4408
    %4410 = vmatprep.mubr.bf16.mxu0 %v3892
    %4411 = vmatmul.mubr.bf16.gmra.mxu0 %v3891
    %v4412 = vpop.f32.mrf.mxu0
    %v4413 = vadd.f32 %v4300, %v4412
    %v4414 = vpop.f32.mrf.mxu0
    %v4415 = vadd.f32 %v4302, %v4414
    %v4416 = vpop.f32.mrf.mxu0
    %v4417 = vadd.f32 %v4304, %v4416
    %v4418 = vpop.f32.mrf.mxu0
    %v4419 = vadd.f32 %v4306, %v4418
    %4420 = vmatprep.mubr.bf16.mxu0 %v3896
    %4421 = vmatmul.mubr.bf16.gmra.mxu0 %v3895
    %v4422 = vpop.f32.mrf.mxu0
    %v4423 = vadd.f32 %v4310, %v4422
    %v4424 = vpop.f32.mrf.mxu0
    %v4425 = vadd.f32 %v4312, %v4424
    %v4426 = vpop.f32.mrf.mxu0
    %v4427 = vadd.f32 %v4314, %v4426
    %v4428 = vpop.f32.mrf.mxu0
    %v4429 = vadd.f32 %v4316, %v4428
    %4430 = vmatprep.mubr.bf16.mxu0 %v3900
    %4431 = vmatmul.mubr.bf16.gmra.mxu0 %v3899
    %v4432 = vpop.f32.mrf.mxu0
    %v4433 = vadd.f32 %v4320, %v4432
    %v4434 = vpop.f32.mrf.mxu0
    %v4435 = vadd.f32 %v4322, %v4434
    %v4436 = vpop.f32.mrf.mxu0
    %v4437 = vadd.f32 %v4324, %v4436
    %v4438 = vpop.f32.mrf.mxu0
    %v4439 = vadd.f32 %v4326, %v4438
    %4440 = vmatprep.mubr.bf16.mxu0 %v3904
    %4441 = vmatmul.mubr.bf16.gmra.mxu0 %v3903
    %v4442 = vpop.f32.mrf.mxu0
    %v4443 = vadd.f32 %v4330, %v4442
    %v4444 = vpop.f32.mrf.mxu0
    %v4445 = vadd.f32 %v4332, %v4444
    %v4446 = vpop.f32.mrf.mxu0
    %v4447 = vadd.f32 %v4334, %v4446
    %v4448 = vpop.f32.mrf.mxu0
    %v4449 = vadd.f32 %v4336, %v4448
    %4450 = vmatprep.mubr.bf16.mxu0 %v3908
    %4451 = vmatmul.mubr.bf16.gmra.mxu0 %v3907
    %v4452 = vpop.f32.mrf.mxu0
    %v4453 = vadd.f32 %v4340, %v4452
    %v4454 = vpop.f32.mrf.mxu0
    %v4455 = vadd.f32 %v4342, %v4454
    %v4456 = vpop.f32.mrf.mxu0
    %v4457 = vadd.f32 %v4344, %v4456
    %v4458 = vpop.f32.mrf.mxu0
    %v4459 = vadd.f32 %v4346, %v4458
    %4460 = vmatprep.mubr.bf16.mxu0 %v3912
    %4461 = vmatmul.mubr.bf16.gmra.mxu0 %v3911
    %v4462 = vpop.f32.mrf.mxu0
    %v4463 = vadd.f32 %v4350, %v4462
    %v4464 = vpop.f32.mrf.mxu0
    %v4465 = vadd.f32 %v4352, %v4464
    %v4466 = vpop.f32.mrf.mxu0
    %v4467 = vadd.f32 %v4354, %v4466
    %v4468 = vpop.f32.mrf.mxu0
    %v4469 = vadd.f32 %v4356, %v4468
    %4470 = vdwg.mxu0
    %v4471 = vmax.f32 %v4393, 0.0
    %v4472 = vmax.f32 %v4395, 0.0
    %v4473 = vmax.f32 %v4397, 0.0
    %v4474 = vmax.f32 %v4399, 0.0
    %v4475 = vmax.f32 %v4403, 0.0
    %v4476 = vmax.f32 %v4405, 0.0
    %v4477 = vmax.f32 %v4407, 0.0
    %v4478 = vmax.f32 %v4409, 0.0
    %v4479 = vmax.f32 %v4413, 0.0
    %v4480 = vmax.f32 %v4415, 0.0
    %v4481 = vmax.f32 %v4417, 0.0
    %v4482 = vmax.f32 %v4419, 0.0
    %v4483 = vmax.f32 %v4423, 0.0
    %v4484 = vmax.f32 %v4425, 0.0
    %v4485 = vmax.f32 %v4427, 0.0
    %v4486 = vmax.f32 %v4429, 0.0
    %v4487 = vmax.f32 %v4433, 0.0
    %v4488 = vmax.f32 %v4435, 0.0
    %v4489 = vmax.f32 %v4437, 0.0
    %v4490 = vmax.f32 %v4439, 0.0
    %v4491 = vmax.f32 %v4443, 0.0
    %v4492 = vmax.f32 %v4445, 0.0
    %v4493 = vmax.f32 %v4447, 0.0
    %v4494 = vmax.f32 %v4449, 0.0
    %v4495 = vmax.f32 %v4453, 0.0
    %v4496 = vmax.f32 %v4455, 0.0
    %v4497 = vmax.f32 %v4457, 0.0
    %v4498 = vmax.f32 %v4459, 0.0
    %v4499 = vmax.f32 %v4463, 0.0
    %v4500 = vmax.f32 %v4465, 0.0
    %v4501 = vmax.f32 %v4467, 0.0
    %v4502 = vmax.f32 %v4469, 0.0
    // Predicated region
    $region66: #{_forward_jit.1} parent=1 // pred_check
      %p4503 = pneg %p41
    $region67: #{_forward_jit.1} parent=1 // pred_check_branch
      %4505 = sbr.rel (%p4503) target = $region69
    $region68: #{_forward_jit.1} parent=1 // pred_region
      %s4506 = scalar_lea.sflag [#allocation11], 3
      %s4507 = smul.u32 4, 32
      %s4508 = smul.u32 %s4507, 1
      %s4509 = sshll.u32 %s4508, 4
      %4510 = dma.done %s4506, %s4509
    $region69: #{_forward_jit.1} parent=1 // pred_fallthru
      _
    %v4511 = vld [vmem:[#allocation5] sm:$0xf]
    %v4512 = vld [vmem:[#allocation5 + $0x4] sm:$0xf]
    %v4513 = vld [vmem:[#allocation5 + $0x8] sm:$0xf]
    %v4514 = vld [vmem:[#allocation5 + $0xc] sm:$0xf]
    %v4515 = vld [vmem:[#allocation5 + $0x10] sm:$0xf]
    %v4516 = vld [vmem:[#allocation5 + $0x14] sm:$0xf]
    %v4517 = vld [vmem:[#allocation5 + $0x18] sm:$0xf]
    %v4518 = vld [vmem:[#allocation5 + $0x1c] sm:$0xf]
    %v4519 = vld [vmem:[#allocation5 + $0x20] sm:$0xf]
    %v4520 = vld [vmem:[#allocation5 + $0x24] sm:$0xf]
    %v4521 = vld [vmem:[#allocation5 + $0x28] sm:$0xf]
    %v4522 = vld [vmem:[#allocation5 + $0x2c] sm:$0xf]
    %v4523 = vld [vmem:[#allocation5 + $0x30] sm:$0xf]
    %v4524 = vld [vmem:[#allocation5 + $0x34] sm:$0xf]
    %v4525 = vld [vmem:[#allocation5 + $0x38] sm:$0xf]
    %v4526 = vld [vmem:[#allocation5 + $0x3c] sm:$0xf]
    %v4527 = vld [vmem:[#allocation5 + $0x40] sm:$0xf]
    %v4528 = vld [vmem:[#allocation5 + $0x44] sm:$0xf]
    %v4529 = vld [vmem:[#allocation5 + $0x48] sm:$0xf]
    %v4530 = vld [vmem:[#allocation5 + $0x4c] sm:$0xf]
    %v4531 = vld [vmem:[#allocation5 + $0x50] sm:$0xf]
    %v4532 = vld [vmem:[#allocation5 + $0x54] sm:$0xf]
    %v4533 = vld [vmem:[#allocation5 + $0x58] sm:$0xf]
    %v4534 = vld [vmem:[#allocation5 + $0x5c] sm:$0xf]
    %v4535 = vld [vmem:[#allocation5 + $0x60] sm:$0xf]
    %v4536 = vld [vmem:[#allocation5 + $0x64] sm:$0xf]
    %v4537 = vld [vmem:[#allocation5 + $0x68] sm:$0xf]
    %v4538 = vld [vmem:[#allocation5 + $0x6c] sm:$0xf]
    %v4539 = vld [vmem:[#allocation5 + $0x70] sm:$0xf]
    %v4540 = vld [vmem:[#allocation5 + $0x74] sm:$0xf]
    %v4541 = vld [vmem:[#allocation5 + $0x78] sm:$0xf]
    %v4542 = vld [vmem:[#allocation5 + $0x7c] sm:$0xf]
    %v4543 = vpack.c.bf16 %v4473, %v4471
    %v4544 = vpack.c.bf16 %v4474, %v4472
    %v4545 = vpack.c.bf16 %v4477, %v4475
    %v4546 = vpack.c.bf16 %v4478, %v4476
    %v4547 = vpack.c.bf16 %v4481, %v4479
    %v4548 = vpack.c.bf16 %v4482, %v4480
    %v4549 = vpack.c.bf16 %v4485, %v4483
    %v4550 = vpack.c.bf16 %v4486, %v4484
    %v4551 = vpack.c.bf16 %v4489, %v4487
    %v4552 = vpack.c.bf16 %v4490, %v4488
    %v4553 = vpack.c.bf16 %v4493, %v4491
    %v4554 = vpack.c.bf16 %v4494, %v4492
    %v4555 = vpack.c.bf16 %v4497, %v4495
    %v4556 = vpack.c.bf16 %v4498, %v4496
    %v4557 = vpack.c.bf16 %v4501, %v4499
    %v4558 = vpack.c.bf16 %v4502, %v4500
    %v4559 = vld [vmem:[#allocation14 + $0xe] sm:$0x1]
    %v4561 = vlaneseq
    %v4562 = vshrl.u32 %v4561, 7
    %v4563 = vsub.s32 0, %v4562
    %v4564 = vrot.slane %v4559, %v4563
    %v4598 = vunpack.c.l.b16 %v4511
    %v4599 = vunpack.c.l.b16 %v4512
    %v4600 = vunpack.c.l.b16 %v4513
    %v4601 = vunpack.c.l.b16 %v4514
    %v4602 = vunpack.c.l.b16 %v4515
    %v4603 = vunpack.c.l.b16 %v4516
    %v4604 = vunpack.c.l.b16 %v4517
    %v4605 = vunpack.c.l.b16 %v4518
    %v4606 = vunpack.c.l.b16 %v4519
    %v4607 = vunpack.c.l.b16 %v4520
    %v4608 = vunpack.c.l.b16 %v4521
    %v4609 = vunpack.c.l.b16 %v4522
    %v4610 = vunpack.c.l.b16 %v4523
    %v4611 = vunpack.c.l.b16 %v4524
    %v4612 = vunpack.c.l.b16 %v4525
    %v4613 = vunpack.c.l.b16 %v4526
    %v4614 = vunpack.c.l.b16 %v4527
    %v4615 = vunpack.c.l.b16 %v4528
    %v4616 = vunpack.c.l.b16 %v4529
    %v4617 = vunpack.c.l.b16 %v4530
    %v4618 = vunpack.c.l.b16 %v4531
    %v4619 = vunpack.c.l.b16 %v4532
    %v4620 = vunpack.c.l.b16 %v4533
    %v4621 = vunpack.c.l.b16 %v4534
    %v4622 = vunpack.c.l.b16 %v4535
    %v4623 = vunpack.c.l.b16 %v4536
    %v4624 = vunpack.c.l.b16 %v4537
    %v4625 = vunpack.c.l.b16 %v4538
    %v4626 = vunpack.c.l.b16 %v4539
    %v4627 = vunpack.c.l.b16 %v4540
    %v4628 = vunpack.c.l.b16 %v4541
    %v4629 = vunpack.c.l.b16 %v4542
    %v4630 = vpack.c.b16 %v4599, %v4598
    %v4631 = vpack.c.b16 %v4601, %v4600
    %v4632 = vpack.c.b16 %v4603, %v4602
    %v4633 = vpack.c.b16 %v4605, %v4604
    %v4634 = vpack.c.b16 %v4607, %v4606
    %v4635 = vpack.c.b16 %v4609, %v4608
    %v4636 = vpack.c.b16 %v4611, %v4610
    %v4637 = vpack.c.b16 %v4613, %v4612
    %v4638 = vpack.c.b16 %v4615, %v4614
    %v4639 = vpack.c.b16 %v4617, %v4616
    %v4640 = vpack.c.b16 %v4619, %v4618
    %v4641 = vpack.c.b16 %v4621, %v4620
    %v4642 = vpack.c.b16 %v4623, %v4622
    %v4643 = vpack.c.b16 %v4625, %v4624
    %v4644 = vpack.c.b16 %v4627, %v4626
    %v4645 = vpack.c.b16 %v4629, %v4628
    %4662 = vmatprep.subr.bf16.mxu0 0
    %4663 = vmatpush1.bf16.msra.mxu0 %v4637
    %4664 = vmatprep.subr.bf16.mxu0 0
    %4665 = vmatpush1.bf16.msra.mxu0 %v4636
    %4666 = vmatprep.subr.bf16.mxu0 0
    %4667 = vmatpush1.bf16.msra.mxu0 %v4635
    %4668 = vmatprep.subr.bf16.mxu0 0
    %4669 = vmatpush1.bf16.msra.mxu0 %v4634
    %4670 = vmatprep.subr.bf16.mxu0 0
    %4671 = vmatpush1.bf16.msra.mxu0 %v4633
    %4672 = vmatprep.subr.bf16.mxu0 0
    %4673 = vmatpush1.bf16.msra.mxu0 %v4632
    %4674 = vmatprep.subr.bf16.mxu0 0
    %4675 = vmatpush1.bf16.msra.mxu0 %v4631
    %4676 = vmatprep.subr.bf16.mxu0 0
    %4677 = vmatpush1.bf16.msra.mxu0 %v4630
    %4678 = vmatprep.subr.bf16.mxu0 0
    %4679 = vmatpush2.bf16.msra.mxu0 %v4645
    %4680 = vmatprep.subr.bf16.mxu0 0
    %4681 = vmatpush2.bf16.msra.mxu0 %v4644
    %4682 = vmatprep.subr.bf16.mxu0 0
    %4683 = vmatpush2.bf16.msra.mxu0 %v4643
    %4684 = vmatprep.subr.bf16.mxu0 0
    %4685 = vmatpush2.bf16.msra.mxu0 %v4642
    %4686 = vmatprep.subr.bf16.mxu0 0
    %4687 = vmatpush2.bf16.msra.mxu0 %v4641
    %4688 = vmatprep.subr.bf16.mxu0 0
    %4689 = vmatpush2.bf16.msra.mxu0 %v4640
    %4690 = vmatprep.subr.bf16.mxu0 0
    %4691 = vmatpush2.bf16.msra.mxu0 %v4639
    %4692 = vmatprep.subr.bf16.mxu0 0
    %4693 = vmatpush2.bf16.msra.mxu0 %v4638
    %4694 = vmatprep.mubr.bf16.mxu0 %v4544
    %4695 = vmatmul.mubr.bf16.gmra.mxu0 %v4543
    %v4696 = vpop.f32.mrf.mxu0
    %v4697 = vadd.f32 %v4564, %v4696
    %v4698 = vpop.f32.mrf.mxu0
    %v4699 = vpop.f32.mrf.mxu0
    %v4700 = vadd.f32 %v4564, %v4699
    %v4701 = vpop.f32.mrf.mxu0
    %4702 = vmatprep.mubr.bf16.mxu0 %v4546
    %4703 = vmatmul.mubr.bf16.gmra.mxu0 %v4545
    %v4704 = vpop.f32.mrf.mxu0
    %v4705 = vadd.f32 %v4564, %v4704
    %v4706 = vpop.f32.mrf.mxu0
    %v4707 = vpop.f32.mrf.mxu0
    %v4708 = vadd.f32 %v4564, %v4707
    %v4709 = vpop.f32.mrf.mxu0
    %4710 = vmatprep.mubr.bf16.mxu0 %v4548
    %4711 = vmatmul.mubr.bf16.gmra.mxu0 %v4547
    %v4712 = vpop.f32.mrf.mxu0
    %v4713 = vadd.f32 %v4564, %v4712
    %v4714 = vpop.f32.mrf.mxu0
    %v4715 = vpop.f32.mrf.mxu0
    %v4716 = vadd.f32 %v4564, %v4715
    %v4717 = vpop.f32.mrf.mxu0
    %4718 = vmatprep.mubr.bf16.mxu0 %v4550
    %4719 = vmatmul.mubr.bf16.gmra.mxu0 %v4549
    %v4720 = vpop.f32.mrf.mxu0
    %v4721 = vadd.f32 %v4564, %v4720
    %v4722 = vpop.f32.mrf.mxu0
    %v4723 = vpop.f32.mrf.mxu0
    %v4724 = vadd.f32 %v4564, %v4723
    %v4725 = vpop.f32.mrf.mxu0
    %4726 = vmatprep.mubr.bf16.mxu0 %v4552
    %4727 = vmatmul.mubr.bf16.gmra.mxu0 %v4551
    %v4728 = vpop.f32.mrf.mxu0
    %v4729 = vadd.f32 %v4564, %v4728
    %v4730 = vpop.f32.mrf.mxu0
    %v4731 = vpop.f32.mrf.mxu0
    %v4732 = vadd.f32 %v4564, %v4731
    %v4733 = vpop.f32.mrf.mxu0
    %4734 = vmatprep.mubr.bf16.mxu0 %v4554
    %4735 = vmatmul.mubr.bf16.gmra.mxu0 %v4553
    %v4736 = vpop.f32.mrf.mxu0
    %v4737 = vadd.f32 %v4564, %v4736
    %v4738 = vpop.f32.mrf.mxu0
    %v4739 = vpop.f32.mrf.mxu0
    %v4740 = vadd.f32 %v4564, %v4739
    %v4741 = vpop.f32.mrf.mxu0
    %4742 = vmatprep.mubr.bf16.mxu0 %v4556
    %4743 = vmatmul.mubr.bf16.gmra.mxu0 %v4555
    %v4744 = vpop.f32.mrf.mxu0
    %v4745 = vadd.f32 %v4564, %v4744
    %v4746 = vpop.f32.mrf.mxu0
    %v4747 = vpop.f32.mrf.mxu0
    %v4748 = vadd.f32 %v4564, %v4747
    %v4749 = vpop.f32.mrf.mxu0
    %4750 = vmatprep.mubr.bf16.mxu0 %v4558
    %4751 = vmatmul.mubr.bf16.gmra.mxu0 %v4557
    %v4752 = vpop.f32.mrf.mxu0
    %v4753 = vadd.f32 %v4564, %v4752
    %v4754 = vpop.f32.mrf.mxu0
    %v4755 = vpop.f32.mrf.mxu0
    %v4756 = vadd.f32 %v4564, %v4755
    %v4757 = vpop.f32.mrf.mxu0
    %4758 = vdwg.mxu0
    %v4759 = vmax.f32 %v4697, 0.0
    %v4760 = vmax.f32 %v4700, 0.0
    %v4761 = vmax.f32 %v4705, 0.0
    %v4762 = vmax.f32 %v4708, 0.0
    %v4763 = vmax.f32 %v4713, 0.0
    %v4764 = vmax.f32 %v4716, 0.0
    %v4765 = vmax.f32 %v4721, 0.0
    %v4766 = vmax.f32 %v4724, 0.0
    %v4767 = vmax.f32 %v4729, 0.0
    %v4768 = vmax.f32 %v4732, 0.0
    %v4769 = vmax.f32 %v4737, 0.0
    %v4770 = vmax.f32 %v4740, 0.0
    %v4771 = vmax.f32 %v4745, 0.0
    %v4772 = vmax.f32 %v4748, 0.0
    %v4773 = vmax.f32 %v4753, 0.0
    %v4774 = vmax.f32 %v4756, 0.0
    // Predicated region
    $region70: #{_forward_jit.1} parent=1 // pred_check
      %p4775 = pneg %p41
    $region71: #{_forward_jit.1} parent=1 // pred_check_branch
      %4777 = sbr.rel (%p4775) target = $region73
    $region72: #{_forward_jit.1} parent=1 // pred_region
      %s4778 = scalar_lea.sflag [#allocation11], 4
      %s4779 = smul.u32 4, 10
      %s4780 = smul.u32 %s4779, 16
      %s4781 = smul.u32 %s4780, 1
      %s4782 = sshll.u32 %s4781, 4
      %4783 = dma.done %s4778, %s4782
    $region73: #{_forward_jit.1} parent=1 // pred_fallthru
      _
    %v4784 = vld [vmem:[#allocation6] sm:$0xf]
    %v4785 = vld [vmem:[#allocation6 + $0x4] sm:$0xf]
    %v4786 = vld [vmem:[#allocation6 + $0x8] sm:$0xf]
    %v4787 = vld [vmem:[#allocation6 + $0xc] sm:$0xf]
    %v4788 = vld [vmem:[#allocation6 + $0x10] sm:$0xf]
    %v4789 = vld [vmem:[#allocation6 + $0x14] sm:$0xf]
    %v4790 = vld [vmem:[#allocation6 + $0x18] sm:$0xf]
    %v4791 = vld [vmem:[#allocation6 + $0x1c] sm:$0xf]
    %v4792 = vld [vmem:[#allocation6 + $0x20] sm:$0xf]
    %v4793 = vld [vmem:[#allocation6 + $0x24] sm:$0xf]
    %v4794 = vld [vmem:[#allocation6 + $0x28] sm:$0xf]
    %v4795 = vld [vmem:[#allocation6 + $0x2c] sm:$0xf]
    %v4796 = vld [vmem:[#allocation6 + $0x30] sm:$0xf]
    %v4797 = vld [vmem:[#allocation6 + $0x34] sm:$0xf]
    %v4798 = vld [vmem:[#allocation6 + $0x38] sm:$0xf]
    %v4799 = vld [vmem:[#allocation6 + $0x3c] sm:$0xf]
    %v4800 = vpack.c.bf16 %v4760, %v4759
    %v4801 = vpack.c.bf16 %v4762, %v4761
    %v4802 = vpack.c.bf16 %v4764, %v4763
    %v4803 = vpack.c.bf16 %v4766, %v4765
    %v4804 = vpack.c.bf16 %v4768, %v4767
    %v4805 = vpack.c.bf16 %v4770, %v4769
    %v4806 = vpack.c.bf16 %v4772, %v4771
    %v4807 = vpack.c.bf16 %v4774, %v4773
    %v4808 = vld [vmem:[#allocation14 + $0xf] sm:$0x1]
    %v4810 = vlaneseq
    %v4811 = vshrl.u32 %v4810, 7
    %v4812 = vsub.s32 0, %v4811
    %v4813 = vrot.slane %v4808, %v4812
    %v4831 = vunpack.c.l.b16 %v4784
    %v4832 = vunpack.c.l.b16 %v4785
    %v4833 = vunpack.c.l.b16 %v4786
    %v4834 = vunpack.c.l.b16 %v4787
    %v4835 = vunpack.c.l.b16 %v4788
    %v4836 = vunpack.c.l.b16 %v4789
    %v4837 = vunpack.c.l.b16 %v4790
    %v4838 = vunpack.c.l.b16 %v4791
    %v4839 = vunpack.c.l.b16 %v4792
    %v4840 = vunpack.c.l.b16 %v4793
    %v4841 = vunpack.c.l.b16 %v4794
    %v4842 = vunpack.c.l.b16 %v4795
    %v4843 = vunpack.c.l.b16 %v4796
    %v4844 = vunpack.c.l.b16 %v4797
    %v4845 = vunpack.c.l.b16 %v4798
    %v4846 = vunpack.c.l.b16 %v4799
    %v4847 = vpack.c.b16 %v4832, %v4831
    %v4848 = vpack.c.b16 %v4834, %v4833
    %v4849 = vpack.c.b16 %v4836, %v4835
    %v4850 = vpack.c.b16 %v4838, %v4837
    %v4851 = vpack.c.b16 %v4840, %v4839
    %v4852 = vpack.c.b16 %v4842, %v4841
    %v4853 = vpack.c.b16 %v4844, %v4843
    %v4854 = vpack.c.b16 %v4846, %v4845
    %4863 = vmatprep.subr.bf16.mxu0 0
    %4864 = vmatpush1.bf16.msra.mxu0 %v4854
    %4865 = vmatprep.subr.bf16.mxu0 0
    %4866 = vmatpush1.bf16.msra.mxu0 %v4853
    %4867 = vmatprep.subr.bf16.mxu0 0
    %4868 = vmatpush1.bf16.msra.mxu0 %v4852
    %4869 = vmatprep.subr.bf16.mxu0 0
    %4870 = vmatpush1.bf16.msra.mxu0 %v4851
    %4871 = vmatprep.subr.bf16.mxu0 0
    %4872 = vmatpush1.bf16.msra.mxu0 %v4850
    %4873 = vmatprep.subr.bf16.mxu0 0
    %4874 = vmatpush1.bf16.msra.mxu0 %v4849
    %4875 = vmatprep.subr.bf16.mxu0 0
    %4876 = vmatpush1.bf16.msra.mxu0 %v4848
    %4877 = vmatprep.subr.bf16.mxu0 0
    %4878 = vmatpush1.bf16.msra.mxu0 %v4847
    %4879 = vmatprep.subr.bf16.mxu0 0
    %4880 = vmatpush2.bf16.msra.mxu0 0
    %4881 = vmatprep.subr.bf16.mxu0 0
    %4882 = vmatpush2.bf16.msra.mxu0 0
    %4883 = vmatprep.subr.bf16.mxu0 0
    %4884 = vmatpush2.bf16.msra.mxu0 0
    %4885 = vmatprep.subr.bf16.mxu0 0
    %4886 = vmatpush2.bf16.msra.mxu0 0
    %4887 = vmatprep.subr.bf16.mxu0 0
    %4888 = vmatpush2.bf16.msra.mxu0 0
    %4889 = vmatprep.subr.bf16.mxu0 0
    %4890 = vmatpush2.bf16.msra.mxu0 0
    %4891 = vmatprep.subr.bf16.mxu0 0
    %4892 = vmatpush2.bf16.msra.mxu0 0
    %4893 = vmatprep.subr.bf16.mxu0 0
    %4894 = vmatpush2.bf16.msra.mxu0 0
    %4895 = vmatprep.mubr.bf16.mxu0 0
    %4896 = vmatmul.mubr.bf16.gmra.mxu0 %v4800
    %v4897 = vpop.f32.mrf.mxu0
    %v4898 = vadd.f32 %v4813, %v4897
    %v4899 = vpop.f32.mrf.mxu0
    %v4900 = vpop.f32.mrf.mxu0
    %v4901 = vadd.f32 %v4813, %v4900
    %v4902 = vpop.f32.mrf.mxu0
    %4903 = vmatprep.mubr.bf16.mxu0 0
    %4904 = vmatmul.mubr.bf16.gmra.mxu0 %v4801
    %v4905 = vpop.f32.mrf.mxu0
    %v4906 = vadd.f32 %v4813, %v4905
    %v4907 = vpop.f32.mrf.mxu0
    %v4908 = vpop.f32.mrf.mxu0
    %v4909 = vadd.f32 %v4813, %v4908
    %v4910 = vpop.f32.mrf.mxu0
    %4911 = vmatprep.mubr.bf16.mxu0 0
    %4912 = vmatmul.mubr.bf16.gmra.mxu0 %v4802
    %v4913 = vpop.f32.mrf.mxu0
    %v4914 = vadd.f32 %v4813, %v4913
    %v4915 = vpop.f32.mrf.mxu0
    %v4916 = vpop.f32.mrf.mxu0
    %v4917 = vadd.f32 %v4813, %v4916
    %v4918 = vpop.f32.mrf.mxu0
    %4919 = vmatprep.mubr.bf16.mxu0 0
    %4920 = vmatmul.mubr.bf16.gmra.mxu0 %v4803
    %v4921 = vpop.f32.mrf.mxu0
    %v4922 = vadd.f32 %v4813, %v4921
    %v4923 = vpop.f32.mrf.mxu0
    %v4924 = vpop.f32.mrf.mxu0
    %v4925 = vadd.f32 %v4813, %v4924
    %v4926 = vpop.f32.mrf.mxu0
    %4927 = vmatprep.mubr.bf16.mxu0 0
    %4928 = vmatmul.mubr.bf16.gmra.mxu0 %v4804
    %v4929 = vpop.f32.mrf.mxu0
    %v4930 = vadd.f32 %v4813, %v4929
    %v4931 = vpop.f32.mrf.mxu0
    %v4932 = vpop.f32.mrf.mxu0
    %v4933 = vadd.f32 %v4813, %v4932
    %v4934 = vpop.f32.mrf.mxu0
    %4935 = vmatprep.mubr.bf16.mxu0 0
    %4936 = vmatmul.mubr.bf16.gmra.mxu0 %v4805
    %v4937 = vpop.f32.mrf.mxu0
    %v4938 = vadd.f32 %v4813, %v4937
    %v4939 = vpop.f32.mrf.mxu0
    %v4940 = vpop.f32.mrf.mxu0
    %v4941 = vadd.f32 %v4813, %v4940
    %v4942 = vpop.f32.mrf.mxu0
    %4943 = vmatprep.mubr.bf16.mxu0 0
    %4944 = vmatmul.mubr.bf16.gmra.mxu0 %v4806
    %v4945 = vpop.f32.mrf.mxu0
    %v4946 = vadd.f32 %v4813, %v4945
    %v4947 = vpop.f32.mrf.mxu0
    %v4948 = vpop.f32.mrf.mxu0
    %v4949 = vadd.f32 %v4813, %v4948
    %v4950 = vpop.f32.mrf.mxu0
    %4951 = vmatprep.mubr.bf16.mxu0 0
    %4952 = vmatmul.mubr.bf16.gmra.mxu0 %v4807
    %v4953 = vpop.f32.mrf.mxu0
    %v4954 = vadd.f32 %v4813, %v4953
    %v4955 = vpop.f32.mrf.mxu0
    %v4956 = vpop.f32.mrf.mxu0
    %v4957 = vadd.f32 %v4813, %v4956
    %v4958 = vpop.f32.mrf.mxu0
    %4959 = vdwg.mxu0
    %v4960 = vmax.f32 %v4898, 0.0
    %v4961 = vmax.f32 %v4901, 0.0
    %v4962 = vmax.f32 %v4906, 0.0
    %v4963 = vmax.f32 %v4909, 0.0
    %v4964 = vmax.f32 %v4914, 0.0
    %v4965 = vmax.f32 %v4917, 0.0
    %v4966 = vmax.f32 %v4922, 0.0
    %v4967 = vmax.f32 %v4925, 0.0
    %v4968 = vmax.f32 %v4930, 0.0
    %v4969 = vmax.f32 %v4933, 0.0
    %v4970 = vmax.f32 %v4938, 0.0
    %v4971 = vmax.f32 %v4941, 0.0
    %v4972 = vmax.f32 %v4946, 0.0
    %v4973 = vmax.f32 %v4949, 0.0
    %v4974 = vmax.f32 %v4954, 0.0
    %v4975 = vmax.f32 %v4957, 0.0
    %s4976 = scalar_lea.vmem [#allocation6], 64
    %v4977 = vld [vmem:[%s4976] sm:$0xf]
    %v4978 = vld [vmem:[%s4976 + $0x4] sm:$0xf]
    %v4979 = vld [vmem:[%s4976 + $0x8] sm:$0xf]
    %v4980 = vld [vmem:[%s4976 + $0xc] sm:$0xf]
    %v4981 = vld [vmem:[%s4976 + $0x10] sm:$0xf]
    %v4982 = vld [vmem:[%s4976 + $0x14] sm:$0xf]
    %v4983 = vld [vmem:[%s4976 + $0x18] sm:$0xf]
    %v4984 = vld [vmem:[%s4976 + $0x1c] sm:$0xf]
    %v4985 = vld [vmem:[%s4976 + $0x20] sm:$0xf]
    %v4986 = vld [vmem:[%s4976 + $0x24] sm:$0xf]
    %v4987 = vld [vmem:[%s4976 + $0x28] sm:$0xf]
    %v4988 = vld [vmem:[%s4976 + $0x2c] sm:$0xf]
    %v4989 = vld [vmem:[%s4976 + $0x30] sm:$0xf]
    %v4990 = vld [vmem:[%s4976 + $0x34] sm:$0xf]
    %v4991 = vld [vmem:[%s4976 + $0x38] sm:$0xf]
    %v4992 = vld [vmem:[%s4976 + $0x3c] sm:$0xf]
    %v4993 = vpack.c.bf16 %v4961, %v4960
    %v4994 = vpack.c.bf16 %v4963, %v4962
    %v4995 = vpack.c.bf16 %v4965, %v4964
    %v4996 = vpack.c.bf16 %v4967, %v4966
    %v4997 = vpack.c.bf16 %v4969, %v4968
    %v4998 = vpack.c.bf16 %v4971, %v4970
    %v4999 = vpack.c.bf16 %v4973, %v4972
    %v5000 = vpack.c.bf16 %v4975, %v4974
    %v5001 = vld [vmem:[#allocation14 + $0x10] sm:$0x1]
    %v5003 = vlaneseq
    %v5004 = vshrl.u32 %v5003, 7
    %v5005 = vsub.s32 0, %v5004
    %v5006 = vrot.slane %v5001, %v5005
    %v5024 = vunpack.c.l.b16 %v4977
    %v5025 = vunpack.c.l.b16 %v4978
    %v5026 = vunpack.c.l.b16 %v4979
    %v5027 = vunpack.c.l.b16 %v4980
    %v5028 = vunpack.c.l.b16 %v4981
    %v5029 = vunpack.c.l.b16 %v4982
    %v5030 = vunpack.c.l.b16 %v4983
    %v5031 = vunpack.c.l.b16 %v4984
    %v5032 = vunpack.c.l.b16 %v4985
    %v5033 = vunpack.c.l.b16 %v4986
    %v5034 = vunpack.c.l.b16 %v4987
    %v5035 = vunpack.c.l.b16 %v4988
    %v5036 = vunpack.c.l.b16 %v4989
    %v5037 = vunpack.c.l.b16 %v4990
    %v5038 = vunpack.c.l.b16 %v4991
    %v5039 = vunpack.c.l.b16 %v4992
    %v5040 = vpack.c.b16 %v5025, %v5024
    %v5041 = vpack.c.b16 %v5027, %v5026
    %v5042 = vpack.c.b16 %v5029, %v5028
    %v5043 = vpack.c.b16 %v5031, %v5030
    %v5044 = vpack.c.b16 %v5033, %v5032
    %v5045 = vpack.c.b16 %v5035, %v5034
    %v5046 = vpack.c.b16 %v5037, %v5036
    %v5047 = vpack.c.b16 %v5039, %v5038
    %5056 = vmatprep.subr.bf16.mxu0 0
    %5057 = vmatpush1.bf16.msra.mxu0 %v5047
    %5058 = vmatprep.subr.bf16.mxu0 0
    %5059 = vmatpush1.bf16.msra.mxu0 %v5046
    %5060 = vmatprep.subr.bf16.mxu0 0
    %5061 = vmatpush1.bf16.msra.mxu0 %v5045
    %5062 = vmatprep.subr.bf16.mxu0 0
    %5063 = vmatpush1.bf16.msra.mxu0 %v5044
    %5064 = vmatprep.subr.bf16.mxu0 0
    %5065 = vmatpush1.bf16.msra.mxu0 %v5043
    %5066 = vmatprep.subr.bf16.mxu0 0
    %5067 = vmatpush1.bf16.msra.mxu0 %v5042
    %5068 = vmatprep.subr.bf16.mxu0 0
    %5069 = vmatpush1.bf16.msra.mxu0 %v5041
    %5070 = vmatprep.subr.bf16.mxu0 0
    %5071 = vmatpush1.bf16.msra.mxu0 %v5040
    %5072 = vmatprep.subr.bf16.mxu0 0
    %5073 = vmatpush2.bf16.msra.mxu0 0
    %5074 = vmatprep.subr.bf16.mxu0 0
    %5075 = vmatpush2.bf16.msra.mxu0 0
    %5076 = vmatprep.subr.bf16.mxu0 0
    %5077 = vmatpush2.bf16.msra.mxu0 0
    %5078 = vmatprep.subr.bf16.mxu0 0
    %5079 = vmatpush2.bf16.msra.mxu0 0
    %5080 = vmatprep.subr.bf16.mxu0 0
    %5081 = vmatpush2.bf16.msra.mxu0 0
    %5082 = vmatprep.subr.bf16.mxu0 0
    %5083 = vmatpush2.bf16.msra.mxu0 0
    %5084 = vmatprep.subr.bf16.mxu0 0
    %5085 = vmatpush2.bf16.msra.mxu0 0
    %5086 = vmatprep.subr.bf16.mxu0 0
    %5087 = vmatpush2.bf16.msra.mxu0 0
    %5088 = vmatprep.mubr.bf16.mxu0 0
    %5089 = vmatmul.mubr.bf16.gmra.mxu0 %v4993
    %v5090 = vpop.f32.mrf.mxu0
    %v5091 = vadd.f32 %v5006, %v5090
    %v5092 = vpop.f32.mrf.mxu0
    %v5093 = vpop.f32.mrf.mxu0
    %v5094 = vadd.f32 %v5006, %v5093
    %v5095 = vpop.f32.mrf.mxu0
    %5096 = vmatprep.mubr.bf16.mxu0 0
    %5097 = vmatmul.mubr.bf16.gmra.mxu0 %v4994
    %v5098 = vpop.f32.mrf.mxu0
    %v5099 = vadd.f32 %v5006, %v5098
    %v5100 = vpop.f32.mrf.mxu0
    %v5101 = vpop.f32.mrf.mxu0
    %v5102 = vadd.f32 %v5006, %v5101
    %v5103 = vpop.f32.mrf.mxu0
    %5104 = vmatprep.mubr.bf16.mxu0 0
    %5105 = vmatmul.mubr.bf16.gmra.mxu0 %v4995
    %v5106 = vpop.f32.mrf.mxu0
    %v5107 = vadd.f32 %v5006, %v5106
    %v5108 = vpop.f32.mrf.mxu0
    %v5109 = vpop.f32.mrf.mxu0
    %v5110 = vadd.f32 %v5006, %v5109
    %v5111 = vpop.f32.mrf.mxu0
    %5112 = vmatprep.mubr.bf16.mxu0 0
    %5113 = vmatmul.mubr.bf16.gmra.mxu0 %v4996
    %v5114 = vpop.f32.mrf.mxu0
    %v5115 = vadd.f32 %v5006, %v5114
    %v5116 = vpop.f32.mrf.mxu0
    %v5117 = vpop.f32.mrf.mxu0
    %v5118 = vadd.f32 %v5006, %v5117
    %v5119 = vpop.f32.mrf.mxu0
    %5120 = vmatprep.mubr.bf16.mxu0 0
    %5121 = vmatmul.mubr.bf16.gmra.mxu0 %v4997
    %v5122 = vpop.f32.mrf.mxu0
    %v5123 = vadd.f32 %v5006, %v5122
    %v5124 = vpop.f32.mrf.mxu0
    %v5125 = vpop.f32.mrf.mxu0
    %v5126 = vadd.f32 %v5006, %v5125
    %v5127 = vpop.f32.mrf.mxu0
    %5128 = vmatprep.mubr.bf16.mxu0 0
    %5129 = vmatmul.mubr.bf16.gmra.mxu0 %v4998
    %v5130 = vpop.f32.mrf.mxu0
    %v5131 = vadd.f32 %v5006, %v5130
    %v5132 = vpop.f32.mrf.mxu0
    %v5133 = vpop.f32.mrf.mxu0
    %v5134 = vadd.f32 %v5006, %v5133
    %v5135 = vpop.f32.mrf.mxu0
    %5136 = vmatprep.mubr.bf16.mxu0 0
    %5137 = vmatmul.mubr.bf16.gmra.mxu0 %v4999
    %v5138 = vpop.f32.mrf.mxu0
    %v5139 = vadd.f32 %v5006, %v5138
    %v5140 = vpop.f32.mrf.mxu0
    %v5141 = vpop.f32.mrf.mxu0
    %v5142 = vadd.f32 %v5006, %v5141
    %v5143 = vpop.f32.mrf.mxu0
    %5144 = vmatprep.mubr.bf16.mxu0 0
    %5145 = vmatmul.mubr.bf16.gmra.mxu0 %v5000
    %v5146 = vpop.f32.mrf.mxu0
    %v5147 = vadd.f32 %v5006, %v5146
    %v5148 = vpop.f32.mrf.mxu0
    %v5149 = vpop.f32.mrf.mxu0
    %v5150 = vadd.f32 %v5006, %v5149
    %v5151 = vpop.f32.mrf.mxu0
    %5152 = vdwg.mxu0
    %v5153 = vmax.f32 %v5091, 0.0
    %v5154 = vmax.f32 %v5094, 0.0
    %v5155 = vmax.f32 %v5099, 0.0
    %v5156 = vmax.f32 %v5102, 0.0
    %v5157 = vmax.f32 %v5107, 0.0
    %v5158 = vmax.f32 %v5110, 0.0
    %v5159 = vmax.f32 %v5115, 0.0
    %v5160 = vmax.f32 %v5118, 0.0
    %v5161 = vmax.f32 %v5123, 0.0
    %v5162 = vmax.f32 %v5126, 0.0
    %v5163 = vmax.f32 %v5131, 0.0
    %v5164 = vmax.f32 %v5134, 0.0
    %v5165 = vmax.f32 %v5139, 0.0
    %v5166 = vmax.f32 %v5142, 0.0
    %v5167 = vmax.f32 %v5147, 0.0
    %v5168 = vmax.f32 %v5150, 0.0
    %s5169 = scalar_lea.vmem [#allocation6], 128
    %v5170 = vld [vmem:[%s5169] sm:$0xf]
    %v5171 = vld [vmem:[%s5169 + $0x4] sm:$0xf]
    %v5172 = vld [vmem:[%s5169 + $0x8] sm:$0xf]
    %v5173 = vld [vmem:[%s5169 + $0xc] sm:$0xf]
    %v5174 = vld [vmem:[%s5169 + $0x10] sm:$0xf]
    %v5175 = vld [vmem:[%s5169 + $0x14] sm:$0xf]
    %v5176 = vld [vmem:[%s5169 + $0x18] sm:$0xf]
    %v5177 = vld [vmem:[%s5169 + $0x1c] sm:$0xf]
    %v5178 = vld [vmem:[%s5169 + $0x20] sm:$0xf]
    %v5179 = vld [vmem:[%s5169 + $0x24] sm:$0xf]
    %v5180 = vld [vmem:[%s5169 + $0x28] sm:$0xf]
    %v5181 = vld [vmem:[%s5169 + $0x2c] sm:$0xf]
    %v5182 = vld [vmem:[%s5169 + $0x30] sm:$0xf]
    %v5183 = vld [vmem:[%s5169 + $0x34] sm:$0xf]
    %v5184 = vld [vmem:[%s5169 + $0x38] sm:$0xf]
    %v5185 = vld [vmem:[%s5169 + $0x3c] sm:$0xf]
    %v5186 = vpack.c.bf16 %v5154, %v5153
    %v5187 = vpack.c.bf16 %v5156, %v5155
    %v5188 = vpack.c.bf16 %v5158, %v5157
    %v5189 = vpack.c.bf16 %v5160, %v5159
    %v5190 = vpack.c.bf16 %v5162, %v5161
    %v5191 = vpack.c.bf16 %v5164, %v5163
    %v5192 = vpack.c.bf16 %v5166, %v5165
    %v5193 = vpack.c.bf16 %v5168, %v5167
    %v5194 = vld [vmem:[#allocation14 + $0x11] sm:$0x1]
    %v5196 = vlaneseq
    %v5197 = vshrl.u32 %v5196, 7
    %v5198 = vsub.s32 0, %v5197
    %v5199 = vrot.slane %v5194, %v5198
    %v5217 = vunpack.c.l.b16 %v5170
    %v5218 = vunpack.c.l.b16 %v5171
    %v5219 = vunpack.c.l.b16 %v5172
    %v5220 = vunpack.c.l.b16 %v5173
    %v5221 = vunpack.c.l.b16 %v5174
    %v5222 = vunpack.c.l.b16 %v5175
    %v5223 = vunpack.c.l.b16 %v5176
    %v5224 = vunpack.c.l.b16 %v5177
    %v5225 = vunpack.c.l.b16 %v5178
    %v5226 = vunpack.c.l.b16 %v5179
    %v5227 = vunpack.c.l.b16 %v5180
    %v5228 = vunpack.c.l.b16 %v5181
    %v5229 = vunpack.c.l.b16 %v5182
    %v5230 = vunpack.c.l.b16 %v5183
    %v5231 = vunpack.c.l.b16 %v5184
    %v5232 = vunpack.c.l.b16 %v5185
    %v5233 = vpack.c.b16 %v5218, %v5217
    %v5234 = vpack.c.b16 %v5220, %v5219
    %v5235 = vpack.c.b16 %v5222, %v5221
    %v5236 = vpack.c.b16 %v5224, %v5223
    %v5237 = vpack.c.b16 %v5226, %v5225
    %v5238 = vpack.c.b16 %v5228, %v5227
    %v5239 = vpack.c.b16 %v5230, %v5229
    %v5240 = vpack.c.b16 %v5232, %v5231
    %5249 = vmatprep.subr.bf16.mxu0 0
    %5250 = vmatpush1.bf16.msra.mxu0 %v5240
    %5251 = vmatprep.subr.bf16.mxu0 0
    %5252 = vmatpush1.bf16.msra.mxu0 %v5239
    %5253 = vmatprep.subr.bf16.mxu0 0
    %5254 = vmatpush1.bf16.msra.mxu0 %v5238
    %5255 = vmatprep.subr.bf16.mxu0 0
    %5256 = vmatpush1.bf16.msra.mxu0 %v5237
    %5257 = vmatprep.subr.bf16.mxu0 0
    %5258 = vmatpush1.bf16.msra.mxu0 %v5236
    %5259 = vmatprep.subr.bf16.mxu0 0
    %5260 = vmatpush1.bf16.msra.mxu0 %v5235
    %5261 = vmatprep.subr.bf16.mxu0 0
    %5262 = vmatpush1.bf16.msra.mxu0 %v5234
    %5263 = vmatprep.subr.bf16.mxu0 0
    %5264 = vmatpush1.bf16.msra.mxu0 %v5233
    %5265 = vmatprep.subr.bf16.mxu0 0
    %5266 = vmatpush2.bf16.msra.mxu0 0
    %5267 = vmatprep.subr.bf16.mxu0 0
    %5268 = vmatpush2.bf16.msra.mxu0 0
    %5269 = vmatprep.subr.bf16.mxu0 0
    %5270 = vmatpush2.bf16.msra.mxu0 0
    %5271 = vmatprep.subr.bf16.mxu0 0
    %5272 = vmatpush2.bf16.msra.mxu0 0
    %5273 = vmatprep.subr.bf16.mxu0 0
    %5274 = vmatpush2.bf16.msra.mxu0 0
    %5275 = vmatprep.subr.bf16.mxu0 0
    %5276 = vmatpush2.bf16.msra.mxu0 0
    %5277 = vmatprep.subr.bf16.mxu0 0
    %5278 = vmatpush2.bf16.msra.mxu0 0
    %5279 = vmatprep.subr.bf16.mxu0 0
    %5280 = vmatpush2.bf16.msra.mxu0 0
    %5281 = vmatprep.mubr.bf16.mxu0 0
    %5282 = vmatmul.mubr.bf16.gmra.mxu0 %v5186
    %v5283 = vpop.f32.mrf.mxu0
    %v5284 = vadd.f32 %v5199, %v5283
    %v5285 = vpop.f32.mrf.mxu0
    %v5286 = vpop.f32.mrf.mxu0
    %v5287 = vadd.f32 %v5199, %v5286
    %v5288 = vpop.f32.mrf.mxu0
    %5289 = vmatprep.mubr.bf16.mxu0 0
    %5290 = vmatmul.mubr.bf16.gmra.mxu0 %v5187
    %v5291 = vpop.f32.mrf.mxu0
    %v5292 = vadd.f32 %v5199, %v5291
    %v5293 = vpop.f32.mrf.mxu0
    %v5294 = vpop.f32.mrf.mxu0
    %v5295 = vadd.f32 %v5199, %v5294
    %v5296 = vpop.f32.mrf.mxu0
    %5297 = vmatprep.mubr.bf16.mxu0 0
    %5298 = vmatmul.mubr.bf16.gmra.mxu0 %v5188
    %v5299 = vpop.f32.mrf.mxu0
    %v5300 = vadd.f32 %v5199, %v5299
    %v5301 = vpop.f32.mrf.mxu0
    %v5302 = vpop.f32.mrf.mxu0
    %v5303 = vadd.f32 %v5199, %v5302
    %v5304 = vpop.f32.mrf.mxu0
    %5305 = vmatprep.mubr.bf16.mxu0 0
    %5306 = vmatmul.mubr.bf16.gmra.mxu0 %v5189
    %v5307 = vpop.f32.mrf.mxu0
    %v5308 = vadd.f32 %v5199, %v5307
    %v5309 = vpop.f32.mrf.mxu0
    %v5310 = vpop.f32.mrf.mxu0
    %v5311 = vadd.f32 %v5199, %v5310
    %v5312 = vpop.f32.mrf.mxu0
    %5313 = vmatprep.mubr.bf16.mxu0 0
    %5314 = vmatmul.mubr.bf16.gmra.mxu0 %v5190
    %v5315 = vpop.f32.mrf.mxu0
    %v5316 = vadd.f32 %v5199, %v5315
    %v5317 = vpop.f32.mrf.mxu0
    %v5318 = vpop.f32.mrf.mxu0
    %v5319 = vadd.f32 %v5199, %v5318
    %v5320 = vpop.f32.mrf.mxu0
    %5321 = vmatprep.mubr.bf16.mxu0 0
    %5322 = vmatmul.mubr.bf16.gmra.mxu0 %v5191
    %v5323 = vpop.f32.mrf.mxu0
    %v5324 = vadd.f32 %v5199, %v5323
    %v5325 = vpop.f32.mrf.mxu0
    %v5326 = vpop.f32.mrf.mxu0
    %v5327 = vadd.f32 %v5199, %v5326
    %v5328 = vpop.f32.mrf.mxu0
    %5329 = vmatprep.mubr.bf16.mxu0 0
    %5330 = vmatmul.mubr.bf16.gmra.mxu0 %v5192
    %v5331 = vpop.f32.mrf.mxu0
    %v5332 = vadd.f32 %v5199, %v5331
    %v5333 = vpop.f32.mrf.mxu0
    %v5334 = vpop.f32.mrf.mxu0
    %v5335 = vadd.f32 %v5199, %v5334
    %v5336 = vpop.f32.mrf.mxu0
    %5337 = vmatprep.mubr.bf16.mxu0 0
    %5338 = vmatmul.mubr.bf16.gmra.mxu0 %v5193
    %v5339 = vpop.f32.mrf.mxu0
    %v5340 = vadd.f32 %v5199, %v5339
    %v5341 = vpop.f32.mrf.mxu0
    %v5342 = vpop.f32.mrf.mxu0
    %v5343 = vadd.f32 %v5199, %v5342
    %v5344 = vpop.f32.mrf.mxu0
    %5345 = vdwg.mxu0
    %v5346 = vmax.f32 %v5284, 0.0
    %v5347 = vmax.f32 %v5287, 0.0
    %v5348 = vmax.f32 %v5292, 0.0
    %v5349 = vmax.f32 %v5295, 0.0
    %v5350 = vmax.f32 %v5300, 0.0
    %v5351 = vmax.f32 %v5303, 0.0
    %v5352 = vmax.f32 %v5308, 0.0
    %v5353 = vmax.f32 %v5311, 0.0
    %v5354 = vmax.f32 %v5316, 0.0
    %v5355 = vmax.f32 %v5319, 0.0
    %v5356 = vmax.f32 %v5324, 0.0
    %v5357 = vmax.f32 %v5327, 0.0
    %v5358 = vmax.f32 %v5332, 0.0
    %v5359 = vmax.f32 %v5335, 0.0
    %v5360 = vmax.f32 %v5340, 0.0
    %v5361 = vmax.f32 %v5343, 0.0
    %s5362 = scalar_lea.vmem [#allocation6], 192
    %v5363 = vld [vmem:[%s5362] sm:$0xf]
    %v5364 = vld [vmem:[%s5362 + $0x4] sm:$0xf]
    %v5365 = vld [vmem:[%s5362 + $0x8] sm:$0xf]
    %v5366 = vld [vmem:[%s5362 + $0xc] sm:$0xf]
    %v5367 = vld [vmem:[%s5362 + $0x10] sm:$0xf]
    %v5368 = vld [vmem:[%s5362 + $0x14] sm:$0xf]
    %v5369 = vld [vmem:[%s5362 + $0x18] sm:$0xf]
    %v5370 = vld [vmem:[%s5362 + $0x1c] sm:$0xf]
    %v5371 = vld [vmem:[%s5362 + $0x20] sm:$0xf]
    %v5372 = vld [vmem:[%s5362 + $0x24] sm:$0xf]
    %v5373 = vld [vmem:[%s5362 + $0x28] sm:$0xf]
    %v5374 = vld [vmem:[%s5362 + $0x2c] sm:$0xf]
    %v5375 = vld [vmem:[%s5362 + $0x30] sm:$0xf]
    %v5376 = vld [vmem:[%s5362 + $0x34] sm:$0xf]
    %v5377 = vld [vmem:[%s5362 + $0x38] sm:$0xf]
    %v5378 = vld [vmem:[%s5362 + $0x3c] sm:$0xf]
    %v5379 = vpack.c.bf16 %v5347, %v5346
    %v5380 = vpack.c.bf16 %v5349, %v5348
    %v5381 = vpack.c.bf16 %v5351, %v5350
    %v5382 = vpack.c.bf16 %v5353, %v5352
    %v5383 = vpack.c.bf16 %v5355, %v5354
    %v5384 = vpack.c.bf16 %v5357, %v5356
    %v5385 = vpack.c.bf16 %v5359, %v5358
    %v5386 = vpack.c.bf16 %v5361, %v5360
    %v5387 = vld [vmem:[#allocation14 + $0x12] sm:$0x1]
    %v5389 = vlaneseq
    %v5390 = vshrl.u32 %v5389, 7
    %v5391 = vsub.s32 0, %v5390
    %v5392 = vrot.slane %v5387, %v5391
    %v5410 = vunpack.c.l.b16 %v5363
    %v5411 = vunpack.c.l.b16 %v5364
    %v5412 = vunpack.c.l.b16 %v5365
    %v5413 = vunpack.c.l.b16 %v5366
    %v5414 = vunpack.c.l.b16 %v5367
    %v5415 = vunpack.c.l.b16 %v5368
    %v5416 = vunpack.c.l.b16 %v5369
    %v5417 = vunpack.c.l.b16 %v5370
    %v5418 = vunpack.c.l.b16 %v5371
    %v5419 = vunpack.c.l.b16 %v5372
    %v5420 = vunpack.c.l.b16 %v5373
    %v5421 = vunpack.c.l.b16 %v5374
    %v5422 = vunpack.c.l.b16 %v5375
    %v5423 = vunpack.c.l.b16 %v5376
    %v5424 = vunpack.c.l.b16 %v5377
    %v5425 = vunpack.c.l.b16 %v5378
    %v5426 = vpack.c.b16 %v5411, %v5410
    %v5427 = vpack.c.b16 %v5413, %v5412
    %v5428 = vpack.c.b16 %v5415, %v5414
    %v5429 = vpack.c.b16 %v5417, %v5416
    %v5430 = vpack.c.b16 %v5419, %v5418
    %v5431 = vpack.c.b16 %v5421, %v5420
    %v5432 = vpack.c.b16 %v5423, %v5422
    %v5433 = vpack.c.b16 %v5425, %v5424
    %5442 = vmatprep.subr.bf16.mxu0 0
    %5443 = vmatpush1.bf16.msra.mxu0 %v5433
    %5444 = vmatprep.subr.bf16.mxu0 0
    %5445 = vmatpush1.bf16.msra.mxu0 %v5432
    %5446 = vmatprep.subr.bf16.mxu0 0
    %5447 = vmatpush1.bf16.msra.mxu0 %v5431
    %5448 = vmatprep.subr.bf16.mxu0 0
    %5449 = vmatpush1.bf16.msra.mxu0 %v5430
    %5450 = vmatprep.subr.bf16.mxu0 0
    %5451 = vmatpush1.bf16.msra.mxu0 %v5429
    %5452 = vmatprep.subr.bf16.mxu0 0
    %5453 = vmatpush1.bf16.msra.mxu0 %v5428
    %5454 = vmatprep.subr.bf16.mxu0 0
    %5455 = vmatpush1.bf16.msra.mxu0 %v5427
    %5456 = vmatprep.subr.bf16.mxu0 0
    %5457 = vmatpush1.bf16.msra.mxu0 %v5426
    %5458 = vmatprep.subr.bf16.mxu0 0
    %5459 = vmatpush2.bf16.msra.mxu0 0
    %5460 = vmatprep.subr.bf16.mxu0 0
    %5461 = vmatpush2.bf16.msra.mxu0 0
    %5462 = vmatprep.subr.bf16.mxu0 0
    %5463 = vmatpush2.bf16.msra.mxu0 0
    %5464 = vmatprep.subr.bf16.mxu0 0
    %5465 = vmatpush2.bf16.msra.mxu0 0
    %5466 = vmatprep.subr.bf16.mxu0 0
    %5467 = vmatpush2.bf16.msra.mxu0 0
    %5468 = vmatprep.subr.bf16.mxu0 0
    %5469 = vmatpush2.bf16.msra.mxu0 0
    %5470 = vmatprep.subr.bf16.mxu0 0
    %5471 = vmatpush2.bf16.msra.mxu0 0
    %5472 = vmatprep.subr.bf16.mxu0 0
    %5473 = vmatpush2.bf16.msra.mxu0 0
    %5474 = vmatprep.mubr.bf16.mxu0 0
    %5475 = vmatmul.mubr.bf16.gmra.mxu0 %v5379
    %v5476 = vpop.f32.mrf.mxu0
    %v5477 = vadd.f32 %v5392, %v5476
    %v5478 = vpop.f32.mrf.mxu0
    %v5479 = vpop.f32.mrf.mxu0
    %v5480 = vadd.f32 %v5392, %v5479
    %v5481 = vpop.f32.mrf.mxu0
    %5482 = vmatprep.mubr.bf16.mxu0 0
    %5483 = vmatmul.mubr.bf16.gmra.mxu0 %v5380
    %v5484 = vpop.f32.mrf.mxu0
    %v5485 = vadd.f32 %v5392, %v5484
    %v5486 = vpop.f32.mrf.mxu0
    %v5487 = vpop.f32.mrf.mxu0
    %v5488 = vadd.f32 %v5392, %v5487
    %v5489 = vpop.f32.mrf.mxu0
    %5490 = vmatprep.mubr.bf16.mxu0 0
    %5491 = vmatmul.mubr.bf16.gmra.mxu0 %v5381
    %v5492 = vpop.f32.mrf.mxu0
    %v5493 = vadd.f32 %v5392, %v5492
    %v5494 = vpop.f32.mrf.mxu0
    %v5495 = vpop.f32.mrf.mxu0
    %v5496 = vadd.f32 %v5392, %v5495
    %v5497 = vpop.f32.mrf.mxu0
    %5498 = vmatprep.mubr.bf16.mxu0 0
    %5499 = vmatmul.mubr.bf16.gmra.mxu0 %v5382
    %v5500 = vpop.f32.mrf.mxu0
    %v5501 = vadd.f32 %v5392, %v5500
    %v5502 = vpop.f32.mrf.mxu0
    %v5503 = vpop.f32.mrf.mxu0
    %v5504 = vadd.f32 %v5392, %v5503
    %v5505 = vpop.f32.mrf.mxu0
    %5506 = vmatprep.mubr.bf16.mxu0 0
    %5507 = vmatmul.mubr.bf16.gmra.mxu0 %v5383
    %v5508 = vpop.f32.mrf.mxu0
    %v5509 = vadd.f32 %v5392, %v5508
    %v5510 = vpop.f32.mrf.mxu0
    %v5511 = vpop.f32.mrf.mxu0
    %v5512 = vadd.f32 %v5392, %v5511
    %v5513 = vpop.f32.mrf.mxu0
    %5514 = vmatprep.mubr.bf16.mxu0 0
    %5515 = vmatmul.mubr.bf16.gmra.mxu0 %v5384
    %v5516 = vpop.f32.mrf.mxu0
    %v5517 = vadd.f32 %v5392, %v5516
    %v5518 = vpop.f32.mrf.mxu0
    %v5519 = vpop.f32.mrf.mxu0
    %v5520 = vadd.f32 %v5392, %v5519
    %v5521 = vpop.f32.mrf.mxu0
    %5522 = vmatprep.mubr.bf16.mxu0 0
    %5523 = vmatmul.mubr.bf16.gmra.mxu0 %v5385
    %v5524 = vpop.f32.mrf.mxu0
    %v5525 = vadd.f32 %v5392, %v5524
    %v5526 = vpop.f32.mrf.mxu0
    %v5527 = vpop.f32.mrf.mxu0
    %v5528 = vadd.f32 %v5392, %v5527
    %v5529 = vpop.f32.mrf.mxu0
    %5530 = vmatprep.mubr.bf16.mxu0 0
    %5531 = vmatmul.mubr.bf16.gmra.mxu0 %v5386
    %v5532 = vpop.f32.mrf.mxu0
    %v5533 = vadd.f32 %v5392, %v5532
    %v5534 = vpop.f32.mrf.mxu0
    %v5535 = vpop.f32.mrf.mxu0
    %v5536 = vadd.f32 %v5392, %v5535
    %v5537 = vpop.f32.mrf.mxu0
    %5538 = vdwg.mxu0
    %v5539 = vmax.f32 %v5477, 0.0
    %v5540 = vmax.f32 %v5480, 0.0
    %v5541 = vmax.f32 %v5485, 0.0
    %v5542 = vmax.f32 %v5488, 0.0
    %v5543 = vmax.f32 %v5493, 0.0
    %v5544 = vmax.f32 %v5496, 0.0
    %v5545 = vmax.f32 %v5501, 0.0
    %v5546 = vmax.f32 %v5504, 0.0
    %v5547 = vmax.f32 %v5509, 0.0
    %v5548 = vmax.f32 %v5512, 0.0
    %v5549 = vmax.f32 %v5517, 0.0
    %v5550 = vmax.f32 %v5520, 0.0
    %v5551 = vmax.f32 %v5525, 0.0
    %v5552 = vmax.f32 %v5528, 0.0
    %v5553 = vmax.f32 %v5533, 0.0
    %v5554 = vmax.f32 %v5536, 0.0
    %s5555 = scalar_lea.vmem [#allocation6], 256
    %v5556 = vld [vmem:[%s5555] sm:$0xf]
    %v5557 = vld [vmem:[%s5555 + $0x4] sm:$0xf]
    %v5558 = vld [vmem:[%s5555 + $0x8] sm:$0xf]
    %v5559 = vld [vmem:[%s5555 + $0xc] sm:$0xf]
    %v5560 = vld [vmem:[%s5555 + $0x10] sm:$0xf]
    %v5561 = vld [vmem:[%s5555 + $0x14] sm:$0xf]
    %v5562 = vld [vmem:[%s5555 + $0x18] sm:$0xf]
    %v5563 = vld [vmem:[%s5555 + $0x1c] sm:$0xf]
    %v5564 = vld [vmem:[%s5555 + $0x20] sm:$0xf]
    %v5565 = vld [vmem:[%s5555 + $0x24] sm:$0xf]
    %v5566 = vld [vmem:[%s5555 + $0x28] sm:$0xf]
    %v5567 = vld [vmem:[%s5555 + $0x2c] sm:$0xf]
    %v5568 = vld [vmem:[%s5555 + $0x30] sm:$0xf]
    %v5569 = vld [vmem:[%s5555 + $0x34] sm:$0xf]
    %v5570 = vld [vmem:[%s5555 + $0x38] sm:$0xf]
    %v5571 = vld [vmem:[%s5555 + $0x3c] sm:$0xf]
    %v5572 = vpack.c.bf16 %v5540, %v5539
    %v5573 = vpack.c.bf16 %v5542, %v5541
    %v5574 = vpack.c.bf16 %v5544, %v5543
    %v5575 = vpack.c.bf16 %v5546, %v5545
    %v5576 = vpack.c.bf16 %v5548, %v5547
    %v5577 = vpack.c.bf16 %v5550, %v5549
    %v5578 = vpack.c.bf16 %v5552, %v5551
    %v5579 = vpack.c.bf16 %v5554, %v5553
    %v5580 = vld [vmem:[#allocation14 + $0x13] sm:$0x1]
    %v5582 = vlaneseq
    %v5583 = vshrl.u32 %v5582, 7
    %v5584 = vsub.s32 0, %v5583
    %v5585 = vrot.slane %v5580, %v5584
    %v5603 = vunpack.c.l.b16 %v5556
    %v5604 = vunpack.c.l.b16 %v5557
    %v5605 = vunpack.c.l.b16 %v5558
    %v5606 = vunpack.c.l.b16 %v5559
    %v5607 = vunpack.c.l.b16 %v5560
    %v5608 = vunpack.c.l.b16 %v5561
    %v5609 = vunpack.c.l.b16 %v5562
    %v5610 = vunpack.c.l.b16 %v5563
    %v5611 = vunpack.c.l.b16 %v5564
    %v5612 = vunpack.c.l.b16 %v5565
    %v5613 = vunpack.c.l.b16 %v5566
    %v5614 = vunpack.c.l.b16 %v5567
    %v5615 = vunpack.c.l.b16 %v5568
    %v5616 = vunpack.c.l.b16 %v5569
    %v5617 = vunpack.c.l.b16 %v5570
    %v5618 = vunpack.c.l.b16 %v5571
    %v5619 = vpack.c.b16 %v5604, %v5603
    %v5620 = vpack.c.b16 %v5606, %v5605
    %v5621 = vpack.c.b16 %v5608, %v5607
    %v5622 = vpack.c.b16 %v5610, %v5609
    %v5623 = vpack.c.b16 %v5612, %v5611
    %v5624 = vpack.c.b16 %v5614, %v5613
    %v5625 = vpack.c.b16 %v5616, %v5615
    %v5626 = vpack.c.b16 %v5618, %v5617
    %5635 = vmatprep.subr.bf16.mxu0 0
    %5636 = vmatpush1.bf16.msra.mxu0 %v5626
    %5637 = vmatprep.subr.bf16.mxu0 0
    %5638 = vmatpush1.bf16.msra.mxu0 %v5625
    %5639 = vmatprep.subr.bf16.mxu0 0
    %5640 = vmatpush1.bf16.msra.mxu0 %v5624
    %5641 = vmatprep.subr.bf16.mxu0 0
    %5642 = vmatpush1.bf16.msra.mxu0 %v5623
    %5643 = vmatprep.subr.bf16.mxu0 0
    %5644 = vmatpush1.bf16.msra.mxu0 %v5622
    %5645 = vmatprep.subr.bf16.mxu0 0
    %5646 = vmatpush1.bf16.msra.mxu0 %v5621
    %5647 = vmatprep.subr.bf16.mxu0 0
    %5648 = vmatpush1.bf16.msra.mxu0 %v5620
    %5649 = vmatprep.subr.bf16.mxu0 0
    %5650 = vmatpush1.bf16.msra.mxu0 %v5619
    %5651 = vmatprep.subr.bf16.mxu0 0
    %5652 = vmatpush2.bf16.msra.mxu0 0
    %5653 = vmatprep.subr.bf16.mxu0 0
    %5654 = vmatpush2.bf16.msra.mxu0 0
    %5655 = vmatprep.subr.bf16.mxu0 0
    %5656 = vmatpush2.bf16.msra.mxu0 0
    %5657 = vmatprep.subr.bf16.mxu0 0
    %5658 = vmatpush2.bf16.msra.mxu0 0
    %5659 = vmatprep.subr.bf16.mxu0 0
    %5660 = vmatpush2.bf16.msra.mxu0 0
    %5661 = vmatprep.subr.bf16.mxu0 0
    %5662 = vmatpush2.bf16.msra.mxu0 0
    %5663 = vmatprep.subr.bf16.mxu0 0
    %5664 = vmatpush2.bf16.msra.mxu0 0
    %5665 = vmatprep.subr.bf16.mxu0 0
    %5666 = vmatpush2.bf16.msra.mxu0 0
    %5667 = vmatprep.mubr.bf16.mxu0 0
    %5668 = vmatmul.mubr.bf16.gmra.mxu0 %v5572
    %v5669 = vpop.f32.mrf.mxu0
    %v5670 = vadd.f32 %v5585, %v5669
    %v5671 = vpop.f32.mrf.mxu0
    %v5672 = vpop.f32.mrf.mxu0
    %v5673 = vadd.f32 %v5585, %v5672
    %v5674 = vpop.f32.mrf.mxu0
    %5675 = vmatprep.mubr.bf16.mxu0 0
    %5676 = vmatmul.mubr.bf16.gmra.mxu0 %v5573
    %v5677 = vpop.f32.mrf.mxu0
    %v5678 = vadd.f32 %v5585, %v5677
    %v5679 = vpop.f32.mrf.mxu0
    %v5680 = vpop.f32.mrf.mxu0
    %v5681 = vadd.f32 %v5585, %v5680
    %v5682 = vpop.f32.mrf.mxu0
    %5683 = vmatprep.mubr.bf16.mxu0 0
    %5684 = vmatmul.mubr.bf16.gmra.mxu0 %v5574
    %v5685 = vpop.f32.mrf.mxu0
    %v5686 = vadd.f32 %v5585, %v5685
    %v5687 = vpop.f32.mrf.mxu0
    %v5688 = vpop.f32.mrf.mxu0
    %v5689 = vadd.f32 %v5585, %v5688
    %v5690 = vpop.f32.mrf.mxu0
    %5691 = vmatprep.mubr.bf16.mxu0 0
    %5692 = vmatmul.mubr.bf16.gmra.mxu0 %v5575
    %v5693 = vpop.f32.mrf.mxu0
    %v5694 = vadd.f32 %v5585, %v5693
    %v5695 = vpop.f32.mrf.mxu0
    %v5696 = vpop.f32.mrf.mxu0
    %v5697 = vadd.f32 %v5585, %v5696
    %v5698 = vpop.f32.mrf.mxu0
    %5699 = vmatprep.mubr.bf16.mxu0 0
    %5700 = vmatmul.mubr.bf16.gmra.mxu0 %v5576
    %v5701 = vpop.f32.mrf.mxu0
    %v5702 = vadd.f32 %v5585, %v5701
    %v5703 = vpop.f32.mrf.mxu0
    %v5704 = vpop.f32.mrf.mxu0
    %v5705 = vadd.f32 %v5585, %v5704
    %v5706 = vpop.f32.mrf.mxu0
    %5707 = vmatprep.mubr.bf16.mxu0 0
    %5708 = vmatmul.mubr.bf16.gmra.mxu0 %v5577
    %v5709 = vpop.f32.mrf.mxu0
    %v5710 = vadd.f32 %v5585, %v5709
    %v5711 = vpop.f32.mrf.mxu0
    %v5712 = vpop.f32.mrf.mxu0
    %v5713 = vadd.f32 %v5585, %v5712
    %v5714 = vpop.f32.mrf.mxu0
    %5715 = vmatprep.mubr.bf16.mxu0 0
    %5716 = vmatmul.mubr.bf16.gmra.mxu0 %v5578
    %v5717 = vpop.f32.mrf.mxu0
    %v5718 = vadd.f32 %v5585, %v5717
    %v5719 = vpop.f32.mrf.mxu0
    %v5720 = vpop.f32.mrf.mxu0
    %v5721 = vadd.f32 %v5585, %v5720
    %v5722 = vpop.f32.mrf.mxu0
    %5723 = vmatprep.mubr.bf16.mxu0 0
    %5724 = vmatmul.mubr.bf16.gmra.mxu0 %v5579
    %v5725 = vpop.f32.mrf.mxu0
    %v5726 = vadd.f32 %v5585, %v5725
    %v5727 = vpop.f32.mrf.mxu0
    %v5728 = vpop.f32.mrf.mxu0
    %v5729 = vadd.f32 %v5585, %v5728
    %v5730 = vpop.f32.mrf.mxu0
    %5731 = vdwg.mxu0
    %v5732 = vmax.f32 %v5670, 0.0
    %v5733 = vmax.f32 %v5673, 0.0
    %v5734 = vmax.f32 %v5678, 0.0
    %v5735 = vmax.f32 %v5681, 0.0
    %v5736 = vmax.f32 %v5686, 0.0
    %v5737 = vmax.f32 %v5689, 0.0
    %v5738 = vmax.f32 %v5694, 0.0
    %v5739 = vmax.f32 %v5697, 0.0
    %v5740 = vmax.f32 %v5702, 0.0
    %v5741 = vmax.f32 %v5705, 0.0
    %v5742 = vmax.f32 %v5710, 0.0
    %v5743 = vmax.f32 %v5713, 0.0
    %v5744 = vmax.f32 %v5718, 0.0
    %v5745 = vmax.f32 %v5721, 0.0
    %v5746 = vmax.f32 %v5726, 0.0
    %v5747 = vmax.f32 %v5729, 0.0
    %s5748 = scalar_lea.vmem [#allocation6], 320
    %v5749 = vld [vmem:[%s5748] sm:$0xf]
    %v5750 = vld [vmem:[%s5748 + $0x4] sm:$0xf]
    %v5751 = vld [vmem:[%s5748 + $0x8] sm:$0xf]
    %v5752 = vld [vmem:[%s5748 + $0xc] sm:$0xf]
    %v5753 = vld [vmem:[%s5748 + $0x10] sm:$0xf]
    %v5754 = vld [vmem:[%s5748 + $0x14] sm:$0xf]
    %v5755 = vld [vmem:[%s5748 + $0x18] sm:$0xf]
    %v5756 = vld [vmem:[%s5748 + $0x1c] sm:$0xf]
    %v5757 = vld [vmem:[%s5748 + $0x20] sm:$0xf]
    %v5758 = vld [vmem:[%s5748 + $0x24] sm:$0xf]
    %v5759 = vld [vmem:[%s5748 + $0x28] sm:$0xf]
    %v5760 = vld [vmem:[%s5748 + $0x2c] sm:$0xf]
    %v5761 = vld [vmem:[%s5748 + $0x30] sm:$0xf]
    %v5762 = vld [vmem:[%s5748 + $0x34] sm:$0xf]
    %v5763 = vld [vmem:[%s5748 + $0x38] sm:$0xf]
    %v5764 = vld [vmem:[%s5748 + $0x3c] sm:$0xf]
    %v5765 = vpack.c.bf16 %v5733, %v5732
    %v5766 = vpack.c.bf16 %v5735, %v5734
    %v5767 = vpack.c.bf16 %v5737, %v5736
    %v5768 = vpack.c.bf16 %v5739, %v5738
    %v5769 = vpack.c.bf16 %v5741, %v5740
    %v5770 = vpack.c.bf16 %v5743, %v5742
    %v5771 = vpack.c.bf16 %v5745, %v5744
    %v5772 = vpack.c.bf16 %v5747, %v5746
    %v5773 = vld [vmem:[#allocation14 + $0x14] sm:$0x1]
    %v5775 = vlaneseq
    %v5776 = vshrl.u32 %v5775, 7
    %v5777 = vsub.s32 0, %v5776
    %v5778 = vrot.slane %v5773, %v5777
    %v5796 = vunpack.c.l.b16 %v5749
    %v5797 = vunpack.c.l.b16 %v5750
    %v5798 = vunpack.c.l.b16 %v5751
    %v5799 = vunpack.c.l.b16 %v5752
    %v5800 = vunpack.c.l.b16 %v5753
    %v5801 = vunpack.c.l.b16 %v5754
    %v5802 = vunpack.c.l.b16 %v5755
    %v5803 = vunpack.c.l.b16 %v5756
    %v5804 = vunpack.c.l.b16 %v5757
    %v5805 = vunpack.c.l.b16 %v5758
    %v5806 = vunpack.c.l.b16 %v5759
    %v5807 = vunpack.c.l.b16 %v5760
    %v5808 = vunpack.c.l.b16 %v5761
    %v5809 = vunpack.c.l.b16 %v5762
    %v5810 = vunpack.c.l.b16 %v5763
    %v5811 = vunpack.c.l.b16 %v5764
    %v5812 = vpack.c.b16 %v5797, %v5796
    %v5813 = vpack.c.b16 %v5799, %v5798
    %v5814 = vpack.c.b16 %v5801, %v5800
    %v5815 = vpack.c.b16 %v5803, %v5802
    %v5816 = vpack.c.b16 %v5805, %v5804
    %v5817 = vpack.c.b16 %v5807, %v5806
    %v5818 = vpack.c.b16 %v5809, %v5808
    %v5819 = vpack.c.b16 %v5811, %v5810
    %5828 = vmatprep.subr.bf16.mxu0 0
    %5829 = vmatpush1.bf16.msra.mxu0 %v5819
    %5830 = vmatprep.subr.bf16.mxu0 0
    %5831 = vmatpush1.bf16.msra.mxu0 %v5818
    %5832 = vmatprep.subr.bf16.mxu0 0
    %5833 = vmatpush1.bf16.msra.mxu0 %v5817
    %5834 = vmatprep.subr.bf16.mxu0 0
    %5835 = vmatpush1.bf16.msra.mxu0 %v5816
    %5836 = vmatprep.subr.bf16.mxu0 0
    %5837 = vmatpush1.bf16.msra.mxu0 %v5815
    %5838 = vmatprep.subr.bf16.mxu0 0
    %5839 = vmatpush1.bf16.msra.mxu0 %v5814
    %5840 = vmatprep.subr.bf16.mxu0 0
    %5841 = vmatpush1.bf16.msra.mxu0 %v5813
    %5842 = vmatprep.subr.bf16.mxu0 0
    %5843 = vmatpush1.bf16.msra.mxu0 %v5812
    %5844 = vmatprep.subr.bf16.mxu0 0
    %5845 = vmatpush2.bf16.msra.mxu0 0
    %5846 = vmatprep.subr.bf16.mxu0 0
    %5847 = vmatpush2.bf16.msra.mxu0 0
    %5848 = vmatprep.subr.bf16.mxu0 0
    %5849 = vmatpush2.bf16.msra.mxu0 0
    %5850 = vmatprep.subr.bf16.mxu0 0
    %5851 = vmatpush2.bf16.msra.mxu0 0
    %5852 = vmatprep.subr.bf16.mxu0 0
    %5853 = vmatpush2.bf16.msra.mxu0 0
    %5854 = vmatprep.subr.bf16.mxu0 0
    %5855 = vmatpush2.bf16.msra.mxu0 0
    %5856 = vmatprep.subr.bf16.mxu0 0
    %5857 = vmatpush2.bf16.msra.mxu0 0
    %5858 = vmatprep.subr.bf16.mxu0 0
    %5859 = vmatpush2.bf16.msra.mxu0 0
    %5860 = vmatprep.mubr.bf16.mxu0 0
    %5861 = vmatmul.mubr.bf16.gmra.mxu0 %v5765
    %v5862 = vpop.f32.mrf.mxu0
    %v5863 = vadd.f32 %v5778, %v5862
    %v5864 = vpop.f32.mrf.mxu0
    %v5865 = vpop.f32.mrf.mxu0
    %v5866 = vadd.f32 %v5778, %v5865
    %v5867 = vpop.f32.mrf.mxu0
    %5868 = vmatprep.mubr.bf16.mxu0 0
    %5869 = vmatmul.mubr.bf16.gmra.mxu0 %v5766
    %v5870 = vpop.f32.mrf.mxu0
    %v5871 = vadd.f32 %v5778, %v5870
    %v5872 = vpop.f32.mrf.mxu0
    %v5873 = vpop.f32.mrf.mxu0
    %v5874 = vadd.f32 %v5778, %v5873
    %v5875 = vpop.f32.mrf.mxu0
    %5876 = vmatprep.mubr.bf16.mxu0 0
    %5877 = vmatmul.mubr.bf16.gmra.mxu0 %v5767
    %v5878 = vpop.f32.mrf.mxu0
    %v5879 = vadd.f32 %v5778, %v5878
    %v5880 = vpop.f32.mrf.mxu0
    %v5881 = vpop.f32.mrf.mxu0
    %v5882 = vadd.f32 %v5778, %v5881
    %v5883 = vpop.f32.mrf.mxu0
    %5884 = vmatprep.mubr.bf16.mxu0 0
    %5885 = vmatmul.mubr.bf16.gmra.mxu0 %v5768
    %v5886 = vpop.f32.mrf.mxu0
    %v5887 = vadd.f32 %v5778, %v5886
    %v5888 = vpop.f32.mrf.mxu0
    %v5889 = vpop.f32.mrf.mxu0
    %v5890 = vadd.f32 %v5778, %v5889
    %v5891 = vpop.f32.mrf.mxu0
    %5892 = vmatprep.mubr.bf16.mxu0 0
    %5893 = vmatmul.mubr.bf16.gmra.mxu0 %v5769
    %v5894 = vpop.f32.mrf.mxu0
    %v5895 = vadd.f32 %v5778, %v5894
    %v5896 = vpop.f32.mrf.mxu0
    %v5897 = vpop.f32.mrf.mxu0
    %v5898 = vadd.f32 %v5778, %v5897
    %v5899 = vpop.f32.mrf.mxu0
    %5900 = vmatprep.mubr.bf16.mxu0 0
    %5901 = vmatmul.mubr.bf16.gmra.mxu0 %v5770
    %v5902 = vpop.f32.mrf.mxu0
    %v5903 = vadd.f32 %v5778, %v5902
    %v5904 = vpop.f32.mrf.mxu0
    %v5905 = vpop.f32.mrf.mxu0
    %v5906 = vadd.f32 %v5778, %v5905
    %v5907 = vpop.f32.mrf.mxu0
    %5908 = vmatprep.mubr.bf16.mxu0 0
    %5909 = vmatmul.mubr.bf16.gmra.mxu0 %v5771
    %v5910 = vpop.f32.mrf.mxu0
    %v5911 = vadd.f32 %v5778, %v5910
    %v5912 = vpop.f32.mrf.mxu0
    %v5913 = vpop.f32.mrf.mxu0
    %v5914 = vadd.f32 %v5778, %v5913
    %v5915 = vpop.f32.mrf.mxu0
    %5916 = vmatprep.mubr.bf16.mxu0 0
    %5917 = vmatmul.mubr.bf16.gmra.mxu0 %v5772
    %v5918 = vpop.f32.mrf.mxu0
    %v5919 = vadd.f32 %v5778, %v5918
    %v5920 = vpop.f32.mrf.mxu0
    %v5921 = vpop.f32.mrf.mxu0
    %v5922 = vadd.f32 %v5778, %v5921
    %v5923 = vpop.f32.mrf.mxu0
    %5924 = vdwg.mxu0
    %v5925 = vmax.f32 %v5863, 0.0
    %v5926 = vmax.f32 %v5866, 0.0
    %v5927 = vmax.f32 %v5871, 0.0
    %v5928 = vmax.f32 %v5874, 0.0
    %v5929 = vmax.f32 %v5879, 0.0
    %v5930 = vmax.f32 %v5882, 0.0
    %v5931 = vmax.f32 %v5887, 0.0
    %v5932 = vmax.f32 %v5890, 0.0
    %v5933 = vmax.f32 %v5895, 0.0
    %v5934 = vmax.f32 %v5898, 0.0
    %v5935 = vmax.f32 %v5903, 0.0
    %v5936 = vmax.f32 %v5906, 0.0
    %v5937 = vmax.f32 %v5911, 0.0
    %v5938 = vmax.f32 %v5914, 0.0
    %v5939 = vmax.f32 %v5919, 0.0
    %v5940 = vmax.f32 %v5922, 0.0
    %s5941 = scalar_lea.vmem [#allocation6], 384
    %v5942 = vld [vmem:[%s5941] sm:$0xf]
    %v5943 = vld [vmem:[%s5941 + $0x4] sm:$0xf]
    %v5944 = vld [vmem:[%s5941 + $0x8] sm:$0xf]
    %v5945 = vld [vmem:[%s5941 + $0xc] sm:$0xf]
    %v5946 = vld [vmem:[%s5941 + $0x10] sm:$0xf]
    %v5947 = vld [vmem:[%s5941 + $0x14] sm:$0xf]
    %v5948 = vld [vmem:[%s5941 + $0x18] sm:$0xf]
    %v5949 = vld [vmem:[%s5941 + $0x1c] sm:$0xf]
    %v5950 = vld [vmem:[%s5941 + $0x20] sm:$0xf]
    %v5951 = vld [vmem:[%s5941 + $0x24] sm:$0xf]
    %v5952 = vld [vmem:[%s5941 + $0x28] sm:$0xf]
    %v5953 = vld [vmem:[%s5941 + $0x2c] sm:$0xf]
    %v5954 = vld [vmem:[%s5941 + $0x30] sm:$0xf]
    %v5955 = vld [vmem:[%s5941 + $0x34] sm:$0xf]
    %v5956 = vld [vmem:[%s5941 + $0x38] sm:$0xf]
    %v5957 = vld [vmem:[%s5941 + $0x3c] sm:$0xf]
    %v5958 = vpack.c.bf16 %v5926, %v5925
    %v5959 = vpack.c.bf16 %v5928, %v5927
    %v5960 = vpack.c.bf16 %v5930, %v5929
    %v5961 = vpack.c.bf16 %v5932, %v5931
    %v5962 = vpack.c.bf16 %v5934, %v5933
    %v5963 = vpack.c.bf16 %v5936, %v5935
    %v5964 = vpack.c.bf16 %v5938, %v5937
    %v5965 = vpack.c.bf16 %v5940, %v5939
    %v5966 = vld [vmem:[#allocation14 + $0x15] sm:$0x1]
    %v5968 = vlaneseq
    %v5969 = vshrl.u32 %v5968, 7
    %v5970 = vsub.s32 0, %v5969
    %v5971 = vrot.slane %v5966, %v5970
    %v5989 = vunpack.c.l.b16 %v5942
    %v5990 = vunpack.c.l.b16 %v5943
    %v5991 = vunpack.c.l.b16 %v5944
    %v5992 = vunpack.c.l.b16 %v5945
    %v5993 = vunpack.c.l.b16 %v5946
    %v5994 = vunpack.c.l.b16 %v5947
    %v5995 = vunpack.c.l.b16 %v5948
    %v5996 = vunpack.c.l.b16 %v5949
    %v5997 = vunpack.c.l.b16 %v5950
    %v5998 = vunpack.c.l.b16 %v5951
    %v5999 = vunpack.c.l.b16 %v5952
    %v6000 = vunpack.c.l.b16 %v5953
    %v6001 = vunpack.c.l.b16 %v5954
    %v6002 = vunpack.c.l.b16 %v5955
    %v6003 = vunpack.c.l.b16 %v5956
    %v6004 = vunpack.c.l.b16 %v5957
    %v6005 = vpack.c.b16 %v5990, %v5989
    %v6006 = vpack.c.b16 %v5992, %v5991
    %v6007 = vpack.c.b16 %v5994, %v5993
    %v6008 = vpack.c.b16 %v5996, %v5995
    %v6009 = vpack.c.b16 %v5998, %v5997
    %v6010 = vpack.c.b16 %v6000, %v5999
    %v6011 = vpack.c.b16 %v6002, %v6001
    %v6012 = vpack.c.b16 %v6004, %v6003
    %6021 = vmatprep.subr.bf16.mxu0 0
    %6022 = vmatpush1.bf16.msra.mxu0 %v6012
    %6023 = vmatprep.subr.bf16.mxu0 0
    %6024 = vmatpush1.bf16.msra.mxu0 %v6011
    %6025 = vmatprep.subr.bf16.mxu0 0
    %6026 = vmatpush1.bf16.msra.mxu0 %v6010
    %6027 = vmatprep.subr.bf16.mxu0 0
    %6028 = vmatpush1.bf16.msra.mxu0 %v6009
    %6029 = vmatprep.subr.bf16.mxu0 0
    %6030 = vmatpush1.bf16.msra.mxu0 %v6008
    %6031 = vmatprep.subr.bf16.mxu0 0
    %6032 = vmatpush1.bf16.msra.mxu0 %v6007
    %6033 = vmatprep.subr.bf16.mxu0 0
    %6034 = vmatpush1.bf16.msra.mxu0 %v6006
    %6035 = vmatprep.subr.bf16.mxu0 0
    %6036 = vmatpush1.bf16.msra.mxu0 %v6005
    %6037 = vmatprep.subr.bf16.mxu0 0
    %6038 = vmatpush2.bf16.msra.mxu0 0
    %6039 = vmatprep.subr.bf16.mxu0 0
    %6040 = vmatpush2.bf16.msra.mxu0 0
    %6041 = vmatprep.subr.bf16.mxu0 0
    %6042 = vmatpush2.bf16.msra.mxu0 0
    %6043 = vmatprep.subr.bf16.mxu0 0
    %6044 = vmatpush2.bf16.msra.mxu0 0
    %6045 = vmatprep.subr.bf16.mxu0 0
    %6046 = vmatpush2.bf16.msra.mxu0 0
    %6047 = vmatprep.subr.bf16.mxu0 0
    %6048 = vmatpush2.bf16.msra.mxu0 0
    %6049 = vmatprep.subr.bf16.mxu0 0
    %6050 = vmatpush2.bf16.msra.mxu0 0
    %6051 = vmatprep.subr.bf16.mxu0 0
    %6052 = vmatpush2.bf16.msra.mxu0 0
    %6053 = vmatprep.mubr.bf16.mxu0 0
    %6054 = vmatmul.mubr.bf16.gmra.mxu0 %v5958
    %v6055 = vpop.f32.mrf.mxu0
    %v6056 = vadd.f32 %v5971, %v6055
    %v6057 = vpop.f32.mrf.mxu0
    %v6058 = vpop.f32.mrf.mxu0
    %v6059 = vadd.f32 %v5971, %v6058
    %v6060 = vpop.f32.mrf.mxu0
    %6061 = vmatprep.mubr.bf16.mxu0 0
    %6062 = vmatmul.mubr.bf16.gmra.mxu0 %v5959
    %v6063 = vpop.f32.mrf.mxu0
    %v6064 = vadd.f32 %v5971, %v6063
    %v6065 = vpop.f32.mrf.mxu0
    %v6066 = vpop.f32.mrf.mxu0
    %v6067 = vadd.f32 %v5971, %v6066
    %v6068 = vpop.f32.mrf.mxu0
    %6069 = vmatprep.mubr.bf16.mxu0 0
    %6070 = vmatmul.mubr.bf16.gmra.mxu0 %v5960
    %v6071 = vpop.f32.mrf.mxu0
    %v6072 = vadd.f32 %v5971, %v6071
    %v6073 = vpop.f32.mrf.mxu0
    %v6074 = vpop.f32.mrf.mxu0
    %v6075 = vadd.f32 %v5971, %v6074
    %v6076 = vpop.f32.mrf.mxu0
    %6077 = vmatprep.mubr.bf16.mxu0 0
    %6078 = vmatmul.mubr.bf16.gmra.mxu0 %v5961
    %v6079 = vpop.f32.mrf.mxu0
    %v6080 = vadd.f32 %v5971, %v6079
    %v6081 = vpop.f32.mrf.mxu0
    %v6082 = vpop.f32.mrf.mxu0
    %v6083 = vadd.f32 %v5971, %v6082
    %v6084 = vpop.f32.mrf.mxu0
    %6085 = vmatprep.mubr.bf16.mxu0 0
    %6086 = vmatmul.mubr.bf16.gmra.mxu0 %v5962
    %v6087 = vpop.f32.mrf.mxu0
    %v6088 = vadd.f32 %v5971, %v6087
    %v6089 = vpop.f32.mrf.mxu0
    %v6090 = vpop.f32.mrf.mxu0
    %v6091 = vadd.f32 %v5971, %v6090
    %v6092 = vpop.f32.mrf.mxu0
    %6093 = vmatprep.mubr.bf16.mxu0 0
    %6094 = vmatmul.mubr.bf16.gmra.mxu0 %v5963
    %v6095 = vpop.f32.mrf.mxu0
    %v6096 = vadd.f32 %v5971, %v6095
    %v6097 = vpop.f32.mrf.mxu0
    %v6098 = vpop.f32.mrf.mxu0
    %v6099 = vadd.f32 %v5971, %v6098
    %v6100 = vpop.f32.mrf.mxu0
    %6101 = vmatprep.mubr.bf16.mxu0 0
    %6102 = vmatmul.mubr.bf16.gmra.mxu0 %v5964
    %v6103 = vpop.f32.mrf.mxu0
    %v6104 = vadd.f32 %v5971, %v6103
    %v6105 = vpop.f32.mrf.mxu0
    %v6106 = vpop.f32.mrf.mxu0
    %v6107 = vadd.f32 %v5971, %v6106
    %v6108 = vpop.f32.mrf.mxu0
    %6109 = vmatprep.mubr.bf16.mxu0 0
    %6110 = vmatmul.mubr.bf16.gmra.mxu0 %v5965
    %v6111 = vpop.f32.mrf.mxu0
    %v6112 = vadd.f32 %v5971, %v6111
    %v6113 = vpop.f32.mrf.mxu0
    %v6114 = vpop.f32.mrf.mxu0
    %v6115 = vadd.f32 %v5971, %v6114
    %v6116 = vpop.f32.mrf.mxu0
    %6117 = vdwg.mxu0
    %v6118 = vmax.f32 %v6056, 0.0
    %v6119 = vmax.f32 %v6059, 0.0
    %v6120 = vmax.f32 %v6064, 0.0
    %v6121 = vmax.f32 %v6067, 0.0
    %v6122 = vmax.f32 %v6072, 0.0
    %v6123 = vmax.f32 %v6075, 0.0
    %v6124 = vmax.f32 %v6080, 0.0
    %v6125 = vmax.f32 %v6083, 0.0
    %v6126 = vmax.f32 %v6088, 0.0
    %v6127 = vmax.f32 %v6091, 0.0
    %v6128 = vmax.f32 %v6096, 0.0
    %v6129 = vmax.f32 %v6099, 0.0
    %v6130 = vmax.f32 %v6104, 0.0
    %v6131 = vmax.f32 %v6107, 0.0
    %v6132 = vmax.f32 %v6112, 0.0
    %v6133 = vmax.f32 %v6115, 0.0
    %s6134 = scalar_lea.vmem [#allocation6], 448
    %v6135 = vld [vmem:[%s6134] sm:$0xf]
    %v6136 = vld [vmem:[%s6134 + $0x4] sm:$0xf]
    %v6137 = vld [vmem:[%s6134 + $0x8] sm:$0xf]
    %v6138 = vld [vmem:[%s6134 + $0xc] sm:$0xf]
    %v6139 = vld [vmem:[%s6134 + $0x10] sm:$0xf]
    %v6140 = vld [vmem:[%s6134 + $0x14] sm:$0xf]
    %v6141 = vld [vmem:[%s6134 + $0x18] sm:$0xf]
    %v6142 = vld [vmem:[%s6134 + $0x1c] sm:$0xf]
    %v6143 = vld [vmem:[%s6134 + $0x20] sm:$0xf]
    %v6144 = vld [vmem:[%s6134 + $0x24] sm:$0xf]
    %v6145 = vld [vmem:[%s6134 + $0x28] sm:$0xf]
    %v6146 = vld [vmem:[%s6134 + $0x2c] sm:$0xf]
    %v6147 = vld [vmem:[%s6134 + $0x30] sm:$0xf]
    %v6148 = vld [vmem:[%s6134 + $0x34] sm:$0xf]
    %v6149 = vld [vmem:[%s6134 + $0x38] sm:$0xf]
    %v6150 = vld [vmem:[%s6134 + $0x3c] sm:$0xf]
    %v6151 = vpack.c.bf16 %v6119, %v6118
    %v6152 = vpack.c.bf16 %v6121, %v6120
    %v6153 = vpack.c.bf16 %v6123, %v6122
    %v6154 = vpack.c.bf16 %v6125, %v6124
    %v6155 = vpack.c.bf16 %v6127, %v6126
    %v6156 = vpack.c.bf16 %v6129, %v6128
    %v6157 = vpack.c.bf16 %v6131, %v6130
    %v6158 = vpack.c.bf16 %v6133, %v6132
    %v6159 = vld [vmem:[#allocation14 + $0x16] sm:$0x1]
    %v6161 = vlaneseq
    %v6162 = vshrl.u32 %v6161, 7
    %v6163 = vsub.s32 0, %v6162
    %v6164 = vrot.slane %v6159, %v6163
    %v6182 = vunpack.c.l.b16 %v6135
    %v6183 = vunpack.c.l.b16 %v6136
    %v6184 = vunpack.c.l.b16 %v6137
    %v6185 = vunpack.c.l.b16 %v6138
    %v6186 = vunpack.c.l.b16 %v6139
    %v6187 = vunpack.c.l.b16 %v6140
    %v6188 = vunpack.c.l.b16 %v6141
    %v6189 = vunpack.c.l.b16 %v6142
    %v6190 = vunpack.c.l.b16 %v6143
    %v6191 = vunpack.c.l.b16 %v6144
    %v6192 = vunpack.c.l.b16 %v6145
    %v6193 = vunpack.c.l.b16 %v6146
    %v6194 = vunpack.c.l.b16 %v6147
    %v6195 = vunpack.c.l.b16 %v6148
    %v6196 = vunpack.c.l.b16 %v6149
    %v6197 = vunpack.c.l.b16 %v6150
    %v6198 = vpack.c.b16 %v6183, %v6182
    %v6199 = vpack.c.b16 %v6185, %v6184
    %v6200 = vpack.c.b16 %v6187, %v6186
    %v6201 = vpack.c.b16 %v6189, %v6188
    %v6202 = vpack.c.b16 %v6191, %v6190
    %v6203 = vpack.c.b16 %v6193, %v6192
    %v6204 = vpack.c.b16 %v6195, %v6194
    %v6205 = vpack.c.b16 %v6197, %v6196
    %6214 = vmatprep.subr.bf16.mxu0 0
    %6215 = vmatpush1.bf16.msra.mxu0 %v6205
    %6216 = vmatprep.subr.bf16.mxu0 0
    %6217 = vmatpush1.bf16.msra.mxu0 %v6204
    %6218 = vmatprep.subr.bf16.mxu0 0
    %6219 = vmatpush1.bf16.msra.mxu0 %v6203
    %6220 = vmatprep.subr.bf16.mxu0 0
    %6221 = vmatpush1.bf16.msra.mxu0 %v6202
    %6222 = vmatprep.subr.bf16.mxu0 0
    %6223 = vmatpush1.bf16.msra.mxu0 %v6201
    %6224 = vmatprep.subr.bf16.mxu0 0
    %6225 = vmatpush1.bf16.msra.mxu0 %v6200
    %6226 = vmatprep.subr.bf16.mxu0 0
    %6227 = vmatpush1.bf16.msra.mxu0 %v6199
    %6228 = vmatprep.subr.bf16.mxu0 0
    %6229 = vmatpush1.bf16.msra.mxu0 %v6198
    %6230 = vmatprep.subr.bf16.mxu0 0
    %6231 = vmatpush2.bf16.msra.mxu0 0
    %6232 = vmatprep.subr.bf16.mxu0 0
    %6233 = vmatpush2.bf16.msra.mxu0 0
    %6234 = vmatprep.subr.bf16.mxu0 0
    %6235 = vmatpush2.bf16.msra.mxu0 0
    %6236 = vmatprep.subr.bf16.mxu0 0
    %6237 = vmatpush2.bf16.msra.mxu0 0
    %6238 = vmatprep.subr.bf16.mxu0 0
    %6239 = vmatpush2.bf16.msra.mxu0 0
    %6240 = vmatprep.subr.bf16.mxu0 0
    %6241 = vmatpush2.bf16.msra.mxu0 0
    %6242 = vmatprep.subr.bf16.mxu0 0
    %6243 = vmatpush2.bf16.msra.mxu0 0
    %6244 = vmatprep.subr.bf16.mxu0 0
    %6245 = vmatpush2.bf16.msra.mxu0 0
    %6246 = vmatprep.mubr.bf16.mxu0 0
    %6247 = vmatmul.mubr.bf16.gmra.mxu0 %v6151
    %v6248 = vpop.f32.mrf.mxu0
    %v6249 = vadd.f32 %v6164, %v6248
    %v6250 = vpop.f32.mrf.mxu0
    %v6251 = vpop.f32.mrf.mxu0
    %v6252 = vadd.f32 %v6164, %v6251
    %v6253 = vpop.f32.mrf.mxu0
    %6254 = vmatprep.mubr.bf16.mxu0 0
    %6255 = vmatmul.mubr.bf16.gmra.mxu0 %v6152
    %v6256 = vpop.f32.mrf.mxu0
    %v6257 = vadd.f32 %v6164, %v6256
    %v6258 = vpop.f32.mrf.mxu0
    %v6259 = vpop.f32.mrf.mxu0
    %v6260 = vadd.f32 %v6164, %v6259
    %v6261 = vpop.f32.mrf.mxu0
    %6262 = vmatprep.mubr.bf16.mxu0 0
    %6263 = vmatmul.mubr.bf16.gmra.mxu0 %v6153
    %v6264 = vpop.f32.mrf.mxu0
    %v6265 = vadd.f32 %v6164, %v6264
    %v6266 = vpop.f32.mrf.mxu0
    %v6267 = vpop.f32.mrf.mxu0
    %v6268 = vadd.f32 %v6164, %v6267
    %v6269 = vpop.f32.mrf.mxu0
    %6270 = vmatprep.mubr.bf16.mxu0 0
    %6271 = vmatmul.mubr.bf16.gmra.mxu0 %v6154
    %v6272 = vpop.f32.mrf.mxu0
    %v6273 = vadd.f32 %v6164, %v6272
    %v6274 = vpop.f32.mrf.mxu0
    %v6275 = vpop.f32.mrf.mxu0
    %v6276 = vadd.f32 %v6164, %v6275
    %v6277 = vpop.f32.mrf.mxu0
    %6278 = vmatprep.mubr.bf16.mxu0 0
    %6279 = vmatmul.mubr.bf16.gmra.mxu0 %v6155
    %v6280 = vpop.f32.mrf.mxu0
    %v6281 = vadd.f32 %v6164, %v6280
    %v6282 = vpop.f32.mrf.mxu0
    %v6283 = vpop.f32.mrf.mxu0
    %v6284 = vadd.f32 %v6164, %v6283
    %v6285 = vpop.f32.mrf.mxu0
    %6286 = vmatprep.mubr.bf16.mxu0 0
    %6287 = vmatmul.mubr.bf16.gmra.mxu0 %v6156
    %v6288 = vpop.f32.mrf.mxu0
    %v6289 = vadd.f32 %v6164, %v6288
    %v6290 = vpop.f32.mrf.mxu0
    %v6291 = vpop.f32.mrf.mxu0
    %v6292 = vadd.f32 %v6164, %v6291
    %v6293 = vpop.f32.mrf.mxu0
    %6294 = vmatprep.mubr.bf16.mxu0 0
    %6295 = vmatmul.mubr.bf16.gmra.mxu0 %v6157
    %v6296 = vpop.f32.mrf.mxu0
    %v6297 = vadd.f32 %v6164, %v6296
    %v6298 = vpop.f32.mrf.mxu0
    %v6299 = vpop.f32.mrf.mxu0
    %v6300 = vadd.f32 %v6164, %v6299
    %v6301 = vpop.f32.mrf.mxu0
    %6302 = vmatprep.mubr.bf16.mxu0 0
    %6303 = vmatmul.mubr.bf16.gmra.mxu0 %v6158
    %v6304 = vpop.f32.mrf.mxu0
    %v6305 = vadd.f32 %v6164, %v6304
    %v6306 = vpop.f32.mrf.mxu0
    %v6307 = vpop.f32.mrf.mxu0
    %v6308 = vadd.f32 %v6164, %v6307
    %v6309 = vpop.f32.mrf.mxu0
    %6310 = vdwg.mxu0
    %v6311 = vmax.f32 %v6249, 0.0
    %v6312 = vmax.f32 %v6252, 0.0
    %v6313 = vmax.f32 %v6257, 0.0
    %v6314 = vmax.f32 %v6260, 0.0
    %v6315 = vmax.f32 %v6265, 0.0
    %v6316 = vmax.f32 %v6268, 0.0
    %v6317 = vmax.f32 %v6273, 0.0
    %v6318 = vmax.f32 %v6276, 0.0
    %v6319 = vmax.f32 %v6281, 0.0
    %v6320 = vmax.f32 %v6284, 0.0
    %v6321 = vmax.f32 %v6289, 0.0
    %v6322 = vmax.f32 %v6292, 0.0
    %v6323 = vmax.f32 %v6297, 0.0
    %v6324 = vmax.f32 %v6300, 0.0
    %v6325 = vmax.f32 %v6305, 0.0
    %v6326 = vmax.f32 %v6308, 0.0
    %s6327 = scalar_lea.vmem [#allocation6], 512
    %v6328 = vld [vmem:[%s6327] sm:$0xf]
    %v6329 = vld [vmem:[%s6327 + $0x4] sm:$0xf]
    %v6330 = vld [vmem:[%s6327 + $0x8] sm:$0xf]
    %v6331 = vld [vmem:[%s6327 + $0xc] sm:$0xf]
    %v6332 = vld [vmem:[%s6327 + $0x10] sm:$0xf]
    %v6333 = vld [vmem:[%s6327 + $0x14] sm:$0xf]
    %v6334 = vld [vmem:[%s6327 + $0x18] sm:$0xf]
    %v6335 = vld [vmem:[%s6327 + $0x1c] sm:$0xf]
    %v6336 = vld [vmem:[%s6327 + $0x20] sm:$0xf]
    %v6337 = vld [vmem:[%s6327 + $0x24] sm:$0xf]
    %v6338 = vld [vmem:[%s6327 + $0x28] sm:$0xf]
    %v6339 = vld [vmem:[%s6327 + $0x2c] sm:$0xf]
    %v6340 = vld [vmem:[%s6327 + $0x30] sm:$0xf]
    %v6341 = vld [vmem:[%s6327 + $0x34] sm:$0xf]
    %v6342 = vld [vmem:[%s6327 + $0x38] sm:$0xf]
    %v6343 = vld [vmem:[%s6327 + $0x3c] sm:$0xf]
    %v6344 = vpack.c.bf16 %v6312, %v6311
    %v6345 = vpack.c.bf16 %v6314, %v6313
    %v6346 = vpack.c.bf16 %v6316, %v6315
    %v6347 = vpack.c.bf16 %v6318, %v6317
    %v6348 = vpack.c.bf16 %v6320, %v6319
    %v6349 = vpack.c.bf16 %v6322, %v6321
    %v6350 = vpack.c.bf16 %v6324, %v6323
    %v6351 = vpack.c.bf16 %v6326, %v6325
    %v6352 = vld [vmem:[#allocation14 + $0x17] sm:$0x1]
    %v6354 = vlaneseq
    %v6355 = vshrl.u32 %v6354, 7
    %v6356 = vsub.s32 0, %v6355
    %v6357 = vrot.slane %v6352, %v6356
    %v6375 = vunpack.c.l.b16 %v6328
    %v6376 = vunpack.c.l.b16 %v6329
    %v6377 = vunpack.c.l.b16 %v6330
    %v6378 = vunpack.c.l.b16 %v6331
    %v6379 = vunpack.c.l.b16 %v6332
    %v6380 = vunpack.c.l.b16 %v6333
    %v6381 = vunpack.c.l.b16 %v6334
    %v6382 = vunpack.c.l.b16 %v6335
    %v6383 = vunpack.c.l.b16 %v6336
    %v6384 = vunpack.c.l.b16 %v6337
    %v6385 = vunpack.c.l.b16 %v6338
    %v6386 = vunpack.c.l.b16 %v6339
    %v6387 = vunpack.c.l.b16 %v6340
    %v6388 = vunpack.c.l.b16 %v6341
    %v6389 = vunpack.c.l.b16 %v6342
    %v6390 = vunpack.c.l.b16 %v6343
    %v6391 = vpack.c.b16 %v6376, %v6375
    %v6392 = vpack.c.b16 %v6378, %v6377
    %v6393 = vpack.c.b16 %v6380, %v6379
    %v6394 = vpack.c.b16 %v6382, %v6381
    %v6395 = vpack.c.b16 %v6384, %v6383
    %v6396 = vpack.c.b16 %v6386, %v6385
    %v6397 = vpack.c.b16 %v6388, %v6387
    %v6398 = vpack.c.b16 %v6390, %v6389
    %6407 = vmatprep.subr.bf16.mxu0 0
    %6408 = vmatpush1.bf16.msra.mxu0 %v6398
    %6409 = vmatprep.subr.bf16.mxu0 0
    %6410 = vmatpush1.bf16.msra.mxu0 %v6397
    %6411 = vmatprep.subr.bf16.mxu0 0
    %6412 = vmatpush1.bf16.msra.mxu0 %v6396
    %6413 = vmatprep.subr.bf16.mxu0 0
    %6414 = vmatpush1.bf16.msra.mxu0 %v6395
    %6415 = vmatprep.subr.bf16.mxu0 0
    %6416 = vmatpush1.bf16.msra.mxu0 %v6394
    %6417 = vmatprep.subr.bf16.mxu0 0
    %6418 = vmatpush1.bf16.msra.mxu0 %v6393
    %6419 = vmatprep.subr.bf16.mxu0 0
    %6420 = vmatpush1.bf16.msra.mxu0 %v6392
    %6421 = vmatprep.subr.bf16.mxu0 0
    %6422 = vmatpush1.bf16.msra.mxu0 %v6391
    %6423 = vmatprep.subr.bf16.mxu0 0
    %6424 = vmatpush2.bf16.msra.mxu0 0
    %6425 = vmatprep.subr.bf16.mxu0 0
    %6426 = vmatpush2.bf16.msra.mxu0 0
    %6427 = vmatprep.subr.bf16.mxu0 0
    %6428 = vmatpush2.bf16.msra.mxu0 0
    %6429 = vmatprep.subr.bf16.mxu0 0
    %6430 = vmatpush2.bf16.msra.mxu0 0
    %6431 = vmatprep.subr.bf16.mxu0 0
    %6432 = vmatpush2.bf16.msra.mxu0 0
    %6433 = vmatprep.subr.bf16.mxu0 0
    %6434 = vmatpush2.bf16.msra.mxu0 0
    %6435 = vmatprep.subr.bf16.mxu0 0
    %6436 = vmatpush2.bf16.msra.mxu0 0
    %6437 = vmatprep.subr.bf16.mxu0 0
    %6438 = vmatpush2.bf16.msra.mxu0 0
    %6439 = vmatprep.mubr.bf16.mxu0 0
    %6440 = vmatmul.mubr.bf16.gmra.mxu0 %v6344
    %v6441 = vpop.f32.mrf.mxu0
    %v6442 = vadd.f32 %v6357, %v6441
    %v6443 = vpop.f32.mrf.mxu0
    %v6444 = vpop.f32.mrf.mxu0
    %v6445 = vadd.f32 %v6357, %v6444
    %v6446 = vpop.f32.mrf.mxu0
    %6447 = vmatprep.mubr.bf16.mxu0 0
    %6448 = vmatmul.mubr.bf16.gmra.mxu0 %v6345
    %v6449 = vpop.f32.mrf.mxu0
    %v6450 = vadd.f32 %v6357, %v6449
    %v6451 = vpop.f32.mrf.mxu0
    %v6452 = vpop.f32.mrf.mxu0
    %v6453 = vadd.f32 %v6357, %v6452
    %v6454 = vpop.f32.mrf.mxu0
    %6455 = vmatprep.mubr.bf16.mxu0 0
    %6456 = vmatmul.mubr.bf16.gmra.mxu0 %v6346
    %v6457 = vpop.f32.mrf.mxu0
    %v6458 = vadd.f32 %v6357, %v6457
    %v6459 = vpop.f32.mrf.mxu0
    %v6460 = vpop.f32.mrf.mxu0
    %v6461 = vadd.f32 %v6357, %v6460
    %v6462 = vpop.f32.mrf.mxu0
    %6463 = vmatprep.mubr.bf16.mxu0 0
    %6464 = vmatmul.mubr.bf16.gmra.mxu0 %v6347
    %v6465 = vpop.f32.mrf.mxu0
    %v6466 = vadd.f32 %v6357, %v6465
    %v6467 = vpop.f32.mrf.mxu0
    %v6468 = vpop.f32.mrf.mxu0
    %v6469 = vadd.f32 %v6357, %v6468
    %v6470 = vpop.f32.mrf.mxu0
    %6471 = vmatprep.mubr.bf16.mxu0 0
    %6472 = vmatmul.mubr.bf16.gmra.mxu0 %v6348
    %v6473 = vpop.f32.mrf.mxu0
    %v6474 = vadd.f32 %v6357, %v6473
    %v6475 = vpop.f32.mrf.mxu0
    %v6476 = vpop.f32.mrf.mxu0
    %v6477 = vadd.f32 %v6357, %v6476
    %v6478 = vpop.f32.mrf.mxu0
    %6479 = vmatprep.mubr.bf16.mxu0 0
    %6480 = vmatmul.mubr.bf16.gmra.mxu0 %v6349
    %v6481 = vpop.f32.mrf.mxu0
    %v6482 = vadd.f32 %v6357, %v6481
    %v6483 = vpop.f32.mrf.mxu0
    %v6484 = vpop.f32.mrf.mxu0
    %v6485 = vadd.f32 %v6357, %v6484
    %v6486 = vpop.f32.mrf.mxu0
    %6487 = vmatprep.mubr.bf16.mxu0 0
    %6488 = vmatmul.mubr.bf16.gmra.mxu0 %v6350
    %v6489 = vpop.f32.mrf.mxu0
    %v6490 = vadd.f32 %v6357, %v6489
    %v6491 = vpop.f32.mrf.mxu0
    %v6492 = vpop.f32.mrf.mxu0
    %v6493 = vadd.f32 %v6357, %v6492
    %v6494 = vpop.f32.mrf.mxu0
    %6495 = vmatprep.mubr.bf16.mxu0 0
    %6496 = vmatmul.mubr.bf16.gmra.mxu0 %v6351
    %v6497 = vpop.f32.mrf.mxu0
    %v6498 = vadd.f32 %v6357, %v6497
    %v6499 = vpop.f32.mrf.mxu0
    %v6500 = vpop.f32.mrf.mxu0
    %v6501 = vadd.f32 %v6357, %v6500
    %v6502 = vpop.f32.mrf.mxu0
    %6503 = vdwg.mxu0
    %v6504 = vmax.f32 %v6442, 0.0
    %v6505 = vmax.f32 %v6445, 0.0
    %v6506 = vmax.f32 %v6450, 0.0
    %v6507 = vmax.f32 %v6453, 0.0
    %v6508 = vmax.f32 %v6458, 0.0
    %v6509 = vmax.f32 %v6461, 0.0
    %v6510 = vmax.f32 %v6466, 0.0
    %v6511 = vmax.f32 %v6469, 0.0
    %v6512 = vmax.f32 %v6474, 0.0
    %v6513 = vmax.f32 %v6477, 0.0
    %v6514 = vmax.f32 %v6482, 0.0
    %v6515 = vmax.f32 %v6485, 0.0
    %v6516 = vmax.f32 %v6490, 0.0
    %v6517 = vmax.f32 %v6493, 0.0
    %v6518 = vmax.f32 %v6498, 0.0
    %v6519 = vmax.f32 %v6501, 0.0
    %s6520 = scalar_lea.vmem [#allocation6], 576
    %v6521 = vld [vmem:[%s6520] sm:$0xf]
    %v6522 = vld [vmem:[%s6520 + $0x4] sm:$0xf]
    %v6523 = vld [vmem:[%s6520 + $0x8] sm:$0xf]
    %v6524 = vld [vmem:[%s6520 + $0xc] sm:$0xf]
    %v6525 = vld [vmem:[%s6520 + $0x10] sm:$0xf]
    %v6526 = vld [vmem:[%s6520 + $0x14] sm:$0xf]
    %v6527 = vld [vmem:[%s6520 + $0x18] sm:$0xf]
    %v6528 = vld [vmem:[%s6520 + $0x1c] sm:$0xf]
    %v6529 = vld [vmem:[%s6520 + $0x20] sm:$0xf]
    %v6530 = vld [vmem:[%s6520 + $0x24] sm:$0xf]
    %v6531 = vld [vmem:[%s6520 + $0x28] sm:$0xf]
    %v6532 = vld [vmem:[%s6520 + $0x2c] sm:$0xf]
    %v6533 = vld [vmem:[%s6520 + $0x30] sm:$0xf]
    %v6534 = vld [vmem:[%s6520 + $0x34] sm:$0xf]
    %v6535 = vld [vmem:[%s6520 + $0x38] sm:$0xf]
    %v6536 = vld [vmem:[%s6520 + $0x3c] sm:$0xf]
    %v6537 = vpack.c.bf16 %v6505, %v6504
    %v6538 = vpack.c.bf16 %v6507, %v6506
    %v6539 = vpack.c.bf16 %v6509, %v6508
    %v6540 = vpack.c.bf16 %v6511, %v6510
    %v6541 = vpack.c.bf16 %v6513, %v6512
    %v6542 = vpack.c.bf16 %v6515, %v6514
    %v6543 = vpack.c.bf16 %v6517, %v6516
    %v6544 = vpack.c.bf16 %v6519, %v6518
    %v6545 = vld [vmem:[#allocation14 + $0x18] sm:$0x1]
    %v6547 = vlaneseq
    %v6548 = vshrl.u32 %v6547, 7
    %v6549 = vsub.s32 0, %v6548
    %v6550 = vrot.slane %v6545, %v6549
    %v6568 = vunpack.c.l.b16 %v6521
    %v6569 = vunpack.c.l.b16 %v6522
    %v6570 = vunpack.c.l.b16 %v6523
    %v6571 = vunpack.c.l.b16 %v6524
    %v6572 = vunpack.c.l.b16 %v6525
    %v6573 = vunpack.c.l.b16 %v6526
    %v6574 = vunpack.c.l.b16 %v6527
    %v6575 = vunpack.c.l.b16 %v6528
    %v6576 = vunpack.c.l.b16 %v6529
    %v6577 = vunpack.c.l.b16 %v6530
    %v6578 = vunpack.c.l.b16 %v6531
    %v6579 = vunpack.c.l.b16 %v6532
    %v6580 = vunpack.c.l.b16 %v6533
    %v6581 = vunpack.c.l.b16 %v6534
    %v6582 = vunpack.c.l.b16 %v6535
    %v6583 = vunpack.c.l.b16 %v6536
    %v6584 = vpack.c.b16 %v6569, %v6568
    %v6585 = vpack.c.b16 %v6571, %v6570
    %v6586 = vpack.c.b16 %v6573, %v6572
    %v6587 = vpack.c.b16 %v6575, %v6574
    %v6588 = vpack.c.b16 %v6577, %v6576
    %v6589 = vpack.c.b16 %v6579, %v6578
    %v6590 = vpack.c.b16 %v6581, %v6580
    %v6591 = vpack.c.b16 %v6583, %v6582
    %6600 = vmatprep.subr.bf16.mxu0 0
    %6601 = vmatpush1.bf16.msra.mxu0 %v6591
    %6602 = vmatprep.subr.bf16.mxu0 0
    %6603 = vmatpush1.bf16.msra.mxu0 %v6590
    %6604 = vmatprep.subr.bf16.mxu0 0
    %6605 = vmatpush1.bf16.msra.mxu0 %v6589
    %6606 = vmatprep.subr.bf16.mxu0 0
    %6607 = vmatpush1.bf16.msra.mxu0 %v6588
    %6608 = vmatprep.subr.bf16.mxu0 0
    %6609 = vmatpush1.bf16.msra.mxu0 %v6587
    %6610 = vmatprep.subr.bf16.mxu0 0
    %6611 = vmatpush1.bf16.msra.mxu0 %v6586
    %6612 = vmatprep.subr.bf16.mxu0 0
    %6613 = vmatpush1.bf16.msra.mxu0 %v6585
    %6614 = vmatprep.subr.bf16.mxu0 0
    %6615 = vmatpush1.bf16.msra.mxu0 %v6584
    %6616 = vmatprep.subr.bf16.mxu0 0
    %6617 = vmatpush2.bf16.msra.mxu0 0
    %6618 = vmatprep.subr.bf16.mxu0 0
    %6619 = vmatpush2.bf16.msra.mxu0 0
    %6620 = vmatprep.subr.bf16.mxu0 0
    %6621 = vmatpush2.bf16.msra.mxu0 0
    %6622 = vmatprep.subr.bf16.mxu0 0
    %6623 = vmatpush2.bf16.msra.mxu0 0
    %6624 = vmatprep.subr.bf16.mxu0 0
    %6625 = vmatpush2.bf16.msra.mxu0 0
    %6626 = vmatprep.subr.bf16.mxu0 0
    %6627 = vmatpush2.bf16.msra.mxu0 0
    %6628 = vmatprep.subr.bf16.mxu0 0
    %6629 = vmatpush2.bf16.msra.mxu0 0
    %6630 = vmatprep.subr.bf16.mxu0 0
    %6631 = vmatpush2.bf16.msra.mxu0 0
    %6632 = vmatprep.mubr.bf16.mxu0 0
    %6633 = vmatmul.mubr.bf16.gmra.mxu0 %v6537
    %v6634 = vpop.f32.mrf.mxu0
    %v6635 = vadd.f32 %v6550, %v6634
    %v6636 = vpop.f32.mrf.mxu0
    %v6637 = vpop.f32.mrf.mxu0
    %v6638 = vadd.f32 %v6550, %v6637
    %v6639 = vpop.f32.mrf.mxu0
    %6640 = vmatprep.mubr.bf16.mxu0 0
    %6641 = vmatmul.mubr.bf16.gmra.mxu0 %v6538
    %v6642 = vpop.f32.mrf.mxu0
    %v6643 = vadd.f32 %v6550, %v6642
    %v6644 = vpop.f32.mrf.mxu0
    %v6645 = vpop.f32.mrf.mxu0
    %v6646 = vadd.f32 %v6550, %v6645
    %v6647 = vpop.f32.mrf.mxu0
    %6648 = vmatprep.mubr.bf16.mxu0 0
    %6649 = vmatmul.mubr.bf16.gmra.mxu0 %v6539
    %v6650 = vpop.f32.mrf.mxu0
    %v6651 = vadd.f32 %v6550, %v6650
    %v6652 = vpop.f32.mrf.mxu0
    %v6653 = vpop.f32.mrf.mxu0
    %v6654 = vadd.f32 %v6550, %v6653
    %v6655 = vpop.f32.mrf.mxu0
    %6656 = vmatprep.mubr.bf16.mxu0 0
    %6657 = vmatmul.mubr.bf16.gmra.mxu0 %v6540
    %v6658 = vpop.f32.mrf.mxu0
    %v6659 = vadd.f32 %v6550, %v6658
    %v6660 = vpop.f32.mrf.mxu0
    %v6661 = vpop.f32.mrf.mxu0
    %v6662 = vadd.f32 %v6550, %v6661
    %v6663 = vpop.f32.mrf.mxu0
    %6664 = vmatprep.mubr.bf16.mxu0 0
    %6665 = vmatmul.mubr.bf16.gmra.mxu0 %v6541
    %v6666 = vpop.f32.mrf.mxu0
    %v6667 = vadd.f32 %v6550, %v6666
    %v6668 = vpop.f32.mrf.mxu0
    %v6669 = vpop.f32.mrf.mxu0
    %v6670 = vadd.f32 %v6550, %v6669
    %v6671 = vpop.f32.mrf.mxu0
    %6672 = vmatprep.mubr.bf16.mxu0 0
    %6673 = vmatmul.mubr.bf16.gmra.mxu0 %v6542
    %v6674 = vpop.f32.mrf.mxu0
    %v6675 = vadd.f32 %v6550, %v6674
    %v6676 = vpop.f32.mrf.mxu0
    %v6677 = vpop.f32.mrf.mxu0
    %v6678 = vadd.f32 %v6550, %v6677
    %v6679 = vpop.f32.mrf.mxu0
    %6680 = vmatprep.mubr.bf16.mxu0 0
    %6681 = vmatmul.mubr.bf16.gmra.mxu0 %v6543
    %v6682 = vpop.f32.mrf.mxu0
    %v6683 = vadd.f32 %v6550, %v6682
    %v6684 = vpop.f32.mrf.mxu0
    %v6685 = vpop.f32.mrf.mxu0
    %v6686 = vadd.f32 %v6550, %v6685
    %v6687 = vpop.f32.mrf.mxu0
    %6688 = vmatprep.mubr.bf16.mxu0 0
    %6689 = vmatmul.mubr.bf16.gmra.mxu0 %v6544
    %v6690 = vpop.f32.mrf.mxu0
    %v6691 = vadd.f32 %v6550, %v6690
    %v6692 = vpop.f32.mrf.mxu0
    %v6693 = vpop.f32.mrf.mxu0
    %v6694 = vadd.f32 %v6550, %v6693
    %v6695 = vpop.f32.mrf.mxu0
    %6696 = vdwg.mxu0
    %v6697 = vmax.f32 %v6635, 0.0
    %v6698 = vmax.f32 %v6638, 0.0
    %v6699 = vmax.f32 %v6643, 0.0
    %v6700 = vmax.f32 %v6646, 0.0
    %v6701 = vmax.f32 %v6651, 0.0
    %v6702 = vmax.f32 %v6654, 0.0
    %v6703 = vmax.f32 %v6659, 0.0
    %v6704 = vmax.f32 %v6662, 0.0
    %v6705 = vmax.f32 %v6667, 0.0
    %v6706 = vmax.f32 %v6670, 0.0
    %v6707 = vmax.f32 %v6675, 0.0
    %v6708 = vmax.f32 %v6678, 0.0
    %v6709 = vmax.f32 %v6683, 0.0
    %v6710 = vmax.f32 %v6686, 0.0
    %v6711 = vmax.f32 %v6691, 0.0
    %v6712 = vmax.f32 %v6694, 0.0
    // Predicated region
    $region74: #{_forward_jit.1} parent=1 // pred_check
      %p6713 = pneg %p41
    $region75: #{_forward_jit.1} parent=1 // pred_check_branch
      %6715 = sbr.rel (%p6713) target = $region77
    $region76: #{_forward_jit.1} parent=1 // pred_region
      %s6716 = scalar_lea.sflag [#allocation11], 5
      %s6717 = smul.u32 4, 16
      %s6718 = smul.u32 %s6717, 2
      %s6719 = sshll.u32 %s6718, 4
      %6720 = dma.done %s6716, %s6719
    $region77: #{_forward_jit.1} parent=1 // pred_fallthru
      _
    %v6721 = vld [vmem:[#allocation7] sm:$0xff]
    %v6722 = vld [vmem:[#allocation7 + $0x8] sm:$0xff]
    %v6723 = vld [vmem:[#allocation7 + $0x10] sm:$0xff]
    %v6724 = vld [vmem:[#allocation7 + $0x18] sm:$0xff]
    %v6725 = vld [vmem:[#allocation7 + $0x20] sm:$0xff]
    %v6726 = vld [vmem:[#allocation7 + $0x28] sm:$0xff]
    %v6727 = vld [vmem:[#allocation7 + $0x30] sm:$0xff]
    %v6728 = vld [vmem:[#allocation7 + $0x38] sm:$0xff]
    %v6729 = vld [vmem:[#allocation7 + $0x40] sm:$0xff]
    %v6730 = vld [vmem:[#allocation7 + $0x48] sm:$0xff]
    %v6731 = vld [vmem:[#allocation7 + $0x50] sm:$0xff]
    %v6732 = vld [vmem:[#allocation7 + $0x58] sm:$0xff]
    %v6733 = vld [vmem:[#allocation7 + $0x60] sm:$0xff]
    %v6734 = vld [vmem:[#allocation7 + $0x68] sm:$0xff]
    %v6735 = vld [vmem:[#allocation7 + $0x70] sm:$0xff]
    %v6736 = vld [vmem:[#allocation7 + $0x78] sm:$0xff]
    %v6737 = vpack.c.bf16 %v6698, %v6697
    %v6738 = vpack.c.bf16 %v6700, %v6699
    %v6739 = vpack.c.bf16 %v6702, %v6701
    %v6740 = vpack.c.bf16 %v6704, %v6703
    %v6741 = vpack.c.bf16 %v6706, %v6705
    %v6742 = vpack.c.bf16 %v6708, %v6707
    %v6743 = vpack.c.bf16 %v6710, %v6709
    %v6744 = vpack.c.bf16 %v6712, %v6711
    %v6745 = vld [vmem:[#allocation14 + $0x19] sm:$0x3]
    %v6747 = vlaneseq
    %v6748 = vshrl.u32 %v6747, 7
    %v6749 = vsub.s32 0, %v6748
    %v6750 = vrot.slane %v6745, %v6749
    %v6751 = vlaneseq
    %v6752 = vshrl.u32 %v6751, 7
    %v6753 = vsub.s32 1, %v6752
    %v6754 = vrot.slane %v6745, %v6753
    %v6773 = vunpack.c.l.b16 %v6721
    %v6774 = vunpack.c.h.b16 %v6721
    %v6775 = vunpack.c.l.b16 %v6722
    %v6776 = vunpack.c.h.b16 %v6722
    %v6777 = vunpack.c.l.b16 %v6723
    %v6778 = vunpack.c.h.b16 %v6723
    %v6779 = vunpack.c.l.b16 %v6724
    %v6780 = vunpack.c.h.b16 %v6724
    %v6781 = vunpack.c.l.b16 %v6725
    %v6782 = vunpack.c.h.b16 %v6725
    %v6783 = vunpack.c.l.b16 %v6726
    %v6784 = vunpack.c.h.b16 %v6726
    %v6785 = vunpack.c.l.b16 %v6727
    %v6786 = vunpack.c.h.b16 %v6727
    %v6787 = vunpack.c.l.b16 %v6728
    %v6788 = vunpack.c.h.b16 %v6728
    %v6789 = vunpack.c.l.b16 %v6729
    %v6790 = vunpack.c.h.b16 %v6729
    %v6791 = vunpack.c.l.b16 %v6730
    %v6792 = vunpack.c.h.b16 %v6730
    %v6793 = vunpack.c.l.b16 %v6731
    %v6794 = vunpack.c.h.b16 %v6731
    %v6795 = vunpack.c.l.b16 %v6732
    %v6796 = vunpack.c.h.b16 %v6732
    %v6797 = vunpack.c.l.b16 %v6733
    %v6798 = vunpack.c.h.b16 %v6733
    %v6799 = vunpack.c.l.b16 %v6734
    %v6800 = vunpack.c.h.b16 %v6734
    %v6801 = vunpack.c.l.b16 %v6735
    %v6802 = vunpack.c.h.b16 %v6735
    %v6803 = vunpack.c.l.b16 %v6736
    %v6804 = vunpack.c.h.b16 %v6736
    %v6805 = vpack.c.b16 %v6775, %v6773
    %v6806 = vpack.c.b16 %v6776, %v6774
    %v6807 = vpack.c.b16 %v6779, %v6777
    %v6808 = vpack.c.b16 %v6780, %v6778
    %v6809 = vpack.c.b16 %v6783, %v6781
    %v6810 = vpack.c.b16 %v6784, %v6782
    %v6811 = vpack.c.b16 %v6787, %v6785
    %v6812 = vpack.c.b16 %v6788, %v6786
    %v6813 = vpack.c.b16 %v6791, %v6789
    %v6814 = vpack.c.b16 %v6792, %v6790
    %v6815 = vpack.c.b16 %v6795, %v6793
    %v6816 = vpack.c.b16 %v6796, %v6794
    %v6817 = vpack.c.b16 %v6799, %v6797
    %v6818 = vpack.c.b16 %v6800, %v6798
    %v6819 = vpack.c.b16 %v6803, %v6801
    %v6820 = vpack.c.b16 %v6804, %v6802
    %6837 = vmatprep.subr.bf16.mxu0 %v6820
    %6838 = vmatpush1.bf16.msra.mxu0 %v6819
    %6839 = vmatprep.subr.bf16.mxu0 %v6818
    %6840 = vmatpush1.bf16.msra.mxu0 %v6817
    %6841 = vmatprep.subr.bf16.mxu0 %v6816
    %6842 = vmatpush1.bf16.msra.mxu0 %v6815
    %6843 = vmatprep.subr.bf16.mxu0 %v6814
    %6844 = vmatpush1.bf16.msra.mxu0 %v6813
    %6845 = vmatprep.subr.bf16.mxu0 %v6812
    %6846 = vmatpush1.bf16.msra.mxu0 %v6811
    %6847 = vmatprep.subr.bf16.mxu0 %v6810
    %6848 = vmatpush1.bf16.msra.mxu0 %v6809
    %6849 = vmatprep.subr.bf16.mxu0 %v6808
    %6850 = vmatpush1.bf16.msra.mxu0 %v6807
    %6851 = vmatprep.subr.bf16.mxu0 %v6806
    %6852 = vmatpush1.bf16.msra.mxu0 %v6805
    %6853 = vmatprep.subr.bf16.mxu0 0
    %6854 = vmatpush2.bf16.msra.mxu0 0
    %6855 = vmatprep.subr.bf16.mxu0 0
    %6856 = vmatpush2.bf16.msra.mxu0 0
    %6857 = vmatprep.subr.bf16.mxu0 0
    %6858 = vmatpush2.bf16.msra.mxu0 0
    %6859 = vmatprep.subr.bf16.mxu0 0
    %6860 = vmatpush2.bf16.msra.mxu0 0
    %6861 = vmatprep.subr.bf16.mxu0 0
    %6862 = vmatpush2.bf16.msra.mxu0 0
    %6863 = vmatprep.subr.bf16.mxu0 0
    %6864 = vmatpush2.bf16.msra.mxu0 0
    %6865 = vmatprep.subr.bf16.mxu0 0
    %6866 = vmatpush2.bf16.msra.mxu0 0
    %6867 = vmatprep.subr.bf16.mxu0 0
    %6868 = vmatpush2.bf16.msra.mxu0 0
    %6869 = vmatprep.mubr.bf16.mxu0 0
    %6870 = vmatmul.mubr.bf16.gmra.mxu0 %v6737
    %v6871 = vpop.f32.mrf.mxu0
    %v6872 = vadd.f32 %v6750, %v6871
    %v6873 = vpop.f32.mrf.mxu0
    %v6874 = vadd.f32 %v6754, %v6873
    %v6875 = vpop.f32.mrf.mxu0
    %v6876 = vadd.f32 %v6750, %v6875
    %v6877 = vpop.f32.mrf.mxu0
    %v6878 = vadd.f32 %v6754, %v6877
    %6879 = vmatprep.mubr.bf16.mxu0 0
    %6880 = vmatmul.mubr.bf16.gmra.mxu0 %v6738
    %v6881 = vpop.f32.mrf.mxu0
    %v6882 = vadd.f32 %v6750, %v6881
    %v6883 = vpop.f32.mrf.mxu0
    %v6884 = vadd.f32 %v6754, %v6883
    %v6885 = vpop.f32.mrf.mxu0
    %v6886 = vadd.f32 %v6750, %v6885
    %v6887 = vpop.f32.mrf.mxu0
    %v6888 = vadd.f32 %v6754, %v6887
    %6889 = vmatprep.mubr.bf16.mxu0 0
    %6890 = vmatmul.mubr.bf16.gmra.mxu0 %v6739
    %v6891 = vpop.f32.mrf.mxu0
    %v6892 = vadd.f32 %v6750, %v6891
    %v6893 = vpop.f32.mrf.mxu0
    %v6894 = vadd.f32 %v6754, %v6893
    %v6895 = vpop.f32.mrf.mxu0
    %v6896 = vadd.f32 %v6750, %v6895
    %v6897 = vpop.f32.mrf.mxu0
    %v6898 = vadd.f32 %v6754, %v6897
    %6899 = vmatprep.mubr.bf16.mxu0 0
    %6900 = vmatmul.mubr.bf16.gmra.mxu0 %v6740
    %v6901 = vpop.f32.mrf.mxu0
    %v6902 = vadd.f32 %v6750, %v6901
    %v6903 = vpop.f32.mrf.mxu0
    %v6904 = vadd.f32 %v6754, %v6903
    %v6905 = vpop.f32.mrf.mxu0
    %v6906 = vadd.f32 %v6750, %v6905
    %v6907 = vpop.f32.mrf.mxu0
    %v6908 = vadd.f32 %v6754, %v6907
    %6909 = vmatprep.mubr.bf16.mxu0 0
    %6910 = vmatmul.mubr.bf16.gmra.mxu0 %v6741
    %v6911 = vpop.f32.mrf.mxu0
    %v6912 = vadd.f32 %v6750, %v6911
    %v6913 = vpop.f32.mrf.mxu0
    %v6914 = vadd.f32 %v6754, %v6913
    %v6915 = vpop.f32.mrf.mxu0
    %v6916 = vadd.f32 %v6750, %v6915
    %v6917 = vpop.f32.mrf.mxu0
    %v6918 = vadd.f32 %v6754, %v6917
    %6919 = vmatprep.mubr.bf16.mxu0 0
    %6920 = vmatmul.mubr.bf16.gmra.mxu0 %v6742
    %v6921 = vpop.f32.mrf.mxu0
    %v6922 = vadd.f32 %v6750, %v6921
    %v6923 = vpop.f32.mrf.mxu0
    %v6924 = vadd.f32 %v6754, %v6923
    %v6925 = vpop.f32.mrf.mxu0
    %v6926 = vadd.f32 %v6750, %v6925
    %v6927 = vpop.f32.mrf.mxu0
    %v6928 = vadd.f32 %v6754, %v6927
    %6929 = vmatprep.mubr.bf16.mxu0 0
    %6930 = vmatmul.mubr.bf16.gmra.mxu0 %v6743
    %v6931 = vpop.f32.mrf.mxu0
    %v6932 = vadd.f32 %v6750, %v6931
    %v6933 = vpop.f32.mrf.mxu0
    %v6934 = vadd.f32 %v6754, %v6933
    %v6935 = vpop.f32.mrf.mxu0
    %v6936 = vadd.f32 %v6750, %v6935
    %v6937 = vpop.f32.mrf.mxu0
    %v6938 = vadd.f32 %v6754, %v6937
    %6939 = vmatprep.mubr.bf16.mxu0 0
    %6940 = vmatmul.mubr.bf16.gmra.mxu0 %v6744
    %v6941 = vpop.f32.mrf.mxu0
    %v6942 = vadd.f32 %v6750, %v6941
    %v6943 = vpop.f32.mrf.mxu0
    %v6944 = vadd.f32 %v6754, %v6943
    %v6945 = vpop.f32.mrf.mxu0
    %v6946 = vadd.f32 %v6750, %v6945
    %v6947 = vpop.f32.mrf.mxu0
    %v6948 = vadd.f32 %v6754, %v6947
    %6949 = vdwg.mxu0
    %v6950 = vmax.f32 %v6872, 0.0
    %v6951 = vmax.f32 %v6874, 0.0
    %v6952 = vmax.f32 %v6876, 0.0
    %v6953 = vmax.f32 %v6878, 0.0
    %v6954 = vmax.f32 %v6882, 0.0
    %v6955 = vmax.f32 %v6884, 0.0
    %v6956 = vmax.f32 %v6886, 0.0
    %v6957 = vmax.f32 %v6888, 0.0
    %v6958 = vmax.f32 %v6892, 0.0
    %v6959 = vmax.f32 %v6894, 0.0
    %v6960 = vmax.f32 %v6896, 0.0
    %v6961 = vmax.f32 %v6898, 0.0
    %v6962 = vmax.f32 %v6902, 0.0
    %v6963 = vmax.f32 %v6904, 0.0
    %v6964 = vmax.f32 %v6906, 0.0
    %v6965 = vmax.f32 %v6908, 0.0
    %v6966 = vmax.f32 %v6912, 0.0
    %v6967 = vmax.f32 %v6914, 0.0
    %v6968 = vmax.f32 %v6916, 0.0
    %v6969 = vmax.f32 %v6918, 0.0
    %v6970 = vmax.f32 %v6922, 0.0
    %v6971 = vmax.f32 %v6924, 0.0
    %v6972 = vmax.f32 %v6926, 0.0
    %v6973 = vmax.f32 %v6928, 0.0
    %v6974 = vmax.f32 %v6932, 0.0
    %v6975 = vmax.f32 %v6934, 0.0
    %v6976 = vmax.f32 %v6936, 0.0
    %v6977 = vmax.f32 %v6938, 0.0
    %v6978 = vmax.f32 %v6942, 0.0
    %v6979 = vmax.f32 %v6944, 0.0
    %v6980 = vmax.f32 %v6946, 0.0
    %v6981 = vmax.f32 %v6948, 0.0
    // Predicated region
    $region78: #{_forward_jit.1} parent=1 // pred_check
      %p6982 = pneg %p41
    $region79: #{_forward_jit.1} parent=1 // pred_check_branch
      %6984 = sbr.rel (%p6982) target = $region81
    $region80: #{_forward_jit.1} parent=1 // pred_region
      %s6985 = scalar_lea.sflag [#allocation11], 6
      %s6986 = smul.u32 4, 32
      %s6987 = smul.u32 %s6986, 4
      %s6988 = sshll.u32 %s6987, 4
      %6989 = dma.done %s6985, %s6988
    $region81: #{_forward_jit.1} parent=1 // pred_fallthru
      _
    %v6990 = vld [vmem:[#allocation8] sm:$0xff]
    %v6991 = vld [vmem:[#allocation8 + $0x8] sm:$0xff]
    %v6992 = vld [vmem:[#allocation8 + $0x10] sm:$0xff]
    %v6993 = vld [vmem:[#allocation8 + $0x18] sm:$0xff]
    %v6994 = vld [vmem:[#allocation8 + $0x20] sm:$0xff]
    %v6995 = vld [vmem:[#allocation8 + $0x28] sm:$0xff]
    %v6996 = vld [vmem:[#allocation8 + $0x30] sm:$0xff]
    %v6997 = vld [vmem:[#allocation8 + $0x38] sm:$0xff]
    %v6998 = vld [vmem:[#allocation8 + $0x40] sm:$0xff]
    %v6999 = vld [vmem:[#allocation8 + $0x48] sm:$0xff]
    %v7000 = vld [vmem:[#allocation8 + $0x50] sm:$0xff]
    %v7001 = vld [vmem:[#allocation8 + $0x58] sm:$0xff]
    %v7002 = vld [vmem:[#allocation8 + $0x60] sm:$0xff]
    %v7003 = vld [vmem:[#allocation8 + $0x68] sm:$0xff]
    %v7004 = vld [vmem:[#allocation8 + $0x70] sm:$0xff]
    %v7005 = vld [vmem:[#allocation8 + $0x78] sm:$0xff]
    %v7006 = vld [vmem:[#allocation8 + $0x80] sm:$0xff]
    %v7007 = vld [vmem:[#allocation8 + $0x88] sm:$0xff]
    %v7008 = vld [vmem:[#allocation8 + $0x90] sm:$0xff]
    %v7009 = vld [vmem:[#allocation8 + $0x98] sm:$0xff]
    %v7010 = vld [vmem:[#allocation8 + $0xa0] sm:$0xff]
    %v7011 = vld [vmem:[#allocation8 + $0xa8] sm:$0xff]
    %v7012 = vld [vmem:[#allocation8 + $0xb0] sm:$0xff]
    %v7013 = vld [vmem:[#allocation8 + $0xb8] sm:$0xff]
    %v7014 = vld [vmem:[#allocation8 + $0xc0] sm:$0xff]
    %v7015 = vld [vmem:[#allocation8 + $0xc8] sm:$0xff]
    %v7016 = vld [vmem:[#allocation8 + $0xd0] sm:$0xff]
    %v7017 = vld [vmem:[#allocation8 + $0xd8] sm:$0xff]
    %v7018 = vld [vmem:[#allocation8 + $0xe0] sm:$0xff]
    %v7019 = vld [vmem:[#allocation8 + $0xe8] sm:$0xff]
    %v7020 = vld [vmem:[#allocation8 + $0xf0] sm:$0xff]
    %v7021 = vld [vmem:[#allocation8 + $0xf8] sm:$0xff]
    %v7022 = vld [vmem:[#allocation8 + $0x100] sm:$0xff]
    %v7023 = vld [vmem:[#allocation8 + $0x108] sm:$0xff]
    %v7024 = vld [vmem:[#allocation8 + $0x110] sm:$0xff]
    %v7025 = vld [vmem:[#allocation8 + $0x118] sm:$0xff]
    %v7026 = vld [vmem:[#allocation8 + $0x120] sm:$0xff]
    %v7027 = vld [vmem:[#allocation8 + $0x128] sm:$0xff]
    %v7028 = vld [vmem:[#allocation8 + $0x130] sm:$0xff]
    %v7029 = vld [vmem:[#allocation8 + $0x138] sm:$0xff]
    %v7030 = vld [vmem:[#allocation8 + $0x140] sm:$0xff]
    %v7031 = vld [vmem:[#allocation8 + $0x148] sm:$0xff]
    %v7032 = vld [vmem:[#allocation8 + $0x150] sm:$0xff]
    %v7033 = vld [vmem:[#allocation8 + $0x158] sm:$0xff]
    %v7034 = vld [vmem:[#allocation8 + $0x160] sm:$0xff]
    %v7035 = vld [vmem:[#allocation8 + $0x168] sm:$0xff]
    %v7036 = vld [vmem:[#allocation8 + $0x170] sm:$0xff]
    %v7037 = vld [vmem:[#allocation8 + $0x178] sm:$0xff]
    %v7038 = vld [vmem:[#allocation8 + $0x180] sm:$0xff]
    %v7039 = vld [vmem:[#allocation8 + $0x188] sm:$0xff]
    %v7040 = vld [vmem:[#allocation8 + $0x190] sm:$0xff]
    %v7041 = vld [vmem:[#allocation8 + $0x198] sm:$0xff]
    %v7042 = vld [vmem:[#allocation8 + $0x1a0] sm:$0xff]
    %v7043 = vld [vmem:[#allocation8 + $0x1a8] sm:$0xff]
    %v7044 = vld [vmem:[#allocation8 + $0x1b0] sm:$0xff]
    %v7045 = vld [vmem:[#allocation8 + $0x1b8] sm:$0xff]
    %v7046 = vld [vmem:[#allocation8 + $0x1c0] sm:$0xff]
    %v7047 = vld [vmem:[#allocation8 + $0x1c8] sm:$0xff]
    %v7048 = vld [vmem:[#allocation8 + $0x1d0] sm:$0xff]
    %v7049 = vld [vmem:[#allocation8 + $0x1d8] sm:$0xff]
    %v7050 = vld [vmem:[#allocation8 + $0x1e0] sm:$0xff]
    %v7051 = vld [vmem:[#allocation8 + $0x1e8] sm:$0xff]
    %v7052 = vld [vmem:[#allocation8 + $0x1f0] sm:$0xff]
    %v7053 = vld [vmem:[#allocation8 + $0x1f8] sm:$0xff]
    %v7054 = vpack.c.bf16 %v6952, %v6950
    %v7055 = vpack.c.bf16 %v6953, %v6951
    %v7056 = vpack.c.bf16 %v6956, %v6954
    %v7057 = vpack.c.bf16 %v6957, %v6955
    %v7058 = vpack.c.bf16 %v6960, %v6958
    %v7059 = vpack.c.bf16 %v6961, %v6959
    %v7060 = vpack.c.bf16 %v6964, %v6962
    %v7061 = vpack.c.bf16 %v6965, %v6963
    %v7062 = vpack.c.bf16 %v6968, %v6966
    %v7063 = vpack.c.bf16 %v6969, %v6967
    %v7064 = vpack.c.bf16 %v6972, %v6970
    %v7065 = vpack.c.bf16 %v6973, %v6971
    %v7066 = vpack.c.bf16 %v6976, %v6974
    %v7067 = vpack.c.bf16 %v6977, %v6975
    %v7068 = vpack.c.bf16 %v6980, %v6978
    %v7069 = vpack.c.bf16 %v6981, %v6979
    %v7070 = vld [vmem:[#allocation14 + $0x1b] sm:$0xf]
    %v7072 = vlaneseq
    %v7073 = vshrl.u32 %v7072, 7
    %v7074 = vsub.s32 0, %v7073
    %v7075 = vrot.slane %v7070, %v7074
    %v7076 = vlaneseq
    %v7077 = vshrl.u32 %v7076, 7
    %v7078 = vsub.s32 1, %v7077
    %v7079 = vrot.slane %v7070, %v7078
    %v7080 = vlaneseq
    %v7081 = vshrl.u32 %v7080, 7
    %v7082 = vsub.s32 2, %v7081
    %v7083 = vrot.slane %v7070, %v7082
    %v7084 = vlaneseq
    %v7085 = vshrl.u32 %v7084, 7
    %v7086 = vsub.s32 3, %v7085
    %v7087 = vrot.slane %v7070, %v7086
    %v7156 = vunpack.c.l.b16 %v6990
    %v7157 = vunpack.c.h.b16 %v6990
    %v7158 = vunpack.c.l.b16 %v6991
    %v7159 = vunpack.c.h.b16 %v6991
    %v7160 = vunpack.c.l.b16 %v6992
    %v7161 = vunpack.c.h.b16 %v6992
    %v7162 = vunpack.c.l.b16 %v6993
    %v7163 = vunpack.c.h.b16 %v6993
    %v7164 = vunpack.c.l.b16 %v6994
    %v7165 = vunpack.c.h.b16 %v6994
    %v7166 = vunpack.c.l.b16 %v6995
    %v7167 = vunpack.c.h.b16 %v6995
    %v7168 = vunpack.c.l.b16 %v6996
    %v7169 = vunpack.c.h.b16 %v6996
    %v7170 = vunpack.c.l.b16 %v6997
    %v7171 = vunpack.c.h.b16 %v6997
    %v7172 = vunpack.c.l.b16 %v6998
    %v7173 = vunpack.c.h.b16 %v6998
    %v7174 = vunpack.c.l.b16 %v6999
    %v7175 = vunpack.c.h.b16 %v6999
    %v7176 = vunpack.c.l.b16 %v7000
    %v7177 = vunpack.c.h.b16 %v7000
    %v7178 = vunpack.c.l.b16 %v7001
    %v7179 = vunpack.c.h.b16 %v7001
    %v7180 = vunpack.c.l.b16 %v7002
    %v7181 = vunpack.c.h.b16 %v7002
    %v7182 = vunpack.c.l.b16 %v7003
    %v7183 = vunpack.c.h.b16 %v7003
    %v7184 = vunpack.c.l.b16 %v7004
    %v7185 = vunpack.c.h.b16 %v7004
    %v7186 = vunpack.c.l.b16 %v7005
    %v7187 = vunpack.c.h.b16 %v7005
    %v7188 = vunpack.c.l.b16 %v7006
    %v7189 = vunpack.c.h.b16 %v7006
    %v7190 = vunpack.c.l.b16 %v7007
    %v7191 = vunpack.c.h.b16 %v7007
    %v7192 = vunpack.c.l.b16 %v7008
    %v7193 = vunpack.c.h.b16 %v7008
    %v7194 = vunpack.c.l.b16 %v7009
    %v7195 = vunpack.c.h.b16 %v7009
    %v7196 = vunpack.c.l.b16 %v7010
    %v7197 = vunpack.c.h.b16 %v7010
    %v7198 = vunpack.c.l.b16 %v7011
    %v7199 = vunpack.c.h.b16 %v7011
    %v7200 = vunpack.c.l.b16 %v7012
    %v7201 = vunpack.c.h.b16 %v7012
    %v7202 = vunpack.c.l.b16 %v7013
    %v7203 = vunpack.c.h.b16 %v7013
    %v7204 = vunpack.c.l.b16 %v7014
    %v7205 = vunpack.c.h.b16 %v7014
    %v7206 = vunpack.c.l.b16 %v7015
    %v7207 = vunpack.c.h.b16 %v7015
    %v7208 = vunpack.c.l.b16 %v7016
    %v7209 = vunpack.c.h.b16 %v7016
    %v7210 = vunpack.c.l.b16 %v7017
    %v7211 = vunpack.c.h.b16 %v7017
    %v7212 = vunpack.c.l.b16 %v7018
    %v7213 = vunpack.c.h.b16 %v7018
    %v7214 = vunpack.c.l.b16 %v7019
    %v7215 = vunpack.c.h.b16 %v7019
    %v7216 = vunpack.c.l.b16 %v7020
    %v7217 = vunpack.c.h.b16 %v7020
    %v7218 = vunpack.c.l.b16 %v7021
    %v7219 = vunpack.c.h.b16 %v7021
    %v7220 = vunpack.c.l.b16 %v7022
    %v7221 = vunpack.c.h.b16 %v7022
    %v7222 = vunpack.c.l.b16 %v7023
    %v7223 = vunpack.c.h.b16 %v7023
    %v7224 = vunpack.c.l.b16 %v7024
    %v7225 = vunpack.c.h.b16 %v7024
    %v7226 = vunpack.c.l.b16 %v7025
    %v7227 = vunpack.c.h.b16 %v7025
    %v7228 = vunpack.c.l.b16 %v7026
    %v7229 = vunpack.c.h.b16 %v7026
    %v7230 = vunpack.c.l.b16 %v7027
    %v7231 = vunpack.c.h.b16 %v7027
    %v7232 = vunpack.c.l.b16 %v7028
    %v7233 = vunpack.c.h.b16 %v7028
    %v7234 = vunpack.c.l.b16 %v7029
    %v7235 = vunpack.c.h.b16 %v7029
    %v7236 = vunpack.c.l.b16 %v7030
    %v7237 = vunpack.c.h.b16 %v7030
    %v7238 = vunpack.c.l.b16 %v7031
    %v7239 = vunpack.c.h.b16 %v7031
    %v7240 = vunpack.c.l.b16 %v7032
    %v7241 = vunpack.c.h.b16 %v7032
    %v7242 = vunpack.c.l.b16 %v7033
    %v7243 = vunpack.c.h.b16 %v7033
    %v7244 = vunpack.c.l.b16 %v7034
    %v7245 = vunpack.c.h.b16 %v7034
    %v7246 = vunpack.c.l.b16 %v7035
    %v7247 = vunpack.c.h.b16 %v7035
    %v7248 = vunpack.c.l.b16 %v7036
    %v7249 = vunpack.c.h.b16 %v7036
    %v7250 = vunpack.c.l.b16 %v7037
    %v7251 = vunpack.c.h.b16 %v7037
    %v7252 = vunpack.c.l.b16 %v7038
    %v7253 = vunpack.c.h.b16 %v7038
    %v7254 = vunpack.c.l.b16 %v7039
    %v7255 = vunpack.c.h.b16 %v7039
    %v7256 = vunpack.c.l.b16 %v7040
    %v7257 = vunpack.c.h.b16 %v7040
    %v7258 = vunpack.c.l.b16 %v7041
    %v7259 = vunpack.c.h.b16 %v7041
    %v7260 = vunpack.c.l.b16 %v7042
    %v7261 = vunpack.c.h.b16 %v7042
    %v7262 = vunpack.c.l.b16 %v7043
    %v7263 = vunpack.c.h.b16 %v7043
    %v7264 = vunpack.c.l.b16 %v7044
    %v7265 = vunpack.c.h.b16 %v7044
    %v7266 = vunpack.c.l.b16 %v7045
    %v7267 = vunpack.c.h.b16 %v7045
    %v7268 = vunpack.c.l.b16 %v7046
    %v7269 = vunpack.c.h.b16 %v7046
    %v7270 = vunpack.c.l.b16 %v7047
    %v7271 = vunpack.c.h.b16 %v7047
    %v7272 = vunpack.c.l.b16 %v7048
    %v7273 = vunpack.c.h.b16 %v7048
    %v7274 = vunpack.c.l.b16 %v7049
    %v7275 = vunpack.c.h.b16 %v7049
    %v7276 = vunpack.c.l.b16 %v7050
    %v7277 = vunpack.c.h.b16 %v7050
    %v7278 = vunpack.c.l.b16 %v7051
    %v7279 = vunpack.c.h.b16 %v7051
    %v7280 = vunpack.c.l.b16 %v7052
    %v7281 = vunpack.c.h.b16 %v7052
    %v7282 = vunpack.c.l.b16 %v7053
    %v7283 = vunpack.c.h.b16 %v7053
    %v7284 = vpack.c.b16 %v7160, %v7156
    %v7285 = vpack.c.b16 %v7161, %v7157
    %v7286 = vpack.c.b16 %v7162, %v7158
    %v7287 = vpack.c.b16 %v7163, %v7159
    %v7288 = vpack.c.b16 %v7168, %v7164
    %v7289 = vpack.c.b16 %v7169, %v7165
    %v7290 = vpack.c.b16 %v7170, %v7166
    %v7291 = vpack.c.b16 %v7171, %v7167
    %v7292 = vpack.c.b16 %v7176, %v7172
    %v7293 = vpack.c.b16 %v7177, %v7173
    %v7294 = vpack.c.b16 %v7178, %v7174
    %v7295 = vpack.c.b16 %v7179, %v7175
    %v7296 = vpack.c.b16 %v7184, %v7180
    %v7297 = vpack.c.b16 %v7185, %v7181
    %v7298 = vpack.c.b16 %v7186, %v7182
    %v7299 = vpack.c.b16 %v7187, %v7183
    %v7300 = vpack.c.b16 %v7192, %v7188
    %v7301 = vpack.c.b16 %v7193, %v7189
    %v7302 = vpack.c.b16 %v7194, %v7190
    %v7303 = vpack.c.b16 %v7195, %v7191
    %v7304 = vpack.c.b16 %v7200, %v7196
    %v7305 = vpack.c.b16 %v7201, %v7197
    %v7306 = vpack.c.b16 %v7202, %v7198
    %v7307 = vpack.c.b16 %v7203, %v7199
    %v7308 = vpack.c.b16 %v7208, %v7204
    %v7309 = vpack.c.b16 %v7209, %v7205
    %v7310 = vpack.c.b16 %v7210, %v7206
    %v7311 = vpack.c.b16 %v7211, %v7207
    %v7312 = vpack.c.b16 %v7216, %v7212
    %v7313 = vpack.c.b16 %v7217, %v7213
    %v7314 = vpack.c.b16 %v7218, %v7214
    %v7315 = vpack.c.b16 %v7219, %v7215
    %v7316 = vpack.c.b16 %v7224, %v7220
    %v7317 = vpack.c.b16 %v7225, %v7221
    %v7318 = vpack.c.b16 %v7226, %v7222
    %v7319 = vpack.c.b16 %v7227, %v7223
    %v7320 = vpack.c.b16 %v7232, %v7228
    %v7321 = vpack.c.b16 %v7233, %v7229
    %v7322 = vpack.c.b16 %v7234, %v7230
    %v7323 = vpack.c.b16 %v7235, %v7231
    %v7324 = vpack.c.b16 %v7240, %v7236
    %v7325 = vpack.c.b16 %v7241, %v7237
    %v7326 = vpack.c.b16 %v7242, %v7238
    %v7327 = vpack.c.b16 %v7243, %v7239
    %v7328 = vpack.c.b16 %v7248, %v7244
    %v7329 = vpack.c.b16 %v7249, %v7245
    %v7330 = vpack.c.b16 %v7250, %v7246
    %v7331 = vpack.c.b16 %v7251, %v7247
    %v7332 = vpack.c.b16 %v7256, %v7252
    %v7333 = vpack.c.b16 %v7257, %v7253
    %v7334 = vpack.c.b16 %v7258, %v7254
    %v7335 = vpack.c.b16 %v7259, %v7255
    %v7336 = vpack.c.b16 %v7264, %v7260
    %v7337 = vpack.c.b16 %v7265, %v7261
    %v7338 = vpack.c.b16 %v7266, %v7262
    %v7339 = vpack.c.b16 %v7267, %v7263
    %v7340 = vpack.c.b16 %v7272, %v7268
    %v7341 = vpack.c.b16 %v7273, %v7269
    %v7342 = vpack.c.b16 %v7274, %v7270
    %v7343 = vpack.c.b16 %v7275, %v7271
    %v7344 = vpack.c.b16 %v7280, %v7276
    %v7345 = vpack.c.b16 %v7281, %v7277
    %v7346 = vpack.c.b16 %v7282, %v7278
    %v7347 = vpack.c.b16 %v7283, %v7279
    %7412 = vmatprep.subr.bf16.mxu0 %v7313
    %7413 = vmatpush1.bf16.msra.mxu0 %v7312
    %7414 = vmatprep.subr.bf16.mxu0 %v7309
    %7415 = vmatpush1.bf16.msra.mxu0 %v7308
    %7416 = vmatprep.subr.bf16.mxu0 %v7305
    %7417 = vmatpush1.bf16.msra.mxu0 %v7304
    %7418 = vmatprep.subr.bf16.mxu0 %v7301
    %7419 = vmatpush1.bf16.msra.mxu0 %v7300
    %7420 = vmatprep.subr.bf16.mxu0 %v7297
    %7421 = vmatpush1.bf16.msra.mxu0 %v7296
    %7422 = vmatprep.subr.bf16.mxu0 %v7293
    %7423 = vmatpush1.bf16.msra.mxu0 %v7292
    %7424 = vmatprep.subr.bf16.mxu0 %v7289
    %7425 = vmatpush1.bf16.msra.mxu0 %v7288
    %7426 = vmatprep.subr.bf16.mxu0 %v7285
    %7427 = vmatpush1.bf16.msra.mxu0 %v7284
    %7428 = vmatprep.subr.bf16.mxu0 %v7345
    %7429 = vmatpush2.bf16.msra.mxu0 %v7344
    %7430 = vmatprep.subr.bf16.mxu0 %v7341
    %7431 = vmatpush2.bf16.msra.mxu0 %v7340
    %7432 = vmatprep.subr.bf16.mxu0 %v7337
    %7433 = vmatpush2.bf16.msra.mxu0 %v7336
    %7434 = vmatprep.subr.bf16.mxu0 %v7333
    %7435 = vmatpush2.bf16.msra.mxu0 %v7332
    %7436 = vmatprep.subr.bf16.mxu0 %v7329
    %7437 = vmatpush2.bf16.msra.mxu0 %v7328
    %7438 = vmatprep.subr.bf16.mxu0 %v7325
    %7439 = vmatpush2.bf16.msra.mxu0 %v7324
    %7440 = vmatprep.subr.bf16.mxu0 %v7321
    %7441 = vmatpush2.bf16.msra.mxu0 %v7320
    %7442 = vmatprep.subr.bf16.mxu0 %v7317
    %7443 = vmatpush2.bf16.msra.mxu0 %v7316
    %7444 = vmatprep.mubr.bf16.mxu0 %v7055
    %7445 = vmatmul.mubr.bf16.gmra.mxu0 %v7054
    %v7446 = vpop.f32.mrf.mxu0
    %v7447 = vadd.f32 %v7075, %v7446
    %v7448 = vpop.f32.mrf.mxu0
    %v7449 = vadd.f32 %v7079, %v7448
    %v7450 = vpop.f32.mrf.mxu0
    %v7451 = vadd.f32 %v7075, %v7450
    %v7452 = vpop.f32.mrf.mxu0
    %v7453 = vadd.f32 %v7079, %v7452
    %7454 = vmatprep.mubr.bf16.mxu0 %v7057
    %7455 = vmatmul.mubr.bf16.gmra.mxu0 %v7056
    %v7456 = vpop.f32.mrf.mxu0
    %v7457 = vadd.f32 %v7075, %v7456
    %v7458 = vpop.f32.mrf.mxu0
    %v7459 = vadd.f32 %v7079, %v7458
    %v7460 = vpop.f32.mrf.mxu0
    %v7461 = vadd.f32 %v7075, %v7460
    %v7462 = vpop.f32.mrf.mxu0
    %v7463 = vadd.f32 %v7079, %v7462
    %7464 = vmatprep.mubr.bf16.mxu0 %v7059
    %7465 = vmatmul.mubr.bf16.gmra.mxu0 %v7058
    %v7466 = vpop.f32.mrf.mxu0
    %v7467 = vadd.f32 %v7075, %v7466
    %v7468 = vpop.f32.mrf.mxu0
    %v7469 = vadd.f32 %v7079, %v7468
    %v7470 = vpop.f32.mrf.mxu0
    %v7471 = vadd.f32 %v7075, %v7470
    %v7472 = vpop.f32.mrf.mxu0
    %v7473 = vadd.f32 %v7079, %v7472
    %7474 = vmatprep.mubr.bf16.mxu0 %v7061
    %7475 = vmatmul.mubr.bf16.gmra.mxu0 %v7060
    %v7476 = vpop.f32.mrf.mxu0
    %v7477 = vadd.f32 %v7075, %v7476
    %v7478 = vpop.f32.mrf.mxu0
    %v7479 = vadd.f32 %v7079, %v7478
    %v7480 = vpop.f32.mrf.mxu0
    %v7481 = vadd.f32 %v7075, %v7480
    %v7482 = vpop.f32.mrf.mxu0
    %v7483 = vadd.f32 %v7079, %v7482
    %7484 = vmatprep.mubr.bf16.mxu0 %v7063
    %7485 = vmatmul.mubr.bf16.gmra.mxu0 %v7062
    %v7486 = vpop.f32.mrf.mxu0
    %v7487 = vadd.f32 %v7075, %v7486
    %v7488 = vpop.f32.mrf.mxu0
    %v7489 = vadd.f32 %v7079, %v7488
    %v7490 = vpop.f32.mrf.mxu0
    %v7491 = vadd.f32 %v7075, %v7490
    %v7492 = vpop.f32.mrf.mxu0
    %v7493 = vadd.f32 %v7079, %v7492
    %7494 = vmatprep.mubr.bf16.mxu0 %v7065
    %7495 = vmatmul.mubr.bf16.gmra.mxu0 %v7064
    %v7496 = vpop.f32.mrf.mxu0
    %v7497 = vadd.f32 %v7075, %v7496
    %v7498 = vpop.f32.mrf.mxu0
    %v7499 = vadd.f32 %v7079, %v7498
    %v7500 = vpop.f32.mrf.mxu0
    %v7501 = vadd.f32 %v7075, %v7500
    %v7502 = vpop.f32.mrf.mxu0
    %v7503 = vadd.f32 %v7079, %v7502
    %7504 = vmatprep.mubr.bf16.mxu0 %v7067
    %7505 = vmatmul.mubr.bf16.gmra.mxu0 %v7066
    %v7506 = vpop.f32.mrf.mxu0
    %v7507 = vadd.f32 %v7075, %v7506
    %v7508 = vpop.f32.mrf.mxu0
    %v7509 = vadd.f32 %v7079, %v7508
    %v7510 = vpop.f32.mrf.mxu0
    %v7511 = vadd.f32 %v7075, %v7510
    %v7512 = vpop.f32.mrf.mxu0
    %v7513 = vadd.f32 %v7079, %v7512
    %7514 = vmatprep.mubr.bf16.mxu0 %v7069
    %7515 = vmatmul.mubr.bf16.gmra.mxu0 %v7068
    %v7516 = vpop.f32.mrf.mxu0
    %v7517 = vadd.f32 %v7075, %v7516
    %v7518 = vpop.f32.mrf.mxu0
    %v7519 = vadd.f32 %v7079, %v7518
    %v7520 = vpop.f32.mrf.mxu0
    %v7521 = vadd.f32 %v7075, %v7520
    %v7522 = vpop.f32.mrf.mxu0
    %v7523 = vadd.f32 %v7079, %v7522
    %7524 = vdwg.mxu0
    %7525 = vmatprep.subr.bf16.mxu0 %v7315
    %7526 = vmatpush1.bf16.msra.mxu0 %v7314
    %7527 = vmatprep.subr.bf16.mxu0 %v7311
    %7528 = vmatpush1.bf16.msra.mxu0 %v7310
    %7529 = vmatprep.subr.bf16.mxu0 %v7307
    %7530 = vmatpush1.bf16.msra.mxu0 %v7306
    %7531 = vmatprep.subr.bf16.mxu0 %v7303
    %7532 = vmatpush1.bf16.msra.mxu0 %v7302
    %7533 = vmatprep.subr.bf16.mxu0 %v7299
    %7534 = vmatpush1.bf16.msra.mxu0 %v7298
    %7535 = vmatprep.subr.bf16.mxu0 %v7295
    %7536 = vmatpush1.bf16.msra.mxu0 %v7294
    %7537 = vmatprep.subr.bf16.mxu0 %v7291
    %7538 = vmatpush1.bf16.msra.mxu0 %v7290
    %7539 = vmatprep.subr.bf16.mxu0 %v7287
    %7540 = vmatpush1.bf16.msra.mxu0 %v7286
    %7541 = vmatprep.subr.bf16.mxu0 %v7347
    %7542 = vmatpush2.bf16.msra.mxu0 %v7346
    %7543 = vmatprep.subr.bf16.mxu0 %v7343
    %7544 = vmatpush2.bf16.msra.mxu0 %v7342
    %7545 = vmatprep.subr.bf16.mxu0 %v7339
    %7546 = vmatpush2.bf16.msra.mxu0 %v7338
    %7547 = vmatprep.subr.bf16.mxu0 %v7335
    %7548 = vmatpush2.bf16.msra.mxu0 %v7334
    %7549 = vmatprep.subr.bf16.mxu0 %v7331
    %7550 = vmatpush2.bf16.msra.mxu0 %v7330
    %7551 = vmatprep.subr.bf16.mxu0 %v7327
    %7552 = vmatpush2.bf16.msra.mxu0 %v7326
    %7553 = vmatprep.subr.bf16.mxu0 %v7323
    %7554 = vmatpush2.bf16.msra.mxu0 %v7322
    %7555 = vmatprep.subr.bf16.mxu0 %v7319
    %7556 = vmatpush2.bf16.msra.mxu0 %v7318
    %7557 = vmatprep.mubr.bf16.mxu0 %v7055
    %7558 = vmatmul.mubr.bf16.gmra.mxu0 %v7054
    %v7559 = vpop.f32.mrf.mxu0
    %v7560 = vadd.f32 %v7083, %v7559
    %v7561 = vpop.f32.mrf.mxu0
    %v7562 = vadd.f32 %v7087, %v7561
    %v7563 = vpop.f32.mrf.mxu0
    %v7564 = vadd.f32 %v7083, %v7563
    %v7565 = vpop.f32.mrf.mxu0
    %v7566 = vadd.f32 %v7087, %v7565
    %7567 = vmatprep.mubr.bf16.mxu0 %v7057
    %7568 = vmatmul.mubr.bf16.gmra.mxu0 %v7056
    %v7569 = vpop.f32.mrf.mxu0
    %v7570 = vadd.f32 %v7083, %v7569
    %v7571 = vpop.f32.mrf.mxu0
    %v7572 = vadd.f32 %v7087, %v7571
    %v7573 = vpop.f32.mrf.mxu0
    %v7574 = vadd.f32 %v7083, %v7573
    %v7575 = vpop.f32.mrf.mxu0
    %v7576 = vadd.f32 %v7087, %v7575
    %7577 = vmatprep.mubr.bf16.mxu0 %v7059
    %7578 = vmatmul.mubr.bf16.gmra.mxu0 %v7058
    %v7579 = vpop.f32.mrf.mxu0
    %v7580 = vadd.f32 %v7083, %v7579
    %v7581 = vpop.f32.mrf.mxu0
    %v7582 = vadd.f32 %v7087, %v7581
    %v7583 = vpop.f32.mrf.mxu0
    %v7584 = vadd.f32 %v7083, %v7583
    %v7585 = vpop.f32.mrf.mxu0
    %v7586 = vadd.f32 %v7087, %v7585
    %7587 = vmatprep.mubr.bf16.mxu0 %v7061
    %7588 = vmatmul.mubr.bf16.gmra.mxu0 %v7060
    %v7589 = vpop.f32.mrf.mxu0
    %v7590 = vadd.f32 %v7083, %v7589
    %v7591 = vpop.f32.mrf.mxu0
    %v7592 = vadd.f32 %v7087, %v7591
    %v7593 = vpop.f32.mrf.mxu0
    %v7594 = vadd.f32 %v7083, %v7593
    %v7595 = vpop.f32.mrf.mxu0
    %v7596 = vadd.f32 %v7087, %v7595
    %7597 = vmatprep.mubr.bf16.mxu0 %v7063
    %7598 = vmatmul.mubr.bf16.gmra.mxu0 %v7062
    %v7599 = vpop.f32.mrf.mxu0
    %v7600 = vadd.f32 %v7083, %v7599
    %v7601 = vpop.f32.mrf.mxu0
    %v7602 = vadd.f32 %v7087, %v7601
    %v7603 = vpop.f32.mrf.mxu0
    %v7604 = vadd.f32 %v7083, %v7603
    %v7605 = vpop.f32.mrf.mxu0
    %v7606 = vadd.f32 %v7087, %v7605
    %7607 = vmatprep.mubr.bf16.mxu0 %v7065
    %7608 = vmatmul.mubr.bf16.gmra.mxu0 %v7064
    %v7609 = vpop.f32.mrf.mxu0
    %v7610 = vadd.f32 %v7083, %v7609
    %v7611 = vpop.f32.mrf.mxu0
    %v7612 = vadd.f32 %v7087, %v7611
    %v7613 = vpop.f32.mrf.mxu0
    %v7614 = vadd.f32 %v7083, %v7613
    %v7615 = vpop.f32.mrf.mxu0
    %v7616 = vadd.f32 %v7087, %v7615
    %7617 = vmatprep.mubr.bf16.mxu0 %v7067
    %7618 = vmatmul.mubr.bf16.gmra.mxu0 %v7066
    %v7619 = vpop.f32.mrf.mxu0
    %v7620 = vadd.f32 %v7083, %v7619
    %v7621 = vpop.f32.mrf.mxu0
    %v7622 = vadd.f32 %v7087, %v7621
    %v7623 = vpop.f32.mrf.mxu0
    %v7624 = vadd.f32 %v7083, %v7623
    %v7625 = vpop.f32.mrf.mxu0
    %v7626 = vadd.f32 %v7087, %v7625
    %7627 = vmatprep.mubr.bf16.mxu0 %v7069
    %7628 = vmatmul.mubr.bf16.gmra.mxu0 %v7068
    %v7629 = vpop.f32.mrf.mxu0
    %v7630 = vadd.f32 %v7083, %v7629
    %v7631 = vpop.f32.mrf.mxu0
    %v7632 = vadd.f32 %v7087, %v7631
    %v7633 = vpop.f32.mrf.mxu0
    %v7634 = vadd.f32 %v7083, %v7633
    %v7635 = vpop.f32.mrf.mxu0
    %v7636 = vadd.f32 %v7087, %v7635
    %7637 = vdwg.mxu0
    %v7638 = vmax.f32 %v7447, 0.0
    %v7639 = vmax.f32 %v7449, 0.0
    %v7640 = vmax.f32 %v7560, 0.0
    %v7641 = vmax.f32 %v7562, 0.0
    %v7642 = vmax.f32 %v7451, 0.0
    %v7643 = vmax.f32 %v7453, 0.0
    %v7644 = vmax.f32 %v7564, 0.0
    %v7645 = vmax.f32 %v7566, 0.0
    %v7646 = vmax.f32 %v7457, 0.0
    %v7647 = vmax.f32 %v7459, 0.0
    %v7648 = vmax.f32 %v7570, 0.0
    %v7649 = vmax.f32 %v7572, 0.0
    %v7650 = vmax.f32 %v7461, 0.0
    %v7651 = vmax.f32 %v7463, 0.0
    %v7652 = vmax.f32 %v7574, 0.0
    %v7653 = vmax.f32 %v7576, 0.0
    %v7654 = vmax.f32 %v7467, 0.0
    %v7655 = vmax.f32 %v7469, 0.0
    %v7656 = vmax.f32 %v7580, 0.0
    %v7657 = vmax.f32 %v7582, 0.0
    %v7658 = vmax.f32 %v7471, 0.0
    %v7659 = vmax.f32 %v7473, 0.0
    %v7660 = vmax.f32 %v7584, 0.0
    %v7661 = vmax.f32 %v7586, 0.0
    %v7662 = vmax.f32 %v7477, 0.0
    %v7663 = vmax.f32 %v7479, 0.0
    %v7664 = vmax.f32 %v7590, 0.0
    %v7665 = vmax.f32 %v7592, 0.0
    %v7666 = vmax.f32 %v7481, 0.0
    %v7667 = vmax.f32 %v7483, 0.0
    %v7668 = vmax.f32 %v7594, 0.0
    %v7669 = vmax.f32 %v7596, 0.0
    %v7670 = vmax.f32 %v7487, 0.0
    %v7671 = vmax.f32 %v7489, 0.0
    %v7672 = vmax.f32 %v7600, 0.0
    %v7673 = vmax.f32 %v7602, 0.0
    %v7674 = vmax.f32 %v7491, 0.0
    %v7675 = vmax.f32 %v7493, 0.0
    %v7676 = vmax.f32 %v7604, 0.0
    %v7677 = vmax.f32 %v7606, 0.0
    %v7678 = vmax.f32 %v7497, 0.0
    %v7679 = vmax.f32 %v7499, 0.0
    %v7680 = vmax.f32 %v7610, 0.0
    %v7681 = vmax.f32 %v7612, 0.0
    %v7682 = vmax.f32 %v7501, 0.0
    %v7683 = vmax.f32 %v7503, 0.0
    %v7684 = vmax.f32 %v7614, 0.0
    %v7685 = vmax.f32 %v7616, 0.0
    %v7686 = vmax.f32 %v7507, 0.0
    %v7687 = vmax.f32 %v7509, 0.0
    %v7688 = vmax.f32 %v7620, 0.0
    %v7689 = vmax.f32 %v7622, 0.0
    %v7690 = vmax.f32 %v7511, 0.0
    %v7691 = vmax.f32 %v7513, 0.0
    %v7692 = vmax.f32 %v7624, 0.0
    %v7693 = vmax.f32 %v7626, 0.0
    %v7694 = vmax.f32 %v7517, 0.0
    %v7695 = vmax.f32 %v7519, 0.0
    %v7696 = vmax.f32 %v7630, 0.0
    %v7697 = vmax.f32 %v7632, 0.0
    %v7698 = vmax.f32 %v7521, 0.0
    %v7699 = vmax.f32 %v7523, 0.0
    %v7700 = vmax.f32 %v7634, 0.0
    %v7701 = vmax.f32 %v7636, 0.0
    // Predicated region
    $region82: #{_forward_jit.1} parent=1 // pred_check
      %p7702 = pneg %p41
    $region83: #{_forward_jit.1} parent=1 // pred_check_branch
      %7704 = sbr.rel (%p7702) target = $region85
    $region84: #{_forward_jit.1} parent=1 // pred_region
      %s7705 = scalar_lea.sflag [#allocation11], 7
      %s7706 = smul.u32 4, 64
      %s7707 = smul.u32 %s7706, 8
      %s7708 = sshll.u32 %s7707, 4
      %7709 = dma.done %s7705, %s7708
    $region85: #{_forward_jit.1} parent=1 // pred_fallthru
      _
    %v7710 = vld [vmem:[#allocation9] sm:$0xff]
    %v7711 = vld [vmem:[#allocation9 + $0x8] sm:$0xff]
    %v7712 = vld [vmem:[#allocation9 + $0x10] sm:$0xff]
    %v7713 = vld [vmem:[#allocation9 + $0x18] sm:$0xff]
    %v7714 = vld [vmem:[#allocation9 + $0x20] sm:$0xff]
    %v7715 = vld [vmem:[#allocation9 + $0x28] sm:$0xff]
    %v7716 = vld [vmem:[#allocation9 + $0x30] sm:$0xff]
    %v7717 = vld [vmem:[#allocation9 + $0x38] sm:$0xff]
    %v7718 = vld [vmem:[#allocation9 + $0x40] sm:$0xff]
    %v7719 = vld [vmem:[#allocation9 + $0x48] sm:$0xff]
    %v7720 = vld [vmem:[#allocation9 + $0x50] sm:$0xff]
    %v7721 = vld [vmem:[#allocation9 + $0x58] sm:$0xff]
    %v7722 = vld [vmem:[#allocation9 + $0x60] sm:$0xff]
    %v7723 = vld [vmem:[#allocation9 + $0x68] sm:$0xff]
    %v7724 = vld [vmem:[#allocation9 + $0x70] sm:$0xff]
    %v7725 = vld [vmem:[#allocation9 + $0x78] sm:$0xff]
    %v7726 = vld [vmem:[#allocation9 + $0x80] sm:$0xff]
    %v7727 = vld [vmem:[#allocation9 + $0x88] sm:$0xff]
    %v7728 = vld [vmem:[#allocation9 + $0x90] sm:$0xff]
    %v7729 = vld [vmem:[#allocation9 + $0x98] sm:$0xff]
    %v7730 = vld [vmem:[#allocation9 + $0xa0] sm:$0xff]
    %v7731 = vld [vmem:[#allocation9 + $0xa8] sm:$0xff]
    %v7732 = vld [vmem:[#allocation9 + $0xb0] sm:$0xff]
    %v7733 = vld [vmem:[#allocation9 + $0xb8] sm:$0xff]
    %v7734 = vld [vmem:[#allocation9 + $0xc0] sm:$0xff]
    %v7735 = vld [vmem:[#allocation9 + $0xc8] sm:$0xff]
    %v7736 = vld [vmem:[#allocation9 + $0xd0] sm:$0xff]
    %v7737 = vld [vmem:[#allocation9 + $0xd8] sm:$0xff]
    %v7738 = vld [vmem:[#allocation9 + $0xe0] sm:$0xff]
    %v7739 = vld [vmem:[#allocation9 + $0xe8] sm:$0xff]
    %v7740 = vld [vmem:[#allocation9 + $0xf0] sm:$0xff]
    %v7741 = vld [vmem:[#allocation9 + $0xf8] sm:$0xff]
    %v7742 = vld [vmem:[#allocation9 + $0x100] sm:$0xff]
    %v7743 = vld [vmem:[#allocation9 + $0x108] sm:$0xff]
    %v7744 = vld [vmem:[#allocation9 + $0x110] sm:$0xff]
    %v7745 = vld [vmem:[#allocation9 + $0x118] sm:$0xff]
    %v7746 = vld [vmem:[#allocation9 + $0x120] sm:$0xff]
    %v7747 = vld [vmem:[#allocation9 + $0x128] sm:$0xff]
    %v7748 = vld [vmem:[#allocation9 + $0x130] sm:$0xff]
    %v7749 = vld [vmem:[#allocation9 + $0x138] sm:$0xff]
    %v7750 = vld [vmem:[#allocation9 + $0x140] sm:$0xff]
    %v7751 = vld [vmem:[#allocation9 + $0x148] sm:$0xff]
    %v7752 = vld [vmem:[#allocation9 + $0x150] sm:$0xff]
    %v7753 = vld [vmem:[#allocation9 + $0x158] sm:$0xff]
    %v7754 = vld [vmem:[#allocation9 + $0x160] sm:$0xff]
    %v7755 = vld [vmem:[#allocation9 + $0x168] sm:$0xff]
    %v7756 = vld [vmem:[#allocation9 + $0x170] sm:$0xff]
    %v7757 = vld [vmem:[#allocation9 + $0x178] sm:$0xff]
    %v7758 = vld [vmem:[#allocation9 + $0x180] sm:$0xff]
    %v7759 = vld [vmem:[#allocation9 + $0x188] sm:$0xff]
    %v7760 = vld [vmem:[#allocation9 + $0x190] sm:$0xff]
    %v7761 = vld [vmem:[#allocation9 + $0x198] sm:$0xff]
    %v7762 = vld [vmem:[#allocation9 + $0x1a0] sm:$0xff]
    %v7763 = vld [vmem:[#allocation9 + $0x1a8] sm:$0xff]
    %v7764 = vld [vmem:[#allocation9 + $0x1b0] sm:$0xff]
    %v7765 = vld [vmem:[#allocation9 + $0x1b8] sm:$0xff]
    %v7766 = vld [vmem:[#allocation9 + $0x1c0] sm:$0xff]
    %v7767 = vld [vmem:[#allocation9 + $0x1c8] sm:$0xff]
    %v7768 = vld [vmem:[#allocation9 + $0x1d0] sm:$0xff]
    %v7769 = vld [vmem:[#allocation9 + $0x1d8] sm:$0xff]
    %v7770 = vld [vmem:[#allocation9 + $0x1e0] sm:$0xff]
    %v7771 = vld [vmem:[#allocation9 + $0x1e8] sm:$0xff]
    %v7772 = vld [vmem:[#allocation9 + $0x1f0] sm:$0xff]
    %v7773 = vld [vmem:[#allocation9 + $0x1f8] sm:$0xff]
    %v7774 = vld [vmem:[#allocation9 + $0x200] sm:$0xff]
    %v7775 = vld [vmem:[#allocation9 + $0x208] sm:$0xff]
    %v7776 = vld [vmem:[#allocation9 + $0x210] sm:$0xff]
    %v7777 = vld [vmem:[#allocation9 + $0x218] sm:$0xff]
    %v7778 = vld [vmem:[#allocation9 + $0x220] sm:$0xff]
    %v7779 = vld [vmem:[#allocation9 + $0x228] sm:$0xff]
    %v7780 = vld [vmem:[#allocation9 + $0x230] sm:$0xff]
    %v7781 = vld [vmem:[#allocation9 + $0x238] sm:$0xff]
    %v7782 = vld [vmem:[#allocation9 + $0x240] sm:$0xff]
    %v7783 = vld [vmem:[#allocation9 + $0x248] sm:$0xff]
    %v7784 = vld [vmem:[#allocation9 + $0x250] sm:$0xff]
    %v7785 = vld [vmem:[#allocation9 + $0x258] sm:$0xff]
    %v7786 = vld [vmem:[#allocation9 + $0x260] sm:$0xff]
    %v7787 = vld [vmem:[#allocation9 + $0x268] sm:$0xff]
    %v7788 = vld [vmem:[#allocation9 + $0x270] sm:$0xff]
    %v7789 = vld [vmem:[#allocation9 + $0x278] sm:$0xff]
    %v7790 = vld [vmem:[#allocation9 + $0x280] sm:$0xff]
    %v7791 = vld [vmem:[#allocation9 + $0x288] sm:$0xff]
    %v7792 = vld [vmem:[#allocation9 + $0x290] sm:$0xff]
    %v7793 = vld [vmem:[#allocation9 + $0x298] sm:$0xff]
    %v7794 = vld [vmem:[#allocation9 + $0x2a0] sm:$0xff]
    %v7795 = vld [vmem:[#allocation9 + $0x2a8] sm:$0xff]
    %v7796 = vld [vmem:[#allocation9 + $0x2b0] sm:$0xff]
    %v7797 = vld [vmem:[#allocation9 + $0x2b8] sm:$0xff]
    %v7798 = vld [vmem:[#allocation9 + $0x2c0] sm:$0xff]
    %v7799 = vld [vmem:[#allocation9 + $0x2c8] sm:$0xff]
    %v7800 = vld [vmem:[#allocation9 + $0x2d0] sm:$0xff]
    %v7801 = vld [vmem:[#allocation9 + $0x2d8] sm:$0xff]
    %v7802 = vld [vmem:[#allocation9 + $0x2e0] sm:$0xff]
    %v7803 = vld [vmem:[#allocation9 + $0x2e8] sm:$0xff]
    %v7804 = vld [vmem:[#allocation9 + $0x2f0] sm:$0xff]
    %v7805 = vld [vmem:[#allocation9 + $0x2f8] sm:$0xff]
    %v7806 = vld [vmem:[#allocation9 + $0x300] sm:$0xff]
    %v7807 = vld [vmem:[#allocation9 + $0x308] sm:$0xff]
    %v7808 = vld [vmem:[#allocation9 + $0x310] sm:$0xff]
    %v7809 = vld [vmem:[#allocation9 + $0x318] sm:$0xff]
    %v7810 = vld [vmem:[#allocation9 + $0x320] sm:$0xff]
    %v7811 = vld [vmem:[#allocation9 + $0x328] sm:$0xff]
    %v7812 = vld [vmem:[#allocation9 + $0x330] sm:$0xff]
    %v7813 = vld [vmem:[#allocation9 + $0x338] sm:$0xff]
    %v7814 = vld [vmem:[#allocation9 + $0x340] sm:$0xff]
    %v7815 = vld [vmem:[#allocation9 + $0x348] sm:$0xff]
    %v7816 = vld [vmem:[#allocation9 + $0x350] sm:$0xff]
    %v7817 = vld [vmem:[#allocation9 + $0x358] sm:$0xff]
    %v7818 = vld [vmem:[#allocation9 + $0x360] sm:$0xff]
    %v7819 = vld [vmem:[#allocation9 + $0x368] sm:$0xff]
    %v7820 = vld [vmem:[#allocation9 + $0x370] sm:$0xff]
    %v7821 = vld [vmem:[#allocation9 + $0x378] sm:$0xff]
    %v7822 = vld [vmem:[#allocation9 + $0x380] sm:$0xff]
    %v7823 = vld [vmem:[#allocation9 + $0x388] sm:$0xff]
    %v7824 = vld [vmem:[#allocation9 + $0x390] sm:$0xff]
    %v7825 = vld [vmem:[#allocation9 + $0x398] sm:$0xff]
    %v7826 = vld [vmem:[#allocation9 + $0x3a0] sm:$0xff]
    %v7827 = vld [vmem:[#allocation9 + $0x3a8] sm:$0xff]
    %v7828 = vld [vmem:[#allocation9 + $0x3b0] sm:$0xff]
    %v7829 = vld [vmem:[#allocation9 + $0x3b8] sm:$0xff]
    %v7830 = vld [vmem:[#allocation9 + $0x3c0] sm:$0xff]
    %v7831 = vld [vmem:[#allocation9 + $0x3c8] sm:$0xff]
    %v7832 = vld [vmem:[#allocation9 + $0x3d0] sm:$0xff]
    %v7833 = vld [vmem:[#allocation9 + $0x3d8] sm:$0xff]
    %v7834 = vld [vmem:[#allocation9 + $0x3e0] sm:$0xff]
    %v7835 = vld [vmem:[#allocation9 + $0x3e8] sm:$0xff]
    %v7836 = vld [vmem:[#allocation9 + $0x3f0] sm:$0xff]
    %v7837 = vld [vmem:[#allocation9 + $0x3f8] sm:$0xff]
    %v7838 = vld [vmem:[#allocation9 + $0x400] sm:$0xff]
    %v7839 = vld [vmem:[#allocation9 + $0x408] sm:$0xff]
    %v7840 = vld [vmem:[#allocation9 + $0x410] sm:$0xff]
    %v7841 = vld [vmem:[#allocation9 + $0x418] sm:$0xff]
    %v7842 = vld [vmem:[#allocation9 + $0x420] sm:$0xff]
    %v7843 = vld [vmem:[#allocation9 + $0x428] sm:$0xff]
    %v7844 = vld [vmem:[#allocation9 + $0x430] sm:$0xff]
    %v7845 = vld [vmem:[#allocation9 + $0x438] sm:$0xff]
    %v7846 = vld [vmem:[#allocation9 + $0x440] sm:$0xff]
    %v7847 = vld [vmem:[#allocation9 + $0x448] sm:$0xff]
    %v7848 = vld [vmem:[#allocation9 + $0x450] sm:$0xff]
    %v7849 = vld [vmem:[#allocation9 + $0x458] sm:$0xff]
    %v7850 = vld [vmem:[#allocation9 + $0x460] sm:$0xff]
    %v7851 = vld [vmem:[#allocation9 + $0x468] sm:$0xff]
    %v7852 = vld [vmem:[#allocation9 + $0x470] sm:$0xff]
    %v7853 = vld [vmem:[#allocation9 + $0x478] sm:$0xff]
    %v7854 = vld [vmem:[#allocation9 + $0x480] sm:$0xff]
    %v7855 = vld [vmem:[#allocation9 + $0x488] sm:$0xff]
    %v7856 = vld [vmem:[#allocation9 + $0x490] sm:$0xff]
    %v7857 = vld [vmem:[#allocation9 + $0x498] sm:$0xff]
    %v7858 = vld [vmem:[#allocation9 + $0x4a0] sm:$0xff]
    %v7859 = vld [vmem:[#allocation9 + $0x4a8] sm:$0xff]
    %v7860 = vld [vmem:[#allocation9 + $0x4b0] sm:$0xff]
    %v7861 = vld [vmem:[#allocation9 + $0x4b8] sm:$0xff]
    %v7862 = vld [vmem:[#allocation9 + $0x4c0] sm:$0xff]
    %v7863 = vld [vmem:[#allocation9 + $0x4c8] sm:$0xff]
    %v7864 = vld [vmem:[#allocation9 + $0x4d0] sm:$0xff]
    %v7865 = vld [vmem:[#allocation9 + $0x4d8] sm:$0xff]
    %v7866 = vld [vmem:[#allocation9 + $0x4e0] sm:$0xff]
    %v7867 = vld [vmem:[#allocation9 + $0x4e8] sm:$0xff]
    %v7868 = vld [vmem:[#allocation9 + $0x4f0] sm:$0xff]
    %v7869 = vld [vmem:[#allocation9 + $0x4f8] sm:$0xff]
    %v7870 = vld [vmem:[#allocation9 + $0x500] sm:$0xff]
    %v7871 = vld [vmem:[#allocation9 + $0x508] sm:$0xff]
    %v7872 = vld [vmem:[#allocation9 + $0x510] sm:$0xff]
    %v7873 = vld [vmem:[#allocation9 + $0x518] sm:$0xff]
    %v7874 = vld [vmem:[#allocation9 + $0x520] sm:$0xff]
    %v7875 = vld [vmem:[#allocation9 + $0x528] sm:$0xff]
    %v7876 = vld [vmem:[#allocation9 + $0x530] sm:$0xff]
    %v7877 = vld [vmem:[#allocation9 + $0x538] sm:$0xff]
    %v7878 = vld [vmem:[#allocation9 + $0x540] sm:$0xff]
    %v7879 = vld [vmem:[#allocation9 + $0x548] sm:$0xff]
    %v7880 = vld [vmem:[#allocation9 + $0x550] sm:$0xff]
    %v7881 = vld [vmem:[#allocation9 + $0x558] sm:$0xff]
    %v7882 = vld [vmem:[#allocation9 + $0x560] sm:$0xff]
    %v7883 = vld [vmem:[#allocation9 + $0x568] sm:$0xff]
    %v7884 = vld [vmem:[#allocation9 + $0x570] sm:$0xff]
    %v7885 = vld [vmem:[#allocation9 + $0x578] sm:$0xff]
    %v7886 = vld [vmem:[#allocation9 + $0x580] sm:$0xff]
    %v7887 = vld [vmem:[#allocation9 + $0x588] sm:$0xff]
    %v7888 = vld [vmem:[#allocation9 + $0x590] sm:$0xff]
    %v7889 = vld [vmem:[#allocation9 + $0x598] sm:$0xff]
    %v7890 = vld [vmem:[#allocation9 + $0x5a0] sm:$0xff]
    %v7891 = vld [vmem:[#allocation9 + $0x5a8] sm:$0xff]
    %v7892 = vld [vmem:[#allocation9 + $0x5b0] sm:$0xff]
    %v7893 = vld [vmem:[#allocation9 + $0x5b8] sm:$0xff]
    %v7894 = vld [vmem:[#allocation9 + $0x5c0] sm:$0xff]
    %v7895 = vld [vmem:[#allocation9 + $0x5c8] sm:$0xff]
    %v7896 = vld [vmem:[#allocation9 + $0x5d0] sm:$0xff]
    %v7897 = vld [vmem:[#allocation9 + $0x5d8] sm:$0xff]
    %v7898 = vld [vmem:[#allocation9 + $0x5e0] sm:$0xff]
    %v7899 = vld [vmem:[#allocation9 + $0x5e8] sm:$0xff]
    %v7900 = vld [vmem:[#allocation9 + $0x5f0] sm:$0xff]
    %v7901 = vld [vmem:[#allocation9 + $0x5f8] sm:$0xff]
    %v7902 = vld [vmem:[#allocation9 + $0x600] sm:$0xff]
    %v7903 = vld [vmem:[#allocation9 + $0x608] sm:$0xff]
    %v7904 = vld [vmem:[#allocation9 + $0x610] sm:$0xff]
    %v7905 = vld [vmem:[#allocation9 + $0x618] sm:$0xff]
    %v7906 = vld [vmem:[#allocation9 + $0x620] sm:$0xff]
    %v7907 = vld [vmem:[#allocation9 + $0x628] sm:$0xff]
    %v7908 = vld [vmem:[#allocation9 + $0x630] sm:$0xff]
    %v7909 = vld [vmem:[#allocation9 + $0x638] sm:$0xff]
    %v7910 = vld [vmem:[#allocation9 + $0x640] sm:$0xff]
    %v7911 = vld [vmem:[#allocation9 + $0x648] sm:$0xff]
    %v7912 = vld [vmem:[#allocation9 + $0x650] sm:$0xff]
    %v7913 = vld [vmem:[#allocation9 + $0x658] sm:$0xff]
    %v7914 = vld [vmem:[#allocation9 + $0x660] sm:$0xff]
    %v7915 = vld [vmem:[#allocation9 + $0x668] sm:$0xff]
    %v7916 = vld [vmem:[#allocation9 + $0x670] sm:$0xff]
    %v7917 = vld [vmem:[#allocation9 + $0x678] sm:$0xff]
    %v7918 = vld [vmem:[#allocation9 + $0x680] sm:$0xff]
    %v7919 = vld [vmem:[#allocation9 + $0x688] sm:$0xff]
    %v7920 = vld [vmem:[#allocation9 + $0x690] sm:$0xff]
    %v7921 = vld [vmem:[#allocation9 + $0x698] sm:$0xff]
    %v7922 = vld [vmem:[#allocation9 + $0x6a0] sm:$0xff]
    %v7923 = vld [vmem:[#allocation9 + $0x6a8] sm:$0xff]
    %v7924 = vld [vmem:[#allocation9 + $0x6b0] sm:$0xff]
    %v7925 = vld [vmem:[#allocation9 + $0x6b8] sm:$0xff]
    %v7926 = vld [vmem:[#allocation9 + $0x6c0] sm:$0xff]
    %v7927 = vld [vmem:[#allocation9 + $0x6c8] sm:$0xff]
    %v7928 = vld [vmem:[#allocation9 + $0x6d0] sm:$0xff]
    %v7929 = vld [vmem:[#allocation9 + $0x6d8] sm:$0xff]
    %v7930 = vld [vmem:[#allocation9 + $0x6e0] sm:$0xff]
    %v7931 = vld [vmem:[#allocation9 + $0x6e8] sm:$0xff]
    %v7932 = vld [vmem:[#allocation9 + $0x6f0] sm:$0xff]
    %v7933 = vld [vmem:[#allocation9 + $0x6f8] sm:$0xff]
    %v7934 = vld [vmem:[#allocation9 + $0x700] sm:$0xff]
    %v7935 = vld [vmem:[#allocation9 + $0x708] sm:$0xff]
    %v7936 = vld [vmem:[#allocation9 + $0x710] sm:$0xff]
    %v7937 = vld [vmem:[#allocation9 + $0x718] sm:$0xff]
    %v7938 = vld [vmem:[#allocation9 + $0x720] sm:$0xff]
    %v7939 = vld [vmem:[#allocation9 + $0x728] sm:$0xff]
    %v7940 = vld [vmem:[#allocation9 + $0x730] sm:$0xff]
    %v7941 = vld [vmem:[#allocation9 + $0x738] sm:$0xff]
    %v7942 = vld [vmem:[#allocation9 + $0x740] sm:$0xff]
    %v7943 = vld [vmem:[#allocation9 + $0x748] sm:$0xff]
    %v7944 = vld [vmem:[#allocation9 + $0x750] sm:$0xff]
    %v7945 = vld [vmem:[#allocation9 + $0x758] sm:$0xff]
    %v7946 = vld [vmem:[#allocation9 + $0x760] sm:$0xff]
    %v7947 = vld [vmem:[#allocation9 + $0x768] sm:$0xff]
    %v7948 = vld [vmem:[#allocation9 + $0x770] sm:$0xff]
    %v7949 = vld [vmem:[#allocation9 + $0x778] sm:$0xff]
    %v7950 = vld [vmem:[#allocation9 + $0x780] sm:$0xff]
    %v7951 = vld [vmem:[#allocation9 + $0x788] sm:$0xff]
    %v7952 = vld [vmem:[#allocation9 + $0x790] sm:$0xff]
    %v7953 = vld [vmem:[#allocation9 + $0x798] sm:$0xff]
    %v7954 = vld [vmem:[#allocation9 + $0x7a0] sm:$0xff]
    %v7955 = vld [vmem:[#allocation9 + $0x7a8] sm:$0xff]
    %v7956 = vld [vmem:[#allocation9 + $0x7b0] sm:$0xff]
    %v7957 = vld [vmem:[#allocation9 + $0x7b8] sm:$0xff]
    %v7958 = vld [vmem:[#allocation9 + $0x7c0] sm:$0xff]
    %v7959 = vld [vmem:[#allocation9 + $0x7c8] sm:$0xff]
    %v7960 = vld [vmem:[#allocation9 + $0x7d0] sm:$0xff]
    %v7961 = vld [vmem:[#allocation9 + $0x7d8] sm:$0xff]
    %v7962 = vld [vmem:[#allocation9 + $0x7e0] sm:$0xff]
    %v7963 = vld [vmem:[#allocation9 + $0x7e8] sm:$0xff]
    %v7964 = vld [vmem:[#allocation9 + $0x7f0] sm:$0xff]
    %v7965 = vld [vmem:[#allocation9 + $0x7f8] sm:$0xff]
    %v7966 = vpack.c.bf16 %v7642, %v7638
    %v7967 = vpack.c.bf16 %v7643, %v7639
    %v7968 = vpack.c.bf16 %v7644, %v7640
    %v7969 = vpack.c.bf16 %v7645, %v7641
    %v7970 = vpack.c.bf16 %v7650, %v7646
    %v7971 = vpack.c.bf16 %v7651, %v7647
    %v7972 = vpack.c.bf16 %v7652, %v7648
    %v7973 = vpack.c.bf16 %v7653, %v7649
    %v7974 = vpack.c.bf16 %v7658, %v7654
    %v7975 = vpack.c.bf16 %v7659, %v7655
    %v7976 = vpack.c.bf16 %v7660, %v7656
    %v7977 = vpack.c.bf16 %v7661, %v7657
    %v7978 = vpack.c.bf16 %v7666, %v7662
    %v7979 = vpack.c.bf16 %v7667, %v7663
    %v7980 = vpack.c.bf16 %v7668, %v7664
    %v7981 = vpack.c.bf16 %v7669, %v7665
    %v7982 = vpack.c.bf16 %v7674, %v7670
    %v7983 = vpack.c.bf16 %v7675, %v7671
    %v7984 = vpack.c.bf16 %v7676, %v7672
    %v7985 = vpack.c.bf16 %v7677, %v7673
    %v7986 = vpack.c.bf16 %v7682, %v7678
    %v7987 = vpack.c.bf16 %v7683, %v7679
    %v7988 = vpack.c.bf16 %v7684, %v7680
    %v7989 = vpack.c.bf16 %v7685, %v7681
    %v7990 = vpack.c.bf16 %v7690, %v7686
    %v7991 = vpack.c.bf16 %v7691, %v7687
    %v7992 = vpack.c.bf16 %v7692, %v7688
    %v7993 = vpack.c.bf16 %v7693, %v7689
    %v7994 = vpack.c.bf16 %v7698, %v7694
    %v7995 = vpack.c.bf16 %v7699, %v7695
    %v7996 = vpack.c.bf16 %v7700, %v7696
    %v7997 = vpack.c.bf16 %v7701, %v7697
    %v7998 = vld [vmem:[#allocation14 + $0x1f] sm:$0xff]
    %v8000 = vlaneseq
    %v8001 = vshrl.u32 %v8000, 7
    %v8002 = vsub.s32 0, %v8001
    %v8003 = vrot.slane %v7998, %v8002
    %v8004 = vlaneseq
    %v8005 = vshrl.u32 %v8004, 7
    %v8006 = vsub.s32 1, %v8005
    %v8007 = vrot.slane %v7998, %v8006
    %v8008 = vlaneseq
    %v8009 = vshrl.u32 %v8008, 7
    %v8010 = vsub.s32 2, %v8009
    %v8011 = vrot.slane %v7998, %v8010
    %v8012 = vlaneseq
    %v8013 = vshrl.u32 %v8012, 7
    %v8014 = vsub.s32 3, %v8013
    %v8015 = vrot.slane %v7998, %v8014
    %v8016 = vlaneseq
    %v8017 = vshrl.u32 %v8016, 7
    %v8018 = vsub.s32 4, %v8017
    %v8019 = vrot.slane %v7998, %v8018
    %v8020 = vlaneseq
    %v8021 = vshrl.u32 %v8020, 7
    %v8022 = vsub.s32 5, %v8021
    %v8023 = vrot.slane %v7998, %v8022
    %v8024 = vlaneseq
    %v8025 = vshrl.u32 %v8024, 7
    %v8026 = vsub.s32 6, %v8025
    %v8027 = vrot.slane %v7998, %v8026
    %v8028 = vlaneseq
    %v8029 = vshrl.u32 %v8028, 7
    %v8030 = vsub.s32 7, %v8029
    %v8031 = vrot.slane %v7998, %v8030
    %v8296 = vunpack.c.l.b16 %v7710
    %v8297 = vunpack.c.h.b16 %v7710
    %v8298 = vunpack.c.l.b16 %v7711
    %v8299 = vunpack.c.h.b16 %v7711
    %v8300 = vunpack.c.l.b16 %v7712
    %v8301 = vunpack.c.h.b16 %v7712
    %v8302 = vunpack.c.l.b16 %v7713
    %v8303 = vunpack.c.h.b16 %v7713
    %v8304 = vunpack.c.l.b16 %v7714
    %v8305 = vunpack.c.h.b16 %v7714
    %v8306 = vunpack.c.l.b16 %v7715
    %v8307 = vunpack.c.h.b16 %v7715
    %v8308 = vunpack.c.l.b16 %v7716
    %v8309 = vunpack.c.h.b16 %v7716
    %v8310 = vunpack.c.l.b16 %v7717
    %v8311 = vunpack.c.h.b16 %v7717
    %v8312 = vunpack.c.l.b16 %v7718
    %v8313 = vunpack.c.h.b16 %v7718
    %v8314 = vunpack.c.l.b16 %v7719
    %v8315 = vunpack.c.h.b16 %v7719
    %v8316 = vunpack.c.l.b16 %v7720
    %v8317 = vunpack.c.h.b16 %v7720
    %v8318 = vunpack.c.l.b16 %v7721
    %v8319 = vunpack.c.h.b16 %v7721
    %v8320 = vunpack.c.l.b16 %v7722
    %v8321 = vunpack.c.h.b16 %v7722
    %v8322 = vunpack.c.l.b16 %v7723
    %v8323 = vunpack.c.h.b16 %v7723
    %v8324 = vunpack.c.l.b16 %v7724
    %v8325 = vunpack.c.h.b16 %v7724
    %v8326 = vunpack.c.l.b16 %v7725
    %v8327 = vunpack.c.h.b16 %v7725
    %v8328 = vunpack.c.l.b16 %v7726
    %v8329 = vunpack.c.h.b16 %v7726
    %v8330 = vunpack.c.l.b16 %v7727
    %v8331 = vunpack.c.h.b16 %v7727
    %v8332 = vunpack.c.l.b16 %v7728
    %v8333 = vunpack.c.h.b16 %v7728
    %v8334 = vunpack.c.l.b16 %v7729
    %v8335 = vunpack.c.h.b16 %v7729
    %v8336 = vunpack.c.l.b16 %v7730
    %v8337 = vunpack.c.h.b16 %v7730
    %v8338 = vunpack.c.l.b16 %v7731
    %v8339 = vunpack.c.h.b16 %v7731
    %v8340 = vunpack.c.l.b16 %v7732
    %v8341 = vunpack.c.h.b16 %v7732
    %v8342 = vunpack.c.l.b16 %v7733
    %v8343 = vunpack.c.h.b16 %v7733
    %v8344 = vunpack.c.l.b16 %v7734
    %v8345 = vunpack.c.h.b16 %v7734
    %v8346 = vunpack.c.l.b16 %v7735
    %v8347 = vunpack.c.h.b16 %v7735
    %v8348 = vunpack.c.l.b16 %v7736
    %v8349 = vunpack.c.h.b16 %v7736
    %v8350 = vunpack.c.l.b16 %v7737
    %v8351 = vunpack.c.h.b16 %v7737
    %v8352 = vunpack.c.l.b16 %v7738
    %v8353 = vunpack.c.h.b16 %v7738
    %v8354 = vunpack.c.l.b16 %v7739
    %v8355 = vunpack.c.h.b16 %v7739
    %v8356 = vunpack.c.l.b16 %v7740
    %v8357 = vunpack.c.h.b16 %v7740
    %v8358 = vunpack.c.l.b16 %v7741
    %v8359 = vunpack.c.h.b16 %v7741
    %v8360 = vunpack.c.l.b16 %v7742
    %v8361 = vunpack.c.h.b16 %v7742
    %v8362 = vunpack.c.l.b16 %v7743
    %v8363 = vunpack.c.h.b16 %v7743
    %v8364 = vunpack.c.l.b16 %v7744
    %v8365 = vunpack.c.h.b16 %v7744
    %v8366 = vunpack.c.l.b16 %v7745
    %v8367 = vunpack.c.h.b16 %v7745
    %v8368 = vunpack.c.l.b16 %v7746
    %v8369 = vunpack.c.h.b16 %v7746
    %v8370 = vunpack.c.l.b16 %v7747
    %v8371 = vunpack.c.h.b16 %v7747
    %v8372 = vunpack.c.l.b16 %v7748
    %v8373 = vunpack.c.h.b16 %v7748
    %v8374 = vunpack.c.l.b16 %v7749
    %v8375 = vunpack.c.h.b16 %v7749
    %v8376 = vunpack.c.l.b16 %v7750
    %v8377 = vunpack.c.h.b16 %v7750
    %v8378 = vunpack.c.l.b16 %v7751
    %v8379 = vunpack.c.h.b16 %v7751
    %v8380 = vunpack.c.l.b16 %v7752
    %v8381 = vunpack.c.h.b16 %v7752
    %v8382 = vunpack.c.l.b16 %v7753
    %v8383 = vunpack.c.h.b16 %v7753
    %v8384 = vunpack.c.l.b16 %v7754
    %v8385 = vunpack.c.h.b16 %v7754
    %v8386 = vunpack.c.l.b16 %v7755
    %v8387 = vunpack.c.h.b16 %v7755
    %v8388 = vunpack.c.l.b16 %v7756
    %v8389 = vunpack.c.h.b16 %v7756
    %v8390 = vunpack.c.l.b16 %v7757
    %v8391 = vunpack.c.h.b16 %v7757
    %v8392 = vunpack.c.l.b16 %v7758
    %v8393 = vunpack.c.h.b16 %v7758
    %v8394 = vunpack.c.l.b16 %v7759
    %v8395 = vunpack.c.h.b16 %v7759
    %v8396 = vunpack.c.l.b16 %v7760
    %v8397 = vunpack.c.h.b16 %v7760
    %v8398 = vunpack.c.l.b16 %v7761
    %v8399 = vunpack.c.h.b16 %v7761
    %v8400 = vunpack.c.l.b16 %v7762
    %v8401 = vunpack.c.h.b16 %v7762
    %v8402 = vunpack.c.l.b16 %v7763
    %v8403 = vunpack.c.h.b16 %v7763
    %v8404 = vunpack.c.l.b16 %v7764
    %v8405 = vunpack.c.h.b16 %v7764
    %v8406 = vunpack.c.l.b16 %v7765
    %v8407 = vunpack.c.h.b16 %v7765
    %v8408 = vunpack.c.l.b16 %v7766
    %v8409 = vunpack.c.h.b16 %v7766
    %v8410 = vunpack.c.l.b16 %v7767
    %v8411 = vunpack.c.h.b16 %v7767
    %v8412 = vunpack.c.l.b16 %v7768
    %v8413 = vunpack.c.h.b16 %v7768
    %v8414 = vunpack.c.l.b16 %v7769
    %v8415 = vunpack.c.h.b16 %v7769
    %v8416 = vunpack.c.l.b16 %v7770
    %v8417 = vunpack.c.h.b16 %v7770
    %v8418 = vunpack.c.l.b16 %v7771
    %v8419 = vunpack.c.h.b16 %v7771
    %v8420 = vunpack.c.l.b16 %v7772
    %v8421 = vunpack.c.h.b16 %v7772
    %v8422 = vunpack.c.l.b16 %v7773
    %v8423 = vunpack.c.h.b16 %v7773
    %v8424 = vunpack.c.l.b16 %v7774
    %v8425 = vunpack.c.h.b16 %v7774
    %v8426 = vunpack.c.l.b16 %v7775
    %v8427 = vunpack.c.h.b16 %v7775
    %v8428 = vunpack.c.l.b16 %v7776
    %v8429 = vunpack.c.h.b16 %v7776
    %v8430 = vunpack.c.l.b16 %v7777
    %v8431 = vunpack.c.h.b16 %v7777
    %v8432 = vunpack.c.l.b16 %v7778
    %v8433 = vunpack.c.h.b16 %v7778
    %v8434 = vunpack.c.l.b16 %v7779
    %v8435 = vunpack.c.h.b16 %v7779
    %v8436 = vunpack.c.l.b16 %v7780
    %v8437 = vunpack.c.h.b16 %v7780
    %v8438 = vunpack.c.l.b16 %v7781
    %v8439 = vunpack.c.h.b16 %v7781
    %v8440 = vunpack.c.l.b16 %v7782
    %v8441 = vunpack.c.h.b16 %v7782
    %v8442 = vunpack.c.l.b16 %v7783
    %v8443 = vunpack.c.h.b16 %v7783
    %v8444 = vunpack.c.l.b16 %v7784
    %v8445 = vunpack.c.h.b16 %v7784
    %v8446 = vunpack.c.l.b16 %v7785
    %v8447 = vunpack.c.h.b16 %v7785
    %v8448 = vunpack.c.l.b16 %v7786
    %v8449 = vunpack.c.h.b16 %v7786
    %v8450 = vunpack.c.l.b16 %v7787
    %v8451 = vunpack.c.h.b16 %v7787
    %v8452 = vunpack.c.l.b16 %v7788
    %v8453 = vunpack.c.h.b16 %v7788
    %v8454 = vunpack.c.l.b16 %v7789
    %v8455 = vunpack.c.h.b16 %v7789
    %v8456 = vunpack.c.l.b16 %v7790
    %v8457 = vunpack.c.h.b16 %v7790
    %v8458 = vunpack.c.l.b16 %v7791
    %v8459 = vunpack.c.h.b16 %v7791
    %v8460 = vunpack.c.l.b16 %v7792
    %v8461 = vunpack.c.h.b16 %v7792
    %v8462 = vunpack.c.l.b16 %v7793
    %v8463 = vunpack.c.h.b16 %v7793
    %v8464 = vunpack.c.l.b16 %v7794
    %v8465 = vunpack.c.h.b16 %v7794
    %v8466 = vunpack.c.l.b16 %v7795
    %v8467 = vunpack.c.h.b16 %v7795
    %v8468 = vunpack.c.l.b16 %v7796
    %v8469 = vunpack.c.h.b16 %v7796
    %v8470 = vunpack.c.l.b16 %v7797
    %v8471 = vunpack.c.h.b16 %v7797
    %v8472 = vunpack.c.l.b16 %v7798
    %v8473 = vunpack.c.h.b16 %v7798
    %v8474 = vunpack.c.l.b16 %v7799
    %v8475 = vunpack.c.h.b16 %v7799
    %v8476 = vunpack.c.l.b16 %v7800
    %v8477 = vunpack.c.h.b16 %v7800
    %v8478 = vunpack.c.l.b16 %v7801
    %v8479 = vunpack.c.h.b16 %v7801
    %v8480 = vunpack.c.l.b16 %v7802
    %v8481 = vunpack.c.h.b16 %v7802
    %v8482 = vunpack.c.l.b16 %v7803
    %v8483 = vunpack.c.h.b16 %v7803
    %v8484 = vunpack.c.l.b16 %v7804
    %v8485 = vunpack.c.h.b16 %v7804
    %v8486 = vunpack.c.l.b16 %v7805
    %v8487 = vunpack.c.h.b16 %v7805
    %v8488 = vunpack.c.l.b16 %v7806
    %v8489 = vunpack.c.h.b16 %v7806
    %v8490 = vunpack.c.l.b16 %v7807
    %v8491 = vunpack.c.h.b16 %v7807
    %v8492 = vunpack.c.l.b16 %v7808
    %v8493 = vunpack.c.h.b16 %v7808
    %v8494 = vunpack.c.l.b16 %v7809
    %v8495 = vunpack.c.h.b16 %v7809
    %v8496 = vunpack.c.l.b16 %v7810
    %v8497 = vunpack.c.h.b16 %v7810
    %v8498 = vunpack.c.l.b16 %v7811
    %v8499 = vunpack.c.h.b16 %v7811
    %v8500 = vunpack.c.l.b16 %v7812
    %v8501 = vunpack.c.h.b16 %v7812
    %v8502 = vunpack.c.l.b16 %v7813
    %v8503 = vunpack.c.h.b16 %v7813
    %v8504 = vunpack.c.l.b16 %v7814
    %v8505 = vunpack.c.h.b16 %v7814
    %v8506 = vunpack.c.l.b16 %v7815
    %v8507 = vunpack.c.h.b16 %v7815
    %v8508 = vunpack.c.l.b16 %v7816
    %v8509 = vunpack.c.h.b16 %v7816
    %v8510 = vunpack.c.l.b16 %v7817
    %v8511 = vunpack.c.h.b16 %v7817
    %v8512 = vunpack.c.l.b16 %v7818
    %v8513 = vunpack.c.h.b16 %v7818
    %v8514 = vunpack.c.l.b16 %v7819
    %v8515 = vunpack.c.h.b16 %v7819
    %v8516 = vunpack.c.l.b16 %v7820
    %v8517 = vunpack.c.h.b16 %v7820
    %v8518 = vunpack.c.l.b16 %v7821
    %v8519 = vunpack.c.h.b16 %v7821
    %v8520 = vunpack.c.l.b16 %v7822
    %v8521 = vunpack.c.h.b16 %v7822
    %v8522 = vunpack.c.l.b16 %v7823
    %v8523 = vunpack.c.h.b16 %v7823
    %v8524 = vunpack.c.l.b16 %v7824
    %v8525 = vunpack.c.h.b16 %v7824
    %v8526 = vunpack.c.l.b16 %v7825
    %v8527 = vunpack.c.h.b16 %v7825
    %v8528 = vunpack.c.l.b16 %v7826
    %v8529 = vunpack.c.h.b16 %v7826
    %v8530 = vunpack.c.l.b16 %v7827
    %v8531 = vunpack.c.h.b16 %v7827
    %v8532 = vunpack.c.l.b16 %v7828
    %v8533 = vunpack.c.h.b16 %v7828
    %v8534 = vunpack.c.l.b16 %v7829
    %v8535 = vunpack.c.h.b16 %v7829
    %v8536 = vunpack.c.l.b16 %v7830
    %v8537 = vunpack.c.h.b16 %v7830
    %v8538 = vunpack.c.l.b16 %v7831
    %v8539 = vunpack.c.h.b16 %v7831
    %v8540 = vunpack.c.l.b16 %v7832
    %v8541 = vunpack.c.h.b16 %v7832
    %v8542 = vunpack.c.l.b16 %v7833
    %v8543 = vunpack.c.h.b16 %v7833
    %v8544 = vunpack.c.l.b16 %v7834
    %v8545 = vunpack.c.h.b16 %v7834
    %v8546 = vunpack.c.l.b16 %v7835
    %v8547 = vunpack.c.h.b16 %v7835
    %v8548 = vunpack.c.l.b16 %v7836
    %v8549 = vunpack.c.h.b16 %v7836
    %v8550 = vunpack.c.l.b16 %v7837
    %v8551 = vunpack.c.h.b16 %v7837
    %v8552 = vunpack.c.l.b16 %v7838
    %v8553 = vunpack.c.h.b16 %v7838
    %v8554 = vunpack.c.l.b16 %v7839
    %v8555 = vunpack.c.h.b16 %v7839
    %v8556 = vunpack.c.l.b16 %v7840
    %v8557 = vunpack.c.h.b16 %v7840
    %v8558 = vunpack.c.l.b16 %v7841
    %v8559 = vunpack.c.h.b16 %v7841
    %v8560 = vunpack.c.l.b16 %v7842
    %v8561 = vunpack.c.h.b16 %v7842
    %v8562 = vunpack.c.l.b16 %v7843
    %v8563 = vunpack.c.h.b16 %v7843
    %v8564 = vunpack.c.l.b16 %v7844
    %v8565 = vunpack.c.h.b16 %v7844
    %v8566 = vunpack.c.l.b16 %v7845
    %v8567 = vunpack.c.h.b16 %v7845
    %v8568 = vunpack.c.l.b16 %v7846
    %v8569 = vunpack.c.h.b16 %v7846
    %v8570 = vunpack.c.l.b16 %v7847
    %v8571 = vunpack.c.h.b16 %v7847
    %v8572 = vunpack.c.l.b16 %v7848
    %v8573 = vunpack.c.h.b16 %v7848
    %v8574 = vunpack.c.l.b16 %v7849
    %v8575 = vunpack.c.h.b16 %v7849
    %v8576 = vunpack.c.l.b16 %v7850
    %v8577 = vunpack.c.h.b16 %v7850
    %v8578 = vunpack.c.l.b16 %v7851
    %v8579 = vunpack.c.h.b16 %v7851
    %v8580 = vunpack.c.l.b16 %v7852
    %v8581 = vunpack.c.h.b16 %v7852
    %v8582 = vunpack.c.l.b16 %v7853
    %v8583 = vunpack.c.h.b16 %v7853
    %v8584 = vunpack.c.l.b16 %v7854
    %v8585 = vunpack.c.h.b16 %v7854
    %v8586 = vunpack.c.l.b16 %v7855
    %v8587 = vunpack.c.h.b16 %v7855
    %v8588 = vunpack.c.l.b16 %v7856
    %v8589 = vunpack.c.h.b16 %v7856
    %v8590 = vunpack.c.l.b16 %v7857
    %v8591 = vunpack.c.h.b16 %v7857
    %v8592 = vunpack.c.l.b16 %v7858
    %v8593 = vunpack.c.h.b16 %v7858
    %v8594 = vunpack.c.l.b16 %v7859
    %v8595 = vunpack.c.h.b16 %v7859
    %v8596 = vunpack.c.l.b16 %v7860
    %v8597 = vunpack.c.h.b16 %v7860
    %v8598 = vunpack.c.l.b16 %v7861
    %v8599 = vunpack.c.h.b16 %v7861
    %v8600 = vunpack.c.l.b16 %v7862
    %v8601 = vunpack.c.h.b16 %v7862
    %v8602 = vunpack.c.l.b16 %v7863
    %v8603 = vunpack.c.h.b16 %v7863
    %v8604 = vunpack.c.l.b16 %v7864
    %v8605 = vunpack.c.h.b16 %v7864
    %v8606 = vunpack.c.l.b16 %v7865
    %v8607 = vunpack.c.h.b16 %v7865
    %v8608 = vunpack.c.l.b16 %v7866
    %v8609 = vunpack.c.h.b16 %v7866
    %v8610 = vunpack.c.l.b16 %v7867
    %v8611 = vunpack.c.h.b16 %v7867
    %v8612 = vunpack.c.l.b16 %v7868
    %v8613 = vunpack.c.h.b16 %v7868
    %v8614 = vunpack.c.l.b16 %v7869
    %v8615 = vunpack.c.h.b16 %v7869
    %v8616 = vunpack.c.l.b16 %v7870
    %v8617 = vunpack.c.h.b16 %v7870
    %v8618 = vunpack.c.l.b16 %v7871
    %v8619 = vunpack.c.h.b16 %v7871
    %v8620 = vunpack.c.l.b16 %v7872
    %v8621 = vunpack.c.h.b16 %v7872
    %v8622 = vunpack.c.l.b16 %v7873
    %v8623 = vunpack.c.h.b16 %v7873
    %v8624 = vunpack.c.l.b16 %v7874
    %v8625 = vunpack.c.h.b16 %v7874
    %v8626 = vunpack.c.l.b16 %v7875
    %v8627 = vunpack.c.h.b16 %v7875
    %v8628 = vunpack.c.l.b16 %v7876
    %v8629 = vunpack.c.h.b16 %v7876
    %v8630 = vunpack.c.l.b16 %v7877
    %v8631 = vunpack.c.h.b16 %v7877
    %v8632 = vunpack.c.l.b16 %v7878
    %v8633 = vunpack.c.h.b16 %v7878
    %v8634 = vunpack.c.l.b16 %v7879
    %v8635 = vunpack.c.h.b16 %v7879
    %v8636 = vunpack.c.l.b16 %v7880
    %v8637 = vunpack.c.h.b16 %v7880
    %v8638 = vunpack.c.l.b16 %v7881
    %v8639 = vunpack.c.h.b16 %v7881
    %v8640 = vunpack.c.l.b16 %v7882
    %v8641 = vunpack.c.h.b16 %v7882
    %v8642 = vunpack.c.l.b16 %v7883
    %v8643 = vunpack.c.h.b16 %v7883
    %v8644 = vunpack.c.l.b16 %v7884
    %v8645 = vunpack.c.h.b16 %v7884
    %v8646 = vunpack.c.l.b16 %v7885
    %v8647 = vunpack.c.h.b16 %v7885
    %v8648 = vunpack.c.l.b16 %v7886
    %v8649 = vunpack.c.h.b16 %v7886
    %v8650 = vunpack.c.l.b16 %v7887
    %v8651 = vunpack.c.h.b16 %v7887
    %v8652 = vunpack.c.l.b16 %v7888
    %v8653 = vunpack.c.h.b16 %v7888
    %v8654 = vunpack.c.l.b16 %v7889
    %v8655 = vunpack.c.h.b16 %v7889
    %v8656 = vunpack.c.l.b16 %v7890
    %v8657 = vunpack.c.h.b16 %v7890
    %v8658 = vunpack.c.l.b16 %v7891
    %v8659 = vunpack.c.h.b16 %v7891
    %v8660 = vunpack.c.l.b16 %v7892
    %v8661 = vunpack.c.h.b16 %v7892
    %v8662 = vunpack.c.l.b16 %v7893
    %v8663 = vunpack.c.h.b16 %v7893
    %v8664 = vunpack.c.l.b16 %v7894
    %v8665 = vunpack.c.h.b16 %v7894
    %v8666 = vunpack.c.l.b16 %v7895
    %v8667 = vunpack.c.h.b16 %v7895
    %v8668 = vunpack.c.l.b16 %v7896
    %v8669 = vunpack.c.h.b16 %v7896
    %v8670 = vunpack.c.l.b16 %v7897
    %v8671 = vunpack.c.h.b16 %v7897
    %v8672 = vunpack.c.l.b16 %v7898
    %v8673 = vunpack.c.h.b16 %v7898
    %v8674 = vunpack.c.l.b16 %v7899
    %v8675 = vunpack.c.h.b16 %v7899
    %v8676 = vunpack.c.l.b16 %v7900
    %v8677 = vunpack.c.h.b16 %v7900
    %v8678 = vunpack.c.l.b16 %v7901
    %v8679 = vunpack.c.h.b16 %v7901
    %v8680 = vunpack.c.l.b16 %v7902
    %v8681 = vunpack.c.h.b16 %v7902
    %v8682 = vunpack.c.l.b16 %v7903
    %v8683 = vunpack.c.h.b16 %v7903
    %v8684 = vunpack.c.l.b16 %v7904
    %v8685 = vunpack.c.h.b16 %v7904
    %v8686 = vunpack.c.l.b16 %v7905
    %v8687 = vunpack.c.h.b16 %v7905
    %v8688 = vunpack.c.l.b16 %v7906
    %v8689 = vunpack.c.h.b16 %v7906
    %v8690 = vunpack.c.l.b16 %v7907
    %v8691 = vunpack.c.h.b16 %v7907
    %v8692 = vunpack.c.l.b16 %v7908
    %v8693 = vunpack.c.h.b16 %v7908
    %v8694 = vunpack.c.l.b16 %v7909
    %v8695 = vunpack.c.h.b16 %v7909
    %v8696 = vunpack.c.l.b16 %v7910
    %v8697 = vunpack.c.h.b16 %v7910
    %v8698 = vunpack.c.l.b16 %v7911
    %v8699 = vunpack.c.h.b16 %v7911
    %v8700 = vunpack.c.l.b16 %v7912
    %v8701 = vunpack.c.h.b16 %v7912
    %v8702 = vunpack.c.l.b16 %v7913
    %v8703 = vunpack.c.h.b16 %v7913
    %v8704 = vunpack.c.l.b16 %v7914
    %v8705 = vunpack.c.h.b16 %v7914
    %v8706 = vunpack.c.l.b16 %v7915
    %v8707 = vunpack.c.h.b16 %v7915
    %v8708 = vunpack.c.l.b16 %v7916
    %v8709 = vunpack.c.h.b16 %v7916
    %v8710 = vunpack.c.l.b16 %v7917
    %v8711 = vunpack.c.h.b16 %v7917
    %v8712 = vunpack.c.l.b16 %v7918
    %v8713 = vunpack.c.h.b16 %v7918
    %v8714 = vunpack.c.l.b16 %v7919
    %v8715 = vunpack.c.h.b16 %v7919
    %v8716 = vunpack.c.l.b16 %v7920
    %v8717 = vunpack.c.h.b16 %v7920
    %v8718 = vunpack.c.l.b16 %v7921
    %v8719 = vunpack.c.h.b16 %v7921
    %v8720 = vunpack.c.l.b16 %v7922
    %v8721 = vunpack.c.h.b16 %v7922
    %v8722 = vunpack.c.l.b16 %v7923
    %v8723 = vunpack.c.h.b16 %v7923
    %v8724 = vunpack.c.l.b16 %v7924
    %v8725 = vunpack.c.h.b16 %v7924
    %v8726 = vunpack.c.l.b16 %v7925
    %v8727 = vunpack.c.h.b16 %v7925
    %v8728 = vunpack.c.l.b16 %v7926
    %v8729 = vunpack.c.h.b16 %v7926
    %v8730 = vunpack.c.l.b16 %v7927
    %v8731 = vunpack.c.h.b16 %v7927
    %v8732 = vunpack.c.l.b16 %v7928
    %v8733 = vunpack.c.h.b16 %v7928
    %v8734 = vunpack.c.l.b16 %v7929
    %v8735 = vunpack.c.h.b16 %v7929
    %v8736 = vunpack.c.l.b16 %v7930
    %v8737 = vunpack.c.h.b16 %v7930
    %v8738 = vunpack.c.l.b16 %v7931
    %v8739 = vunpack.c.h.b16 %v7931
    %v8740 = vunpack.c.l.b16 %v7932
    %v8741 = vunpack.c.h.b16 %v7932
    %v8742 = vunpack.c.l.b16 %v7933
    %v8743 = vunpack.c.h.b16 %v7933
    %v8744 = vunpack.c.l.b16 %v7934
    %v8745 = vunpack.c.h.b16 %v7934
    %v8746 = vunpack.c.l.b16 %v7935
    %v8747 = vunpack.c.h.b16 %v7935
    %v8748 = vunpack.c.l.b16 %v7936
    %v8749 = vunpack.c.h.b16 %v7936
    %v8750 = vunpack.c.l.b16 %v7937
    %v8751 = vunpack.c.h.b16 %v7937
    %v8752 = vunpack.c.l.b16 %v7938
    %v8753 = vunpack.c.h.b16 %v7938
    %v8754 = vunpack.c.l.b16 %v7939
    %v8755 = vunpack.c.h.b16 %v7939
    %v8756 = vunpack.c.l.b16 %v7940
    %v8757 = vunpack.c.h.b16 %v7940
    %v8758 = vunpack.c.l.b16 %v7941
    %v8759 = vunpack.c.h.b16 %v7941
    %v8760 = vunpack.c.l.b16 %v7942
    %v8761 = vunpack.c.h.b16 %v7942
    %v8762 = vunpack.c.l.b16 %v7943
    %v8763 = vunpack.c.h.b16 %v7943
    %v8764 = vunpack.c.l.b16 %v7944
    %v8765 = vunpack.c.h.b16 %v7944
    %v8766 = vunpack.c.l.b16 %v7945
    %v8767 = vunpack.c.h.b16 %v7945
    %v8768 = vunpack.c.l.b16 %v7946
    %v8769 = vunpack.c.h.b16 %v7946
    %v8770 = vunpack.c.l.b16 %v7947
    %v8771 = vunpack.c.h.b16 %v7947
    %v8772 = vunpack.c.l.b16 %v7948
    %v8773 = vunpack.c.h.b16 %v7948
    %v8774 = vunpack.c.l.b16 %v7949
    %v8775 = vunpack.c.h.b16 %v7949
    %v8776 = vunpack.c.l.b16 %v7950
    %v8777 = vunpack.c.h.b16 %v7950
    %v8778 = vunpack.c.l.b16 %v7951
    %v8779 = vunpack.c.h.b16 %v7951
    %v8780 = vunpack.c.l.b16 %v7952
    %v8781 = vunpack.c.h.b16 %v7952
    %v8782 = vunpack.c.l.b16 %v7953
    %v8783 = vunpack.c.h.b16 %v7953
    %v8784 = vunpack.c.l.b16 %v7954
    %v8785 = vunpack.c.h.b16 %v7954
    %v8786 = vunpack.c.l.b16 %v7955
    %v8787 = vunpack.c.h.b16 %v7955
    %v8788 = vunpack.c.l.b16 %v7956
    %v8789 = vunpack.c.h.b16 %v7956
    %v8790 = vunpack.c.l.b16 %v7957
    %v8791 = vunpack.c.h.b16 %v7957
    %v8792 = vunpack.c.l.b16 %v7958
    %v8793 = vunpack.c.h.b16 %v7958
    %v8794 = vunpack.c.l.b16 %v7959
    %v8795 = vunpack.c.h.b16 %v7959
    %v8796 = vunpack.c.l.b16 %v7960
    %v8797 = vunpack.c.h.b16 %v7960
    %v8798 = vunpack.c.l.b16 %v7961
    %v8799 = vunpack.c.h.b16 %v7961
    %v8800 = vunpack.c.l.b16 %v7962
    %v8801 = vunpack.c.h.b16 %v7962
    %v8802 = vunpack.c.l.b16 %v7963
    %v8803 = vunpack.c.h.b16 %v7963
    %v8804 = vunpack.c.l.b16 %v7964
    %v8805 = vunpack.c.h.b16 %v7964
    %v8806 = vunpack.c.l.b16 %v7965
    %v8807 = vunpack.c.h.b16 %v7965
    %v8808 = vpack.c.b16 %v8304, %v8296
    %v8809 = vpack.c.b16 %v8305, %v8297
    %v8810 = vpack.c.b16 %v8306, %v8298
    %v8811 = vpack.c.b16 %v8307, %v8299
    %v8812 = vpack.c.b16 %v8308, %v8300
    %v8813 = vpack.c.b16 %v8309, %v8301
    %v8814 = vpack.c.b16 %v8310, %v8302
    %v8815 = vpack.c.b16 %v8311, %v8303
    %v8816 = vpack.c.b16 %v8320, %v8312
    %v8817 = vpack.c.b16 %v8321, %v8313
    %v8818 = vpack.c.b16 %v8322, %v8314
    %v8819 = vpack.c.b16 %v8323, %v8315
    %v8820 = vpack.c.b16 %v8324, %v8316
    %v8821 = vpack.c.b16 %v8325, %v8317
    %v8822 = vpack.c.b16 %v8326, %v8318
    %v8823 = vpack.c.b16 %v8327, %v8319
    %v8824 = vpack.c.b16 %v8336, %v8328
    %v8825 = vpack.c.b16 %v8337, %v8329
    %v8826 = vpack.c.b16 %v8338, %v8330
    %v8827 = vpack.c.b16 %v8339, %v8331
    %v8828 = vpack.c.b16 %v8340, %v8332
    %v8829 = vpack.c.b16 %v8341, %v8333
    %v8830 = vpack.c.b16 %v8342, %v8334
    %v8831 = vpack.c.b16 %v8343, %v8335
    %v8832 = vpack.c.b16 %v8352, %v8344
    %v8833 = vpack.c.b16 %v8353, %v8345
    %v8834 = vpack.c.b16 %v8354, %v8346
    %v8835 = vpack.c.b16 %v8355, %v8347
    %v8836 = vpack.c.b16 %v8356, %v8348
    %v8837 = vpack.c.b16 %v8357, %v8349
    %v8838 = vpack.c.b16 %v8358, %v8350
    %v8839 = vpack.c.b16 %v8359, %v8351
    %v8840 = vpack.c.b16 %v8368, %v8360
    %v8841 = vpack.c.b16 %v8369, %v8361
    %v8842 = vpack.c.b16 %v8370, %v8362
    %v8843 = vpack.c.b16 %v8371, %v8363
    %v8844 = vpack.c.b16 %v8372, %v8364
    %v8845 = vpack.c.b16 %v8373, %v8365
    %v8846 = vpack.c.b16 %v8374, %v8366
    %v8847 = vpack.c.b16 %v8375, %v8367
    %v8848 = vpack.c.b16 %v8384, %v8376
    %v8849 = vpack.c.b16 %v8385, %v8377
    %v8850 = vpack.c.b16 %v8386, %v8378
    %v8851 = vpack.c.b16 %v8387, %v8379
    %v8852 = vpack.c.b16 %v8388, %v8380
    %v8853 = vpack.c.b16 %v8389, %v8381
    %v8854 = vpack.c.b16 %v8390, %v8382
    %v8855 = vpack.c.b16 %v8391, %v8383
    %v8856 = vpack.c.b16 %v8400, %v8392
    %v8857 = vpack.c.b16 %v8401, %v8393
    %v8858 = vpack.c.b16 %v8402, %v8394
    %v8859 = vpack.c.b16 %v8403, %v8395
    %v8860 = vpack.c.b16 %v8404, %v8396
    %v8861 = vpack.c.b16 %v8405, %v8397
    %v8862 = vpack.c.b16 %v8406, %v8398
    %v8863 = vpack.c.b16 %v8407, %v8399
    %v8864 = vpack.c.b16 %v8416, %v8408
    %v8865 = vpack.c.b16 %v8417, %v8409
    %v8866 = vpack.c.b16 %v8418, %v8410
    %v8867 = vpack.c.b16 %v8419, %v8411
    %v8868 = vpack.c.b16 %v8420, %v8412
    %v8869 = vpack.c.b16 %v8421, %v8413
    %v8870 = vpack.c.b16 %v8422, %v8414
    %v8871 = vpack.c.b16 %v8423, %v8415
    %v8872 = vpack.c.b16 %v8432, %v8424
    %v8873 = vpack.c.b16 %v8433, %v8425
    %v8874 = vpack.c.b16 %v8434, %v8426
    %v8875 = vpack.c.b16 %v8435, %v8427
    %v8876 = vpack.c.b16 %v8436, %v8428
    %v8877 = vpack.c.b16 %v8437, %v8429
    %v8878 = vpack.c.b16 %v8438, %v8430
    %v8879 = vpack.c.b16 %v8439, %v8431
    %v8880 = vpack.c.b16 %v8448, %v8440
    %v8881 = vpack.c.b16 %v8449, %v8441
    %v8882 = vpack.c.b16 %v8450, %v8442
    %v8883 = vpack.c.b16 %v8451, %v8443
    %v8884 = vpack.c.b16 %v8452, %v8444
    %v8885 = vpack.c.b16 %v8453, %v8445
    %v8886 = vpack.c.b16 %v8454, %v8446
    %v8887 = vpack.c.b16 %v8455, %v8447
    %v8888 = vpack.c.b16 %v8464, %v8456
    %v8889 = vpack.c.b16 %v8465, %v8457
    %v8890 = vpack.c.b16 %v8466, %v8458
    %v8891 = vpack.c.b16 %v8467, %v8459
    %v8892 = vpack.c.b16 %v8468, %v8460
    %v8893 = vpack.c.b16 %v8469, %v8461
    %v8894 = vpack.c.b16 %v8470, %v8462
    %v8895 = vpack.c.b16 %v8471, %v8463
    %v8896 = vpack.c.b16 %v8480, %v8472
    %v8897 = vpack.c.b16 %v8481, %v8473
    %v8898 = vpack.c.b16 %v8482, %v8474
    %v8899 = vpack.c.b16 %v8483, %v8475
    %v8900 = vpack.c.b16 %v8484, %v8476
    %v8901 = vpack.c.b16 %v8485, %v8477
    %v8902 = vpack.c.b16 %v8486, %v8478
    %v8903 = vpack.c.b16 %v8487, %v8479
    %v8904 = vpack.c.b16 %v8496, %v8488
    %v8905 = vpack.c.b16 %v8497, %v8489
    %v8906 = vpack.c.b16 %v8498, %v8490
    %v8907 = vpack.c.b16 %v8499, %v8491
    %v8908 = vpack.c.b16 %v8500, %v8492
    %v8909 = vpack.c.b16 %v8501, %v8493
    %v8910 = vpack.c.b16 %v8502, %v8494
    %v8911 = vpack.c.b16 %v8503, %v8495
    %v8912 = vpack.c.b16 %v8512, %v8504
    %v8913 = vpack.c.b16 %v8513, %v8505
    %v8914 = vpack.c.b16 %v8514, %v8506
    %v8915 = vpack.c.b16 %v8515, %v8507
    %v8916 = vpack.c.b16 %v8516, %v8508
    %v8917 = vpack.c.b16 %v8517, %v8509
    %v8918 = vpack.c.b16 %v8518, %v8510
    %v8919 = vpack.c.b16 %v8519, %v8511
    %v8920 = vpack.c.b16 %v8528, %v8520
    %v8921 = vpack.c.b16 %v8529, %v8521
    %v8922 = vpack.c.b16 %v8530, %v8522
    %v8923 = vpack.c.b16 %v8531, %v8523
    %v8924 = vpack.c.b16 %v8532, %v8524
    %v8925 = vpack.c.b16 %v8533, %v8525
    %v8926 = vpack.c.b16 %v8534, %v8526
    %v8927 = vpack.c.b16 %v8535, %v8527
    %v8928 = vpack.c.b16 %v8544, %v8536
    %v8929 = vpack.c.b16 %v8545, %v8537
    %v8930 = vpack.c.b16 %v8546, %v8538
    %v8931 = vpack.c.b16 %v8547, %v8539
    %v8932 = vpack.c.b16 %v8548, %v8540
    %v8933 = vpack.c.b16 %v8549, %v8541
    %v8934 = vpack.c.b16 %v8550, %v8542
    %v8935 = vpack.c.b16 %v8551, %v8543
    %v8936 = vpack.c.b16 %v8560, %v8552
    %v8937 = vpack.c.b16 %v8561, %v8553
    %v8938 = vpack.c.b16 %v8562, %v8554
    %v8939 = vpack.c.b16 %v8563, %v8555
    %v8940 = vpack.c.b16 %v8564, %v8556
    %v8941 = vpack.c.b16 %v8565, %v8557
    %v8942 = vpack.c.b16 %v8566, %v8558
    %v8943 = vpack.c.b16 %v8567, %v8559
    %v8944 = vpack.c.b16 %v8576, %v8568
    %v8945 = vpack.c.b16 %v8577, %v8569
    %v8946 = vpack.c.b16 %v8578, %v8570
    %v8947 = vpack.c.b16 %v8579, %v8571
    %v8948 = vpack.c.b16 %v8580, %v8572
    %v8949 = vpack.c.b16 %v8581, %v8573
    %v8950 = vpack.c.b16 %v8582, %v8574
    %v8951 = vpack.c.b16 %v8583, %v8575
    %v8952 = vpack.c.b16 %v8592, %v8584
    %v8953 = vpack.c.b16 %v8593, %v8585
    %v8954 = vpack.c.b16 %v8594, %v8586
    %v8955 = vpack.c.b16 %v8595, %v8587
    %v8956 = vpack.c.b16 %v8596, %v8588
    %v8957 = vpack.c.b16 %v8597, %v8589
    %v8958 = vpack.c.b16 %v8598, %v8590
    %v8959 = vpack.c.b16 %v8599, %v8591
    %v8960 = vpack.c.b16 %v8608, %v8600
    %v8961 = vpack.c.b16 %v8609, %v8601
    %v8962 = vpack.c.b16 %v8610, %v8602
    %v8963 = vpack.c.b16 %v8611, %v8603
    %v8964 = vpack.c.b16 %v8612, %v8604
    %v8965 = vpack.c.b16 %v8613, %v8605
    %v8966 = vpack.c.b16 %v8614, %v8606
    %v8967 = vpack.c.b16 %v8615, %v8607
    %v8968 = vpack.c.b16 %v8624, %v8616
    %v8969 = vpack.c.b16 %v8625, %v8617
    %v8970 = vpack.c.b16 %v8626, %v8618
    %v8971 = vpack.c.b16 %v8627, %v8619
    %v8972 = vpack.c.b16 %v8628, %v8620
    %v8973 = vpack.c.b16 %v8629, %v8621
    %v8974 = vpack.c.b16 %v8630, %v8622
    %v8975 = vpack.c.b16 %v8631, %v8623
    %v8976 = vpack.c.b16 %v8640, %v8632
    %v8977 = vpack.c.b16 %v8641, %v8633
    %v8978 = vpack.c.b16 %v8642, %v8634
    %v8979 = vpack.c.b16 %v8643, %v8635
    %v8980 = vpack.c.b16 %v8644, %v8636
    %v8981 = vpack.c.b16 %v8645, %v8637
    %v8982 = vpack.c.b16 %v8646, %v8638
    %v8983 = vpack.c.b16 %v8647, %v8639
    %v8984 = vpack.c.b16 %v8656, %v8648
    %v8985 = vpack.c.b16 %v8657, %v8649
    %v8986 = vpack.c.b16 %v8658, %v8650
    %v8987 = vpack.c.b16 %v8659, %v8651
    %v8988 = vpack.c.b16 %v8660, %v8652
    %v8989 = vpack.c.b16 %v8661, %v8653
    %v8990 = vpack.c.b16 %v8662, %v8654
    %v8991 = vpack.c.b16 %v8663, %v8655
    %v8992 = vpack.c.b16 %v8672, %v8664
    %v8993 = vpack.c.b16 %v8673, %v8665
    %v8994 = vpack.c.b16 %v8674, %v8666
    %v8995 = vpack.c.b16 %v8675, %v8667
    %v8996 = vpack.c.b16 %v8676, %v8668
    %v8997 = vpack.c.b16 %v8677, %v8669
    %v8998 = vpack.c.b16 %v8678, %v8670
    %v8999 = vpack.c.b16 %v8679, %v8671
    %v9000 = vpack.c.b16 %v8688, %v8680
    %v9001 = vpack.c.b16 %v8689, %v8681
    %v9002 = vpack.c.b16 %v8690, %v8682
    %v9003 = vpack.c.b16 %v8691, %v8683
    %v9004 = vpack.c.b16 %v8692, %v8684
    %v9005 = vpack.c.b16 %v8693, %v8685
    %v9006 = vpack.c.b16 %v8694, %v8686
    %v9007 = vpack.c.b16 %v8695, %v8687
    %v9008 = vpack.c.b16 %v8704, %v8696
    %v9009 = vpack.c.b16 %v8705, %v8697
    %v9010 = vpack.c.b16 %v8706, %v8698
    %v9011 = vpack.c.b16 %v8707, %v8699
    %v9012 = vpack.c.b16 %v8708, %v8700
    %v9013 = vpack.c.b16 %v8709, %v8701
    %v9014 = vpack.c.b16 %v8710, %v8702
    %v9015 = vpack.c.b16 %v8711, %v8703
    %v9016 = vpack.c.b16 %v8720, %v8712
    %v9017 = vpack.c.b16 %v8721, %v8713
    %v9018 = vpack.c.b16 %v8722, %v8714
    %v9019 = vpack.c.b16 %v8723, %v8715
    %v9020 = vpack.c.b16 %v8724, %v8716
    %v9021 = vpack.c.b16 %v8725, %v8717
    %v9022 = vpack.c.b16 %v8726, %v8718
    %v9023 = vpack.c.b16 %v8727, %v8719
    %v9024 = vpack.c.b16 %v8736, %v8728
    %v9025 = vpack.c.b16 %v8737, %v8729
    %v9026 = vpack.c.b16 %v8738, %v8730
    %v9027 = vpack.c.b16 %v8739, %v8731
    %v9028 = vpack.c.b16 %v8740, %v8732
    %v9029 = vpack.c.b16 %v8741, %v8733
    %v9030 = vpack.c.b16 %v8742, %v8734
    %v9031 = vpack.c.b16 %v8743, %v8735
    %v9032 = vpack.c.b16 %v8752, %v8744
    %v9033 = vpack.c.b16 %v8753, %v8745
    %v9034 = vpack.c.b16 %v8754, %v8746
    %v9035 = vpack.c.b16 %v8755, %v8747
    %v9036 = vpack.c.b16 %v8756, %v8748
    %v9037 = vpack.c.b16 %v8757, %v8749
    %v9038 = vpack.c.b16 %v8758, %v8750
    %v9039 = vpack.c.b16 %v8759, %v8751
    %v9040 = vpack.c.b16 %v8768, %v8760
    %v9041 = vpack.c.b16 %v8769, %v8761
    %v9042 = vpack.c.b16 %v8770, %v8762
    %v9043 = vpack.c.b16 %v8771, %v8763
    %v9044 = vpack.c.b16 %v8772, %v8764
    %v9045 = vpack.c.b16 %v8773, %v8765
    %v9046 = vpack.c.b16 %v8774, %v8766
    %v9047 = vpack.c.b16 %v8775, %v8767
    %v9048 = vpack.c.b16 %v8784, %v8776
    %v9049 = vpack.c.b16 %v8785, %v8777
    %v9050 = vpack.c.b16 %v8786, %v8778
    %v9051 = vpack.c.b16 %v8787, %v8779
    %v9052 = vpack.c.b16 %v8788, %v8780
    %v9053 = vpack.c.b16 %v8789, %v8781
    %v9054 = vpack.c.b16 %v8790, %v8782
    %v9055 = vpack.c.b16 %v8791, %v8783
    %v9056 = vpack.c.b16 %v8800, %v8792
    %v9057 = vpack.c.b16 %v8801, %v8793
    %v9058 = vpack.c.b16 %v8802, %v8794
    %v9059 = vpack.c.b16 %v8803, %v8795
    %v9060 = vpack.c.b16 %v8804, %v8796
    %v9061 = vpack.c.b16 %v8805, %v8797
    %v9062 = vpack.c.b16 %v8806, %v8798
    %v9063 = vpack.c.b16 %v8807, %v8799
    %9320 = vmatprep.subr.bf16.mxu0 %v8865
    %9321 = vmatpush1.bf16.msra.mxu0 %v8864
    %9322 = vmatprep.subr.bf16.mxu0 %v8857
    %9323 = vmatpush1.bf16.msra.mxu0 %v8856
    %9324 = vmatprep.subr.bf16.mxu0 %v8849
    %9325 = vmatpush1.bf16.msra.mxu0 %v8848
    %9326 = vmatprep.subr.bf16.mxu0 %v8841
    %9327 = vmatpush1.bf16.msra.mxu0 %v8840
    %9328 = vmatprep.subr.bf16.mxu0 %v8833
    %9329 = vmatpush1.bf16.msra.mxu0 %v8832
    %9330 = vmatprep.subr.bf16.mxu0 %v8825
    %9331 = vmatpush1.bf16.msra.mxu0 %v8824
    %9332 = vmatprep.subr.bf16.mxu0 %v8817
    %9333 = vmatpush1.bf16.msra.mxu0 %v8816
    %9334 = vmatprep.subr.bf16.mxu0 %v8809
    %9335 = vmatpush1.bf16.msra.mxu0 %v8808
    %9336 = vmatprep.subr.bf16.mxu0 %v8929
    %9337 = vmatpush2.bf16.msra.mxu0 %v8928
    %9338 = vmatprep.subr.bf16.mxu0 %v8921
    %9339 = vmatpush2.bf16.msra.mxu0 %v8920
    %9340 = vmatprep.subr.bf16.mxu0 %v8913
    %9341 = vmatpush2.bf16.msra.mxu0 %v8912
    %9342 = vmatprep.subr.bf16.mxu0 %v8905
    %9343 = vmatpush2.bf16.msra.mxu0 %v8904
    %9344 = vmatprep.subr.bf16.mxu0 %v8897
    %9345 = vmatpush2.bf16.msra.mxu0 %v8896
    %9346 = vmatprep.subr.bf16.mxu0 %v8889
    %9347 = vmatpush2.bf16.msra.mxu0 %v8888
    %9348 = vmatprep.subr.bf16.mxu0 %v8881
    %9349 = vmatpush2.bf16.msra.mxu0 %v8880
    %9350 = vmatprep.subr.bf16.mxu0 %v8873
    %9351 = vmatpush2.bf16.msra.mxu0 %v8872
    %9352 = vmatprep.mubr.bf16.mxu0 %v7967
    %9353 = vmatmul.mubr.bf16.gmra.mxu0 %v7966
    %v9354 = vpop.f32.mrf.mxu0
    %v9355 = vadd.f32 %v8003, %v9354
    %v9356 = vpop.f32.mrf.mxu0
    %v9357 = vadd.f32 %v8007, %v9356
    %v9358 = vpop.f32.mrf.mxu0
    %v9359 = vadd.f32 %v8003, %v9358
    %v9360 = vpop.f32.mrf.mxu0
    %v9361 = vadd.f32 %v8007, %v9360
    %9362 = vmatprep.mubr.bf16.mxu0 %v7971
    %9363 = vmatmul.mubr.bf16.gmra.mxu0 %v7970
    %v9364 = vpop.f32.mrf.mxu0
    %v9365 = vadd.f32 %v8003, %v9364
    %v9366 = vpop.f32.mrf.mxu0
    %v9367 = vadd.f32 %v8007, %v9366
    %v9368 = vpop.f32.mrf.mxu0
    %v9369 = vadd.f32 %v8003, %v9368
    %v9370 = vpop.f32.mrf.mxu0
    %v9371 = vadd.f32 %v8007, %v9370
    %9372 = vmatprep.mubr.bf16.mxu0 %v7975
    %9373 = vmatmul.mubr.bf16.gmra.mxu0 %v7974
    %v9374 = vpop.f32.mrf.mxu0
    %v9375 = vadd.f32 %v8003, %v9374
    %v9376 = vpop.f32.mrf.mxu0
    %v9377 = vadd.f32 %v8007, %v9376
    %v9378 = vpop.f32.mrf.mxu0
    %v9379 = vadd.f32 %v8003, %v9378
    %v9380 = vpop.f32.mrf.mxu0
    %v9381 = vadd.f32 %v8007, %v9380
    %9382 = vmatprep.mubr.bf16.mxu0 %v7979
    %9383 = vmatmul.mubr.bf16.gmra.mxu0 %v7978
    %v9384 = vpop.f32.mrf.mxu0
    %v9385 = vadd.f32 %v8003, %v9384
    %v9386 = vpop.f32.mrf.mxu0
    %v9387 = vadd.f32 %v8007, %v9386
    %v9388 = vpop.f32.mrf.mxu0
    %v9389 = vadd.f32 %v8003, %v9388
    %v9390 = vpop.f32.mrf.mxu0
    %v9391 = vadd.f32 %v8007, %v9390
    %9392 = vmatprep.mubr.bf16.mxu0 %v7983
    %9393 = vmatmul.mubr.bf16.gmra.mxu0 %v7982
    %v9394 = vpop.f32.mrf.mxu0
    %v9395 = vadd.f32 %v8003, %v9394
    %v9396 = vpop.f32.mrf.mxu0
    %v9397 = vadd.f32 %v8007, %v9396
    %v9398 = vpop.f32.mrf.mxu0
    %v9399 = vadd.f32 %v8003, %v9398
    %v9400 = vpop.f32.mrf.mxu0
    %v9401 = vadd.f32 %v8007, %v9400
    %9402 = vmatprep.mubr.bf16.mxu0 %v7987
    %9403 = vmatmul.mubr.bf16.gmra.mxu0 %v7986
    %v9404 = vpop.f32.mrf.mxu0
    %v9405 = vadd.f32 %v8003, %v9404
    %v9406 = vpop.f32.mrf.mxu0
    %v9407 = vadd.f32 %v8007, %v9406
    %v9408 = vpop.f32.mrf.mxu0
    %v9409 = vadd.f32 %v8003, %v9408
    %v9410 = vpop.f32.mrf.mxu0
    %v9411 = vadd.f32 %v8007, %v9410
    %9412 = vmatprep.mubr.bf16.mxu0 %v7991
    %9413 = vmatmul.mubr.bf16.gmra.mxu0 %v7990
    %v9414 = vpop.f32.mrf.mxu0
    %v9415 = vadd.f32 %v8003, %v9414
    %v9416 = vpop.f32.mrf.mxu0
    %v9417 = vadd.f32 %v8007, %v9416
    %v9418 = vpop.f32.mrf.mxu0
    %v9419 = vadd.f32 %v8003, %v9418
    %v9420 = vpop.f32.mrf.mxu0
    %v9421 = vadd.f32 %v8007, %v9420
    %9422 = vmatprep.mubr.bf16.mxu0 %v7995
    %9423 = vmatmul.mubr.bf16.gmra.mxu0 %v7994
    %v9424 = vpop.f32.mrf.mxu0
    %v9425 = vadd.f32 %v8003, %v9424
    %v9426 = vpop.f32.mrf.mxu0
    %v9427 = vadd.f32 %v8007, %v9426
    %v9428 = vpop.f32.mrf.mxu0
    %v9429 = vadd.f32 %v8003, %v9428
    %v9430 = vpop.f32.mrf.mxu0
    %v9431 = vadd.f32 %v8007, %v9430
    %9432 = vdwg.mxu0
    %9433 = vmatprep.subr.bf16.mxu0 %v8993
    %9434 = vmatpush1.bf16.msra.mxu0 %v8992
    %9435 = vmatprep.subr.bf16.mxu0 %v8985
    %9436 = vmatpush1.bf16.msra.mxu0 %v8984
    %9437 = vmatprep.subr.bf16.mxu0 %v8977
    %9438 = vmatpush1.bf16.msra.mxu0 %v8976
    %9439 = vmatprep.subr.bf16.mxu0 %v8969
    %9440 = vmatpush1.bf16.msra.mxu0 %v8968
    %9441 = vmatprep.subr.bf16.mxu0 %v8961
    %9442 = vmatpush1.bf16.msra.mxu0 %v8960
    %9443 = vmatprep.subr.bf16.mxu0 %v8953
    %9444 = vmatpush1.bf16.msra.mxu0 %v8952
    %9445 = vmatprep.subr.bf16.mxu0 %v8945
    %9446 = vmatpush1.bf16.msra.mxu0 %v8944
    %9447 = vmatprep.subr.bf16.mxu0 %v8937
    %9448 = vmatpush1.bf16.msra.mxu0 %v8936
    %9449 = vmatprep.subr.bf16.mxu0 %v9057
    %9450 = vmatpush2.bf16.msra.mxu0 %v9056
    %9451 = vmatprep.subr.bf16.mxu0 %v9049
    %9452 = vmatpush2.bf16.msra.mxu0 %v9048
    %9453 = vmatprep.subr.bf16.mxu0 %v9041
    %9454 = vmatpush2.bf16.msra.mxu0 %v9040
    %9455 = vmatprep.subr.bf16.mxu0 %v9033
    %9456 = vmatpush2.bf16.msra.mxu0 %v9032
    %9457 = vmatprep.subr.bf16.mxu0 %v9025
    %9458 = vmatpush2.bf16.msra.mxu0 %v9024
    %9459 = vmatprep.subr.bf16.mxu0 %v9017
    %9460 = vmatpush2.bf16.msra.mxu0 %v9016
    %9461 = vmatprep.subr.bf16.mxu0 %v9009
    %9462 = vmatpush2.bf16.msra.mxu0 %v9008
    %9463 = vmatprep.subr.bf16.mxu0 %v9001
    %9464 = vmatpush2.bf16.msra.mxu0 %v9000
    %9465 = vmatprep.mubr.bf16.mxu0 %v7969
    %9466 = vmatmul.mubr.bf16.gmra.mxu0 %v7968
    %v9467 = vpop.f32.mrf.mxu0
    %v9468 = vadd.f32 %v9355, %v9467
    %v9469 = vpop.f32.mrf.mxu0
    %v9470 = vadd.f32 %v9357, %v9469
    %v9471 = vpop.f32.mrf.mxu0
    %v9472 = vadd.f32 %v9359, %v9471
    %v9473 = vpop.f32.mrf.mxu0
    %v9474 = vadd.f32 %v9361, %v9473
    %9475 = vmatprep.mubr.bf16.mxu0 %v7973
    %9476 = vmatmul.mubr.bf16.gmra.mxu0 %v7972
    %v9477 = vpop.f32.mrf.mxu0
    %v9478 = vadd.f32 %v9365, %v9477
    %v9479 = vpop.f32.mrf.mxu0
    %v9480 = vadd.f32 %v9367, %v9479
    %v9481 = vpop.f32.mrf.mxu0
    %v9482 = vadd.f32 %v9369, %v9481
    %v9483 = vpop.f32.mrf.mxu0
    %v9484 = vadd.f32 %v9371, %v9483
    %9485 = vmatprep.mubr.bf16.mxu0 %v7977
    %9486 = vmatmul.mubr.bf16.gmra.mxu0 %v7976
    %v9487 = vpop.f32.mrf.mxu0
    %v9488 = vadd.f32 %v9375, %v9487
    %v9489 = vpop.f32.mrf.mxu0
    %v9490 = vadd.f32 %v9377, %v9489
    %v9491 = vpop.f32.mrf.mxu0
    %v9492 = vadd.f32 %v9379, %v9491
    %v9493 = vpop.f32.mrf.mxu0
    %v9494 = vadd.f32 %v9381, %v9493
    %9495 = vmatprep.mubr.bf16.mxu0 %v7981
    %9496 = vmatmul.mubr.bf16.gmra.mxu0 %v7980
    %v9497 = vpop.f32.mrf.mxu0
    %v9498 = vadd.f32 %v9385, %v9497
    %v9499 = vpop.f32.mrf.mxu0
    %v9500 = vadd.f32 %v9387, %v9499
    %v9501 = vpop.f32.mrf.mxu0
    %v9502 = vadd.f32 %v9389, %v9501
    %v9503 = vpop.f32.mrf.mxu0
    %v9504 = vadd.f32 %v9391, %v9503
    %9505 = vmatprep.mubr.bf16.mxu0 %v7985
    %9506 = vmatmul.mubr.bf16.gmra.mxu0 %v7984
    %v9507 = vpop.f32.mrf.mxu0
    %v9508 = vadd.f32 %v9395, %v9507
    %v9509 = vpop.f32.mrf.mxu0
    %v9510 = vadd.f32 %v9397, %v9509
    %v9511 = vpop.f32.mrf.mxu0
    %v9512 = vadd.f32 %v9399, %v9511
    %v9513 = vpop.f32.mrf.mxu0
    %v9514 = vadd.f32 %v9401, %v9513
    %9515 = vmatprep.mubr.bf16.mxu0 %v7989
    %9516 = vmatmul.mubr.bf16.gmra.mxu0 %v7988
    %v9517 = vpop.f32.mrf.mxu0
    %v9518 = vadd.f32 %v9405, %v9517
    %v9519 = vpop.f32.mrf.mxu0
    %v9520 = vadd.f32 %v9407, %v9519
    %v9521 = vpop.f32.mrf.mxu0
    %v9522 = vadd.f32 %v9409, %v9521
    %v9523 = vpop.f32.mrf.mxu0
    %v9524 = vadd.f32 %v9411, %v9523
    %9525 = vmatprep.mubr.bf16.mxu0 %v7993
    %9526 = vmatmul.mubr.bf16.gmra.mxu0 %v7992
    %v9527 = vpop.f32.mrf.mxu0
    %v9528 = vadd.f32 %v9415, %v9527
    %v9529 = vpop.f32.mrf.mxu0
    %v9530 = vadd.f32 %v9417, %v9529
    %v9531 = vpop.f32.mrf.mxu0
    %v9532 = vadd.f32 %v9419, %v9531
    %v9533 = vpop.f32.mrf.mxu0
    %v9534 = vadd.f32 %v9421, %v9533
    %9535 = vmatprep.mubr.bf16.mxu0 %v7997
    %9536 = vmatmul.mubr.bf16.gmra.mxu0 %v7996
    %v9537 = vpop.f32.mrf.mxu0
    %v9538 = vadd.f32 %v9425, %v9537
    %v9539 = vpop.f32.mrf.mxu0
    %v9540 = vadd.f32 %v9427, %v9539
    %v9541 = vpop.f32.mrf.mxu0
    %v9542 = vadd.f32 %v9429, %v9541
    %v9543 = vpop.f32.mrf.mxu0
    %v9544 = vadd.f32 %v9431, %v9543
    %9545 = vdwg.mxu0
    %9546 = vmatprep.subr.bf16.mxu0 %v8867
    %9547 = vmatpush1.bf16.msra.mxu0 %v8866
    %9548 = vmatprep.subr.bf16.mxu0 %v8859
    %9549 = vmatpush1.bf16.msra.mxu0 %v8858
    %9550 = vmatprep.subr.bf16.mxu0 %v8851
    %9551 = vmatpush1.bf16.msra.mxu0 %v8850
    %9552 = vmatprep.subr.bf16.mxu0 %v8843
    %9553 = vmatpush1.bf16.msra.mxu0 %v8842
    %9554 = vmatprep.subr.bf16.mxu0 %v8835
    %9555 = vmatpush1.bf16.msra.mxu0 %v8834
    %9556 = vmatprep.subr.bf16.mxu0 %v8827
    %9557 = vmatpush1.bf16.msra.mxu0 %v8826
    %9558 = vmatprep.subr.bf16.mxu0 %v8819
    %9559 = vmatpush1.bf16.msra.mxu0 %v8818
    %9560 = vmatprep.subr.bf16.mxu0 %v8811
    %9561 = vmatpush1.bf16.msra.mxu0 %v8810
    %9562 = vmatprep.subr.bf16.mxu0 %v8931
    %9563 = vmatpush2.bf16.msra.mxu0 %v8930
    %9564 = vmatprep.subr.bf16.mxu0 %v8923
    %9565 = vmatpush2.bf16.msra.mxu0 %v8922
    %9566 = vmatprep.subr.bf16.mxu0 %v8915
    %9567 = vmatpush2.bf16.msra.mxu0 %v8914
    %9568 = vmatprep.subr.bf16.mxu0 %v8907
    %9569 = vmatpush2.bf16.msra.mxu0 %v8906
    %9570 = vmatprep.subr.bf16.mxu0 %v8899
    %9571 = vmatpush2.bf16.msra.mxu0 %v8898
    %9572 = vmatprep.subr.bf16.mxu0 %v8891
    %9573 = vmatpush2.bf16.msra.mxu0 %v8890
    %9574 = vmatprep.subr.bf16.mxu0 %v8883
    %9575 = vmatpush2.bf16.msra.mxu0 %v8882
    %9576 = vmatprep.subr.bf16.mxu0 %v8875
    %9577 = vmatpush2.bf16.msra.mxu0 %v8874
    %9578 = vmatprep.mubr.bf16.mxu0 %v7967
    %9579 = vmatmul.mubr.bf16.gmra.mxu0 %v7966
    %v9580 = vpop.f32.mrf.mxu0
    %v9581 = vadd.f32 %v8011, %v9580
    %v9582 = vpop.f32.mrf.mxu0
    %v9583 = vadd.f32 %v8015, %v9582
    %v9584 = vpop.f32.mrf.mxu0
    %v9585 = vadd.f32 %v8011, %v9584
    %v9586 = vpop.f32.mrf.mxu0
    %v9587 = vadd.f32 %v8015, %v9586
    %9588 = vmatprep.mubr.bf16.mxu0 %v7971
    %9589 = vmatmul.mubr.bf16.gmra.mxu0 %v7970
    %v9590 = vpop.f32.mrf.mxu0
    %v9591 = vadd.f32 %v8011, %v9590
    %v9592 = vpop.f32.mrf.mxu0
    %v9593 = vadd.f32 %v8015, %v9592
    %v9594 = vpop.f32.mrf.mxu0
    %v9595 = vadd.f32 %v8011, %v9594
    %v9596 = vpop.f32.mrf.mxu0
    %v9597 = vadd.f32 %v8015, %v9596
    %9598 = vmatprep.mubr.bf16.mxu0 %v7975
    %9599 = vmatmul.mubr.bf16.gmra.mxu0 %v7974
    %v9600 = vpop.f32.mrf.mxu0
    %v9601 = vadd.f32 %v8011, %v9600
    %v9602 = vpop.f32.mrf.mxu0
    %v9603 = vadd.f32 %v8015, %v9602
    %v9604 = vpop.f32.mrf.mxu0
    %v9605 = vadd.f32 %v8011, %v9604
    %v9606 = vpop.f32.mrf.mxu0
    %v9607 = vadd.f32 %v8015, %v9606
    %9608 = vmatprep.mubr.bf16.mxu0 %v7979
    %9609 = vmatmul.mubr.bf16.gmra.mxu0 %v7978
    %v9610 = vpop.f32.mrf.mxu0
    %v9611 = vadd.f32 %v8011, %v9610
    %v9612 = vpop.f32.mrf.mxu0
    %v9613 = vadd.f32 %v8015, %v9612
    %v9614 = vpop.f32.mrf.mxu0
    %v9615 = vadd.f32 %v8011, %v9614
    %v9616 = vpop.f32.mrf.mxu0
    %v9617 = vadd.f32 %v8015, %v9616
    %9618 = vmatprep.mubr.bf16.mxu0 %v7983
    %9619 = vmatmul.mubr.bf16.gmra.mxu0 %v7982
    %v9620 = vpop.f32.mrf.mxu0
    %v9621 = vadd.f32 %v8011, %v9620
    %v9622 = vpop.f32.mrf.mxu0
    %v9623 = vadd.f32 %v8015, %v9622
    %v9624 = vpop.f32.mrf.mxu0
    %v9625 = vadd.f32 %v8011, %v9624
    %v9626 = vpop.f32.mrf.mxu0
    %v9627 = vadd.f32 %v8015, %v9626
    %9628 = vmatprep.mubr.bf16.mxu0 %v7987
    %9629 = vmatmul.mubr.bf16.gmra.mxu0 %v7986
    %v9630 = vpop.f32.mrf.mxu0
    %v9631 = vadd.f32 %v8011, %v9630
    %v9632 = vpop.f32.mrf.mxu0
    %v9633 = vadd.f32 %v8015, %v9632
    %v9634 = vpop.f32.mrf.mxu0
    %v9635 = vadd.f32 %v8011, %v9634
    %v9636 = vpop.f32.mrf.mxu0
    %v9637 = vadd.f32 %v8015, %v9636
    %9638 = vmatprep.mubr.bf16.mxu0 %v7991
    %9639 = vmatmul.mubr.bf16.gmra.mxu0 %v7990
    %v9640 = vpop.f32.mrf.mxu0
    %v9641 = vadd.f32 %v8011, %v9640
    %v9642 = vpop.f32.mrf.mxu0
    %v9643 = vadd.f32 %v8015, %v9642
    %v9644 = vpop.f32.mrf.mxu0
    %v9645 = vadd.f32 %v8011, %v9644
    %v9646 = vpop.f32.mrf.mxu0
    %v9647 = vadd.f32 %v8015, %v9646
    %9648 = vmatprep.mubr.bf16.mxu0 %v7995
    %9649 = vmatmul.mubr.bf16.gmra.mxu0 %v7994
    %v9650 = vpop.f32.mrf.mxu0
    %v9651 = vadd.f32 %v8011, %v9650
    %v9652 = vpop.f32.mrf.mxu0
    %v9653 = vadd.f32 %v8015, %v9652
    %v9654 = vpop.f32.mrf.mxu0
    %v9655 = vadd.f32 %v8011, %v9654
    %v9656 = vpop.f32.mrf.mxu0
    %v9657 = vadd.f32 %v8015, %v9656
    %9658 = vdwg.mxu0
    %9659 = vmatprep.subr.bf16.mxu0 %v8995
    %9660 = vmatpush1.bf16.msra.mxu0 %v8994
    %9661 = vmatprep.subr.bf16.mxu0 %v8987
    %9662 = vmatpush1.bf16.msra.mxu0 %v8986
    %9663 = vmatprep.subr.bf16.mxu0 %v8979
    %9664 = vmatpush1.bf16.msra.mxu0 %v8978
    %9665 = vmatprep.subr.bf16.mxu0 %v8971
    %9666 = vmatpush1.bf16.msra.mxu0 %v8970
    %9667 = vmatprep.subr.bf16.mxu0 %v8963
    %9668 = vmatpush1.bf16.msra.mxu0 %v8962
    %9669 = vmatprep.subr.bf16.mxu0 %v8955
    %9670 = vmatpush1.bf16.msra.mxu0 %v8954
    %9671 = vmatprep.subr.bf16.mxu0 %v8947
    %9672 = vmatpush1.bf16.msra.mxu0 %v8946
    %9673 = vmatprep.subr.bf16.mxu0 %v8939
    %9674 = vmatpush1.bf16.msra.mxu0 %v8938
    %9675 = vmatprep.subr.bf16.mxu0 %v9059
    %9676 = vmatpush2.bf16.msra.mxu0 %v9058
    %9677 = vmatprep.subr.bf16.mxu0 %v9051
    %9678 = vmatpush2.bf16.msra.mxu0 %v9050
    %9679 = vmatprep.subr.bf16.mxu0 %v9043
    %9680 = vmatpush2.bf16.msra.mxu0 %v9042
    %9681 = vmatprep.subr.bf16.mxu0 %v9035
    %9682 = vmatpush2.bf16.msra.mxu0 %v9034
    %9683 = vmatprep.subr.bf16.mxu0 %v9027
    %9684 = vmatpush2.bf16.msra.mxu0 %v9026
    %9685 = vmatprep.subr.bf16.mxu0 %v9019
    %9686 = vmatpush2.bf16.msra.mxu0 %v9018
    %9687 = vmatprep.subr.bf16.mxu0 %v9011
    %9688 = vmatpush2.bf16.msra.mxu0 %v9010
    %9689 = vmatprep.subr.bf16.mxu0 %v9003
    %9690 = vmatpush2.bf16.msra.mxu0 %v9002
    %9691 = vmatprep.mubr.bf16.mxu0 %v7969
    %9692 = vmatmul.mubr.bf16.gmra.mxu0 %v7968
    %v9693 = vpop.f32.mrf.mxu0
    %v9694 = vadd.f32 %v9581, %v9693
    %v9695 = vpop.f32.mrf.mxu0
    %v9696 = vadd.f32 %v9583, %v9695
    %v9697 = vpop.f32.mrf.mxu0
    %v9698 = vadd.f32 %v9585, %v9697
    %v9699 = vpop.f32.mrf.mxu0
    %v9700 = vadd.f32 %v9587, %v9699
    %9701 = vmatprep.mubr.bf16.mxu0 %v7973
    %9702 = vmatmul.mubr.bf16.gmra.mxu0 %v7972
    %v9703 = vpop.f32.mrf.mxu0
    %v9704 = vadd.f32 %v9591, %v9703
    %v9705 = vpop.f32.mrf.mxu0
    %v9706 = vadd.f32 %v9593, %v9705
    %v9707 = vpop.f32.mrf.mxu0
    %v9708 = vadd.f32 %v9595, %v9707
    %v9709 = vpop.f32.mrf.mxu0
    %v9710 = vadd.f32 %v9597, %v9709
    %9711 = vmatprep.mubr.bf16.mxu0 %v7977
    %9712 = vmatmul.mubr.bf16.gmra.mxu0 %v7976
    %v9713 = vpop.f32.mrf.mxu0
    %v9714 = vadd.f32 %v9601, %v9713
    %v9715 = vpop.f32.mrf.mxu0
    %v9716 = vadd.f32 %v9603, %v9715
    %v9717 = vpop.f32.mrf.mxu0
    %v9718 = vadd.f32 %v9605, %v9717
    %v9719 = vpop.f32.mrf.mxu0
    %v9720 = vadd.f32 %v9607, %v9719
    %9721 = vmatprep.mubr.bf16.mxu0 %v7981
    %9722 = vmatmul.mubr.bf16.gmra.mxu0 %v7980
    %v9723 = vpop.f32.mrf.mxu0
    %v9724 = vadd.f32 %v9611, %v9723
    %v9725 = vpop.f32.mrf.mxu0
    %v9726 = vadd.f32 %v9613, %v9725
    %v9727 = vpop.f32.mrf.mxu0
    %v9728 = vadd.f32 %v9615, %v9727
    %v9729 = vpop.f32.mrf.mxu0
    %v9730 = vadd.f32 %v9617, %v9729
    %9731 = vmatprep.mubr.bf16.mxu0 %v7985
    %9732 = vmatmul.mubr.bf16.gmra.mxu0 %v7984
    %v9733 = vpop.f32.mrf.mxu0
    %v9734 = vadd.f32 %v9621, %v9733
    %v9735 = vpop.f32.mrf.mxu0
    %v9736 = vadd.f32 %v9623, %v9735
    %v9737 = vpop.f32.mrf.mxu0
    %v9738 = vadd.f32 %v9625, %v9737
    %v9739 = vpop.f32.mrf.mxu0
    %v9740 = vadd.f32 %v9627, %v9739
    %9741 = vmatprep.mubr.bf16.mxu0 %v7989
    %9742 = vmatmul.mubr.bf16.gmra.mxu0 %v7988
    %v9743 = vpop.f32.mrf.mxu0
    %v9744 = vadd.f32 %v9631, %v9743
    %v9745 = vpop.f32.mrf.mxu0
    %v9746 = vadd.f32 %v9633, %v9745
    %v9747 = vpop.f32.mrf.mxu0
    %v9748 = vadd.f32 %v9635, %v9747
    %v9749 = vpop.f32.mrf.mxu0
    %v9750 = vadd.f32 %v9637, %v9749
    %9751 = vmatprep.mubr.bf16.mxu0 %v7993
    %9752 = vmatmul.mubr.bf16.gmra.mxu0 %v7992
    %v9753 = vpop.f32.mrf.mxu0
    %v9754 = vadd.f32 %v9641, %v9753
    %v9755 = vpop.f32.mrf.mxu0
    %v9756 = vadd.f32 %v9643, %v9755
    %v9757 = vpop.f32.mrf.mxu0
    %v9758 = vadd.f32 %v9645, %v9757
    %v9759 = vpop.f32.mrf.mxu0
    %v9760 = vadd.f32 %v9647, %v9759
    %9761 = vmatprep.mubr.bf16.mxu0 %v7997
    %9762 = vmatmul.mubr.bf16.gmra.mxu0 %v7996
    %v9763 = vpop.f32.mrf.mxu0
    %v9764 = vadd.f32 %v9651, %v9763
    %v9765 = vpop.f32.mrf.mxu0
    %v9766 = vadd.f32 %v9653, %v9765
    %v9767 = vpop.f32.mrf.mxu0
    %v9768 = vadd.f32 %v9655, %v9767
    %v9769 = vpop.f32.mrf.mxu0
    %v9770 = vadd.f32 %v9657, %v9769
    %9771 = vdwg.mxu0
    %9772 = vmatprep.subr.bf16.mxu0 %v8869
    %9773 = vmatpush1.bf16.msra.mxu0 %v8868
    %9774 = vmatprep.subr.bf16.mxu0 %v8861
    %9775 = vmatpush1.bf16.msra.mxu0 %v8860
    %9776 = vmatprep.subr.bf16.mxu0 %v8853
    %9777 = vmatpush1.bf16.msra.mxu0 %v8852
    %9778 = vmatprep.subr.bf16.mxu0 %v8845
    %9779 = vmatpush1.bf16.msra.mxu0 %v8844
    %9780 = vmatprep.subr.bf16.mxu0 %v8837
    %9781 = vmatpush1.bf16.msra.mxu0 %v8836
    %9782 = vmatprep.subr.bf16.mxu0 %v8829
    %9783 = vmatpush1.bf16.msra.mxu0 %v8828
    %9784 = vmatprep.subr.bf16.mxu0 %v8821
    %9785 = vmatpush1.bf16.msra.mxu0 %v8820
    %9786 = vmatprep.subr.bf16.mxu0 %v8813
    %9787 = vmatpush1.bf16.msra.mxu0 %v8812
    %9788 = vmatprep.subr.bf16.mxu0 %v8933
    %9789 = vmatpush2.bf16.msra.mxu0 %v8932
    %9790 = vmatprep.subr.bf16.mxu0 %v8925
    %9791 = vmatpush2.bf16.msra.mxu0 %v8924
    %9792 = vmatprep.subr.bf16.mxu0 %v8917
    %9793 = vmatpush2.bf16.msra.mxu0 %v8916
    %9794 = vmatprep.subr.bf16.mxu0 %v8909
    %9795 = vmatpush2.bf16.msra.mxu0 %v8908
    %9796 = vmatprep.subr.bf16.mxu0 %v8901
    %9797 = vmatpush2.bf16.msra.mxu0 %v8900
    %9798 = vmatprep.subr.bf16.mxu0 %v8893
    %9799 = vmatpush2.bf16.msra.mxu0 %v8892
    %9800 = vmatprep.subr.bf16.mxu0 %v8885
    %9801 = vmatpush2.bf16.msra.mxu0 %v8884
    %9802 = vmatprep.subr.bf16.mxu0 %v8877
    %9803 = vmatpush2.bf16.msra.mxu0 %v8876
    %9804 = vmatprep.mubr.bf16.mxu0 %v7967
    %9805 = vmatmul.mubr.bf16.gmra.mxu0 %v7966
    %v9806 = vpop.f32.mrf.mxu0
    %v9807 = vadd.f32 %v8019, %v9806
    %v9808 = vpop.f32.mrf.mxu0
    %v9809 = vadd.f32 %v8023, %v9808
    %v9810 = vpop.f32.mrf.mxu0
    %v9811 = vadd.f32 %v8019, %v9810
    %v9812 = vpop.f32.mrf.mxu0
    %v9813 = vadd.f32 %v8023, %v9812
    %9814 = vmatprep.mubr.bf16.mxu0 %v7971
    %9815 = vmatmul.mubr.bf16.gmra.mxu0 %v7970
    %v9816 = vpop.f32.mrf.mxu0
    %v9817 = vadd.f32 %v8019, %v9816
    %v9818 = vpop.f32.mrf.mxu0
    %v9819 = vadd.f32 %v8023, %v9818
    %v9820 = vpop.f32.mrf.mxu0
    %v9821 = vadd.f32 %v8019, %v9820
    %v9822 = vpop.f32.mrf.mxu0
    %v9823 = vadd.f32 %v8023, %v9822
    %9824 = vmatprep.mubr.bf16.mxu0 %v7975
    %9825 = vmatmul.mubr.bf16.gmra.mxu0 %v7974
    %v9826 = vpop.f32.mrf.mxu0
    %v9827 = vadd.f32 %v8019, %v9826
    %v9828 = vpop.f32.mrf.mxu0
    %v9829 = vadd.f32 %v8023, %v9828
    %v9830 = vpop.f32.mrf.mxu0
    %v9831 = vadd.f32 %v8019, %v9830
    %v9832 = vpop.f32.mrf.mxu0
    %v9833 = vadd.f32 %v8023, %v9832
    %9834 = vmatprep.mubr.bf16.mxu0 %v7979
    %9835 = vmatmul.mubr.bf16.gmra.mxu0 %v7978
    %v9836 = vpop.f32.mrf.mxu0
    %v9837 = vadd.f32 %v8019, %v9836
    %v9838 = vpop.f32.mrf.mxu0
    %v9839 = vadd.f32 %v8023, %v9838
    %v9840 = vpop.f32.mrf.mxu0
    %v9841 = vadd.f32 %v8019, %v9840
    %v9842 = vpop.f32.mrf.mxu0
    %v9843 = vadd.f32 %v8023, %v9842
    %9844 = vmatprep.mubr.bf16.mxu0 %v7983
    %9845 = vmatmul.mubr.bf16.gmra.mxu0 %v7982
    %v9846 = vpop.f32.mrf.mxu0
    %v9847 = vadd.f32 %v8019, %v9846
    %v9848 = vpop.f32.mrf.mxu0
    %v9849 = vadd.f32 %v8023, %v9848
    %v9850 = vpop.f32.mrf.mxu0
    %v9851 = vadd.f32 %v8019, %v9850
    %v9852 = vpop.f32.mrf.mxu0
    %v9853 = vadd.f32 %v8023, %v9852
    %9854 = vmatprep.mubr.bf16.mxu0 %v7987
    %9855 = vmatmul.mubr.bf16.gmra.mxu0 %v7986
    %v9856 = vpop.f32.mrf.mxu0
    %v9857 = vadd.f32 %v8019, %v9856
    %v9858 = vpop.f32.mrf.mxu0
    %v9859 = vadd.f32 %v8023, %v9858
    %v9860 = vpop.f32.mrf.mxu0
    %v9861 = vadd.f32 %v8019, %v9860
    %v9862 = vpop.f32.mrf.mxu0
    %v9863 = vadd.f32 %v8023, %v9862
    %9864 = vmatprep.mubr.bf16.mxu0 %v7991
    %9865 = vmatmul.mubr.bf16.gmra.mxu0 %v7990
    %v9866 = vpop.f32.mrf.mxu0
    %v9867 = vadd.f32 %v8019, %v9866
    %v9868 = vpop.f32.mrf.mxu0
    %v9869 = vadd.f32 %v8023, %v9868
    %v9870 = vpop.f32.mrf.mxu0
    %v9871 = vadd.f32 %v8019, %v9870
    %v9872 = vpop.f32.mrf.mxu0
    %v9873 = vadd.f32 %v8023, %v9872
    %9874 = vmatprep.mubr.bf16.mxu0 %v7995
    %9875 = vmatmul.mubr.bf16.gmra.mxu0 %v7994
    %v9876 = vpop.f32.mrf.mxu0
    %v9877 = vadd.f32 %v8019, %v9876
    %v9878 = vpop.f32.mrf.mxu0
    %v9879 = vadd.f32 %v8023, %v9878
    %v9880 = vpop.f32.mrf.mxu0
    %v9881 = vadd.f32 %v8019, %v9880
    %v9882 = vpop.f32.mrf.mxu0
    %v9883 = vadd.f32 %v8023, %v9882
    %9884 = vdwg.mxu0
    %9885 = vmatprep.subr.bf16.mxu0 %v8997
    %9886 = vmatpush1.bf16.msra.mxu0 %v8996
    %9887 = vmatprep.subr.bf16.mxu0 %v8989
    %9888 = vmatpush1.bf16.msra.mxu0 %v8988
    %9889 = vmatprep.subr.bf16.mxu0 %v8981
    %9890 = vmatpush1.bf16.msra.mxu0 %v8980
    %9891 = vmatprep.subr.bf16.mxu0 %v8973
    %9892 = vmatpush1.bf16.msra.mxu0 %v8972
    %9893 = vmatprep.subr.bf16.mxu0 %v8965
    %9894 = vmatpush1.bf16.msra.mxu0 %v8964
    %9895 = vmatprep.subr.bf16.mxu0 %v8957
    %9896 = vmatpush1.bf16.msra.mxu0 %v8956
    %9897 = vmatprep.subr.bf16.mxu0 %v8949
    %9898 = vmatpush1.bf16.msra.mxu0 %v8948
    %9899 = vmatprep.subr.bf16.mxu0 %v8941
    %9900 = vmatpush1.bf16.msra.mxu0 %v8940
    %9901 = vmatprep.subr.bf16.mxu0 %v9061
    %9902 = vmatpush2.bf16.msra.mxu0 %v9060
    %9903 = vmatprep.subr.bf16.mxu0 %v9053
    %9904 = vmatpush2.bf16.msra.mxu0 %v9052
    %9905 = vmatprep.subr.bf16.mxu0 %v9045
    %9906 = vmatpush2.bf16.msra.mxu0 %v9044
    %9907 = vmatprep.subr.bf16.mxu0 %v9037
    %9908 = vmatpush2.bf16.msra.mxu0 %v9036
    %9909 = vmatprep.subr.bf16.mxu0 %v9029
    %9910 = vmatpush2.bf16.msra.mxu0 %v9028
    %9911 = vmatprep.subr.bf16.mxu0 %v9021
    %9912 = vmatpush2.bf16.msra.mxu0 %v9020
    %9913 = vmatprep.subr.bf16.mxu0 %v9013
    %9914 = vmatpush2.bf16.msra.mxu0 %v9012
    %9915 = vmatprep.subr.bf16.mxu0 %v9005
    %9916 = vmatpush2.bf16.msra.mxu0 %v9004
    %9917 = vmatprep.mubr.bf16.mxu0 %v7969
    %9918 = vmatmul.mubr.bf16.gmra.mxu0 %v7968
    %v9919 = vpop.f32.mrf.mxu0
    %v9920 = vadd.f32 %v9807, %v9919
    %v9921 = vpop.f32.mrf.mxu0
    %v9922 = vadd.f32 %v9809, %v9921
    %v9923 = vpop.f32.mrf.mxu0
    %v9924 = vadd.f32 %v9811, %v9923
    %v9925 = vpop.f32.mrf.mxu0
    %v9926 = vadd.f32 %v9813, %v9925
    %9927 = vmatprep.mubr.bf16.mxu0 %v7973
    %9928 = vmatmul.mubr.bf16.gmra.mxu0 %v7972
    %v9929 = vpop.f32.mrf.mxu0
    %v9930 = vadd.f32 %v9817, %v9929
    %v9931 = vpop.f32.mrf.mxu0
    %v9932 = vadd.f32 %v9819, %v9931
    %v9933 = vpop.f32.mrf.mxu0
    %v9934 = vadd.f32 %v9821, %v9933
    %v9935 = vpop.f32.mrf.mxu0
    %v9936 = vadd.f32 %v9823, %v9935
    %9937 = vmatprep.mubr.bf16.mxu0 %v7977
    %9938 = vmatmul.mubr.bf16.gmra.mxu0 %v7976
    %v9939 = vpop.f32.mrf.mxu0
    %v9940 = vadd.f32 %v9827, %v9939
    %v9941 = vpop.f32.mrf.mxu0
    %v9942 = vadd.f32 %v9829, %v9941
    %v9943 = vpop.f32.mrf.mxu0
    %v9944 = vadd.f32 %v9831, %v9943
    %v9945 = vpop.f32.mrf.mxu0
    %v9946 = vadd.f32 %v9833, %v9945
    %9947 = vmatprep.mubr.bf16.mxu0 %v7981
    %9948 = vmatmul.mubr.bf16.gmra.mxu0 %v7980
    %v9949 = vpop.f32.mrf.mxu0
    %v9950 = vadd.f32 %v9837, %v9949
    %v9951 = vpop.f32.mrf.mxu0
    %v9952 = vadd.f32 %v9839, %v9951
    %v9953 = vpop.f32.mrf.mxu0
    %v9954 = vadd.f32 %v9841, %v9953
    %v9955 = vpop.f32.mrf.mxu0
    %v9956 = vadd.f32 %v9843, %v9955
    %9957 = vmatprep.mubr.bf16.mxu0 %v7985
    %9958 = vmatmul.mubr.bf16.gmra.mxu0 %v7984
    %v9959 = vpop.f32.mrf.mxu0
    %v9960 = vadd.f32 %v9847, %v9959
    %v9961 = vpop.f32.mrf.mxu0
    %v9962 = vadd.f32 %v9849, %v9961
    %v9963 = vpop.f32.mrf.mxu0
    %v9964 = vadd.f32 %v9851, %v9963
    %v9965 = vpop.f32.mrf.mxu0
    %v9966 = vadd.f32 %v9853, %v9965
    %9967 = vmatprep.mubr.bf16.mxu0 %v7989
    %9968 = vmatmul.mubr.bf16.gmra.mxu0 %v7988
    %v9969 = vpop.f32.mrf.mxu0
    %v9970 = vadd.f32 %v9857, %v9969
    %v9971 = vpop.f32.mrf.mxu0
    %v9972 = vadd.f32 %v9859, %v9971
    %v9973 = vpop.f32.mrf.mxu0
    %v9974 = vadd.f32 %v9861, %v9973
    %v9975 = vpop.f32.mrf.mxu0
    %v9976 = vadd.f32 %v9863, %v9975
    %9977 = vmatprep.mubr.bf16.mxu0 %v7993
    %9978 = vmatmul.mubr.bf16.gmra.mxu0 %v7992
    %v9979 = vpop.f32.mrf.mxu0
    %v9980 = vadd.f32 %v9867, %v9979
    %v9981 = vpop.f32.mrf.mxu0
    %v9982 = vadd.f32 %v9869, %v9981
    %v9983 = vpop.f32.mrf.mxu0
    %v9984 = vadd.f32 %v9871, %v9983
    %v9985 = vpop.f32.mrf.mxu0
    %v9986 = vadd.f32 %v9873, %v9985
    %9987 = vmatprep.mubr.bf16.mxu0 %v7997
    %9988 = vmatmul.mubr.bf16.gmra.mxu0 %v7996
    %v9989 = vpop.f32.mrf.mxu0
    %v9990 = vadd.f32 %v9877, %v9989
    %v9991 = vpop.f32.mrf.mxu0
    %v9992 = vadd.f32 %v9879, %v9991
    %v9993 = vpop.f32.mrf.mxu0
    %v9994 = vadd.f32 %v9881, %v9993
    %v9995 = vpop.f32.mrf.mxu0
    %v9996 = vadd.f32 %v9883, %v9995
    %9997 = vdwg.mxu0
    %9998 = vmatprep.subr.bf16.mxu0 %v8871
    %9999 = vmatpush1.bf16.msra.mxu0 %v8870
    %10000 = vmatprep.subr.bf16.mxu0 %v8863
    %10001 = vmatpush1.bf16.msra.mxu0 %v8862
    %10002 = vmatprep.subr.bf16.mxu0 %v8855
    %10003 = vmatpush1.bf16.msra.mxu0 %v8854
    %10004 = vmatprep.subr.bf16.mxu0 %v8847
    %10005 = vmatpush1.bf16.msra.mxu0 %v8846
    %10006 = vmatprep.subr.bf16.mxu0 %v8839
    %10007 = vmatpush1.bf16.msra.mxu0 %v8838
    %10008 = vmatprep.subr.bf16.mxu0 %v8831
    %10009 = vmatpush1.bf16.msra.mxu0 %v8830
    %10010 = vmatprep.subr.bf16.mxu0 %v8823
    %10011 = vmatpush1.bf16.msra.mxu0 %v8822
    %10012 = vmatprep.subr.bf16.mxu0 %v8815
    %10013 = vmatpush1.bf16.msra.mxu0 %v8814
    %10014 = vmatprep.subr.bf16.mxu0 %v8935
    %10015 = vmatpush2.bf16.msra.mxu0 %v8934
    %10016 = vmatprep.subr.bf16.mxu0 %v8927
    %10017 = vmatpush2.bf16.msra.mxu0 %v8926
    %10018 = vmatprep.subr.bf16.mxu0 %v8919
    %10019 = vmatpush2.bf16.msra.mxu0 %v8918
    %10020 = vmatprep.subr.bf16.mxu0 %v8911
    %10021 = vmatpush2.bf16.msra.mxu0 %v8910
    %10022 = vmatprep.subr.bf16.mxu0 %v8903
    %10023 = vmatpush2.bf16.msra.mxu0 %v8902
    %10024 = vmatprep.subr.bf16.mxu0 %v8895
    %10025 = vmatpush2.bf16.msra.mxu0 %v8894
    %10026 = vmatprep.subr.bf16.mxu0 %v8887
    %10027 = vmatpush2.bf16.msra.mxu0 %v8886
    %10028 = vmatprep.subr.bf16.mxu0 %v8879
    %10029 = vmatpush2.bf16.msra.mxu0 %v8878
    %10030 = vmatprep.mubr.bf16.mxu0 %v7967
    %10031 = vmatmul.mubr.bf16.gmra.mxu0 %v7966
    %v10032 = vpop.f32.mrf.mxu0
    %v10033 = vadd.f32 %v8027, %v10032
    %v10034 = vpop.f32.mrf.mxu0
    %v10035 = vadd.f32 %v8031, %v10034
    %v10036 = vpop.f32.mrf.mxu0
    %v10037 = vadd.f32 %v8027, %v10036
    %v10038 = vpop.f32.mrf.mxu0
    %v10039 = vadd.f32 %v8031, %v10038
    %10040 = vmatprep.mubr.bf16.mxu0 %v7971
    %10041 = vmatmul.mubr.bf16.gmra.mxu0 %v7970
    %v10042 = vpop.f32.mrf.mxu0
    %v10043 = vadd.f32 %v8027, %v10042
    %v10044 = vpop.f32.mrf.mxu0
    %v10045 = vadd.f32 %v8031, %v10044
    %v10046 = vpop.f32.mrf.mxu0
    %v10047 = vadd.f32 %v8027, %v10046
    %v10048 = vpop.f32.mrf.mxu0
    %v10049 = vadd.f32 %v8031, %v10048
    %10050 = vmatprep.mubr.bf16.mxu0 %v7975
    %10051 = vmatmul.mubr.bf16.gmra.mxu0 %v7974
    %v10052 = vpop.f32.mrf.mxu0
    %v10053 = vadd.f32 %v8027, %v10052
    %v10054 = vpop.f32.mrf.mxu0
    %v10055 = vadd.f32 %v8031, %v10054
    %v10056 = vpop.f32.mrf.mxu0
    %v10057 = vadd.f32 %v8027, %v10056
    %v10058 = vpop.f32.mrf.mxu0
    %v10059 = vadd.f32 %v8031, %v10058
    %10060 = vmatprep.mubr.bf16.mxu0 %v7979
    %10061 = vmatmul.mubr.bf16.gmra.mxu0 %v7978
    %v10062 = vpop.f32.mrf.mxu0
    %v10063 = vadd.f32 %v8027, %v10062
    %v10064 = vpop.f32.mrf.mxu0
    %v10065 = vadd.f32 %v8031, %v10064
    %v10066 = vpop.f32.mrf.mxu0
    %v10067 = vadd.f32 %v8027, %v10066
    %v10068 = vpop.f32.mrf.mxu0
    %v10069 = vadd.f32 %v8031, %v10068
    %10070 = vmatprep.mubr.bf16.mxu0 %v7983
    %10071 = vmatmul.mubr.bf16.gmra.mxu0 %v7982
    %v10072 = vpop.f32.mrf.mxu0
    %v10073 = vadd.f32 %v8027, %v10072
    %v10074 = vpop.f32.mrf.mxu0
    %v10075 = vadd.f32 %v8031, %v10074
    %v10076 = vpop.f32.mrf.mxu0
    %v10077 = vadd.f32 %v8027, %v10076
    %v10078 = vpop.f32.mrf.mxu0
    %v10079 = vadd.f32 %v8031, %v10078
    %10080 = vmatprep.mubr.bf16.mxu0 %v7987
    %10081 = vmatmul.mubr.bf16.gmra.mxu0 %v7986
    %v10082 = vpop.f32.mrf.mxu0
    %v10083 = vadd.f32 %v8027, %v10082
    %v10084 = vpop.f32.mrf.mxu0
    %v10085 = vadd.f32 %v8031, %v10084
    %v10086 = vpop.f32.mrf.mxu0
    %v10087 = vadd.f32 %v8027, %v10086
    %v10088 = vpop.f32.mrf.mxu0
    %v10089 = vadd.f32 %v8031, %v10088
    %10090 = vmatprep.mubr.bf16.mxu0 %v7991
    %10091 = vmatmul.mubr.bf16.gmra.mxu0 %v7990
    %v10092 = vpop.f32.mrf.mxu0
    %v10093 = vadd.f32 %v8027, %v10092
    %v10094 = vpop.f32.mrf.mxu0
    %v10095 = vadd.f32 %v8031, %v10094
    %v10096 = vpop.f32.mrf.mxu0
    %v10097 = vadd.f32 %v8027, %v10096
    %v10098 = vpop.f32.mrf.mxu0
    %v10099 = vadd.f32 %v8031, %v10098
    %10100 = vmatprep.mubr.bf16.mxu0 %v7995
    %10101 = vmatmul.mubr.bf16.gmra.mxu0 %v7994
    %v10102 = vpop.f32.mrf.mxu0
    %v10103 = vadd.f32 %v8027, %v10102
    %v10104 = vpop.f32.mrf.mxu0
    %v10105 = vadd.f32 %v8031, %v10104
    %v10106 = vpop.f32.mrf.mxu0
    %v10107 = vadd.f32 %v8027, %v10106
    %v10108 = vpop.f32.mrf.mxu0
    %v10109 = vadd.f32 %v8031, %v10108
    %10110 = vdwg.mxu0
    %10111 = vmatprep.subr.bf16.mxu0 %v8999
    %10112 = vmatpush1.bf16.msra.mxu0 %v8998
    %10113 = vmatprep.subr.bf16.mxu0 %v8991
    %10114 = vmatpush1.bf16.msra.mxu0 %v8990
    %10115 = vmatprep.subr.bf16.mxu0 %v8983
    %10116 = vmatpush1.bf16.msra.mxu0 %v8982
    %10117 = vmatprep.subr.bf16.mxu0 %v8975
    %10118 = vmatpush1.bf16.msra.mxu0 %v8974
    %10119 = vmatprep.subr.bf16.mxu0 %v8967
    %10120 = vmatpush1.bf16.msra.mxu0 %v8966
    %10121 = vmatprep.subr.bf16.mxu0 %v8959
    %10122 = vmatpush1.bf16.msra.mxu0 %v8958
    %10123 = vmatprep.subr.bf16.mxu0 %v8951
    %10124 = vmatpush1.bf16.msra.mxu0 %v8950
    %10125 = vmatprep.subr.bf16.mxu0 %v8943
    %10126 = vmatpush1.bf16.msra.mxu0 %v8942
    %10127 = vmatprep.subr.bf16.mxu0 %v9063
    %10128 = vmatpush2.bf16.msra.mxu0 %v9062
    %10129 = vmatprep.subr.bf16.mxu0 %v9055
    %10130 = vmatpush2.bf16.msra.mxu0 %v9054
    %10131 = vmatprep.subr.bf16.mxu0 %v9047
    %10132 = vmatpush2.bf16.msra.mxu0 %v9046
    %10133 = vmatprep.subr.bf16.mxu0 %v9039
    %10134 = vmatpush2.bf16.msra.mxu0 %v9038
    %10135 = vmatprep.subr.bf16.mxu0 %v9031
    %10136 = vmatpush2.bf16.msra.mxu0 %v9030
    %10137 = vmatprep.subr.bf16.mxu0 %v9023
    %10138 = vmatpush2.bf16.msra.mxu0 %v9022
    %10139 = vmatprep.subr.bf16.mxu0 %v9015
    %10140 = vmatpush2.bf16.msra.mxu0 %v9014
    %10141 = vmatprep.subr.bf16.mxu0 %v9007
    %10142 = vmatpush2.bf16.msra.mxu0 %v9006
    %10143 = vmatprep.mubr.bf16.mxu0 %v7969
    %10144 = vmatmul.mubr.bf16.gmra.mxu0 %v7968
    %v10145 = vpop.f32.mrf.mxu0
    %v10146 = vadd.f32 %v10033, %v10145
    %v10147 = vpop.f32.mrf.mxu0
    %v10148 = vadd.f32 %v10035, %v10147
    %v10149 = vpop.f32.mrf.mxu0
    %v10150 = vadd.f32 %v10037, %v10149
    %v10151 = vpop.f32.mrf.mxu0
    %v10152 = vadd.f32 %v10039, %v10151
    %10153 = vmatprep.mubr.bf16.mxu0 %v7973
    %10154 = vmatmul.mubr.bf16.gmra.mxu0 %v7972
    %v10155 = vpop.f32.mrf.mxu0
    %v10156 = vadd.f32 %v10043, %v10155
    %v10157 = vpop.f32.mrf.mxu0
    %v10158 = vadd.f32 %v10045, %v10157
    %v10159 = vpop.f32.mrf.mxu0
    %v10160 = vadd.f32 %v10047, %v10159
    %v10161 = vpop.f32.mrf.mxu0
    %v10162 = vadd.f32 %v10049, %v10161
    %10163 = vmatprep.mubr.bf16.mxu0 %v7977
    %10164 = vmatmul.mubr.bf16.gmra.mxu0 %v7976
    %v10165 = vpop.f32.mrf.mxu0
    %v10166 = vadd.f32 %v10053, %v10165
    %v10167 = vpop.f32.mrf.mxu0
    %v10168 = vadd.f32 %v10055, %v10167
    %v10169 = vpop.f32.mrf.mxu0
    %v10170 = vadd.f32 %v10057, %v10169
    %v10171 = vpop.f32.mrf.mxu0
    %v10172 = vadd.f32 %v10059, %v10171
    %10173 = vmatprep.mubr.bf16.mxu0 %v7981
    %10174 = vmatmul.mubr.bf16.gmra.mxu0 %v7980
    %v10175 = vpop.f32.mrf.mxu0
    %v10176 = vadd.f32 %v10063, %v10175
    %v10177 = vpop.f32.mrf.mxu0
    %v10178 = vadd.f32 %v10065, %v10177
    %v10179 = vpop.f32.mrf.mxu0
    %v10180 = vadd.f32 %v10067, %v10179
    %v10181 = vpop.f32.mrf.mxu0
    %v10182 = vadd.f32 %v10069, %v10181
    %10183 = vmatprep.mubr.bf16.mxu0 %v7985
    %10184 = vmatmul.mubr.bf16.gmra.mxu0 %v7984
    %v10185 = vpop.f32.mrf.mxu0
    %v10186 = vadd.f32 %v10073, %v10185
    %v10187 = vpop.f32.mrf.mxu0
    %v10188 = vadd.f32 %v10075, %v10187
    %v10189 = vpop.f32.mrf.mxu0
    %v10190 = vadd.f32 %v10077, %v10189
    %v10191 = vpop.f32.mrf.mxu0
    %v10192 = vadd.f32 %v10079, %v10191
    %10193 = vmatprep.mubr.bf16.mxu0 %v7989
    %10194 = vmatmul.mubr.bf16.gmra.mxu0 %v7988
    %v10195 = vpop.f32.mrf.mxu0
    %v10196 = vadd.f32 %v10083, %v10195
    %v10197 = vpop.f32.mrf.mxu0
    %v10198 = vadd.f32 %v10085, %v10197
    %v10199 = vpop.f32.mrf.mxu0
    %v10200 = vadd.f32 %v10087, %v10199
    %v10201 = vpop.f32.mrf.mxu0
    %v10202 = vadd.f32 %v10089, %v10201
    %10203 = vmatprep.mubr.bf16.mxu0 %v7993
    %10204 = vmatmul.mubr.bf16.gmra.mxu0 %v7992
    %v10205 = vpop.f32.mrf.mxu0
    %v10206 = vadd.f32 %v10093, %v10205
    %v10207 = vpop.f32.mrf.mxu0
    %v10208 = vadd.f32 %v10095, %v10207
    %v10209 = vpop.f32.mrf.mxu0
    %v10210 = vadd.f32 %v10097, %v10209
    %v10211 = vpop.f32.mrf.mxu0
    %v10212 = vadd.f32 %v10099, %v10211
    %10213 = vmatprep.mubr.bf16.mxu0 %v7997
    %10214 = vmatmul.mubr.bf16.gmra.mxu0 %v7996
    %v10215 = vpop.f32.mrf.mxu0
    %v10216 = vadd.f32 %v10103, %v10215
    %v10217 = vpop.f32.mrf.mxu0
    %v10218 = vadd.f32 %v10105, %v10217
    %v10219 = vpop.f32.mrf.mxu0
    %v10220 = vadd.f32 %v10107, %v10219
    %v10221 = vpop.f32.mrf.mxu0
    %v10222 = vadd.f32 %v10109, %v10221
    %10223 = vdwg.mxu0
    %v10224 = vmax.f32 %v9468, 0.0
    %v10225 = vmax.f32 %v9470, 0.0
    %v10226 = vmax.f32 %v9694, 0.0
    %v10227 = vmax.f32 %v9696, 0.0
    %v10228 = vmax.f32 %v9920, 0.0
    %v10229 = vmax.f32 %v9922, 0.0
    %v10230 = vmax.f32 %v10146, 0.0
    %v10231 = vmax.f32 %v10148, 0.0
    %v10232 = vmax.f32 %v9472, 0.0
    %v10233 = vmax.f32 %v9474, 0.0
    %v10234 = vmax.f32 %v9698, 0.0
    %v10235 = vmax.f32 %v9700, 0.0
    %v10236 = vmax.f32 %v9924, 0.0
    %v10237 = vmax.f32 %v9926, 0.0
    %v10238 = vmax.f32 %v10150, 0.0
    %v10239 = vmax.f32 %v10152, 0.0
    %v10240 = vmax.f32 %v9478, 0.0
    %v10241 = vmax.f32 %v9480, 0.0
    %v10242 = vmax.f32 %v9704, 0.0
    %v10243 = vmax.f32 %v9706, 0.0
    %v10244 = vmax.f32 %v9930, 0.0
    %v10245 = vmax.f32 %v9932, 0.0
    %v10246 = vmax.f32 %v10156, 0.0
    %v10247 = vmax.f32 %v10158, 0.0
    %v10248 = vmax.f32 %v9482, 0.0
    %v10249 = vmax.f32 %v9484, 0.0
    %v10250 = vmax.f32 %v9708, 0.0
    %v10251 = vmax.f32 %v9710, 0.0
    %v10252 = vmax.f32 %v9934, 0.0
    %v10253 = vmax.f32 %v9936, 0.0
    %v10254 = vmax.f32 %v10160, 0.0
    %v10255 = vmax.f32 %v10162, 0.0
    %v10256 = vmax.f32 %v9488, 0.0
    %v10257 = vmax.f32 %v9490, 0.0
    %v10258 = vmax.f32 %v9714, 0.0
    %v10259 = vmax.f32 %v9716, 0.0
    %v10260 = vmax.f32 %v9940, 0.0
    %v10261 = vmax.f32 %v9942, 0.0
    %v10262 = vmax.f32 %v10166, 0.0
    %v10263 = vmax.f32 %v10168, 0.0
    %v10264 = vmax.f32 %v9492, 0.0
    %v10265 = vmax.f32 %v9494, 0.0
    %v10266 = vmax.f32 %v9718, 0.0
    %v10267 = vmax.f32 %v9720, 0.0
    %v10268 = vmax.f32 %v9944, 0.0
    %v10269 = vmax.f32 %v9946, 0.0
    %v10270 = vmax.f32 %v10170, 0.0
    %v10271 = vmax.f32 %v10172, 0.0
    %v10272 = vmax.f32 %v9498, 0.0
    %v10273 = vmax.f32 %v9500, 0.0
    %v10274 = vmax.f32 %v9724, 0.0
    %v10275 = vmax.f32 %v9726, 0.0
    %v10276 = vmax.f32 %v9950, 0.0
    %v10277 = vmax.f32 %v9952, 0.0
    %v10278 = vmax.f32 %v10176, 0.0
    %v10279 = vmax.f32 %v10178, 0.0
    %v10280 = vmax.f32 %v9502, 0.0
    %v10281 = vmax.f32 %v9504, 0.0
    %v10282 = vmax.f32 %v9728, 0.0
    %v10283 = vmax.f32 %v9730, 0.0
    %v10284 = vmax.f32 %v9954, 0.0
    %v10285 = vmax.f32 %v9956, 0.0
    %v10286 = vmax.f32 %v10180, 0.0
    %v10287 = vmax.f32 %v10182, 0.0
    %v10288 = vmax.f32 %v9508, 0.0
    %v10289 = vmax.f32 %v9510, 0.0
    %v10290 = vmax.f32 %v9734, 0.0
    %v10291 = vmax.f32 %v9736, 0.0
    %v10292 = vmax.f32 %v9960, 0.0
    %v10293 = vmax.f32 %v9962, 0.0
    %v10294 = vmax.f32 %v10186, 0.0
    %v10295 = vmax.f32 %v10188, 0.0
    %v10296 = vmax.f32 %v9512, 0.0
    %v10297 = vmax.f32 %v9514, 0.0
    %v10298 = vmax.f32 %v9738, 0.0
    %v10299 = vmax.f32 %v9740, 0.0
    %v10300 = vmax.f32 %v9964, 0.0
    %v10301 = vmax.f32 %v9966, 0.0
    %v10302 = vmax.f32 %v10190, 0.0
    %v10303 = vmax.f32 %v10192, 0.0
    %v10304 = vmax.f32 %v9518, 0.0
    %v10305 = vmax.f32 %v9520, 0.0
    %v10306 = vmax.f32 %v9744, 0.0
    %v10307 = vmax.f32 %v9746, 0.0
    %v10308 = vmax.f32 %v9970, 0.0
    %v10309 = vmax.f32 %v9972, 0.0
    %v10310 = vmax.f32 %v10196, 0.0
    %v10311 = vmax.f32 %v10198, 0.0
    %v10312 = vmax.f32 %v9522, 0.0
    %v10313 = vmax.f32 %v9524, 0.0
    %v10314 = vmax.f32 %v9748, 0.0
    %v10315 = vmax.f32 %v9750, 0.0
    %v10316 = vmax.f32 %v9974, 0.0
    %v10317 = vmax.f32 %v9976, 0.0
    %v10318 = vmax.f32 %v10200, 0.0
    %v10319 = vmax.f32 %v10202, 0.0
    %v10320 = vmax.f32 %v9528, 0.0
    %v10321 = vmax.f32 %v9530, 0.0
    %v10322 = vmax.f32 %v9754, 0.0
    %v10323 = vmax.f32 %v9756, 0.0
    %v10324 = vmax.f32 %v9980, 0.0
    %v10325 = vmax.f32 %v9982, 0.0
    %v10326 = vmax.f32 %v10206, 0.0
    %v10327 = vmax.f32 %v10208, 0.0
    %v10328 = vmax.f32 %v9532, 0.0
    %v10329 = vmax.f32 %v9534, 0.0
    %v10330 = vmax.f32 %v9758, 0.0
    %v10331 = vmax.f32 %v9760, 0.0
    %v10332 = vmax.f32 %v9984, 0.0
    %v10333 = vmax.f32 %v9986, 0.0
    %v10334 = vmax.f32 %v10210, 0.0
    %v10335 = vmax.f32 %v10212, 0.0
    %v10336 = vmax.f32 %v9538, 0.0
    %v10337 = vmax.f32 %v9540, 0.0
    %v10338 = vmax.f32 %v9764, 0.0
    %v10339 = vmax.f32 %v9766, 0.0
    %v10340 = vmax.f32 %v9990, 0.0
    %v10341 = vmax.f32 %v9992, 0.0
    %v10342 = vmax.f32 %v10216, 0.0
    %v10343 = vmax.f32 %v10218, 0.0
    %v10344 = vmax.f32 %v9542, 0.0
    %v10345 = vmax.f32 %v9544, 0.0
    %v10346 = vmax.f32 %v9768, 0.0
    %v10347 = vmax.f32 %v9770, 0.0
    %v10348 = vmax.f32 %v9994, 0.0
    %v10349 = vmax.f32 %v9996, 0.0
    %v10350 = vmax.f32 %v10220, 0.0
    %v10351 = vmax.f32 %v10222, 0.0
    // Predicated region
    $region86: #{_forward_jit.1} parent=1 // pred_check
      %p10352 = pneg %p41
    $region87: #{_forward_jit.1} parent=1 // pred_check_branch
      %10354 = sbr.rel (%p10352) target = $region89
    $region88: #{_forward_jit.1} parent=1 // pred_region
      %s10355 = scalar_lea.sflag [#allocation11], 8
      %s10356 = smul.u32 4, 128
      %s10357 = smul.u32 %s10356, 1
      %s10358 = sshll.u32 %s10357, 4
      %10359 = dma.done %s10355, %s10358
    $region89: #{_forward_jit.1} parent=1 // pred_fallthru
      _
    %v10360 = vld [vmem:[#allocation10] sm:$0xf]
    %v10361 = vld [vmem:[#allocation10 + $0x4] sm:$0xf]
    %v10362 = vld [vmem:[#allocation10 + $0x8] sm:$0xf]
    %v10363 = vld [vmem:[#allocation10 + $0xc] sm:$0xf]
    %v10364 = vld [vmem:[#allocation10 + $0x10] sm:$0xf]
    %v10365 = vld [vmem:[#allocation10 + $0x14] sm:$0xf]
    %v10366 = vld [vmem:[#allocation10 + $0x18] sm:$0xf]
    %v10367 = vld [vmem:[#allocation10 + $0x1c] sm:$0xf]
    %v10368 = vld [vmem:[#allocation10 + $0x20] sm:$0xf]
    %v10369 = vld [vmem:[#allocation10 + $0x24] sm:$0xf]
    %v10370 = vld [vmem:[#allocation10 + $0x28] sm:$0xf]
    %v10371 = vld [vmem:[#allocation10 + $0x2c] sm:$0xf]
    %v10372 = vld [vmem:[#allocation10 + $0x30] sm:$0xf]
    %v10373 = vld [vmem:[#allocation10 + $0x34] sm:$0xf]
    %v10374 = vld [vmem:[#allocation10 + $0x38] sm:$0xf]
    %v10375 = vld [vmem:[#allocation10 + $0x3c] sm:$0xf]
    %v10376 = vld [vmem:[#allocation10 + $0x40] sm:$0xf]
    %v10377 = vld [vmem:[#allocation10 + $0x44] sm:$0xf]
    %v10378 = vld [vmem:[#allocation10 + $0x48] sm:$0xf]
    %v10379 = vld [vmem:[#allocation10 + $0x4c] sm:$0xf]
    %v10380 = vld [vmem:[#allocation10 + $0x50] sm:$0xf]
    %v10381 = vld [vmem:[#allocation10 + $0x54] sm:$0xf]
    %v10382 = vld [vmem:[#allocation10 + $0x58] sm:$0xf]
    %v10383 = vld [vmem:[#allocation10 + $0x5c] sm:$0xf]
    %v10384 = vld [vmem:[#allocation10 + $0x60] sm:$0xf]
    %v10385 = vld [vmem:[#allocation10 + $0x64] sm:$0xf]
    %v10386 = vld [vmem:[#allocation10 + $0x68] sm:$0xf]
    %v10387 = vld [vmem:[#allocation10 + $0x6c] sm:$0xf]
    %v10388 = vld [vmem:[#allocation10 + $0x70] sm:$0xf]
    %v10389 = vld [vmem:[#allocation10 + $0x74] sm:$0xf]
    %v10390 = vld [vmem:[#allocation10 + $0x78] sm:$0xf]
    %v10391 = vld [vmem:[#allocation10 + $0x7c] sm:$0xf]
    %v10392 = vld [vmem:[#allocation10 + $0x80] sm:$0xf]
    %v10393 = vld [vmem:[#allocation10 + $0x84] sm:$0xf]
    %v10394 = vld [vmem:[#allocation10 + $0x88] sm:$0xf]
    %v10395 = vld [vmem:[#allocation10 + $0x8c] sm:$0xf]
    %v10396 = vld [vmem:[#allocation10 + $0x90] sm:$0xf]
    %v10397 = vld [vmem:[#allocation10 + $0x94] sm:$0xf]
    %v10398 = vld [vmem:[#allocation10 + $0x98] sm:$0xf]
    %v10399 = vld [vmem:[#allocation10 + $0x9c] sm:$0xf]
    %v10400 = vld [vmem:[#allocation10 + $0xa0] sm:$0xf]
    %v10401 = vld [vmem:[#allocation10 + $0xa4] sm:$0xf]
    %v10402 = vld [vmem:[#allocation10 + $0xa8] sm:$0xf]
    %v10403 = vld [vmem:[#allocation10 + $0xac] sm:$0xf]
    %v10404 = vld [vmem:[#allocation10 + $0xb0] sm:$0xf]
    %v10405 = vld [vmem:[#allocation10 + $0xb4] sm:$0xf]
    %v10406 = vld [vmem:[#allocation10 + $0xb8] sm:$0xf]
    %v10407 = vld [vmem:[#allocation10 + $0xbc] sm:$0xf]
    %v10408 = vld [vmem:[#allocation10 + $0xc0] sm:$0xf]
    %v10409 = vld [vmem:[#allocation10 + $0xc4] sm:$0xf]
    %v10410 = vld [vmem:[#allocation10 + $0xc8] sm:$0xf]
    %v10411 = vld [vmem:[#allocation10 + $0xcc] sm:$0xf]
    %v10412 = vld [vmem:[#allocation10 + $0xd0] sm:$0xf]
    %v10413 = vld [vmem:[#allocation10 + $0xd4] sm:$0xf]
    %v10414 = vld [vmem:[#allocation10 + $0xd8] sm:$0xf]
    %v10415 = vld [vmem:[#allocation10 + $0xdc] sm:$0xf]
    %v10416 = vld [vmem:[#allocation10 + $0xe0] sm:$0xf]
    %v10417 = vld [vmem:[#allocation10 + $0xe4] sm:$0xf]
    %v10418 = vld [vmem:[#allocation10 + $0xe8] sm:$0xf]
    %v10419 = vld [vmem:[#allocation10 + $0xec] sm:$0xf]
    %v10420 = vld [vmem:[#allocation10 + $0xf0] sm:$0xf]
    %v10421 = vld [vmem:[#allocation10 + $0xf4] sm:$0xf]
    %v10422 = vld [vmem:[#allocation10 + $0xf8] sm:$0xf]
    %v10423 = vld [vmem:[#allocation10 + $0xfc] sm:$0xf]
    %v10424 = vld [vmem:[#allocation10 + $0x100] sm:$0xf]
    %v10425 = vld [vmem:[#allocation10 + $0x104] sm:$0xf]
    %v10426 = vld [vmem:[#allocation10 + $0x108] sm:$0xf]
    %v10427 = vld [vmem:[#allocation10 + $0x10c] sm:$0xf]
    %v10428 = vld [vmem:[#allocation10 + $0x110] sm:$0xf]
    %v10429 = vld [vmem:[#allocation10 + $0x114] sm:$0xf]
    %v10430 = vld [vmem:[#allocation10 + $0x118] sm:$0xf]
    %v10431 = vld [vmem:[#allocation10 + $0x11c] sm:$0xf]
    %v10432 = vld [vmem:[#allocation10 + $0x120] sm:$0xf]
    %v10433 = vld [vmem:[#allocation10 + $0x124] sm:$0xf]
    %v10434 = vld [vmem:[#allocation10 + $0x128] sm:$0xf]
    %v10435 = vld [vmem:[#allocation10 + $0x12c] sm:$0xf]
    %v10436 = vld [vmem:[#allocation10 + $0x130] sm:$0xf]
    %v10437 = vld [vmem:[#allocation10 + $0x134] sm:$0xf]
    %v10438 = vld [vmem:[#allocation10 + $0x138] sm:$0xf]
    %v10439 = vld [vmem:[#allocation10 + $0x13c] sm:$0xf]
    %v10440 = vld [vmem:[#allocation10 + $0x140] sm:$0xf]
    %v10441 = vld [vmem:[#allocation10 + $0x144] sm:$0xf]
    %v10442 = vld [vmem:[#allocation10 + $0x148] sm:$0xf]
    %v10443 = vld [vmem:[#allocation10 + $0x14c] sm:$0xf]
    %v10444 = vld [vmem:[#allocation10 + $0x150] sm:$0xf]
    %v10445 = vld [vmem:[#allocation10 + $0x154] sm:$0xf]
    %v10446 = vld [vmem:[#allocation10 + $0x158] sm:$0xf]
    %v10447 = vld [vmem:[#allocation10 + $0x15c] sm:$0xf]
    %v10448 = vld [vmem:[#allocation10 + $0x160] sm:$0xf]
    %v10449 = vld [vmem:[#allocation10 + $0x164] sm:$0xf]
    %v10450 = vld [vmem:[#allocation10 + $0x168] sm:$0xf]
    %v10451 = vld [vmem:[#allocation10 + $0x16c] sm:$0xf]
    %v10452 = vld [vmem:[#allocation10 + $0x170] sm:$0xf]
    %v10453 = vld [vmem:[#allocation10 + $0x174] sm:$0xf]
    %v10454 = vld [vmem:[#allocation10 + $0x178] sm:$0xf]
    %v10455 = vld [vmem:[#allocation10 + $0x17c] sm:$0xf]
    %v10456 = vld [vmem:[#allocation10 + $0x180] sm:$0xf]
    %v10457 = vld [vmem:[#allocation10 + $0x184] sm:$0xf]
    %v10458 = vld [vmem:[#allocation10 + $0x188] sm:$0xf]
    %v10459 = vld [vmem:[#allocation10 + $0x18c] sm:$0xf]
    %v10460 = vld [vmem:[#allocation10 + $0x190] sm:$0xf]
    %v10461 = vld [vmem:[#allocation10 + $0x194] sm:$0xf]
    %v10462 = vld [vmem:[#allocation10 + $0x198] sm:$0xf]
    %v10463 = vld [vmem:[#allocation10 + $0x19c] sm:$0xf]
    %v10464 = vld [vmem:[#allocation10 + $0x1a0] sm:$0xf]
    %v10465 = vld [vmem:[#allocation10 + $0x1a4] sm:$0xf]
    %v10466 = vld [vmem:[#allocation10 + $0x1a8] sm:$0xf]
    %v10467 = vld [vmem:[#allocation10 + $0x1ac] sm:$0xf]
    %v10468 = vld [vmem:[#allocation10 + $0x1b0] sm:$0xf]
    %v10469 = vld [vmem:[#allocation10 + $0x1b4] sm:$0xf]
    %v10470 = vld [vmem:[#allocation10 + $0x1b8] sm:$0xf]
    %v10471 = vld [vmem:[#allocation10 + $0x1bc] sm:$0xf]
    %v10472 = vld [vmem:[#allocation10 + $0x1c0] sm:$0xf]
    %v10473 = vld [vmem:[#allocation10 + $0x1c4] sm:$0xf]
    %v10474 = vld [vmem:[#allocation10 + $0x1c8] sm:$0xf]
    %v10475 = vld [vmem:[#allocation10 + $0x1cc] sm:$0xf]
    %v10476 = vld [vmem:[#allocation10 + $0x1d0] sm:$0xf]
    %v10477 = vld [vmem:[#allocation10 + $0x1d4] sm:$0xf]
    %v10478 = vld [vmem:[#allocation10 + $0x1d8] sm:$0xf]
    %v10479 = vld [vmem:[#allocation10 + $0x1dc] sm:$0xf]
    %v10480 = vld [vmem:[#allocation10 + $0x1e0] sm:$0xf]
    %v10481 = vld [vmem:[#allocation10 + $0x1e4] sm:$0xf]
    %v10482 = vld [vmem:[#allocation10 + $0x1e8] sm:$0xf]
    %v10483 = vld [vmem:[#allocation10 + $0x1ec] sm:$0xf]
    %v10484 = vld [vmem:[#allocation10 + $0x1f0] sm:$0xf]
    %v10485 = vld [vmem:[#allocation10 + $0x1f4] sm:$0xf]
    %v10486 = vld [vmem:[#allocation10 + $0x1f8] sm:$0xf]
    %v10487 = vld [vmem:[#allocation10 + $0x1fc] sm:$0xf]
    %v10488 = vpack.c.bf16 %v10232, %v10224
    %v10489 = vpack.c.bf16 %v10233, %v10225
    %v10490 = vpack.c.bf16 %v10234, %v10226
    %v10491 = vpack.c.bf16 %v10235, %v10227
    %v10492 = vpack.c.bf16 %v10236, %v10228
    %v10493 = vpack.c.bf16 %v10237, %v10229
    %v10494 = vpack.c.bf16 %v10238, %v10230
    %v10495 = vpack.c.bf16 %v10239, %v10231
    %v10496 = vpack.c.bf16 %v10248, %v10240
    %v10497 = vpack.c.bf16 %v10249, %v10241
    %v10498 = vpack.c.bf16 %v10250, %v10242
    %v10499 = vpack.c.bf16 %v10251, %v10243
    %v10500 = vpack.c.bf16 %v10252, %v10244
    %v10501 = vpack.c.bf16 %v10253, %v10245
    %v10502 = vpack.c.bf16 %v10254, %v10246
    %v10503 = vpack.c.bf16 %v10255, %v10247
    %v10504 = vpack.c.bf16 %v10264, %v10256
    %v10505 = vpack.c.bf16 %v10265, %v10257
    %v10506 = vpack.c.bf16 %v10266, %v10258
    %v10507 = vpack.c.bf16 %v10267, %v10259
    %v10508 = vpack.c.bf16 %v10268, %v10260
    %v10509 = vpack.c.bf16 %v10269, %v10261
    %v10510 = vpack.c.bf16 %v10270, %v10262
    %v10511 = vpack.c.bf16 %v10271, %v10263
    %v10512 = vpack.c.bf16 %v10280, %v10272
    %v10513 = vpack.c.bf16 %v10281, %v10273
    %v10514 = vpack.c.bf16 %v10282, %v10274
    %v10515 = vpack.c.bf16 %v10283, %v10275
    %v10516 = vpack.c.bf16 %v10284, %v10276
    %v10517 = vpack.c.bf16 %v10285, %v10277
    %v10518 = vpack.c.bf16 %v10286, %v10278
    %v10519 = vpack.c.bf16 %v10287, %v10279
    %v10520 = vpack.c.bf16 %v10296, %v10288
    %v10521 = vpack.c.bf16 %v10297, %v10289
    %v10522 = vpack.c.bf16 %v10298, %v10290
    %v10523 = vpack.c.bf16 %v10299, %v10291
    %v10524 = vpack.c.bf16 %v10300, %v10292
    %v10525 = vpack.c.bf16 %v10301, %v10293
    %v10526 = vpack.c.bf16 %v10302, %v10294
    %v10527 = vpack.c.bf16 %v10303, %v10295
    %v10528 = vpack.c.bf16 %v10312, %v10304
    %v10529 = vpack.c.bf16 %v10313, %v10305
    %v10530 = vpack.c.bf16 %v10314, %v10306
    %v10531 = vpack.c.bf16 %v10315, %v10307
    %v10532 = vpack.c.bf16 %v10316, %v10308
    %v10533 = vpack.c.bf16 %v10317, %v10309
    %v10534 = vpack.c.bf16 %v10318, %v10310
    %v10535 = vpack.c.bf16 %v10319, %v10311
    %v10536 = vpack.c.bf16 %v10328, %v10320
    %v10537 = vpack.c.bf16 %v10329, %v10321
    %v10538 = vpack.c.bf16 %v10330, %v10322
    %v10539 = vpack.c.bf16 %v10331, %v10323
    %v10540 = vpack.c.bf16 %v10332, %v10324
    %v10541 = vpack.c.bf16 %v10333, %v10325
    %v10542 = vpack.c.bf16 %v10334, %v10326
    %v10543 = vpack.c.bf16 %v10335, %v10327
    %v10544 = vpack.c.bf16 %v10344, %v10336
    %v10545 = vpack.c.bf16 %v10345, %v10337
    %v10546 = vpack.c.bf16 %v10346, %v10338
    %v10547 = vpack.c.bf16 %v10347, %v10339
    %v10548 = vpack.c.bf16 %v10348, %v10340
    %v10549 = vpack.c.bf16 %v10349, %v10341
    %v10550 = vpack.c.bf16 %v10350, %v10342
    %v10551 = vpack.c.bf16 %v10351, %v10343
    %v10552 = vld [vmem:[#allocation14 + $0x27] sm:$0x1]
    %v10554 = vlaneseq
    %v10555 = vshrl.u32 %v10554, 7
    %v10556 = vsub.s32 0, %v10555
    %v10557 = vrot.slane %v10552, %v10556
    %v10687 = vunpack.c.l.b16 %v10360
    %v10688 = vunpack.c.l.b16 %v10361
    %v10689 = vunpack.c.l.b16 %v10362
    %v10690 = vunpack.c.l.b16 %v10363
    %v10691 = vunpack.c.l.b16 %v10364
    %v10692 = vunpack.c.l.b16 %v10365
    %v10693 = vunpack.c.l.b16 %v10366
    %v10694 = vunpack.c.l.b16 %v10367
    %v10695 = vunpack.c.l.b16 %v10368
    %v10696 = vunpack.c.l.b16 %v10369
    %v10697 = vunpack.c.l.b16 %v10370
    %v10698 = vunpack.c.l.b16 %v10371
    %v10699 = vunpack.c.l.b16 %v10372
    %v10700 = vunpack.c.l.b16 %v10373
    %v10701 = vunpack.c.l.b16 %v10374
    %v10702 = vunpack.c.l.b16 %v10375
    %v10703 = vunpack.c.l.b16 %v10376
    %v10704 = vunpack.c.l.b16 %v10377
    %v10705 = vunpack.c.l.b16 %v10378
    %v10706 = vunpack.c.l.b16 %v10379
    %v10707 = vunpack.c.l.b16 %v10380
    %v10708 = vunpack.c.l.b16 %v10381
    %v10709 = vunpack.c.l.b16 %v10382
    %v10710 = vunpack.c.l.b16 %v10383
    %v10711 = vunpack.c.l.b16 %v10384
    %v10712 = vunpack.c.l.b16 %v10385
    %v10713 = vunpack.c.l.b16 %v10386
    %v10714 = vunpack.c.l.b16 %v10387
    %v10715 = vunpack.c.l.b16 %v10388
    %v10716 = vunpack.c.l.b16 %v10389
    %v10717 = vunpack.c.l.b16 %v10390
    %v10718 = vunpack.c.l.b16 %v10391
    %v10719 = vunpack.c.l.b16 %v10392
    %v10720 = vunpack.c.l.b16 %v10393
    %v10721 = vunpack.c.l.b16 %v10394
    %v10722 = vunpack.c.l.b16 %v10395
    %v10723 = vunpack.c.l.b16 %v10396
    %v10724 = vunpack.c.l.b16 %v10397
    %v10725 = vunpack.c.l.b16 %v10398
    %v10726 = vunpack.c.l.b16 %v10399
    %v10727 = vunpack.c.l.b16 %v10400
    %v10728 = vunpack.c.l.b16 %v10401
    %v10729 = vunpack.c.l.b16 %v10402
    %v10730 = vunpack.c.l.b16 %v10403
    %v10731 = vunpack.c.l.b16 %v10404
    %v10732 = vunpack.c.l.b16 %v10405
    %v10733 = vunpack.c.l.b16 %v10406
    %v10734 = vunpack.c.l.b16 %v10407
    %v10735 = vunpack.c.l.b16 %v10408
    %v10736 = vunpack.c.l.b16 %v10409
    %v10737 = vunpack.c.l.b16 %v10410
    %v10738 = vunpack.c.l.b16 %v10411
    %v10739 = vunpack.c.l.b16 %v10412
    %v10740 = vunpack.c.l.b16 %v10413
    %v10741 = vunpack.c.l.b16 %v10414
    %v10742 = vunpack.c.l.b16 %v10415
    %v10743 = vunpack.c.l.b16 %v10416
    %v10744 = vunpack.c.l.b16 %v10417
    %v10745 = vunpack.c.l.b16 %v10418
    %v10746 = vunpack.c.l.b16 %v10419
    %v10747 = vunpack.c.l.b16 %v10420
    %v10748 = vunpack.c.l.b16 %v10421
    %v10749 = vunpack.c.l.b16 %v10422
    %v10750 = vunpack.c.l.b16 %v10423
    %v10751 = vunpack.c.l.b16 %v10424
    %v10752 = vunpack.c.l.b16 %v10425
    %v10753 = vunpack.c.l.b16 %v10426
    %v10754 = vunpack.c.l.b16 %v10427
    %v10755 = vunpack.c.l.b16 %v10428
    %v10756 = vunpack.c.l.b16 %v10429
    %v10757 = vunpack.c.l.b16 %v10430
    %v10758 = vunpack.c.l.b16 %v10431
    %v10759 = vunpack.c.l.b16 %v10432
    %v10760 = vunpack.c.l.b16 %v10433
    %v10761 = vunpack.c.l.b16 %v10434
    %v10762 = vunpack.c.l.b16 %v10435
    %v10763 = vunpack.c.l.b16 %v10436
    %v10764 = vunpack.c.l.b16 %v10437
    %v10765 = vunpack.c.l.b16 %v10438
    %v10766 = vunpack.c.l.b16 %v10439
    %v10767 = vunpack.c.l.b16 %v10440
    %v10768 = vunpack.c.l.b16 %v10441
    %v10769 = vunpack.c.l.b16 %v10442
    %v10770 = vunpack.c.l.b16 %v10443
    %v10771 = vunpack.c.l.b16 %v10444
    %v10772 = vunpack.c.l.b16 %v10445
    %v10773 = vunpack.c.l.b16 %v10446
    %v10774 = vunpack.c.l.b16 %v10447
    %v10775 = vunpack.c.l.b16 %v10448
    %v10776 = vunpack.c.l.b16 %v10449
    %v10777 = vunpack.c.l.b16 %v10450
    %v10778 = vunpack.c.l.b16 %v10451
    %v10779 = vunpack.c.l.b16 %v10452
    %v10780 = vunpack.c.l.b16 %v10453
    %v10781 = vunpack.c.l.b16 %v10454
    %v10782 = vunpack.c.l.b16 %v10455
    %v10783 = vunpack.c.l.b16 %v10456
    %v10784 = vunpack.c.l.b16 %v10457
    %v10785 = vunpack.c.l.b16 %v10458
    %v10786 = vunpack.c.l.b16 %v10459
    %v10787 = vunpack.c.l.b16 %v10460
    %v10788 = vunpack.c.l.b16 %v10461
    %v10789 = vunpack.c.l.b16 %v10462
    %v10790 = vunpack.c.l.b16 %v10463
    %v10791 = vunpack.c.l.b16 %v10464
    %v10792 = vunpack.c.l.b16 %v10465
    %v10793 = vunpack.c.l.b16 %v10466
    %v10794 = vunpack.c.l.b16 %v10467
    %v10795 = vunpack.c.l.b16 %v10468
    %v10796 = vunpack.c.l.b16 %v10469
    %v10797 = vunpack.c.l.b16 %v10470
    %v10798 = vunpack.c.l.b16 %v10471
    %v10799 = vunpack.c.l.b16 %v10472
    %v10800 = vunpack.c.l.b16 %v10473
    %v10801 = vunpack.c.l.b16 %v10474
    %v10802 = vunpack.c.l.b16 %v10475
    %v10803 = vunpack.c.l.b16 %v10476
    %v10804 = vunpack.c.l.b16 %v10477
    %v10805 = vunpack.c.l.b16 %v10478
    %v10806 = vunpack.c.l.b16 %v10479
    %v10807 = vunpack.c.l.b16 %v10480
    %v10808 = vunpack.c.l.b16 %v10481
    %v10809 = vunpack.c.l.b16 %v10482
    %v10810 = vunpack.c.l.b16 %v10483
    %v10811 = vunpack.c.l.b16 %v10484
    %v10812 = vunpack.c.l.b16 %v10485
    %v10813 = vunpack.c.l.b16 %v10486
    %v10814 = vunpack.c.l.b16 %v10487
    %v10815 = vpack.c.b16 %v10688, %v10687
    %v10816 = vpack.c.b16 %v10690, %v10689
    %v10817 = vpack.c.b16 %v10692, %v10691
    %v10818 = vpack.c.b16 %v10694, %v10693
    %v10819 = vpack.c.b16 %v10696, %v10695
    %v10820 = vpack.c.b16 %v10698, %v10697
    %v10821 = vpack.c.b16 %v10700, %v10699
    %v10822 = vpack.c.b16 %v10702, %v10701
    %v10823 = vpack.c.b16 %v10704, %v10703
    %v10824 = vpack.c.b16 %v10706, %v10705
    %v10825 = vpack.c.b16 %v10708, %v10707
    %v10826 = vpack.c.b16 %v10710, %v10709
    %v10827 = vpack.c.b16 %v10712, %v10711
    %v10828 = vpack.c.b16 %v10714, %v10713
    %v10829 = vpack.c.b16 %v10716, %v10715
    %v10830 = vpack.c.b16 %v10718, %v10717
    %v10831 = vpack.c.b16 %v10720, %v10719
    %v10832 = vpack.c.b16 %v10722, %v10721
    %v10833 = vpack.c.b16 %v10724, %v10723
    %v10834 = vpack.c.b16 %v10726, %v10725
    %v10835 = vpack.c.b16 %v10728, %v10727
    %v10836 = vpack.c.b16 %v10730, %v10729
    %v10837 = vpack.c.b16 %v10732, %v10731
    %v10838 = vpack.c.b16 %v10734, %v10733
    %v10839 = vpack.c.b16 %v10736, %v10735
    %v10840 = vpack.c.b16 %v10738, %v10737
    %v10841 = vpack.c.b16 %v10740, %v10739
    %v10842 = vpack.c.b16 %v10742, %v10741
    %v10843 = vpack.c.b16 %v10744, %v10743
    %v10844 = vpack.c.b16 %v10746, %v10745
    %v10845 = vpack.c.b16 %v10748, %v10747
    %v10846 = vpack.c.b16 %v10750, %v10749
    %v10847 = vpack.c.b16 %v10752, %v10751
    %v10848 = vpack.c.b16 %v10754, %v10753
    %v10849 = vpack.c.b16 %v10756, %v10755
    %v10850 = vpack.c.b16 %v10758, %v10757
    %v10851 = vpack.c.b16 %v10760, %v10759
    %v10852 = vpack.c.b16 %v10762, %v10761
    %v10853 = vpack.c.b16 %v10764, %v10763
    %v10854 = vpack.c.b16 %v10766, %v10765
    %v10855 = vpack.c.b16 %v10768, %v10767
    %v10856 = vpack.c.b16 %v10770, %v10769
    %v10857 = vpack.c.b16 %v10772, %v10771
    %v10858 = vpack.c.b16 %v10774, %v10773
    %v10859 = vpack.c.b16 %v10776, %v10775
    %v10860 = vpack.c.b16 %v10778, %v10777
    %v10861 = vpack.c.b16 %v10780, %v10779
    %v10862 = vpack.c.b16 %v10782, %v10781
    %v10863 = vpack.c.b16 %v10784, %v10783
    %v10864 = vpack.c.b16 %v10786, %v10785
    %v10865 = vpack.c.b16 %v10788, %v10787
    %v10866 = vpack.c.b16 %v10790, %v10789
    %v10867 = vpack.c.b16 %v10792, %v10791
    %v10868 = vpack.c.b16 %v10794, %v10793
    %v10869 = vpack.c.b16 %v10796, %v10795
    %v10870 = vpack.c.b16 %v10798, %v10797
    %v10871 = vpack.c.b16 %v10800, %v10799
    %v10872 = vpack.c.b16 %v10802, %v10801
    %v10873 = vpack.c.b16 %v10804, %v10803
    %v10874 = vpack.c.b16 %v10806, %v10805
    %v10875 = vpack.c.b16 %v10808, %v10807
    %v10876 = vpack.c.b16 %v10810, %v10809
    %v10877 = vpack.c.b16 %v10812, %v10811
    %v10878 = vpack.c.b16 %v10814, %v10813
    %10943 = vmatprep.subr.bf16.mxu0 0
    %10944 = vmatpush1.bf16.msra.mxu0 %v10822
    %10945 = vmatprep.subr.bf16.mxu0 0
    %10946 = vmatpush1.bf16.msra.mxu0 %v10821
    %10947 = vmatprep.subr.bf16.mxu0 0
    %10948 = vmatpush1.bf16.msra.mxu0 %v10820
    %10949 = vmatprep.subr.bf16.mxu0 0
    %10950 = vmatpush1.bf16.msra.mxu0 %v10819
    %10951 = vmatprep.subr.bf16.mxu0 0
    %10952 = vmatpush1.bf16.msra.mxu0 %v10818
    %10953 = vmatprep.subr.bf16.mxu0 0
    %10954 = vmatpush1.bf16.msra.mxu0 %v10817
    %10955 = vmatprep.subr.bf16.mxu0 0
    %10956 = vmatpush1.bf16.msra.mxu0 %v10816
    %10957 = vmatprep.subr.bf16.mxu0 0
    %10958 = vmatpush1.bf16.msra.mxu0 %v10815
    %10959 = vmatprep.subr.bf16.mxu0 0
    %10960 = vmatpush2.bf16.msra.mxu0 %v10830
    %10961 = vmatprep.subr.bf16.mxu0 0
    %10962 = vmatpush2.bf16.msra.mxu0 %v10829
    %10963 = vmatprep.subr.bf16.mxu0 0
    %10964 = vmatpush2.bf16.msra.mxu0 %v10828
    %10965 = vmatprep.subr.bf16.mxu0 0
    %10966 = vmatpush2.bf16.msra.mxu0 %v10827
    %10967 = vmatprep.subr.bf16.mxu0 0
    %10968 = vmatpush2.bf16.msra.mxu0 %v10826
    %10969 = vmatprep.subr.bf16.mxu0 0
    %10970 = vmatpush2.bf16.msra.mxu0 %v10825
    %10971 = vmatprep.subr.bf16.mxu0 0
    %10972 = vmatpush2.bf16.msra.mxu0 %v10824
    %10973 = vmatprep.subr.bf16.mxu0 0
    %10974 = vmatpush2.bf16.msra.mxu0 %v10823
    %10975 = vmatprep.mubr.bf16.mxu0 %v10489
    %10976 = vmatmul.mubr.bf16.gmra.mxu0 %v10488
    %v10977 = vpop.f32.mrf.mxu0
    %v10978 = vadd.f32 %v10557, %v10977
    %v10979 = vpop.f32.mrf.mxu0
    %v10980 = vpop.f32.mrf.mxu0
    %v10981 = vadd.f32 %v10557, %v10980
    %v10982 = vpop.f32.mrf.mxu0
    %10983 = vmatprep.mubr.bf16.mxu0 %v10497
    %10984 = vmatmul.mubr.bf16.gmra.mxu0 %v10496
    %v10985 = vpop.f32.mrf.mxu0
    %v10986 = vadd.f32 %v10557, %v10985
    %v10987 = vpop.f32.mrf.mxu0
    %v10988 = vpop.f32.mrf.mxu0
    %v10989 = vadd.f32 %v10557, %v10988
    %v10990 = vpop.f32.mrf.mxu0
    %10991 = vmatprep.mubr.bf16.mxu0 %v10505
    %10992 = vmatmul.mubr.bf16.gmra.mxu0 %v10504
    %v10993 = vpop.f32.mrf.mxu0
    %v10994 = vadd.f32 %v10557, %v10993
    %v10995 = vpop.f32.mrf.mxu0
    %v10996 = vpop.f32.mrf.mxu0
    %v10997 = vadd.f32 %v10557, %v10996
    %v10998 = vpop.f32.mrf.mxu0
    %10999 = vmatprep.mubr.bf16.mxu0 %v10513
    %11000 = vmatmul.mubr.bf16.gmra.mxu0 %v10512
    %v11001 = vpop.f32.mrf.mxu0
    %v11002 = vadd.f32 %v10557, %v11001
    %v11003 = vpop.f32.mrf.mxu0
    %v11004 = vpop.f32.mrf.mxu0
    %v11005 = vadd.f32 %v10557, %v11004
    %v11006 = vpop.f32.mrf.mxu0
    %11007 = vmatprep.mubr.bf16.mxu0 %v10521
    %11008 = vmatmul.mubr.bf16.gmra.mxu0 %v10520
    %v11009 = vpop.f32.mrf.mxu0
    %v11010 = vadd.f32 %v10557, %v11009
    %v11011 = vpop.f32.mrf.mxu0
    %v11012 = vpop.f32.mrf.mxu0
    %v11013 = vadd.f32 %v10557, %v11012
    %v11014 = vpop.f32.mrf.mxu0
    %11015 = vmatprep.mubr.bf16.mxu0 %v10529
    %11016 = vmatmul.mubr.bf16.gmra.mxu0 %v10528
    %v11017 = vpop.f32.mrf.mxu0
    %v11018 = vadd.f32 %v10557, %v11017
    %v11019 = vpop.f32.mrf.mxu0
    %v11020 = vpop.f32.mrf.mxu0
    %v11021 = vadd.f32 %v10557, %v11020
    %v11022 = vpop.f32.mrf.mxu0
    %11023 = vmatprep.mubr.bf16.mxu0 %v10537
    %11024 = vmatmul.mubr.bf16.gmra.mxu0 %v10536
    %v11025 = vpop.f32.mrf.mxu0
    %v11026 = vadd.f32 %v10557, %v11025
    %v11027 = vpop.f32.mrf.mxu0
    %v11028 = vpop.f32.mrf.mxu0
    %v11029 = vadd.f32 %v10557, %v11028
    %v11030 = vpop.f32.mrf.mxu0
    %11031 = vmatprep.mubr.bf16.mxu0 %v10545
    %11032 = vmatmul.mubr.bf16.gmra.mxu0 %v10544
    %v11033 = vpop.f32.mrf.mxu0
    %v11034 = vadd.f32 %v10557, %v11033
    %v11035 = vpop.f32.mrf.mxu0
    %v11036 = vpop.f32.mrf.mxu0
    %v11037 = vadd.f32 %v10557, %v11036
    %v11038 = vpop.f32.mrf.mxu0
    %11039 = vdwg.mxu0
    %11040 = vmatprep.subr.bf16.mxu0 0
    %11041 = vmatpush1.bf16.msra.mxu0 %v10838
    %11042 = vmatprep.subr.bf16.mxu0 0
    %11043 = vmatpush1.bf16.msra.mxu0 %v10837
    %11044 = vmatprep.subr.bf16.mxu0 0
    %11045 = vmatpush1.bf16.msra.mxu0 %v10836
    %11046 = vmatprep.subr.bf16.mxu0 0
    %11047 = vmatpush1.bf16.msra.mxu0 %v10835
    %11048 = vmatprep.subr.bf16.mxu0 0
    %11049 = vmatpush1.bf16.msra.mxu0 %v10834
    %11050 = vmatprep.subr.bf16.mxu0 0
    %11051 = vmatpush1.bf16.msra.mxu0 %v10833
    %11052 = vmatprep.subr.bf16.mxu0 0
    %11053 = vmatpush1.bf16.msra.mxu0 %v10832
    %11054 = vmatprep.subr.bf16.mxu0 0
    %11055 = vmatpush1.bf16.msra.mxu0 %v10831
    %11056 = vmatprep.subr.bf16.mxu0 0
    %11057 = vmatpush2.bf16.msra.mxu0 %v10846
    %11058 = vmatprep.subr.bf16.mxu0 0
    %11059 = vmatpush2.bf16.msra.mxu0 %v10845
    %11060 = vmatprep.subr.bf16.mxu0 0
    %11061 = vmatpush2.bf16.msra.mxu0 %v10844
    %11062 = vmatprep.subr.bf16.mxu0 0
    %11063 = vmatpush2.bf16.msra.mxu0 %v10843
    %11064 = vmatprep.subr.bf16.mxu0 0
    %11065 = vmatpush2.bf16.msra.mxu0 %v10842
    %11066 = vmatprep.subr.bf16.mxu0 0
    %11067 = vmatpush2.bf16.msra.mxu0 %v10841
    %11068 = vmatprep.subr.bf16.mxu0 0
    %11069 = vmatpush2.bf16.msra.mxu0 %v10840
    %11070 = vmatprep.subr.bf16.mxu0 0
    %11071 = vmatpush2.bf16.msra.mxu0 %v10839
    %11072 = vmatprep.mubr.bf16.mxu0 %v10491
    %11073 = vmatmul.mubr.bf16.gmra.mxu0 %v10490
    %v11074 = vpop.f32.mrf.mxu0
    %v11075 = vadd.f32 %v10978, %v11074
    %v11076 = vpop.f32.mrf.mxu0
    %v11077 = vpop.f32.mrf.mxu0
    %v11078 = vadd.f32 %v10981, %v11077
    %v11079 = vpop.f32.mrf.mxu0
    %11080 = vmatprep.mubr.bf16.mxu0 %v10499
    %11081 = vmatmul.mubr.bf16.gmra.mxu0 %v10498
    %v11082 = vpop.f32.mrf.mxu0
    %v11083 = vadd.f32 %v10986, %v11082
    %v11084 = vpop.f32.mrf.mxu0
    %v11085 = vpop.f32.mrf.mxu0
    %v11086 = vadd.f32 %v10989, %v11085
    %v11087 = vpop.f32.mrf.mxu0
    %11088 = vmatprep.mubr.bf16.mxu0 %v10507
    %11089 = vmatmul.mubr.bf16.gmra.mxu0 %v10506
    %v11090 = vpop.f32.mrf.mxu0
    %v11091 = vadd.f32 %v10994, %v11090
    %v11092 = vpop.f32.mrf.mxu0
    %v11093 = vpop.f32.mrf.mxu0
    %v11094 = vadd.f32 %v10997, %v11093
    %v11095 = vpop.f32.mrf.mxu0
    %11096 = vmatprep.mubr.bf16.mxu0 %v10515
    %11097 = vmatmul.mubr.bf16.gmra.mxu0 %v10514
    %v11098 = vpop.f32.mrf.mxu0
    %v11099 = vadd.f32 %v11002, %v11098
    %v11100 = vpop.f32.mrf.mxu0
    %v11101 = vpop.f32.mrf.mxu0
    %v11102 = vadd.f32 %v11005, %v11101
    %v11103 = vpop.f32.mrf.mxu0
    %11104 = vmatprep.mubr.bf16.mxu0 %v10523
    %11105 = vmatmul.mubr.bf16.gmra.mxu0 %v10522
    %v11106 = vpop.f32.mrf.mxu0
    %v11107 = vadd.f32 %v11010, %v11106
    %v11108 = vpop.f32.mrf.mxu0
    %v11109 = vpop.f32.mrf.mxu0
    %v11110 = vadd.f32 %v11013, %v11109
    %v11111 = vpop.f32.mrf.mxu0
    %11112 = vmatprep.mubr.bf16.mxu0 %v10531
    %11113 = vmatmul.mubr.bf16.gmra.mxu0 %v10530
    %v11114 = vpop.f32.mrf.mxu0
    %v11115 = vadd.f32 %v11018, %v11114
    %v11116 = vpop.f32.mrf.mxu0
    %v11117 = vpop.f32.mrf.mxu0
    %v11118 = vadd.f32 %v11021, %v11117
    %v11119 = vpop.f32.mrf.mxu0
    %11120 = vmatprep.mubr.bf16.mxu0 %v10539
    %11121 = vmatmul.mubr.bf16.gmra.mxu0 %v10538
    %v11122 = vpop.f32.mrf.mxu0
    %v11123 = vadd.f32 %v11026, %v11122
    %v11124 = vpop.f32.mrf.mxu0
    %v11125 = vpop.f32.mrf.mxu0
    %v11126 = vadd.f32 %v11029, %v11125
    %v11127 = vpop.f32.mrf.mxu0
    %11128 = vmatprep.mubr.bf16.mxu0 %v10547
    %11129 = vmatmul.mubr.bf16.gmra.mxu0 %v10546
    %v11130 = vpop.f32.mrf.mxu0
    %v11131 = vadd.f32 %v11034, %v11130
    %v11132 = vpop.f32.mrf.mxu0
    %v11133 = vpop.f32.mrf.mxu0
    %v11134 = vadd.f32 %v11037, %v11133
    %v11135 = vpop.f32.mrf.mxu0
    %11136 = vdwg.mxu0
    %11137 = vmatprep.subr.bf16.mxu0 0
    %11138 = vmatpush1.bf16.msra.mxu0 %v10854
    %11139 = vmatprep.subr.bf16.mxu0 0
    %11140 = vmatpush1.bf16.msra.mxu0 %v10853
    %11141 = vmatprep.subr.bf16.mxu0 0
    %11142 = vmatpush1.bf16.msra.mxu0 %v10852
    %11143 = vmatprep.subr.bf16.mxu0 0
    %11144 = vmatpush1.bf16.msra.mxu0 %v10851
    %11145 = vmatprep.subr.bf16.mxu0 0
    %11146 = vmatpush1.bf16.msra.mxu0 %v10850
    %11147 = vmatprep.subr.bf16.mxu0 0
    %11148 = vmatpush1.bf16.msra.mxu0 %v10849
    %11149 = vmatprep.subr.bf16.mxu0 0
    %11150 = vmatpush1.bf16.msra.mxu0 %v10848
    %11151 = vmatprep.subr.bf16.mxu0 0
    %11152 = vmatpush1.bf16.msra.mxu0 %v10847
    %11153 = vmatprep.subr.bf16.mxu0 0
    %11154 = vmatpush2.bf16.msra.mxu0 %v10862
    %11155 = vmatprep.subr.bf16.mxu0 0
    %11156 = vmatpush2.bf16.msra.mxu0 %v10861
    %11157 = vmatprep.subr.bf16.mxu0 0
    %11158 = vmatpush2.bf16.msra.mxu0 %v10860
    %11159 = vmatprep.subr.bf16.mxu0 0
    %11160 = vmatpush2.bf16.msra.mxu0 %v10859
    %11161 = vmatprep.subr.bf16.mxu0 0
    %11162 = vmatpush2.bf16.msra.mxu0 %v10858
    %11163 = vmatprep.subr.bf16.mxu0 0
    %11164 = vmatpush2.bf16.msra.mxu0 %v10857
    %11165 = vmatprep.subr.bf16.mxu0 0
    %11166 = vmatpush2.bf16.msra.mxu0 %v10856
    %11167 = vmatprep.subr.bf16.mxu0 0
    %11168 = vmatpush2.bf16.msra.mxu0 %v10855
    %11169 = vmatprep.mubr.bf16.mxu0 %v10493
    %11170 = vmatmul.mubr.bf16.gmra.mxu0 %v10492
    %v11171 = vpop.f32.mrf.mxu0
    %v11172 = vadd.f32 %v11075, %v11171
    %v11173 = vpop.f32.mrf.mxu0
    %v11174 = vpop.f32.mrf.mxu0
    %v11175 = vadd.f32 %v11078, %v11174
    %v11176 = vpop.f32.mrf.mxu0
    %11177 = vmatprep.mubr.bf16.mxu0 %v10501
    %11178 = vmatmul.mubr.bf16.gmra.mxu0 %v10500
    %v11179 = vpop.f32.mrf.mxu0
    %v11180 = vadd.f32 %v11083, %v11179
    %v11181 = vpop.f32.mrf.mxu0
    %v11182 = vpop.f32.mrf.mxu0
    %v11183 = vadd.f32 %v11086, %v11182
    %v11184 = vpop.f32.mrf.mxu0
    %11185 = vmatprep.mubr.bf16.mxu0 %v10509
    %11186 = vmatmul.mubr.bf16.gmra.mxu0 %v10508
    %v11187 = vpop.f32.mrf.mxu0
    %v11188 = vadd.f32 %v11091, %v11187
    %v11189 = vpop.f32.mrf.mxu0
    %v11190 = vpop.f32.mrf.mxu0
    %v11191 = vadd.f32 %v11094, %v11190
    %v11192 = vpop.f32.mrf.mxu0
    %11193 = vmatprep.mubr.bf16.mxu0 %v10517
    %11194 = vmatmul.mubr.bf16.gmra.mxu0 %v10516
    %v11195 = vpop.f32.mrf.mxu0
    %v11196 = vadd.f32 %v11099, %v11195
    %v11197 = vpop.f32.mrf.mxu0
    %v11198 = vpop.f32.mrf.mxu0
    %v11199 = vadd.f32 %v11102, %v11198
    %v11200 = vpop.f32.mrf.mxu0
    %11201 = vmatprep.mubr.bf16.mxu0 %v10525
    %11202 = vmatmul.mubr.bf16.gmra.mxu0 %v10524
    %v11203 = vpop.f32.mrf.mxu0
    %v11204 = vadd.f32 %v11107, %v11203
    %v11205 = vpop.f32.mrf.mxu0
    %v11206 = vpop.f32.mrf.mxu0
    %v11207 = vadd.f32 %v11110, %v11206
    %v11208 = vpop.f32.mrf.mxu0
    %11209 = vmatprep.mubr.bf16.mxu0 %v10533
    %11210 = vmatmul.mubr.bf16.gmra.mxu0 %v10532
    %v11211 = vpop.f32.mrf.mxu0
    %v11212 = vadd.f32 %v11115, %v11211
    %v11213 = vpop.f32.mrf.mxu0
    %v11214 = vpop.f32.mrf.mxu0
    %v11215 = vadd.f32 %v11118, %v11214
    %v11216 = vpop.f32.mrf.mxu0
    %11217 = vmatprep.mubr.bf16.mxu0 %v10541
    %11218 = vmatmul.mubr.bf16.gmra.mxu0 %v10540
    %v11219 = vpop.f32.mrf.mxu0
    %v11220 = vadd.f32 %v11123, %v11219
    %v11221 = vpop.f32.mrf.mxu0
    %v11222 = vpop.f32.mrf.mxu0
    %v11223 = vadd.f32 %v11126, %v11222
    %v11224 = vpop.f32.mrf.mxu0
    %11225 = vmatprep.mubr.bf16.mxu0 %v10549
    %11226 = vmatmul.mubr.bf16.gmra.mxu0 %v10548
    %v11227 = vpop.f32.mrf.mxu0
    %v11228 = vadd.f32 %v11131, %v11227
    %v11229 = vpop.f32.mrf.mxu0
    %v11230 = vpop.f32.mrf.mxu0
    %v11231 = vadd.f32 %v11134, %v11230
    %v11232 = vpop.f32.mrf.mxu0
    %11233 = vdwg.mxu0
    %11234 = vmatprep.subr.bf16.mxu0 0
    %11235 = vmatpush1.bf16.msra.mxu0 %v10870
    %11236 = vmatprep.subr.bf16.mxu0 0
    %11237 = vmatpush1.bf16.msra.mxu0 %v10869
    %11238 = vmatprep.subr.bf16.mxu0 0
    %11239 = vmatpush1.bf16.msra.mxu0 %v10868
    %11240 = vmatprep.subr.bf16.mxu0 0
    %11241 = vmatpush1.bf16.msra.mxu0 %v10867
    %11242 = vmatprep.subr.bf16.mxu0 0
    %11243 = vmatpush1.bf16.msra.mxu0 %v10866
    %11244 = vmatprep.subr.bf16.mxu0 0
    %11245 = vmatpush1.bf16.msra.mxu0 %v10865
    %11246 = vmatprep.subr.bf16.mxu0 0
    %11247 = vmatpush1.bf16.msra.mxu0 %v10864
    %11248 = vmatprep.subr.bf16.mxu0 0
    %11249 = vmatpush1.bf16.msra.mxu0 %v10863
    %11250 = vmatprep.subr.bf16.mxu0 0
    %11251 = vmatpush2.bf16.msra.mxu0 %v10878
    %11252 = vmatprep.subr.bf16.mxu0 0
    %11253 = vmatpush2.bf16.msra.mxu0 %v10877
    %11254 = vmatprep.subr.bf16.mxu0 0
    %11255 = vmatpush2.bf16.msra.mxu0 %v10876
    %11256 = vmatprep.subr.bf16.mxu0 0
    %11257 = vmatpush2.bf16.msra.mxu0 %v10875
    %11258 = vmatprep.subr.bf16.mxu0 0
    %11259 = vmatpush2.bf16.msra.mxu0 %v10874
    %11260 = vmatprep.subr.bf16.mxu0 0
    %11261 = vmatpush2.bf16.msra.mxu0 %v10873
    %11262 = vmatprep.subr.bf16.mxu0 0
    %11263 = vmatpush2.bf16.msra.mxu0 %v10872
    %11264 = vmatprep.subr.bf16.mxu0 0
    %11265 = vmatpush2.bf16.msra.mxu0 %v10871
    %11266 = vmatprep.mubr.bf16.mxu0 %v10495
    %11267 = vmatmul.mubr.bf16.gmra.mxu0 %v10494
    %v11268 = vpop.f32.mrf.mxu0
    %v11269 = vadd.f32 %v11172, %v11268
    %v11270 = vpop.f32.mrf.mxu0
    %v11271 = vpop.f32.mrf.mxu0
    %v11272 = vadd.f32 %v11175, %v11271
    %v11273 = vpop.f32.mrf.mxu0
    %11274 = vmatprep.mubr.bf16.mxu0 %v10503
    %11275 = vmatmul.mubr.bf16.gmra.mxu0 %v10502
    %v11276 = vpop.f32.mrf.mxu0
    %v11277 = vadd.f32 %v11180, %v11276
    %v11278 = vpop.f32.mrf.mxu0
    %v11279 = vpop.f32.mrf.mxu0
    %v11280 = vadd.f32 %v11183, %v11279
    %v11281 = vpop.f32.mrf.mxu0
    %11282 = vmatprep.mubr.bf16.mxu0 %v10511
    %11283 = vmatmul.mubr.bf16.gmra.mxu0 %v10510
    %v11284 = vpop.f32.mrf.mxu0
    %v11285 = vadd.f32 %v11188, %v11284
    %v11286 = vpop.f32.mrf.mxu0
    %v11287 = vpop.f32.mrf.mxu0
    %v11288 = vadd.f32 %v11191, %v11287
    %v11289 = vpop.f32.mrf.mxu0
    %11290 = vmatprep.mubr.bf16.mxu0 %v10519
    %11291 = vmatmul.mubr.bf16.gmra.mxu0 %v10518
    %v11292 = vpop.f32.mrf.mxu0
    %v11293 = vadd.f32 %v11196, %v11292
    %v11294 = vpop.f32.mrf.mxu0
    %v11295 = vpop.f32.mrf.mxu0
    %v11296 = vadd.f32 %v11199, %v11295
    %v11297 = vpop.f32.mrf.mxu0
    %11298 = vmatprep.mubr.bf16.mxu0 %v10527
    %11299 = vmatmul.mubr.bf16.gmra.mxu0 %v10526
    %v11300 = vpop.f32.mrf.mxu0
    %v11301 = vadd.f32 %v11204, %v11300
    %v11302 = vpop.f32.mrf.mxu0
    %v11303 = vpop.f32.mrf.mxu0
    %v11304 = vadd.f32 %v11207, %v11303
    %v11305 = vpop.f32.mrf.mxu0
    %11306 = vmatprep.mubr.bf16.mxu0 %v10535
    %11307 = vmatmul.mubr.bf16.gmra.mxu0 %v10534
    %v11308 = vpop.f32.mrf.mxu0
    %v11309 = vadd.f32 %v11212, %v11308
    %v11310 = vpop.f32.mrf.mxu0
    %v11311 = vpop.f32.mrf.mxu0
    %v11312 = vadd.f32 %v11215, %v11311
    %v11313 = vpop.f32.mrf.mxu0
    %11314 = vmatprep.mubr.bf16.mxu0 %v10543
    %11315 = vmatmul.mubr.bf16.gmra.mxu0 %v10542
    %v11316 = vpop.f32.mrf.mxu0
    %v11317 = vadd.f32 %v11220, %v11316
    %v11318 = vpop.f32.mrf.mxu0
    %v11319 = vpop.f32.mrf.mxu0
    %v11320 = vadd.f32 %v11223, %v11319
    %v11321 = vpop.f32.mrf.mxu0
    %11322 = vmatprep.mubr.bf16.mxu0 %v10551
    %11323 = vmatmul.mubr.bf16.gmra.mxu0 %v10550
    %v11324 = vpop.f32.mrf.mxu0
    %v11325 = vadd.f32 %v11228, %v11324
    %v11326 = vpop.f32.mrf.mxu0
    %v11327 = vpop.f32.mrf.mxu0
    %v11328 = vadd.f32 %v11231, %v11327
    %v11329 = vpop.f32.mrf.mxu0
    %11330 = vdwg.mxu0
    %11331 = vst [vmem:[%s12] sm:$0xff] %v11269
    %11332 = vst [vmem:[%s12 + $0x8] sm:$0xff] %v11272
    %11333 = vst [vmem:[%s12 + $0x10] sm:$0xff] %v11277
    %11334 = vst [vmem:[%s12 + $0x18] sm:$0xff] %v11280
    %11335 = vst [vmem:[%s12 + $0x20] sm:$0xff] %v11285
    %11336 = vst [vmem:[%s12 + $0x28] sm:$0xff] %v11288
    %11337 = vst [vmem:[%s12 + $0x30] sm:$0xff] %v11293
    %11338 = vst [vmem:[%s12 + $0x38] sm:$0xff] %v11296
    %11339 = vst [vmem:[%s12 + $0x40] sm:$0xff] %v11301
    %11340 = vst [vmem:[%s12 + $0x48] sm:$0xff] %v11304
    %11341 = vst [vmem:[%s12 + $0x50] sm:$0xff] %v11309
    %11342 = vst [vmem:[%s12 + $0x58] sm:$0xff] %v11312
    %11343 = vst [vmem:[%s12 + $0x60] sm:$0xff] %v11317
    %11344 = vst [vmem:[%s12 + $0x68] sm:$0xff] %v11320
    %11345 = vst [vmem:[%s12 + $0x70] sm:$0xff] %v11325
    %11346 = vst [vmem:[%s12 + $0x78] sm:$0xff] %v11328
    // Predicated region
    $region90: #{_forward_jit.1} parent=1 // pred_check
      _
    $region91: #{_forward_jit.1} parent=1 // pred_check_branch
      %11348 = sbr.rel (0) target = $region93
    $region92: #{_forward_jit.1} parent=1 // pred_region
      _
    $region93: #{_forward_jit.1} parent=1 // pred_fallthru
      _
    // Predicated region
    $region94: #{_forward_jit.1} parent=1 // pred_check
      _
    $region95: #{_forward_jit.1} parent=1 // pred_check_branch
      %11350 = sbr.rel (0) target = $region97
    $region96: #{_forward_jit.1} parent=1 // pred_region
      _
    $region97: #{_forward_jit.1} parent=1 // pred_fallthru
      _
    %11351 = vsyncpa [#allocation15], 1
  %11352 = vsyncmov [#allocation11]
  %s11353 = vpop.sfrf %11352
  %p11354 = scmp.eq.s32.totalorder %s11353, 0
  %p11355 = pneg %p11354
  %11357 = shalt.err (%p11355)
  %s11358 = scalar_lea.sflag [#allocation11], 1
  %11359 = vsyncmov %s11358
  %s11360 = vpop.sfrf %11359
  %p11361 = scmp.eq.s32.totalorder %s11360, 0
  %p11362 = pneg %p11361
  %11364 = shalt.err (%p11362)
  %s11365 = scalar_lea.sflag [#allocation11], 2
  %11366 = vsyncmov %s11365
  %s11367 = vpop.sfrf %11366
  %p11368 = scmp.eq.s32.totalorder %s11367, 0
  %p11369 = pneg %p11368
  %11371 = shalt.err (%p11369)
  %s11372 = scalar_lea.sflag [#allocation11], 3
  %11373 = vsyncmov %s11372
  %s11374 = vpop.sfrf %11373
  %p11375 = scmp.eq.s32.totalorder %s11374, 0
  %p11376 = pneg %p11375
  %11378 = shalt.err (%p11376)
  %s11379 = scalar_lea.sflag [#allocation11], 4
  %11380 = vsyncmov %s11379
  %s11381 = vpop.sfrf %11380
  %p11382 = scmp.eq.s32.totalorder %s11381, 0
  %p11383 = pneg %p11382
  %11385 = shalt.err (%p11383)
  %s11386 = scalar_lea.sflag [#allocation11], 5
  %11387 = vsyncmov %s11386
  %s11388 = vpop.sfrf %11387
  %p11389 = scmp.eq.s32.totalorder %s11388, 0
  %p11390 = pneg %p11389
  %11392 = shalt.err (%p11390)
  %s11393 = scalar_lea.sflag [#allocation11], 6
  %11394 = vsyncmov %s11393
  %s11395 = vpop.sfrf %11394
  %p11396 = scmp.eq.s32.totalorder %s11395, 0
  %p11397 = pneg %p11396
  %11399 = shalt.err (%p11397)
  %s11400 = scalar_lea.sflag [#allocation11], 7
  %11401 = vsyncmov %s11400
  %s11402 = vpop.sfrf %11401
  %p11403 = scmp.eq.s32.totalorder %s11402, 0
  %p11404 = pneg %p11403
  %11406 = shalt.err (%p11404)
  %s11407 = scalar_lea.sflag [#allocation11], 8
  %11408 = vsyncmov %s11407
  %s11409 = vpop.sfrf %11408
  %p11410 = scmp.eq.s32.totalorder %s11409, 0
  %p11411 = pneg %p11410
  %11413 = shalt.err (%p11411)

</llo_original>
